<compile_context>
chip_gen: v7x
topology: tpu7x:2x2x1
jax: 0.10.0
libtpu: 0.0.40
codegen_flags: <defaults>
</compile_context>

<pallas_src>
import functools
import math

import jax
import jax.numpy as jnp
from jax.experimental import pallas as pl
from jax.experimental.pallas import tpu as pltpu

# ---------------- model hyper-parameters (small, synthetic) ----------------
D_MODEL = 32
N_HEADS = 4
D_HEAD = D_MODEL // N_HEADS
D_FF = 64
N_ENC_LAYERS = 2
N_DEC_LAYERS = 2
SRC_VOCAB = 40     # phoneme vocabulary (encoder input)
VOCAB = 50         # params.vocab_size (word vocabulary, decoder output)
VOCAB_PAD = 128    # lane-dense padded vocab width for the output projection
LN_EPS = 1e-5
NEG_INF = -1e30

SLAB_W = 128       # lane width of both weight slabs
VEC_STRIDE = 8     # each bias/LN vector occupies an 8-sublane-aligned row block


# ---------------------------------------------------------------------------
# Slab layout: (row offset, K, N) for matmul weights, (row index, N) for
# bias / LayerNorm vectors.  Shared by prepare_params (packing) and the
# kernel (static ref slices).
# ---------------------------------------------------------------------------
def _build_layout():
    mat, vec = {}, {}
    moff, vidx = [0], [0]

    def add_m(name, k, n):
        mat[name] = (moff[0], k, n)
        moff[0] += k

    def add_v(name, n):
        vec[name] = (vidx[0], n)
        vidx[0] += 1

    for i in range(N_ENC_LAYERS):
        pre = f"enc{i}"
        add_m(pre + "_self_wqkv", D_MODEL, 3 * D_MODEL)
        add_v(pre + "_self_bqkv", 3 * D_MODEL)
        add_m(pre + "_self_wo", D_MODEL, D_MODEL)
        add_v(pre + "_self_bo", D_MODEL)
        add_v(pre + "_ln1_g", D_MODEL)
        add_v(pre + "_ln1_b", D_MODEL)
        add_m(pre + "_ff1_w", D_MODEL, D_FF)
        add_v(pre + "_ff1_b", D_FF)
        add_m(pre + "_ff2_w", D_FF, D_MODEL)
        add_v(pre + "_ff2_b", D_MODEL)
        add_v(pre + "_ln2_g", D_MODEL)
        add_v(pre + "_ln2_b", D_MODEL)
    add_v("enc_final_ln_g", D_MODEL)
    add_v("enc_final_ln_b", D_MODEL)

    for i in range(N_DEC_LAYERS):
        pre = f"dec{i}"
        add_m(pre + "_self_wqkv", D_MODEL, 3 * D_MODEL)
        add_v(pre + "_self_bqkv", 3 * D_MODEL)
        add_m(pre + "_self_wo", D_MODEL, D_MODEL)
        add_v(pre + "_self_bo", D_MODEL)
        add_v(pre + "_ln1_g", D_MODEL)
        add_v(pre + "_ln1_b", D_MODEL)
        add_m(pre + "_cross_wq", D_MODEL, D_MODEL)
        add_v(pre + "_cross_bq", D_MODEL)
        add_m(pre + "_cross_wkv", D_MODEL, 2 * D_MODEL)
        add_v(pre + "_cross_bkv", 2 * D_MODEL)
        add_m(pre + "_cross_wo", D_MODEL, D_MODEL)
        add_v(pre + "_cross_bo", D_MODEL)
        add_v(pre + "_ln2_g", D_MODEL)
        add_v(pre + "_ln2_b", D_MODEL)
        add_m(pre + "_ff1_w", D_MODEL, D_FF)
        add_v(pre + "_ff1_b", D_FF)
        add_m(pre + "_ff2_w", D_FF, D_MODEL)
        add_v(pre + "_ff2_b", D_MODEL)
        add_v(pre + "_ln3_g", D_MODEL)
        add_v(pre + "_ln3_b", D_MODEL)
    add_v("dec_final_ln_g", D_MODEL)
    add_v("dec_final_ln_b", D_MODEL)

    add_m("out_w", D_MODEL, VOCAB_PAD)
    add_v("out_b", VOCAB_PAD)

    rows = ((moff[0] + 7) // 8) * 8          # sublane-align total rows
    return mat, rows, vec, vidx[0]


MAT_LAYOUT, MAT_ROWS, VEC_LAYOUT, NUM_VECS = _build_layout()


# ========================= in-kernel building blocks ========================

def _vec(bvec_ref, name):
    """Bias / LN vector as a [1, N] f32 row read from the packed slab."""
    idx, n = VEC_LAYOUT[name]
    return bvec_ref[idx * VEC_STRIDE:idx * VEC_STRIDE + 1, :n]


def _linear(x16, wmat_ref, bvec_ref, wname, bname, relu=False):
    """x16:[M,K] bf16 @ slab weight [K,N] bf16 -> f32 [M,N] (+bias, opt. ReLU)."""
    off, k, n = MAT_LAYOUT[wname]
    acc = jnp.dot(x16, wmat_ref[off:off + k, :n],
                  preferred_element_type=jnp.float32)
    acc = acc + _vec(bvec_ref, bname)
    if relu:
        acc = jnp.maximum(acc, 0.0)
    return acc


def _layer_norm(x, g, b):
    """One-pass statistics (E[x^2] - mean^2); x f32, g/b [1,D] f32."""
    mean = jnp.mean(x, axis=-1, keepdims=True)
    msq = jnp.mean(x * x, axis=-1, keepdims=True)
    var = msq - mean * mean
    return (x - mean) * jax.lax.rsqrt(var + LN_EPS) * g + b


def _attn_core(q16, k16, v16, bias):
    """Per-head SDPA; q16:[Tq,D] k16,v16:[Tk,D] bf16, bias:[1,Tk] f32 additive.

    Returns the f32 context [Tq, D] (heads concatenated on contiguous lanes);
    the output projection is applied once by the caller on the batch-stacked
    contexts."""
    scale = 1.0 / math.sqrt(D_HEAD)
    ctxs = []
    for h in range(N_HEADS):                              # unrolled: H=4
        lo = h * D_HEAD
        s = jax.lax.dot_general(q16[:, lo:lo + D_HEAD], k16[:, lo:lo + D_HEAD],
                                (((1,), (1,)), ((), ())),
                                preferred_element_type=jnp.float32)
        s = s * scale + bias
        m = jnp.max(s, axis=-1, keepdims=True)
        p = jnp.exp(s - m)
        denom = jnp.sum(p, axis=-1, keepdims=True)
        p = p * pl.reciprocal(denom, approx=True)         # EUP, off the VPU path
        ctxs.append(jnp.dot(p.astype(jnp.bfloat16), v16[:, lo:lo + D_HEAD],
                            preferred_element_type=jnp.float32))
    return jnp.concatenate(ctxs, axis=-1)                 # [Tq, D_MODEL] f32


def _stack(pieces):
    return pieces[0] if len(pieces) == 1 else jnp.concatenate(pieces, axis=0)


def _encoder_layer(x, ebias, wm, bv, pre, b_step, te):
    """x: [b_step*te, D] f32; ebias: [b_step, 1, te] f32 additive."""
    x16 = x.astype(jnp.bfloat16)
    qkv16 = _linear(x16, wm, bv, pre + "_self_wqkv",
                    pre + "_self_bqkv").astype(jnp.bfloat16)
    ctxs = []
    for bi in range(b_step):                              # unrolled over batch
        r = slice(bi * te, (bi + 1) * te)
        ctxs.append(_attn_core(qkv16[r, :D_MODEL],
                               qkv16[r, D_MODEL:2 * D_MODEL],
                               qkv16[r, 2 * D_MODEL:3 * D_MODEL],
                               ebias[bi]))
    ctx16 = _stack(ctxs).astype(jnp.bfloat16)
    h = _linear(ctx16, wm, bv, pre + "_self_wo", pre + "_self_bo")
    x = _layer_norm(x + h, _vec(bv, pre + "_ln1_g"), _vec(bv, pre + "_ln1_b"))

    x16 = x.astype(jnp.bfloat16)
    h1 = _linear(x16, wm, bv, pre + "_ff1_w", pre + "_ff1_b", relu=True)
    h = _linear(h1.astype(jnp.bfloat16), wm, bv, pre + "_ff2_w", pre + "_ff2_b")
    x = _layer_norm(x + h, _vec(bv, pre + "_ln2_g"), _vec(bv, pre + "_ln2_b"))
    return x


def _decoder_layer(y, eouts16, ebias, ybias, wm, bv, pre, b_step, ty, te):
    """cmlm/bert decoder layer: self-attn (key-pad mask only, no causal mask),
    cross-attn over encoder outputs, FFN; all projections batch-stacked."""
    # --- self-attention ---
    y16 = y.astype(jnp.bfloat16)
    qkv16 = _linear(y16, wm, bv, pre + "_self_wqkv",
                    pre + "_self_bqkv").astype(jnp.bfloat16)
    ctxs = []
    for bi in range(b_step):
        r = slice(bi * ty, (bi + 1) * ty)
        ctxs.append(_attn_core(qkv16[r, :D_MODEL],
                               qkv16[r, D_MODEL:2 * D_MODEL],
                               qkv16[r, 2 * D_MODEL:3 * D_MODEL],
                               ybias[bi]))
    ctx16 = _stack(ctxs).astype(jnp.bfloat16)
    h = _linear(ctx16, wm, bv, pre + "_self_wo", pre + "_self_bo")
    y = _layer_norm(y + h, _vec(bv, pre + "_ln1_g"), _vec(bv, pre + "_ln1_b"))

    # --- cross-attention (encoder key-padding mask) ---
    y16 = y.astype(jnp.bfloat16)
    q16 = _linear(y16, wm, bv, pre + "_cross_wq",
                  pre + "_cross_bq").astype(jnp.bfloat16)
    kv16 = _linear(eouts16, wm, bv, pre + "_cross_wkv",
                   pre + "_cross_bkv").astype(jnp.bfloat16)
    ctxs = []
    for bi in range(b_step):
        rq = slice(bi * ty, (bi + 1) * ty)
        rk = slice(bi * te, (bi + 1) * te)
        ctxs.append(_attn_core(q16[rq], kv16[rk, :D_MODEL],
                               kv16[rk, D_MODEL:2 * D_MODEL], ebias[bi]))
    ctx16 = _stack(ctxs).astype(jnp.bfloat16)
    h = _linear(ctx16, wm, bv, pre + "_cross_wo", pre + "_cross_bo")
    y = _layer_norm(y + h, _vec(bv, pre + "_ln2_g"), _vec(bv, pre + "_ln2_b"))

    # --- position-wise FFN ---
    y16 = y.astype(jnp.bfloat16)
    h1 = _linear(y16, wm, bv, pre + "_ff1_w", pre + "_ff1_b", relu=True)
    h = _linear(h1.astype(jnp.bfloat16), wm, bv, pre + "_ff2_w", pre + "_ff2_b")
    y = _layer_norm(y + h, _vec(bv, pre + "_ln3_g"), _vec(bv, pre + "_ln3_b"))
    return y


# =========================== fused forward kernel ===========================

def _p2w_kernel(b_step, te, ty,
                x_enc_ref, x_dec_ref, ebias_ref, ybias_ref,
                wm_ref, bv_ref, o_ref):
    """One grid step = b_step batch elements: full encoder + decoder + logits."""
    ebias = ebias_ref[...]                    # [b_step, 1, te] additive key bias
    ybias = ybias_ref[...]                    # [b_step, 1, ty]

    # ------------------------------ encoder --------------------------------
    x = x_enc_ref[...]                        # [b_step*te, D] f32
    for i in range(N_ENC_LAYERS):
        x = _encoder_layer(x, ebias, wm_ref, bv_ref, f"enc{i}", b_step, te)
    eouts = _layer_norm(x, _vec(bv_ref, "enc_final_ln_g"),
                        _vec(bv_ref, "enc_final_ln_b"))
    eouts16 = eouts.astype(jnp.bfloat16)      # cast once; reused by all x-attn

    # --------------------- decoder (cmlm/bert: no causal mask) -------------
    y = x_dec_ref[...]                        # [b_step*ty, D] f32
    for i in range(N_DEC_LAYERS):
        y = _decoder_layer(y, eouts16, ebias, ybias, wm_ref, bv_ref,
                           f"dec{i}", b_step, ty, te)
    y = _layer_norm(y, _vec(bv_ref, "dec_final_ln_g"),
                    _vec(bv_ref, "dec_final_ln_b"))

    # lane-dense (128-wide) vocab projection; sliced back to VOCAB in wrapper.
    logits = _linear(y.astype(jnp.bfloat16), wm_ref, bv_ref, "out_w", "out_b")
    o_ref[...] = logits.astype(o_ref.dtype)


# ============================ model glue ====================================

def sinusoidal_pe(T, D):
    pos = jnp.arange(T, dtype=jnp.float32)[:, None]
    i = jnp.arange(0, D, 2, dtype=jnp.float32)
    div = jnp.exp(-math.log(10000.0) * i / D)
    pe = jnp.zeros((T, D), jnp.float32)
    pe = pe.at[:, 0::2].set(jnp.sin(pos * div))
    pe = pe.at[:, 1::2].set(jnp.cos(pos * div))
    return pe


def p2w_forward(prepped, ps, plens, ys, ylens, *, batch_blocks=None):
    """P2W.forward with lm_type='pbert' (decoder_type='bert'), labels=None -> logits.

    ps[:, :max(plens)] / ys[:, :max(ylens)] slicing is a no-op under static JAX
    shapes; padding is handled by the in-kernel additive key-padding biases.
    """
    B, Te = ps.shape
    Ty = ys.shape[1]

    if batch_blocks is None:
        # Default: 2-way parallel grid so both v7x TensorCores get work.
        # On single-TC v5e/v6e, pass batch_blocks=1 to collapse the grid and
        # stack the whole batch into the matmul M dimension.
        batch_blocks = 2 if (B % 2 == 0 and B >= 2) else 1
    assert B % batch_blocks == 0
    b_step = B // batch_blocks

    # --- glue (tiny XLA ops, constant-folded PE): embeddings, PE, pad biases ---
    x_enc = jnp.take(prepped["src_emb"], ps, axis=0) * math.sqrt(D_MODEL)
    x_enc = (x_enc + sinusoidal_pe(Te, D_MODEL)[None]).reshape(B * Te, D_MODEL)
    x_dec = jnp.take(prepped["tgt_emb"], ys, axis=0) * math.sqrt(D_MODEL)
    x_dec = (x_dec + sinusoidal_pe(Ty, D_MODEL)[None]).reshape(B * Ty, D_MODEL)

    # Additive key-padding biases, hoisted out of the kernel entirely.
    ebias = jnp.where(jnp.arange(Te)[None, :] < plens[:, None],
                      0.0, NEG_INF).astype(jnp.float32)[:, None, :]
    ybias = jnp.where(jnp.arange(Ty)[None, :] < ylens[:, None],
                      0.0, NEG_INF).astype(jnp.float32)[:, None, :]

    wmat, bvec = prepped["wmat"], prepped["bvec"]
    kernel = functools.partial(_p2w_kernel, b_step, Te, Ty)

    logits_flat = pl.pallas_call(
        kernel,
        out_shape=jax.ShapeDtypeStruct((B * Ty, VOCAB_PAD), jnp.float32),
        grid=(batch_blocks,),
        in_specs=[
            pl.BlockSpec((b_step * Te, D_MODEL), lambda g: (g, 0)),   # x_enc rows
            pl.BlockSpec((b_step * Ty, D_MODEL), lambda g: (g, 0)),   # x_dec rows
            pl.BlockSpec((b_step, 1, Te), lambda g: (g, 0, 0)),       # enc key bias
            pl.BlockSpec((b_step, 1, Ty), lambda g: (g, 0, 0)),       # dec key bias
            pl.BlockSpec(wmat.shape, lambda g: (0, 0)),               # weight slab
            pl.BlockSpec(bvec.shape, lambda g: (0, 0)),               # bias/LN slab
        ],
        out_specs=pl.BlockSpec((b_step * Ty, VOCAB_PAD), lambda g: (g, 0)),
        compiler_params=pltpu.CompilerParams(
            dimension_semantics=("parallel",)),
    )(x_enc, x_dec, ebias, ybias, wmat, bvec)

    # Keep reference semantics: [B, Ty, vocab_size].  (If the consumer can use
    # the 128-wide padded logits directly, drop this slice.)
    return logits_flat.reshape(B, Ty, VOCAB_PAD)[:, :, :VOCAB]


# ============================ parameter init ================================

def init_params(key):
    p = {}
    keys = iter(jax.random.split(key, 512))

    def nrm(shape, scale=0.02):
        return scale * jax.random.normal(next(keys), shape, dtype=jnp.float32)

    def add_mha(prefix):
        for n in ("wq", "wk", "wv", "wo"):
            p[f"{prefix}_{n}"] = nrm((D_MODEL, D_MODEL))
        for n in ("bq", "bk", "bv", "bo"):
            p[f"{prefix}_{n}"] = jnp.zeros((D_MODEL,), jnp.float32)

    def add_ln(prefix):
        p[f"{prefix}_g"] = jnp.ones((D_MODEL,), jnp.float32)
        p[f"{prefix}_b"] = jnp.zeros((D_MODEL,), jnp.float32)

    def add_ffn(prefix):
        p[f"{prefix}_ff1_w"] = nrm((D_MODEL, D_FF))
        p[f"{prefix}_ff1_b"] = jnp.zeros((D_FF,), jnp.float32)
        p[f"{prefix}_ff2_w"] = nrm((D_FF, D_MODEL))
        p[f"{prefix}_ff2_b"] = jnp.zeros((D_MODEL,), jnp.float32)

    p["src_emb"] = nrm((SRC_VOCAB, D_MODEL), scale=1.0 / math.sqrt(D_MODEL))
    p["tgt_emb"] = nrm((VOCAB, D_MODEL), scale=1.0 / math.sqrt(D_MODEL))

    for i in range(N_ENC_LAYERS):
        add_mha(f"enc{i}_self")
        add_ln(f"enc{i}_ln1")
        add_ffn(f"enc{i}")
        add_ln(f"enc{i}_ln2")
    add_ln("enc_final_ln")

    for i in range(N_DEC_LAYERS):
        add_mha(f"dec{i}_self")
        add_ln(f"dec{i}_ln1")
        add_mha(f"dec{i}_cross")
        add_ln(f"dec{i}_ln2")
        add_ffn(f"dec{i}")
        add_ln(f"dec{i}_ln3")
    add_ln("dec_final_ln")

    p["out_w"] = nrm((D_MODEL, VOCAB))
    p["out_b"] = jnp.zeros((VOCAB,), jnp.float32)
    return p


def prepare_params(p):
    """One-time weight prep: fuse QKV / KV, then pack everything into two
    contiguous slabs (wmat bf16 for matmul weights, bvec f32 for biases and
    LayerNorm vectors) laid out per MAT_LAYOUT / VEC_LAYOUT.  The embedding
    tables stay separate (used only in the XLA wrapper)."""
    mats, vecs = {}, {}

    def put_m(name, arr):
        mats[name] = jnp.asarray(arr, jnp.float32)

    def put_v(name, arr):
        vecs[name] = jnp.asarray(arr, jnp.float32).reshape(1, -1)

    def pack_mha(dst, src, cross=False):
        if cross:
            put_m(dst + "_wq", p[src + "_wq"])
            put_v(dst + "_bq", p[src + "_bq"])
            put_m(dst + "_wkv", jnp.concatenate([p[src + "_wk"], p[src + "_wv"]], axis=1))
            put_v(dst + "_bkv", jnp.concatenate([p[src + "_bk"], p[src + "_bv"]]))
        else:
            put_m(dst + "_wqkv", jnp.concatenate(
                [p[src + "_wq"], p[src + "_wk"], p[src + "_wv"]], axis=1))
            put_v(dst + "_bqkv", jnp.concatenate(
                [p[src + "_bq"], p[src + "_bk"], p[src + "_bv"]]))
        put_m(dst + "_wo", p[src + "_wo"])
        put_v(dst + "_bo", p[src + "_bo"])

    def pack_ln(name):
        put_v(name + "_g", p[name + "_g"])
        put_v(name + "_b", p[name + "_b"])

    def pack_ffn(pre):
        put_m(pre + "_ff1_w", p[pre + "_ff1_w"])
        put_v(pre + "_ff1_b", p[pre + "_ff1_b"])
        put_m(pre + "_ff2_w", p[pre + "_ff2_w"])
        put_v(pre + "_ff2_b", p[pre + "_ff2_b"])

    for i in range(N_ENC_LAYERS):
        pre = f"enc{i}"
        pack_mha(pre + "_self", pre + "_self")
        pack_ln(pre + "_ln1")
        pack_ffn(pre)
        pack_ln(pre + "_ln2")
    pack_ln("enc_final_ln")

    for i in range(N_DEC_LAYERS):
        pre = f"dec{i}"
        pack_mha(pre + "_self", pre + "_self")
        pack_ln(pre + "_ln1")
        pack_mha(pre + "_cross", pre + "_cross", cross=True)
        pack_ln(pre + "_ln2")
        pack_ffn(pre)
        pack_ln(pre + "_ln3")
    pack_ln("dec_final_ln")

    put_m("out_w", p["out_w"])          # [D, VOCAB] -> zero-padded to 128 lanes
    put_v("out_b", p["out_b"])

    wmat = jnp.zeros((MAT_ROWS, SLAB_W), jnp.float32)
    for name, (off, _k, _n) in MAT_LAYOUT.items():
        arr = mats[name]
        wmat = wmat.at[off:off + arr.shape[0], :arr.shape[1]].set(arr)

    bvec = jnp.zeros((NUM_VECS * VEC_STRIDE, SLAB_W), jnp.float32)
    for name, (idx, _n) in VEC_LAYOUT.items():
        arr = vecs[name]
        bvec = bvec.at[idx * VEC_STRIDE:idx * VEC_STRIDE + 1, :arr.shape[1]].set(arr)

    return {"wmat": wmat.astype(jnp.bfloat16), "bvec": bvec,
            "src_emb": jnp.asarray(p["src_emb"], jnp.float32),
            "tgt_emb": jnp.asarray(p["tgt_emb"], jnp.float32)}


# ================================ main ======================================

if __name__ == "__main__":
    key = jax.random.PRNGKey(0)
    kp, ky, kparam = jax.random.split(key, 3)

    B, P_LEN, Y_LEN = 2, 16, 8
    ps = jax.random.randint(kp, (B, P_LEN), 0, SRC_VOCAB, dtype=jnp.int32)
    plens = jnp.array([P_LEN, 12], dtype=jnp.int32)
    ys = jax.random.randint(ky, (B, Y_LEN), 0, VOCAB, dtype=jnp.int32)
    ylens = jnp.array([Y_LEN, 6], dtype=jnp.int32)

    params = init_params(kparam)
    prepped = prepare_params(params)

    fwd = jax.jit(p2w_forward, static_argnames=("batch_blocks",))
    logits = fwd(prepped, ps, plens, ys, ylens)
    logits = jax.block_until_ready(logits)

    assert logits.shape == (B, Y_LEN, VOCAB), logits.shape
    assert bool(jnp.all(jnp.isfinite(logits)))
    print("KERNEL_OK")
</pallas_src>

<mosaic_0001>
module attributes {stable_mosaic.version = 11 : i64} {
  func.func @_p2w_kernel(%arg0: i32, %arg1: memref<16x32xf32, #tpu.memory_space<vmem>>, %arg2: memref<8x32xf32, #tpu.memory_space<vmem>>, %arg3: memref<1x1x16xf32, #tpu.memory_space<vmem>>, %arg4: memref<1x1x8xf32, #tpu.memory_space<vmem>>, %arg5: memref<864x128xbf16, #tpu.memory_space<vmem>>, %arg6: memref<376x128xf32, #tpu.memory_space<vmem>>, %arg7: memref<8x128xf32, #tpu.memory_space<vmem>>) attributes {dimension_semantics = [#tpu.dimension_semantics<parallel>], iteration_bounds = array<i64: 2>, scalar_prefetch = 0 : i64, scratch_operands = 0 : i64, tpu.core_type = #tpu.core_type<tc>, window_params = [{transform_indices = @transform_0, window_bounds = array<i64: 16, 32>}, {transform_indices = @transform_1, window_bounds = array<i64: 8, 32>}, {transform_indices = @transform_2, window_bounds = array<i64: 1, 1, 16>}, {transform_indices = @transform_3, window_bounds = array<i64: 1, 1, 8>}, {pipeline_mode = #tpu.pipeline_mode<synchronous>, transform_indices = @transform_4, window_bounds = array<i64: 864, 128>}, {pipeline_mode = #tpu.pipeline_mode<synchronous>, transform_indices = @transform_5, window_bounds = array<i64: 376, 128>}, {transform_indices = @transform_6, window_bounds = array<i64: 8, 128>}]} {
    %c0 = arith.constant 0 : index
    %c0_0 = arith.constant 0 : index
    %c0_1 = arith.constant 0 : index
    %0 = vector.load %arg3[%c0, %c0_0, %c0_1] : memref<1x1x16xf32, #tpu.memory_space<vmem>>, vector<1x1x16xf32>
    %c0_2 = arith.constant 0 : index
    %c0_3 = arith.constant 0 : index
    %c0_4 = arith.constant 0 : index
    %1 = vector.load %arg4[%c0_2, %c0_3, %c0_4] : memref<1x1x8xf32, #tpu.memory_space<vmem>>, vector<1x1x8xf32>
    %c0_5 = arith.constant 0 : index
    %c0_6 = arith.constant 0 : index
    %2 = vector.load %arg1[%c0_5, %c0_6] : memref<16x32xf32, #tpu.memory_space<vmem>>, vector<16x32xf32>
    %3 = arith.truncf %2 : vector<16x32xf32> to vector<16x32xbf16>
    %c0_7 = arith.constant 0 : index
    %c0_8 = arith.constant 0 : index
    %4 = vector.load %arg5[%c0_7, %c0_8] : memref<864x128xbf16, #tpu.memory_space<vmem>>, vector<32x96xbf16>
    %cst = arith.constant dense<0.000000e+00> : vector<16x96xf32>
    %5 = tpu.matmul %3, %4, %cst {dimension_numbers = #tpu.dot_dimension_numbers<[1], [0], [0], [1], [0, 0, 1, 1], [], []>} : vector<16x32xbf16>, vector<32x96xbf16>, vector<16x96xf32> -> vector<16x96xf32>
    %c0_9 = arith.constant 0 : index
    %c0_10 = arith.constant 0 : index
    %6 = vector.load %arg6[%c0_9, %c0_10] : memref<376x128xf32, #tpu.memory_space<vmem>>, vector<1x96xf32>
    %7 = vector.broadcast %6 : vector<1x96xf32> to vector<16x96xf32>
    %8 = arith.addf %5, %7 : vector<16x96xf32>
    %9 = arith.truncf %8 : vector<16x96xf32> to vector<16x96xbf16>
    %10 = vector.extract_strided_slice %9 {offsets = [0, 0], sizes = [16, 32], strides = [1, 1]} : vector<16x96xbf16> to vector<16x32xbf16>
    %11 = vector.extract_strided_slice %9 {offsets = [0, 32], sizes = [16, 32], strides = [1, 1]} : vector<16x96xbf16> to vector<16x32xbf16>
    %12 = vector.extract_strided_slice %9 {offsets = [0, 64], sizes = [16, 32], strides = [1, 1]} : vector<16x96xbf16> to vector<16x32xbf16>
    %13 = vector.shape_cast %0 : vector<1x1x16xf32> to vector<1x16xf32>
    %14 = vector.extract_strided_slice %10 {offsets = [0, 0], sizes = [16, 8], strides = [1, 1]} : vector<16x32xbf16> to vector<16x8xbf16>
    %15 = vector.extract_strided_slice %11 {offsets = [0, 0], sizes = [16, 8], strides = [1, 1]} : vector<16x32xbf16> to vector<16x8xbf16>
    %cst_11 = arith.constant dense<0.000000e+00> : vector<16x16xf32>
    %16 = tpu.matmul %14, %15, %cst_11 {dimension_numbers = #tpu.dot_dimension_numbers<[1], [1], [0], [0], [0, 0, 1, 0], [], []>} : vector<16x8xbf16>, vector<16x8xbf16>, vector<16x16xf32> -> vector<16x16xf32>
    %cst_12 = arith.constant 0.353553385 : f32
    %17 = vector.broadcast %cst_12 : f32 to vector<16x16xf32>
    %18 = arith.mulf %16, %17 : vector<16x16xf32>
    %19 = vector.broadcast %13 : vector<1x16xf32> to vector<16x16xf32>
    %20 = arith.addf %18, %19 : vector<16x16xf32>
    %cst_13 = arith.constant dense<0xFF800000> : vector<16xf32>
    %21 = vector.multi_reduction <maximumf>, %20, %cst_13 [1] : vector<16x16xf32> to vector<16xf32>
    %22 = vector.shape_cast %21 : vector<16xf32> to vector<16x1xf32>
    %23 = vector.broadcast %22 : vector<16x1xf32> to vector<16x16xf32>
    %24 = arith.subf %20, %23 : vector<16x16xf32>
    %25 = math.exp %24 : vector<16x16xf32>
    %cst_14 = arith.constant dense<0.000000e+00> : vector<16xf32>
    %26 = vector.multi_reduction <add>, %25, %cst_14 [1] : vector<16x16xf32> to vector<16xf32>
    %27 = vector.shape_cast %26 : vector<16xf32> to vector<16x1xf32>
    %28 = tpu.reciprocal %27 {approx = true} : vector<16x1xf32> -> vector<16x1xf32>
    %29 = vector.broadcast %28 : vector<16x1xf32> to vector<16x16xf32>
    %30 = arith.mulf %25, %29 : vector<16x16xf32>
    %31 = arith.truncf %30 : vector<16x16xf32> to vector<16x16xbf16>
    %32 = vector.extract_strided_slice %12 {offsets = [0, 0], sizes = [16, 8], strides = [1, 1]} : vector<16x32xbf16> to vector<16x8xbf16>
    %cst_15 = arith.constant dense<0.000000e+00> : vector<16x8xf32>
    %33 = tpu.matmul %31, %32, %cst_15 {dimension_numbers = #tpu.dot_dimension_numbers<[1], [0], [0], [1], [0, 0, 1, 1], [], []>} : vector<16x16xbf16>, vector<16x8xbf16>, vector<16x8xf32> -> vector<16x8xf32>
    %34 = vector.extract_strided_slice %10 {offsets = [0, 8], sizes = [16, 8], strides = [1, 1]} : vector<16x32xbf16> to vector<16x8xbf16>
    %35 = vector.extract_strided_slice %11 {offsets = [0, 8], sizes = [16, 8], strides = [1, 1]} : vector<16x32xbf16> to vector<16x8xbf16>
    %cst_16 = arith.constant dense<0.000000e+00> : vector<16x16xf32>
    %36 = tpu.matmul %34, %35, %cst_16 {dimension_numbers = #tpu.dot_dimension_numbers<[1], [1], [0], [0], [0, 0, 1, 0], [], []>} : vector<16x8xbf16>, vector<16x8xbf16>, vector<16x16xf32> -> vector<16x16xf32>
    %cst_17 = arith.constant 0.353553385 : f32
    %37 = vector.broadcast %cst_17 : f32 to vector<16x16xf32>
    %38 = arith.mulf %36, %37 : vector<16x16xf32>
    %39 = vector.broadcast %13 : vector<1x16xf32> to vector<16x16xf32>
    %40 = arith.addf %38, %39 : vector<16x16xf32>
    %cst_18 = arith.constant dense<0xFF800000> : vector<16xf32>
    %41 = vector.multi_reduction <maximumf>, %40, %cst_18 [1] : vector<16x16xf32> to vector<16xf32>
    %42 = vector.shape_cast %41 : vector<16xf32> to vector<16x1xf32>
    %43 = vector.broadcast %42 : vector<16x1xf32> to vector<16x16xf32>
    %44 = arith.subf %40, %43 : vector<16x16xf32>
    %45 = math.exp %44 : vector<16x16xf32>
    %cst_19 = arith.constant dense<0.000000e+00> : vector<16xf32>
    %46 = vector.multi_reduction <add>, %45, %cst_19 [1] : vector<16x16xf32> to vector<16xf32>
    %47 = vector.shape_cast %46 : vector<16xf32> to vector<16x1xf32>
    %48 = tpu.reciprocal %47 {approx = true} : vector<16x1xf32> -> vector<16x1xf32>
    %49 = vector.broadcast %48 : vector<16x1xf32> to vector<16x16xf32>
    %50 = arith.mulf %45, %49 : vector<16x16xf32>
    %51 = arith.truncf %50 : vector<16x16xf32> to vector<16x16xbf16>
    %52 = vector.extract_strided_slice %12 {offsets = [0, 8], sizes = [16, 8], strides = [1, 1]} : vector<16x32xbf16> to vector<16x8xbf16>
    %cst_20 = arith.constant dense<0.000000e+00> : vector<16x8xf32>
    %53 = tpu.matmul %51, %52, %cst_20 {dimension_numbers = #tpu.dot_dimension_numbers<[1], [0], [0], [1], [0, 0, 1, 1], [], []>} : vector<16x16xbf16>, vector<16x8xbf16>, vector<16x8xf32> -> vector<16x8xf32>
    %54 = vector.extract_strided_slice %10 {offsets = [0, 16], sizes = [16, 8], strides = [1, 1]} : vector<16x32xbf16> to vector<16x8xbf16>
    %55 = vector.extract_strided_slice %11 {offsets = [0, 16], sizes = [16, 8], strides = [1, 1]} : vector<16x32xbf16> to vector<16x8xbf16>
    %cst_21 = arith.constant dense<0.000000e+00> : vector<16x16xf32>
    %56 = tpu.matmul %54, %55, %cst_21 {dimension_numbers = #tpu.dot_dimension_numbers<[1], [1], [0], [0], [0, 0, 1, 0], [], []>} : vector<16x8xbf16>, vector<16x8xbf16>, vector<16x16xf32> -> vector<16x16xf32>
    %cst_22 = arith.constant 0.353553385 : f32
    %57 = vector.broadcast %cst_22 : f32 to vector<16x16xf32>
    %58 = arith.mulf %56, %57 : vector<16x16xf32>
    %59 = vector.broadcast %13 : vector<1x16xf32> to vector<16x16xf32>
    %60 = arith.addf %58, %59 : vector<16x16xf32>
    %cst_23 = arith.constant dense<0xFF800000> : vector<16xf32>
    %61 = vector.multi_reduction <maximumf>, %60, %cst_23 [1] : vector<16x16xf32> to vector<16xf32>
    %62 = vector.shape_cast %61 : vector<16xf32> to vector<16x1xf32>
    %63 = vector.broadcast %62 : vector<16x1xf32> to vector<16x16xf32>
    %64 = arith.subf %60, %63 : vector<16x16xf32>
    %65 = math.exp %64 : vector<16x16xf32>
    %cst_24 = arith.constant dense<0.000000e+00> : vector<16xf32>
    %66 = vector.multi_reduction <add>, %65, %cst_24 [1] : vector<16x16xf32> to vector<16xf32>
    %67 = vector.shape_cast %66 : vector<16xf32> to vector<16x1xf32>
    %68 = tpu.reciprocal %67 {approx = true} : vector<16x1xf32> -> vector<16x1xf32>
    %69 = vector.broadcast %68 : vector<16x1xf32> to vector<16x16xf32>
    %70 = arith.mulf %65, %69 : vector<16x16xf32>
    %71 = arith.truncf %70 : vector<16x16xf32> to vector<16x16xbf16>
    %72 = vector.extract_strided_slice %12 {offsets = [0, 16], sizes = [16, 8], strides = [1, 1]} : vector<16x32xbf16> to vector<16x8xbf16>
    %cst_25 = arith.constant dense<0.000000e+00> : vector<16x8xf32>
    %73 = tpu.matmul %71, %72, %cst_25 {dimension_numbers = #tpu.dot_dimension_numbers<[1], [0], [0], [1], [0, 0, 1, 1], [], []>} : vector<16x16xbf16>, vector<16x8xbf16>, vector<16x8xf32> -> vector<16x8xf32>
    %74 = vector.extract_strided_slice %10 {offsets = [0, 24], sizes = [16, 8], strides = [1, 1]} : vector<16x32xbf16> to vector<16x8xbf16>
    %75 = vector.extract_strided_slice %11 {offsets = [0, 24], sizes = [16, 8], strides = [1, 1]} : vector<16x32xbf16> to vector<16x8xbf16>
    %cst_26 = arith.constant dense<0.000000e+00> : vector<16x16xf32>
    %76 = tpu.matmul %74, %75, %cst_26 {dimension_numbers = #tpu.dot_dimension_numbers<[1], [1], [0], [0], [0, 0, 1, 0], [], []>} : vector<16x8xbf16>, vector<16x8xbf16>, vector<16x16xf32> -> vector<16x16xf32>
    %cst_27 = arith.constant 0.353553385 : f32
    %77 = vector.broadcast %cst_27 : f32 to vector<16x16xf32>
    %78 = arith.mulf %76, %77 : vector<16x16xf32>
    %79 = vector.broadcast %13 : vector<1x16xf32> to vector<16x16xf32>
    %80 = arith.addf %78, %79 : vector<16x16xf32>
    %cst_28 = arith.constant dense<0xFF800000> : vector<16xf32>
    %81 = vector.multi_reduction <maximumf>, %80, %cst_28 [1] : vector<16x16xf32> to vector<16xf32>
    %82 = vector.shape_cast %81 : vector<16xf32> to vector<16x1xf32>
    %83 = vector.broadcast %82 : vector<16x1xf32> to vector<16x16xf32>
    %84 = arith.subf %80, %83 : vector<16x16xf32>
    %85 = math.exp %84 : vector<16x16xf32>
    %cst_29 = arith.constant dense<0.000000e+00> : vector<16xf32>
    %86 = vector.multi_reduction <add>, %85, %cst_29 [1] : vector<16x16xf32> to vector<16xf32>
    %87 = vector.shape_cast %86 : vector<16xf32> to vector<16x1xf32>
    %88 = tpu.reciprocal %87 {approx = true} : vector<16x1xf32> -> vector<16x1xf32>
    %89 = vector.broadcast %88 : vector<16x1xf32> to vector<16x16xf32>
    %90 = arith.mulf %85, %89 : vector<16x16xf32>
    %91 = arith.truncf %90 : vector<16x16xf32> to vector<16x16xbf16>
    %92 = vector.extract_strided_slice %12 {offsets = [0, 24], sizes = [16, 8], strides = [1, 1]} : vector<16x32xbf16> to vector<16x8xbf16>
    %cst_30 = arith.constant dense<0.000000e+00> : vector<16x8xf32>
    %93 = tpu.matmul %91, %92, %cst_30 {dimension_numbers = #tpu.dot_dimension_numbers<[1], [0], [0], [1], [0, 0, 1, 1], [], []>} : vector<16x16xbf16>, vector<16x8xbf16>, vector<16x8xf32> -> vector<16x8xf32>
    %94 = tpu.concatenate %33, %53, %73, %93 in 1 : vector<16x8xf32>, vector<16x8xf32>, vector<16x8xf32>, vector<16x8xf32> -> vector<16x32xf32>
    %95 = arith.truncf %94 : vector<16x32xf32> to vector<16x32xbf16>
    %c32 = arith.constant 32 : index
    %c0_31 = arith.constant 0 : index
    %96 = vector.load %arg5[%c32, %c0_31] : memref<864x128xbf16, #tpu.memory_space<vmem>>, vector<32x32xbf16>
    %cst_32 = arith.constant dense<0.000000e+00> : vector<16x32xf32>
    %97 = tpu.matmul %95, %96, %cst_32 {dimension_numbers = #tpu.dot_dimension_numbers<[1], [0], [0], [1], [0, 0, 1, 1], [], []>} : vector<16x32xbf16>, vector<32x32xbf16>, vector<16x32xf32> -> vector<16x32xf32>
    %c8 = arith.constant 8 : index
    %c0_33 = arith.constant 0 : index
    %98 = vector.load %arg6[%c8, %c0_33] : memref<376x128xf32, #tpu.memory_space<vmem>>, vector<1x32xf32>
    %99 = vector.broadcast %98 : vector<1x32xf32> to vector<16x32xf32>
    %100 = arith.addf %97, %99 : vector<16x32xf32>
    %101 = arith.addf %2, %100 : vector<16x32xf32>
    %c16 = arith.constant 16 : index
    %c0_34 = arith.constant 0 : index
    %102 = vector.load %arg6[%c16, %c0_34] : memref<376x128xf32, #tpu.memory_space<vmem>>, vector<1x32xf32>
    %c24 = arith.constant 24 : index
    %c0_35 = arith.constant 0 : index
    %103 = vector.load %arg6[%c24, %c0_35] : memref<376x128xf32, #tpu.memory_space<vmem>>, vector<1x32xf32>
    %cst_36 = arith.constant dense<0.000000e+00> : vector<16xf32>
    %104 = vector.multi_reduction <add>, %101, %cst_36 [1] : vector<16x32xf32> to vector<16xf32>
    %105 = vector.shape_cast %104 : vector<16xf32> to vector<16x1xf32>
    %cst_37 = arith.constant 3.200000e+01 : f32
    %106 = vector.broadcast %cst_37 : f32 to vector<16x1xf32>
    %107 = arith.divf %105, %106 : vector<16x1xf32>
    %108 = arith.mulf %101, %101 : vector<16x32xf32>
    %cst_38 = arith.constant dense<0.000000e+00> : vector<16xf32>
    %109 = vector.multi_reduction <add>, %108, %cst_38 [1] : vector<16x32xf32> to vector<16xf32>
    %110 = vector.shape_cast %109 : vector<16xf32> to vector<16x1xf32>
    %cst_39 = arith.constant 3.200000e+01 : f32
    %111 = vector.broadcast %cst_39 : f32 to vector<16x1xf32>
    %112 = arith.divf %110, %111 : vector<16x1xf32>
    %113 = arith.mulf %107, %107 : vector<16x1xf32>
    %114 = arith.subf %112, %113 : vector<16x1xf32>
    %115 = vector.broadcast %107 : vector<16x1xf32> to vector<16x32xf32>
    %116 = arith.subf %101, %115 : vector<16x32xf32>
    %cst_40 = arith.constant 9.99999974E-6 : f32
    %117 = vector.broadcast %cst_40 : f32 to vector<16x1xf32>
    %118 = arith.addf %114, %117 : vector<16x1xf32>
    %119 = math.rsqrt %118 : vector<16x1xf32>
    %120 = vector.broadcast %119 : vector<16x1xf32> to vector<16x32xf32>
    %121 = arith.mulf %116, %120 : vector<16x32xf32>
    %122 = vector.broadcast %102 : vector<1x32xf32> to vector<16x32xf32>
    %123 = arith.mulf %121, %122 : vector<16x32xf32>
    %124 = vector.broadcast %103 : vector<1x32xf32> to vector<16x32xf32>
    %125 = arith.addf %123, %124 : vector<16x32xf32>
    %126 = arith.truncf %125 : vector<16x32xf32> to vector<16x32xbf16>
    %c64 = arith.constant 64 : index
    %c0_41 = arith.constant 0 : index
    %127 = vector.load %arg5[%c64, %c0_41] : memref<864x128xbf16, #tpu.memory_space<vmem>>, vector<32x64xbf16>
    %cst_42 = arith.constant dense<0.000000e+00> : vector<16x64xf32>
    %128 = tpu.matmul %126, %127, %cst_42 {dimension_numbers = #tpu.dot_dimension_numbers<[1], [0], [0], [1], [0, 0, 1, 1], [], []>} : vector<16x32xbf16>, vector<32x64xbf16>, vector<16x64xf32> -> vector<16x64xf32>
    %c32_43 = arith.constant 32 : index
    %c0_44 = arith.constant 0 : index
    %129 = vector.load %arg6[%c32_43, %c0_44] : memref<376x128xf32, #tpu.memory_space<vmem>>, vector<1x64xf32>
    %130 = vector.broadcast %129 : vector<1x64xf32> to vector<16x64xf32>
    %131 = arith.addf %128, %130 : vector<16x64xf32>
    %cst_45 = arith.constant 0.000000e+00 : f32
    %132 = vector.broadcast %cst_45 : f32 to vector<16x64xf32>
    %133 = arith.maximumf %131, %132 : vector<16x64xf32>
    %134 = arith.truncf %133 : vector<16x64xf32> to vector<16x64xbf16>
    %c96 = arith.constant 96 : index
    %c0_46 = arith.constant 0 : index
    %135 = vector.load %arg5[%c96, %c0_46] : memref<864x128xbf16, #tpu.memory_space<vmem>>, vector<64x32xbf16>
    %cst_47 = arith.constant dense<0.000000e+00> : vector<16x32xf32>
    %136 = tpu.matmul %134, %135, %cst_47 {dimension_numbers = #tpu.dot_dimension_numbers<[1], [0], [0], [1], [0, 0, 1, 1], [], []>} : vector<16x64xbf16>, vector<64x32xbf16>, vector<16x32xf32> -> vector<16x32xf32>
    %c40 = arith.constant 40 : index
    %c0_48 = arith.constant 0 : index
    %137 = vector.load %arg6[%c40, %c0_48] : memref<376x128xf32, #tpu.memory_space<vmem>>, vector<1x32xf32>
    %138 = vector.broadcast %137 : vector<1x32xf32> to vector<16x32xf32>
    %139 = arith.addf %136, %138 : vector<16x32xf32>
    %140 = arith.addf %125, %139 : vector<16x32xf32>
    %c48 = arith.constant 48 : index
    %c0_49 = arith.constant 0 : index
    %141 = vector.load %arg6[%c48, %c0_49] : memref<376x128xf32, #tpu.memory_space<vmem>>, vector<1x32xf32>
    %c56 = arith.constant 56 : index
    %c0_50 = arith.constant 0 : index
    %142 = vector.load %arg6[%c56, %c0_50] : memref<376x128xf32, #tpu.memory_space<vmem>>, vector<1x32xf32>
    %cst_51 = arith.constant dense<0.000000e+00> : vector<16xf32>
    %143 = vector.multi_reduction <add>, %140, %cst_51 [1] : vector<16x32xf32> to vector<16xf32>
    %144 = vector.shape_cast %143 : vector<16xf32> to vector<16x1xf32>
    %cst_52 = arith.constant 3.200000e+01 : f32
    %145 = vector.broadcast %cst_52 : f32 to vector<16x1xf32>
    %146 = arith.divf %144, %145 : vector<16x1xf32>
    %147 = arith.mulf %140, %140 : vector<16x32xf32>
    %cst_53 = arith.constant dense<0.000000e+00> : vector<16xf32>
    %148 = vector.multi_reduction <add>, %147, %cst_53 [1] : vector<16x32xf32> to vector<16xf32>
    %149 = vector.shape_cast %148 : vector<16xf32> to vector<16x1xf32>
    %cst_54 = arith.constant 3.200000e+01 : f32
    %150 = vector.broadcast %cst_54 : f32 to vector<16x1xf32>
    %151 = arith.divf %149, %150 : vector<16x1xf32>
    %152 = arith.mulf %146, %146 : vector<16x1xf32>
    %153 = arith.subf %151, %152 : vector<16x1xf32>
    %154 = vector.broadcast %146 : vector<16x1xf32> to vector<16x32xf32>
    %155 = arith.subf %140, %154 : vector<16x32xf32>
    %cst_55 = arith.constant 9.99999974E-6 : f32
    %156 = vector.broadcast %cst_55 : f32 to vector<16x1xf32>
    %157 = arith.addf %153, %156 : vector<16x1xf32>
    %158 = math.rsqrt %157 : vector<16x1xf32>
    %159 = vector.broadcast %158 : vector<16x1xf32> to vector<16x32xf32>
    %160 = arith.mulf %155, %159 : vector<16x32xf32>
    %161 = vector.broadcast %141 : vector<1x32xf32> to vector<16x32xf32>
    %162 = arith.mulf %160, %161 : vector<16x32xf32>
    %163 = vector.broadcast %142 : vector<1x32xf32> to vector<16x32xf32>
    %164 = arith.addf %162, %163 : vector<16x32xf32>
    %165 = arith.truncf %164 : vector<16x32xf32> to vector<16x32xbf16>
    %c160 = arith.constant 160 : index
    %c0_56 = arith.constant 0 : index
    %166 = vector.load %arg5[%c160, %c0_56] : memref<864x128xbf16, #tpu.memory_space<vmem>>, vector<32x96xbf16>
    %cst_57 = arith.constant dense<0.000000e+00> : vector<16x96xf32>
    %167 = tpu.matmul %165, %166, %cst_57 {dimension_numbers = #tpu.dot_dimension_numbers<[1], [0], [0], [1], [0, 0, 1, 1], [], []>} : vector<16x32xbf16>, vector<32x96xbf16>, vector<16x96xf32> -> vector<16x96xf32>
    %c64_58 = arith.constant 64 : index
    %c0_59 = arith.constant 0 : index
    %168 = vector.load %arg6[%c64_58, %c0_59] : memref<376x128xf32, #tpu.memory_space<vmem>>, vector<1x96xf32>
    %169 = vector.broadcast %168 : vector<1x96xf32> to vector<16x96xf32>
    %170 = arith.addf %167, %169 : vector<16x96xf32>
    %171 = arith.truncf %170 : vector<16x96xf32> to vector<16x96xbf16>
    %172 = vector.extract_strided_slice %171 {offsets = [0, 0], sizes = [16, 32], strides = [1, 1]} : vector<16x96xbf16> to vector<16x32xbf16>
    %173 = vector.extract_strided_slice %171 {offsets = [0, 32], sizes = [16, 32], strides = [1, 1]} : vector<16x96xbf16> to vector<16x32xbf16>
    %174 = vector.extract_strided_slice %171 {offsets = [0, 64], sizes = [16, 32], strides = [1, 1]} : vector<16x96xbf16> to vector<16x32xbf16>
    %175 = vector.shape_cast %0 : vector<1x1x16xf32> to vector<1x16xf32>
    %176 = vector.extract_strided_slice %172 {offsets = [0, 0], sizes = [16, 8], strides = [1, 1]} : vector<16x32xbf16> to vector<16x8xbf16>
    %177 = vector.extract_strided_slice %173 {offsets = [0, 0], sizes = [16, 8], strides = [1, 1]} : vector<16x32xbf16> to vector<16x8xbf16>
    %cst_60 = arith.constant dense<0.000000e+00> : vector<16x16xf32>
    %178 = tpu.matmul %176, %177, %cst_60 {dimension_numbers = #tpu.dot_dimension_numbers<[1], [1], [0], [0], [0, 0, 1, 0], [], []>} : vector<16x8xbf16>, vector<16x8xbf16>, vector<16x16xf32> -> vector<16x16xf32>
    %cst_61 = arith.constant 0.353553385 : f32
    %179 = vector.broadcast %cst_61 : f32 to vector<16x16xf32>
    %180 = arith.mulf %178, %179 : vector<16x16xf32>
    %181 = vector.broadcast %175 : vector<1x16xf32> to vector<16x16xf32>
    %182 = arith.addf %180, %181 : vector<16x16xf32>
    %cst_62 = arith.constant dense<0xFF800000> : vector<16xf32>
    %183 = vector.multi_reduction <maximumf>, %182, %cst_62 [1] : vector<16x16xf32> to vector<16xf32>
    %184 = vector.shape_cast %183 : vector<16xf32> to vector<16x1xf32>
    %185 = vector.broadcast %184 : vector<16x1xf32> to vector<16x16xf32>
    %186 = arith.subf %182, %185 : vector<16x16xf32>
    %187 = math.exp %186 : vector<16x16xf32>
    %cst_63 = arith.constant dense<0.000000e+00> : vector<16xf32>
    %188 = vector.multi_reduction <add>, %187, %cst_63 [1] : vector<16x16xf32> to vector<16xf32>
    %189 = vector.shape_cast %188 : vector<16xf32> to vector<16x1xf32>
    %190 = tpu.reciprocal %189 {approx = true} : vector<16x1xf32> -> vector<16x1xf32>
    %191 = vector.broadcast %190 : vector<16x1xf32> to vector<16x16xf32>
    %192 = arith.mulf %187, %191 : vector<16x16xf32>
    %193 = arith.truncf %192 : vector<16x16xf32> to vector<16x16xbf16>
    %194 = vector.extract_strided_slice %174 {offsets = [0, 0], sizes = [16, 8], strides = [1, 1]} : vector<16x32xbf16> to vector<16x8xbf16>
    %cst_64 = arith.constant dense<0.000000e+00> : vector<16x8xf32>
    %195 = tpu.matmul %193, %194, %cst_64 {dimension_numbers = #tpu.dot_dimension_numbers<[1], [0], [0], [1], [0, 0, 1, 1], [], []>} : vector<16x16xbf16>, vector<16x8xbf16>, vector<16x8xf32> -> vector<16x8xf32>
    %196 = vector.extract_strided_slice %172 {offsets = [0, 8], sizes = [16, 8], strides = [1, 1]} : vector<16x32xbf16> to vector<16x8xbf16>
    %197 = vector.extract_strided_slice %173 {offsets = [0, 8], sizes = [16, 8], strides = [1, 1]} : vector<16x32xbf16> to vector<16x8xbf16>
    %cst_65 = arith.constant dense<0.000000e+00> : vector<16x16xf32>
    %198 = tpu.matmul %196, %197, %cst_65 {dimension_numbers = #tpu.dot_dimension_numbers<[1], [1], [0], [0], [0, 0, 1, 0], [], []>} : vector<16x8xbf16>, vector<16x8xbf16>, vector<16x16xf32> -> vector<16x16xf32>
    %cst_66 = arith.constant 0.353553385 : f32
    %199 = vector.broadcast %cst_66 : f32 to vector<16x16xf32>
    %200 = arith.mulf %198, %199 : vector<16x16xf32>
    %201 = vector.broadcast %175 : vector<1x16xf32> to vector<16x16xf32>
    %202 = arith.addf %200, %201 : vector<16x16xf32>
    %cst_67 = arith.constant dense<0xFF800000> : vector<16xf32>
    %203 = vector.multi_reduction <maximumf>, %202, %cst_67 [1] : vector<16x16xf32> to vector<16xf32>
    %204 = vector.shape_cast %203 : vector<16xf32> to vector<16x1xf32>
    %205 = vector.broadcast %204 : vector<16x1xf32> to vector<16x16xf32>
    %206 = arith.subf %202, %205 : vector<16x16xf32>
    %207 = math.exp %206 : vector<16x16xf32>
    %cst_68 = arith.constant dense<0.000000e+00> : vector<16xf32>
    %208 = vector.multi_reduction <add>, %207, %cst_68 [1] : vector<16x16xf32> to vector<16xf32>
    %209 = vector.shape_cast %208 : vector<16xf32> to vector<16x1xf32>
    %210 = tpu.reciprocal %209 {approx = true} : vector<16x1xf32> -> vector<16x1xf32>
    %211 = vector.broadcast %210 : vector<16x1xf32> to vector<16x16xf32>
    %212 = arith.mulf %207, %211 : vector<16x16xf32>
    %213 = arith.truncf %212 : vector<16x16xf32> to vector<16x16xbf16>
    %214 = vector.extract_strided_slice %174 {offsets = [0, 8], sizes = [16, 8], strides = [1, 1]} : vector<16x32xbf16> to vector<16x8xbf16>
    %cst_69 = arith.constant dense<0.000000e+00> : vector<16x8xf32>
    %215 = tpu.matmul %213, %214, %cst_69 {dimension_numbers = #tpu.dot_dimension_numbers<[1], [0], [0], [1], [0, 0, 1, 1], [], []>} : vector<16x16xbf16>, vector<16x8xbf16>, vector<16x8xf32> -> vector<16x8xf32>
    %216 = vector.extract_strided_slice %172 {offsets = [0, 16], sizes = [16, 8], strides = [1, 1]} : vector<16x32xbf16> to vector<16x8xbf16>
    %217 = vector.extract_strided_slice %173 {offsets = [0, 16], sizes = [16, 8], strides = [1, 1]} : vector<16x32xbf16> to vector<16x8xbf16>
    %cst_70 = arith.constant dense<0.000000e+00> : vector<16x16xf32>
    %218 = tpu.matmul %216, %217, %cst_70 {dimension_numbers = #tpu.dot_dimension_numbers<[1], [1], [0], [0], [0, 0, 1, 0], [], []>} : vector<16x8xbf16>, vector<16x8xbf16>, vector<16x16xf32> -> vector<16x16xf32>
    %cst_71 = arith.constant 0.353553385 : f32
    %219 = vector.broadcast %cst_71 : f32 to vector<16x16xf32>
    %220 = arith.mulf %218, %219 : vector<16x16xf32>
    %221 = vector.broadcast %175 : vector<1x16xf32> to vector<16x16xf32>
    %222 = arith.addf %220, %221 : vector<16x16xf32>
    %cst_72 = arith.constant dense<0xFF800000> : vector<16xf32>
    %223 = vector.multi_reduction <maximumf>, %222, %cst_72 [1] : vector<16x16xf32> to vector<16xf32>
    %224 = vector.shape_cast %223 : vector<16xf32> to vector<16x1xf32>
    %225 = vector.broadcast %224 : vector<16x1xf32> to vector<16x16xf32>
    %226 = arith.subf %222, %225 : vector<16x16xf32>
    %227 = math.exp %226 : vector<16x16xf32>
    %cst_73 = arith.constant dense<0.000000e+00> : vector<16xf32>
    %228 = vector.multi_reduction <add>, %227, %cst_73 [1] : vector<16x16xf32> to vector<16xf32>
    %229 = vector.shape_cast %228 : vector<16xf32> to vector<16x1xf32>
    %230 = tpu.reciprocal %229 {approx = true} : vector<16x1xf32> -> vector<16x1xf32>
    %231 = vector.broadcast %230 : vector<16x1xf32> to vector<16x16xf32>
    %232 = arith.mulf %227, %231 : vector<16x16xf32>
    %233 = arith.truncf %232 : vector<16x16xf32> to vector<16x16xbf16>
    %234 = vector.extract_strided_slice %174 {offsets = [0, 16], sizes = [16, 8], strides = [1, 1]} : vector<16x32xbf16> to vector<16x8xbf16>
    %cst_74 = arith.constant dense<0.000000e+00> : vector<16x8xf32>
    %235 = tpu.matmul %233, %234, %cst_74 {dimension_numbers = #tpu.dot_dimension_numbers<[1], [0], [0], [1], [0, 0, 1, 1], [], []>} : vector<16x16xbf16>, vector<16x8xbf16>, vector<16x8xf32> -> vector<16x8xf32>
    %236 = vector.extract_strided_slice %172 {offsets = [0, 24], sizes = [16, 8], strides = [1, 1]} : vector<16x32xbf16> to vector<16x8xbf16>
    %237 = vector.extract_strided_slice %173 {offsets = [0, 24], sizes = [16, 8], strides = [1, 1]} : vector<16x32xbf16> to vector<16x8xbf16>
    %cst_75 = arith.constant dense<0.000000e+00> : vector<16x16xf32>
    %238 = tpu.matmul %236, %237, %cst_75 {dimension_numbers = #tpu.dot_dimension_numbers<[1], [1], [0], [0], [0, 0, 1, 0], [], []>} : vector<16x8xbf16>, vector<16x8xbf16>, vector<16x16xf32> -> vector<16x16xf32>
    %cst_76 = arith.constant 0.353553385 : f32
    %239 = vector.broadcast %cst_76 : f32 to vector<16x16xf32>
    %240 = arith.mulf %238, %239 : vector<16x16xf32>
    %241 = vector.broadcast %175 : vector<1x16xf32> to vector<16x16xf32>
    %242 = arith.addf %240, %241 : vector<16x16xf32>
    %cst_77 = arith.constant dense<0xFF800000> : vector<16xf32>
    %243 = vector.multi_reduction <maximumf>, %242, %cst_77 [1] : vector<16x16xf32> to vector<16xf32>
    %244 = vector.shape_cast %243 : vector<16xf32> to vector<16x1xf32>
    %245 = vector.broadcast %244 : vector<16x1xf32> to vector<16x16xf32>
    %246 = arith.subf %242, %245 : vector<16x16xf32>
    %247 = math.exp %246 : vector<16x16xf32>
    %cst_78 = arith.constant dense<0.000000e+00> : vector<16xf32>
    %248 = vector.multi_reduction <add>, %247, %cst_78 [1] : vector<16x16xf32> to vector<16xf32>
    %249 = vector.shape_cast %248 : vector<16xf32> to vector<16x1xf32>
    %250 = tpu.reciprocal %249 {approx = true} : vector<16x1xf32> -> vector<16x1xf32>
    %251 = vector.broadcast %250 : vector<16x1xf32> to vector<16x16xf32>
    %252 = arith.mulf %247, %251 : vector<16x16xf32>
    %253 = arith.truncf %252 : vector<16x16xf32> to vector<16x16xbf16>
    %254 = vector.extract_strided_slice %174 {offsets = [0, 24], sizes = [16, 8], strides = [1, 1]} : vector<16x32xbf16> to vector<16x8xbf16>
    %cst_79 = arith.constant dense<0.000000e+00> : vector<16x8xf32>
    %255 = tpu.matmul %253, %254, %cst_79 {dimension_numbers = #tpu.dot_dimension_numbers<[1], [0], [0], [1], [0, 0, 1, 1], [], []>} : vector<16x16xbf16>, vector<16x8xbf16>, vector<16x8xf32> -> vector<16x8xf32>
    %256 = tpu.concatenate %195, %215, %235, %255 in 1 : vector<16x8xf32>, vector<16x8xf32>, vector<16x8xf32>, vector<16x8xf32> -> vector<16x32xf32>
    %257 = arith.truncf %256 : vector<16x32xf32> to vector<16x32xbf16>
    %c192 = arith.constant 192 : index
    %c0_80 = arith.constant 0 : index
    %258 = vector.load %arg5[%c192, %c0_80] : memref<864x128xbf16, #tpu.memory_space<vmem>>, vector<32x32xbf16>
    %cst_81 = arith.constant dense<0.000000e+00> : vector<16x32xf32>
    %259 = tpu.matmul %257, %258, %cst_81 {dimension_numbers = #tpu.dot_dimension_numbers<[1], [0], [0], [1], [0, 0, 1, 1], [], []>} : vector<16x32xbf16>, vector<32x32xbf16>, vector<16x32xf32> -> vector<16x32xf32>
    %c72 = arith.constant 72 : index
    %c0_82 = arith.constant 0 : index
    %260 = vector.load %arg6[%c72, %c0_82] : memref<376x128xf32, #tpu.memory_space<vmem>>, vector<1x32xf32>
    %261 = vector.broadcast %260 : vector<1x32xf32> to vector<16x32xf32>
    %262 = arith.addf %259, %261 : vector<16x32xf32>
    %263 = arith.addf %164, %262 : vector<16x32xf32>
    %c80 = arith.constant 80 : index
    %c0_83 = arith.constant 0 : index
    %264 = vector.load %arg6[%c80, %c0_83] : memref<376x128xf32, #tpu.memory_space<vmem>>, vector<1x32xf32>
    %c88 = arith.constant 88 : index
    %c0_84 = arith.constant 0 : index
    %265 = vector.load %arg6[%c88, %c0_84] : memref<376x128xf32, #tpu.memory_space<vmem>>, vector<1x32xf32>
    %cst_85 = arith.constant dense<0.000000e+00> : vector<16xf32>
    %266 = vector.multi_reduction <add>, %263, %cst_85 [1] : vector<16x32xf32> to vector<16xf32>
    %267 = vector.shape_cast %266 : vector<16xf32> to vector<16x1xf32>
    %cst_86 = arith.constant 3.200000e+01 : f32
    %268 = vector.broadcast %cst_86 : f32 to vector<16x1xf32>
    %269 = arith.divf %267, %268 : vector<16x1xf32>
    %270 = arith.mulf %263, %263 : vector<16x32xf32>
    %cst_87 = arith.constant dense<0.000000e+00> : vector<16xf32>
    %271 = vector.multi_reduction <add>, %270, %cst_87 [1] : vector<16x32xf32> to vector<16xf32>
    %272 = vector.shape_cast %271 : vector<16xf32> to vector<16x1xf32>
    %cst_88 = arith.constant 3.200000e+01 : f32
    %273 = vector.broadcast %cst_88 : f32 to vector<16x1xf32>
    %274 = arith.divf %272, %273 : vector<16x1xf32>
    %275 = arith.mulf %269, %269 : vector<16x1xf32>
    %276 = arith.subf %274, %275 : vector<16x1xf32>
    %277 = vector.broadcast %269 : vector<16x1xf32> to vector<16x32xf32>
    %278 = arith.subf %263, %277 : vector<16x32xf32>
    %cst_89 = arith.constant 9.99999974E-6 : f32
    %279 = vector.broadcast %cst_89 : f32 to vector<16x1xf32>
    %280 = arith.addf %276, %279 : vector<16x1xf32>
    %281 = math.rsqrt %280 : vector<16x1xf32>
    %282 = vector.broadcast %281 : vector<16x1xf32> to vector<16x32xf32>
    %283 = arith.mulf %278, %282 : vector<16x32xf32>
    %284 = vector.broadcast %264 : vector<1x32xf32> to vector<16x32xf32>
    %285 = arith.mulf %283, %284 : vector<16x32xf32>
    %286 = vector.broadcast %265 : vector<1x32xf32> to vector<16x32xf32>
    %287 = arith.addf %285, %286 : vector<16x32xf32>
    %288 = arith.truncf %287 : vector<16x32xf32> to vector<16x32xbf16>
    %c224 = arith.constant 224 : index
    %c0_90 = arith.constant 0 : index
    %289 = vector.load %arg5[%c224, %c0_90] : memref<864x128xbf16, #tpu.memory_space<vmem>>, vector<32x64xbf16>
    %cst_91 = arith.constant dense<0.000000e+00> : vector<16x64xf32>
    %290 = tpu.matmul %288, %289, %cst_91 {dimension_numbers = #tpu.dot_dimension_numbers<[1], [0], [0], [1], [0, 0, 1, 1], [], []>} : vector<16x32xbf16>, vector<32x64xbf16>, vector<16x64xf32> -> vector<16x64xf32>
    %c96_92 = arith.constant 96 : index
    %c0_93 = arith.constant 0 : index
    %291 = vector.load %arg6[%c96_92, %c0_93] : memref<376x128xf32, #tpu.memory_space<vmem>>, vector<1x64xf32>
    %292 = vector.broadcast %291 : vector<1x64xf32> to vector<16x64xf32>
    %293 = arith.addf %290, %292 : vector<16x64xf32>
    %cst_94 = arith.constant 0.000000e+00 : f32
    %294 = vector.broadcast %cst_94 : f32 to vector<16x64xf32>
    %295 = arith.maximumf %293, %294 : vector<16x64xf32>
    %296 = arith.truncf %295 : vector<16x64xf32> to vector<16x64xbf16>
    %c256 = arith.constant 256 : index
    %c0_95 = arith.constant 0 : index
    %297 = vector.load %arg5[%c256, %c0_95] : memref<864x128xbf16, #tpu.memory_space<vmem>>, vector<64x32xbf16>
    %cst_96 = arith.constant dense<0.000000e+00> : vector<16x32xf32>
    %298 = tpu.matmul %296, %297, %cst_96 {dimension_numbers = #tpu.dot_dimension_numbers<[1], [0], [0], [1], [0, 0, 1, 1], [], []>} : vector<16x64xbf16>, vector<64x32xbf16>, vector<16x32xf32> -> vector<16x32xf32>
    %c104 = arith.constant 104 : index
    %c0_97 = arith.constant 0 : index
    %299 = vector.load %arg6[%c104, %c0_97] : memref<376x128xf32, #tpu.memory_space<vmem>>, vector<1x32xf32>
    %300 = vector.broadcast %299 : vector<1x32xf32> to vector<16x32xf32>
    %301 = arith.addf %298, %300 : vector<16x32xf32>
    %302 = arith.addf %287, %301 : vector<16x32xf32>
    %c112 = arith.constant 112 : index
    %c0_98 = arith.constant 0 : index
    %303 = vector.load %arg6[%c112, %c0_98] : memref<376x128xf32, #tpu.memory_space<vmem>>, vector<1x32xf32>
    %c120 = arith.constant 120 : index
    %c0_99 = arith.constant 0 : index
    %304 = vector.load %arg6[%c120, %c0_99] : memref<376x128xf32, #tpu.memory_space<vmem>>, vector<1x32xf32>
    %cst_100 = arith.constant dense<0.000000e+00> : vector<16xf32>
    %305 = vector.multi_reduction <add>, %302, %cst_100 [1] : vector<16x32xf32> to vector<16xf32>
    %306 = vector.shape_cast %305 : vector<16xf32> to vector<16x1xf32>
    %cst_101 = arith.constant 3.200000e+01 : f32
    %307 = vector.broadcast %cst_101 : f32 to vector<16x1xf32>
    %308 = arith.divf %306, %307 : vector<16x1xf32>
    %309 = arith.mulf %302, %302 : vector<16x32xf32>
    %cst_102 = arith.constant dense<0.000000e+00> : vector<16xf32>
    %310 = vector.multi_reduction <add>, %309, %cst_102 [1] : vector<16x32xf32> to vector<16xf32>
    %311 = vector.shape_cast %310 : vector<16xf32> to vector<16x1xf32>
    %cst_103 = arith.constant 3.200000e+01 : f32
    %312 = vector.broadcast %cst_103 : f32 to vector<16x1xf32>
    %313 = arith.divf %311, %312 : vector<16x1xf32>
    %314 = arith.mulf %308, %308 : vector<16x1xf32>
    %315 = arith.subf %313, %314 : vector<16x1xf32>
    %316 = vector.broadcast %308 : vector<16x1xf32> to vector<16x32xf32>
    %317 = arith.subf %302, %316 : vector<16x32xf32>
    %cst_104 = arith.constant 9.99999974E-6 : f32
    %318 = vector.broadcast %cst_104 : f32 to vector<16x1xf32>
    %319 = arith.addf %315, %318 : vector<16x1xf32>
    %320 = math.rsqrt %319 : vector<16x1xf32>
    %321 = vector.broadcast %320 : vector<16x1xf32> to vector<16x32xf32>
    %322 = arith.mulf %317, %321 : vector<16x32xf32>
    %323 = vector.broadcast %303 : vector<1x32xf32> to vector<16x32xf32>
    %324 = arith.mulf %322, %323 : vector<16x32xf32>
    %325 = vector.broadcast %304 : vector<1x32xf32> to vector<16x32xf32>
    %326 = arith.addf %324, %325 : vector<16x32xf32>
    %c128 = arith.constant 128 : index
    %c0_105 = arith.constant 0 : index
    %327 = vector.load %arg6[%c128, %c0_105] : memref<376x128xf32, #tpu.memory_space<vmem>>, vector<1x32xf32>
    %c136 = arith.constant 136 : index
    %c0_106 = arith.constant 0 : index
    %328 = vector.load %arg6[%c136, %c0_106] : memref<376x128xf32, #tpu.memory_space<vmem>>, vector<1x32xf32>
    %cst_107 = arith.constant dense<0.000000e+00> : vector<16xf32>
    %329 = vector.multi_reduction <add>, %326, %cst_107 [1] : vector<16x32xf32> to vector<16xf32>
    %330 = vector.shape_cast %329 : vector<16xf32> to vector<16x1xf32>
    %cst_108 = arith.constant 3.200000e+01 : f32
    %331 = vector.broadcast %cst_108 : f32 to vector<16x1xf32>
    %332 = arith.divf %330, %331 : vector<16x1xf32>
    %333 = arith.mulf %326, %326 : vector<16x32xf32>
    %cst_109 = arith.constant dense<0.000000e+00> : vector<16xf32>
    %334 = vector.multi_reduction <add>, %333, %cst_109 [1] : vector<16x32xf32> to vector<16xf32>
    %335 = vector.shape_cast %334 : vector<16xf32> to vector<16x1xf32>
    %cst_110 = arith.constant 3.200000e+01 : f32
    %336 = vector.broadcast %cst_110 : f32 to vector<16x1xf32>
    %337 = arith.divf %335, %336 : vector<16x1xf32>
    %338 = arith.mulf %332, %332 : vector<16x1xf32>
    %339 = arith.subf %337, %338 : vector<16x1xf32>
    %340 = vector.broadcast %332 : vector<16x1xf32> to vector<16x32xf32>
    %341 = arith.subf %326, %340 : vector<16x32xf32>
    %cst_111 = arith.constant 9.99999974E-6 : f32
    %342 = vector.broadcast %cst_111 : f32 to vector<16x1xf32>
    %343 = arith.addf %339, %342 : vector<16x1xf32>
    %344 = math.rsqrt %343 : vector<16x1xf32>
    %345 = vector.broadcast %344 : vector<16x1xf32> to vector<16x32xf32>
    %346 = arith.mulf %341, %345 : vector<16x32xf32>
    %347 = vector.broadcast %327 : vector<1x32xf32> to vector<16x32xf32>
    %348 = arith.mulf %346, %347 : vector<16x32xf32>
    %349 = vector.broadcast %328 : vector<1x32xf32> to vector<16x32xf32>
    %350 = arith.addf %348, %349 : vector<16x32xf32>
    %351 = arith.truncf %350 : vector<16x32xf32> to vector<16x32xbf16>
    %c0_112 = arith.constant 0 : index
    %c0_113 = arith.constant 0 : index
    %352 = vector.load %arg2[%c0_112, %c0_113] : memref<8x32xf32, #tpu.memory_space<vmem>>, vector<8x32xf32>
    %353 = arith.truncf %352 : vector<8x32xf32> to vector<8x32xbf16>
    %c320 = arith.constant 320 : index
    %c0_114 = arith.constant 0 : index
    %354 = vector.load %arg5[%c320, %c0_114] : memref<864x128xbf16, #tpu.memory_space<vmem>>, vector<32x96xbf16>
    %cst_115 = arith.constant dense<0.000000e+00> : vector<8x96xf32>
    %355 = tpu.matmul %353, %354, %cst_115 {dimension_numbers = #tpu.dot_dimension_numbers<[1], [0], [0], [1], [0, 0, 1, 1], [], []>} : vector<8x32xbf16>, vector<32x96xbf16>, vector<8x96xf32> -> vector<8x96xf32>
    %c144 = arith.constant 144 : index
    %c0_116 = arith.constant 0 : index
    %356 = vector.load %arg6[%c144, %c0_116] : memref<376x128xf32, #tpu.memory_space<vmem>>, vector<1x96xf32>
    %357 = vector.broadcast %356 : vector<1x96xf32> to vector<8x96xf32>
    %358 = arith.addf %355, %357 : vector<8x96xf32>
    %359 = arith.truncf %358 : vector<8x96xf32> to vector<8x96xbf16>
    %360 = vector.extract_strided_slice %359 {offsets = [0, 0], sizes = [8, 32], strides = [1, 1]} : vector<8x96xbf16> to vector<8x32xbf16>
    %361 = vector.extract_strided_slice %359 {offsets = [0, 32], sizes = [8, 32], strides = [1, 1]} : vector<8x96xbf16> to vector<8x32xbf16>
    %362 = vector.extract_strided_slice %359 {offsets = [0, 64], sizes = [8, 32], strides = [1, 1]} : vector<8x96xbf16> to vector<8x32xbf16>
    %363 = vector.shape_cast %1 : vector<1x1x8xf32> to vector<1x8xf32>
    %364 = vector.extract_strided_slice %360 {offsets = [0, 0], sizes = [8, 8], strides = [1, 1]} : vector<8x32xbf16> to vector<8x8xbf16>
    %365 = vector.extract_strided_slice %361 {offsets = [0, 0], sizes = [8, 8], strides = [1, 1]} : vector<8x32xbf16> to vector<8x8xbf16>
    %cst_117 = arith.constant dense<0.000000e+00> : vector<8x8xf32>
    %366 = tpu.matmul %364, %365, %cst_117 {dimension_numbers = #tpu.dot_dimension_numbers<[1], [1], [0], [0], [0, 0, 1, 0], [], []>} : vector<8x8xbf16>, vector<8x8xbf16>, vector<8x8xf32> -> vector<8x8xf32>
    %cst_118 = arith.constant 0.353553385 : f32
    %367 = vector.broadcast %cst_118 : f32 to vector<8x8xf32>
    %368 = arith.mulf %366, %367 : vector<8x8xf32>
    %369 = vector.broadcast %363 : vector<1x8xf32> to vector<8x8xf32>
    %370 = arith.addf %368, %369 : vector<8x8xf32>
    %cst_119 = arith.constant dense<0xFF800000> : vector<8xf32>
    %371 = vector.multi_reduction <maximumf>, %370, %cst_119 [1] : vector<8x8xf32> to vector<8xf32>
    %372 = vector.shape_cast %371 : vector<8xf32> to vector<8x1xf32>
    %373 = vector.broadcast %372 : vector<8x1xf32> to vector<8x8xf32>
    %374 = arith.subf %370, %373 : vector<8x8xf32>
    %375 = math.exp %374 : vector<8x8xf32>
    %cst_120 = arith.constant dense<0.000000e+00> : vector<8xf32>
    %376 = vector.multi_reduction <add>, %375, %cst_120 [1] : vector<8x8xf32> to vector<8xf32>
    %377 = vector.shape_cast %376 : vector<8xf32> to vector<8x1xf32>
    %378 = tpu.reciprocal %377 {approx = true} : vector<8x1xf32> -> vector<8x1xf32>
    %379 = vector.broadcast %378 : vector<8x1xf32> to vector<8x8xf32>
    %380 = arith.mulf %375, %379 : vector<8x8xf32>
    %381 = arith.truncf %380 : vector<8x8xf32> to vector<8x8xbf16>
    %382 = vector.extract_strided_slice %362 {offsets = [0, 0], sizes = [8, 8], strides = [1, 1]} : vector<8x32xbf16> to vector<8x8xbf16>
    %cst_121 = arith.constant dense<0.000000e+00> : vector<8x8xf32>
    %383 = tpu.matmul %381, %382, %cst_121 {dimension_numbers = #tpu.dot_dimension_numbers<[1], [0], [0], [1], [0, 0, 1, 1], [], []>} : vector<8x8xbf16>, vector<8x8xbf16>, vector<8x8xf32> -> vector<8x8xf32>
    %384 = vector.extract_strided_slice %360 {offsets = [0, 8], sizes = [8, 8], strides = [1, 1]} : vector<8x32xbf16> to vector<8x8xbf16>
    %385 = vector.extract_strided_slice %361 {offsets = [0, 8], sizes = [8, 8], strides = [1, 1]} : vector<8x32xbf16> to vector<8x8xbf16>
    %cst_122 = arith.constant dense<0.000000e+00> : vector<8x8xf32>
    %386 = tpu.matmul %384, %385, %cst_122 {dimension_numbers = #tpu.dot_dimension_numbers<[1], [1], [0], [0], [0, 0, 1, 0], [], []>} : vector<8x8xbf16>, vector<8x8xbf16>, vector<8x8xf32> -> vector<8x8xf32>
    %cst_123 = arith.constant 0.353553385 : f32
    %387 = vector.broadcast %cst_123 : f32 to vector<8x8xf32>
    %388 = arith.mulf %386, %387 : vector<8x8xf32>
    %389 = vector.broadcast %363 : vector<1x8xf32> to vector<8x8xf32>
    %390 = arith.addf %388, %389 : vector<8x8xf32>
    %cst_124 = arith.constant dense<0xFF800000> : vector<8xf32>
    %391 = vector.multi_reduction <maximumf>, %390, %cst_124 [1] : vector<8x8xf32> to vector<8xf32>
    %392 = vector.shape_cast %391 : vector<8xf32> to vector<8x1xf32>
    %393 = vector.broadcast %392 : vector<8x1xf32> to vector<8x8xf32>
    %394 = arith.subf %390, %393 : vector<8x8xf32>
    %395 = math.exp %394 : vector<8x8xf32>
    %cst_125 = arith.constant dense<0.000000e+00> : vector<8xf32>
    %396 = vector.multi_reduction <add>, %395, %cst_125 [1] : vector<8x8xf32> to vector<8xf32>
    %397 = vector.shape_cast %396 : vector<8xf32> to vector<8x1xf32>
    %398 = tpu.reciprocal %397 {approx = true} : vector<8x1xf32> -> vector<8x1xf32>
    %399 = vector.broadcast %398 : vector<8x1xf32> to vector<8x8xf32>
    %400 = arith.mulf %395, %399 : vector<8x8xf32>
    %401 = arith.truncf %400 : vector<8x8xf32> to vector<8x8xbf16>
    %402 = vector.extract_strided_slice %362 {offsets = [0, 8], sizes = [8, 8], strides = [1, 1]} : vector<8x32xbf16> to vector<8x8xbf16>
    %cst_126 = arith.constant dense<0.000000e+00> : vector<8x8xf32>
    %403 = tpu.matmul %401, %402, %cst_126 {dimension_numbers = #tpu.dot_dimension_numbers<[1], [0], [0], [1], [0, 0, 1, 1], [], []>} : vector<8x8xbf16>, vector<8x8xbf16>, vector<8x8xf32> -> vector<8x8xf32>
    %404 = vector.extract_strided_slice %360 {offsets = [0, 16], sizes = [8, 8], strides = [1, 1]} : vector<8x32xbf16> to vector<8x8xbf16>
    %405 = vector.extract_strided_slice %361 {offsets = [0, 16], sizes = [8, 8], strides = [1, 1]} : vector<8x32xbf16> to vector<8x8xbf16>
    %cst_127 = arith.constant dense<0.000000e+00> : vector<8x8xf32>
    %406 = tpu.matmul %404, %405, %cst_127 {dimension_numbers = #tpu.dot_dimension_numbers<[1], [1], [0], [0], [0, 0, 1, 0], [], []>} : vector<8x8xbf16>, vector<8x8xbf16>, vector<8x8xf32> -> vector<8x8xf32>
    %cst_128 = arith.constant 0.353553385 : f32
    %407 = vector.broadcast %cst_128 : f32 to vector<8x8xf32>
    %408 = arith.mulf %406, %407 : vector<8x8xf32>
    %409 = vector.broadcast %363 : vector<1x8xf32> to vector<8x8xf32>
    %410 = arith.addf %408, %409 : vector<8x8xf32>
    %cst_129 = arith.constant dense<0xFF800000> : vector<8xf32>
    %411 = vector.multi_reduction <maximumf>, %410, %cst_129 [1] : vector<8x8xf32> to vector<8xf32>
    %412 = vector.shape_cast %411 : vector<8xf32> to vector<8x1xf32>
    %413 = vector.broadcast %412 : vector<8x1xf32> to vector<8x8xf32>
    %414 = arith.subf %410, %413 : vector<8x8xf32>
    %415 = math.exp %414 : vector<8x8xf32>
    %cst_130 = arith.constant dense<0.000000e+00> : vector<8xf32>
    %416 = vector.multi_reduction <add>, %415, %cst_130 [1] : vector<8x8xf32> to vector<8xf32>
    %417 = vector.shape_cast %416 : vector<8xf32> to vector<8x1xf32>
    %418 = tpu.reciprocal %417 {approx = true} : vector<8x1xf32> -> vector<8x1xf32>
    %419 = vector.broadcast %418 : vector<8x1xf32> to vector<8x8xf32>
    %420 = arith.mulf %415, %419 : vector<8x8xf32>
    %421 = arith.truncf %420 : vector<8x8xf32> to vector<8x8xbf16>
    %422 = vector.extract_strided_slice %362 {offsets = [0, 16], sizes = [8, 8], strides = [1, 1]} : vector<8x32xbf16> to vector<8x8xbf16>
    %cst_131 = arith.constant dense<0.000000e+00> : vector<8x8xf32>
    %423 = tpu.matmul %421, %422, %cst_131 {dimension_numbers = #tpu.dot_dimension_numbers<[1], [0], [0], [1], [0, 0, 1, 1], [], []>} : vector<8x8xbf16>, vector<8x8xbf16>, vector<8x8xf32> -> vector<8x8xf32>
    %424 = vector.extract_strided_slice %360 {offsets = [0, 24], sizes = [8, 8], strides = [1, 1]} : vector<8x32xbf16> to vector<8x8xbf16>
    %425 = vector.extract_strided_slice %361 {offsets = [0, 24], sizes = [8, 8], strides = [1, 1]} : vector<8x32xbf16> to vector<8x8xbf16>
    %cst_132 = arith.constant dense<0.000000e+00> : vector<8x8xf32>
    %426 = tpu.matmul %424, %425, %cst_132 {dimension_numbers = #tpu.dot_dimension_numbers<[1], [1], [0], [0], [0, 0, 1, 0], [], []>} : vector<8x8xbf16>, vector<8x8xbf16>, vector<8x8xf32> -> vector<8x8xf32>
    %cst_133 = arith.constant 0.353553385 : f32
    %427 = vector.broadcast %cst_133 : f32 to vector<8x8xf32>
    %428 = arith.mulf %426, %427 : vector<8x8xf32>
    %429 = vector.broadcast %363 : vector<1x8xf32> to vector<8x8xf32>
    %430 = arith.addf %428, %429 : vector<8x8xf32>
    %cst_134 = arith.constant dense<0xFF800000> : vector<8xf32>
    %431 = vector.multi_reduction <maximumf>, %430, %cst_134 [1] : vector<8x8xf32> to vector<8xf32>
    %432 = vector.shape_cast %431 : vector<8xf32> to vector<8x1xf32>
    %433 = vector.broadcast %432 : vector<8x1xf32> to vector<8x8xf32>
    %434 = arith.subf %430, %433 : vector<8x8xf32>
    %435 = math.exp %434 : vector<8x8xf32>
    %cst_135 = arith.constant dense<0.000000e+00> : vector<8xf32>
    %436 = vector.multi_reduction <add>, %435, %cst_135 [1] : vector<8x8xf32> to vector<8xf32>
    %437 = vector.shape_cast %436 : vector<8xf32> to vector<8x1xf32>
    %438 = tpu.reciprocal %437 {approx = true} : vector<8x1xf32> -> vector<8x1xf32>
    %439 = vector.broadcast %438 : vector<8x1xf32> to vector<8x8xf32>
    %440 = arith.mulf %435, %439 : vector<8x8xf32>
    %441 = arith.truncf %440 : vector<8x8xf32> to vector<8x8xbf16>
    %442 = vector.extract_strided_slice %362 {offsets = [0, 24], sizes = [8, 8], strides = [1, 1]} : vector<8x32xbf16> to vector<8x8xbf16>
    %cst_136 = arith.constant dense<0.000000e+00> : vector<8x8xf32>
    %443 = tpu.matmul %441, %442, %cst_136 {dimension_numbers = #tpu.dot_dimension_numbers<[1], [0], [0], [1], [0, 0, 1, 1], [], []>} : vector<8x8xbf16>, vector<8x8xbf16>, vector<8x8xf32> -> vector<8x8xf32>
    %444 = tpu.concatenate %383, %403, %423, %443 in 1 : vector<8x8xf32>, vector<8x8xf32>, vector<8x8xf32>, vector<8x8xf32> -> vector<8x32xf32>
    %445 = arith.truncf %444 : vector<8x32xf32> to vector<8x32xbf16>
    %c352 = arith.constant 352 : index
    %c0_137 = arith.constant 0 : index
    %446 = vector.load %arg5[%c352, %c0_137] : memref<864x128xbf16, #tpu.memory_space<vmem>>, vector<32x32xbf16>
    %cst_138 = arith.constant dense<0.000000e+00> : vector<8x32xf32>
    %447 = tpu.matmul %445, %446, %cst_138 {dimension_numbers = #tpu.dot_dimension_numbers<[1], [0], [0], [1], [0, 0, 1, 1], [], []>} : vector<8x32xbf16>, vector<32x32xbf16>, vector<8x32xf32> -> vector<8x32xf32>
    %c152 = arith.constant 152 : index
    %c0_139 = arith.constant 0 : index
    %448 = vector.load %arg6[%c152, %c0_139] : memref<376x128xf32, #tpu.memory_space<vmem>>, vector<1x32xf32>
    %449 = vector.broadcast %448 : vector<1x32xf32> to vector<8x32xf32>
    %450 = arith.addf %447, %449 : vector<8x32xf32>
    %451 = arith.addf %352, %450 : vector<8x32xf32>
    %c160_140 = arith.constant 160 : index
    %c0_141 = arith.constant 0 : index
    %452 = vector.load %arg6[%c160_140, %c0_141] : memref<376x128xf32, #tpu.memory_space<vmem>>, vector<1x32xf32>
    %c168 = arith.constant 168 : index
    %c0_142 = arith.constant 0 : index
    %453 = vector.load %arg6[%c168, %c0_142] : memref<376x128xf32, #tpu.memory_space<vmem>>, vector<1x32xf32>
    %cst_143 = arith.constant dense<0.000000e+00> : vector<8xf32>
    %454 = vector.multi_reduction <add>, %451, %cst_143 [1] : vector<8x32xf32> to vector<8xf32>
    %455 = vector.shape_cast %454 : vector<8xf32> to vector<8x1xf32>
    %cst_144 = arith.constant 3.200000e+01 : f32
    %456 = vector.broadcast %cst_144 : f32 to vector<8x1xf32>
    %457 = arith.divf %455, %456 : vector<8x1xf32>
    %458 = arith.mulf %451, %451 : vector<8x32xf32>
    %cst_145 = arith.constant dense<0.000000e+00> : vector<8xf32>
    %459 = vector.multi_reduction <add>, %458, %cst_145 [1] : vector<8x32xf32> to vector<8xf32>
    %460 = vector.shape_cast %459 : vector<8xf32> to vector<8x1xf32>
    %cst_146 = arith.constant 3.200000e+01 : f32
    %461 = vector.broadcast %cst_146 : f32 to vector<8x1xf32>
    %462 = arith.divf %460, %461 : vector<8x1xf32>
    %463 = arith.mulf %457, %457 : vector<8x1xf32>
    %464 = arith.subf %462, %463 : vector<8x1xf32>
    %465 = vector.broadcast %457 : vector<8x1xf32> to vector<8x32xf32>
    %466 = arith.subf %451, %465 : vector<8x32xf32>
    %cst_147 = arith.constant 9.99999974E-6 : f32
    %467 = vector.broadcast %cst_147 : f32 to vector<8x1xf32>
    %468 = arith.addf %464, %467 : vector<8x1xf32>
    %469 = math.rsqrt %468 : vector<8x1xf32>
    %470 = vector.broadcast %469 : vector<8x1xf32> to vector<8x32xf32>
    %471 = arith.mulf %466, %470 : vector<8x32xf32>
    %472 = vector.broadcast %452 : vector<1x32xf32> to vector<8x32xf32>
    %473 = arith.mulf %471, %472 : vector<8x32xf32>
    %474 = vector.broadcast %453 : vector<1x32xf32> to vector<8x32xf32>
    %475 = arith.addf %473, %474 : vector<8x32xf32>
    %476 = arith.truncf %475 : vector<8x32xf32> to vector<8x32xbf16>
    %c384 = arith.constant 384 : index
    %c0_148 = arith.constant 0 : index
    %477 = vector.load %arg5[%c384, %c0_148] : memref<864x128xbf16, #tpu.memory_space<vmem>>, vector<32x32xbf16>
    %cst_149 = arith.constant dense<0.000000e+00> : vector<8x32xf32>
    %478 = tpu.matmul %476, %477, %cst_149 {dimension_numbers = #tpu.dot_dimension_numbers<[1], [0], [0], [1], [0, 0, 1, 1], [], []>} : vector<8x32xbf16>, vector<32x32xbf16>, vector<8x32xf32> -> vector<8x32xf32>
    %c176 = arith.constant 176 : index
    %c0_150 = arith.constant 0 : index
    %479 = vector.load %arg6[%c176, %c0_150] : memref<376x128xf32, #tpu.memory_space<vmem>>, vector<1x32xf32>
    %480 = vector.broadcast %479 : vector<1x32xf32> to vector<8x32xf32>
    %481 = arith.addf %478, %480 : vector<8x32xf32>
    %482 = arith.truncf %481 : vector<8x32xf32> to vector<8x32xbf16>
    %c416 = arith.constant 416 : index
    %c0_151 = arith.constant 0 : index
    %483 = vector.load %arg5[%c416, %c0_151] : memref<864x128xbf16, #tpu.memory_space<vmem>>, vector<32x64xbf16>
    %cst_152 = arith.constant dense<0.000000e+00> : vector<16x64xf32>
    %484 = tpu.matmul %351, %483, %cst_152 {dimension_numbers = #tpu.dot_dimension_numbers<[1], [0], [0], [1], [0, 0, 1, 1], [], []>} : vector<16x32xbf16>, vector<32x64xbf16>, vector<16x64xf32> -> vector<16x64xf32>
    %c184 = arith.constant 184 : index
    %c0_153 = arith.constant 0 : index
    %485 = vector.load %arg6[%c184, %c0_153] : memref<376x128xf32, #tpu.memory_space<vmem>>, vector<1x64xf32>
    %486 = vector.broadcast %485 : vector<1x64xf32> to vector<16x64xf32>
    %487 = arith.addf %484, %486 : vector<16x64xf32>
    %488 = arith.truncf %487 : vector<16x64xf32> to vector<16x64xbf16>
    %489 = vector.extract_strided_slice %488 {offsets = [0, 0], sizes = [16, 32], strides = [1, 1]} : vector<16x64xbf16> to vector<16x32xbf16>
    %490 = vector.extract_strided_slice %488 {offsets = [0, 32], sizes = [16, 32], strides = [1, 1]} : vector<16x64xbf16> to vector<16x32xbf16>
    %491 = vector.shape_cast %0 : vector<1x1x16xf32> to vector<1x16xf32>
    %492 = vector.extract_strided_slice %482 {offsets = [0, 0], sizes = [8, 8], strides = [1, 1]} : vector<8x32xbf16> to vector<8x8xbf16>
    %493 = vector.extract_strided_slice %489 {offsets = [0, 0], sizes = [16, 8], strides = [1, 1]} : vector<16x32xbf16> to vector<16x8xbf16>
    %cst_154 = arith.constant dense<0.000000e+00> : vector<8x16xf32>
    %494 = tpu.matmul %492, %493, %cst_154 {dimension_numbers = #tpu.dot_dimension_numbers<[1], [1], [0], [0], [0, 0, 1, 0], [], []>} : vector<8x8xbf16>, vector<16x8xbf16>, vector<8x16xf32> -> vector<8x16xf32>
    %cst_155 = arith.constant 0.353553385 : f32
    %495 = vector.broadcast %cst_155 : f32 to vector<8x16xf32>
    %496 = arith.mulf %494, %495 : vector<8x16xf32>
    %497 = vector.broadcast %491 : vector<1x16xf32> to vector<8x16xf32>
    %498 = arith.addf %496, %497 : vector<8x16xf32>
    %cst_156 = arith.constant dense<0xFF800000> : vector<8xf32>
    %499 = vector.multi_reduction <maximumf>, %498, %cst_156 [1] : vector<8x16xf32> to vector<8xf32>
    %500 = vector.shape_cast %499 : vector<8xf32> to vector<8x1xf32>
    %501 = vector.broadcast %500 : vector<8x1xf32> to vector<8x16xf32>
    %502 = arith.subf %498, %501 : vector<8x16xf32>
    %503 = math.exp %502 : vector<8x16xf32>
    %cst_157 = arith.constant dense<0.000000e+00> : vector<8xf32>
    %504 = vector.multi_reduction <add>, %503, %cst_157 [1] : vector<8x16xf32> to vector<8xf32>
    %505 = vector.shape_cast %504 : vector<8xf32> to vector<8x1xf32>
    %506 = tpu.reciprocal %505 {approx = true} : vector<8x1xf32> -> vector<8x1xf32>
    %507 = vector.broadcast %506 : vector<8x1xf32> to vector<8x16xf32>
    %508 = arith.mulf %503, %507 : vector<8x16xf32>
    %509 = arith.truncf %508 : vector<8x16xf32> to vector<8x16xbf16>
    %510 = vector.extract_strided_slice %490 {offsets = [0, 0], sizes = [16, 8], strides = [1, 1]} : vector<16x32xbf16> to vector<16x8xbf16>
    %cst_158 = arith.constant dense<0.000000e+00> : vector<8x8xf32>
    %511 = tpu.matmul %509, %510, %cst_158 {dimension_numbers = #tpu.dot_dimension_numbers<[1], [0], [0], [1], [0, 0, 1, 1], [], []>} : vector<8x16xbf16>, vector<16x8xbf16>, vector<8x8xf32> -> vector<8x8xf32>
    %512 = vector.extract_strided_slice %482 {offsets = [0, 8], sizes = [8, 8], strides = [1, 1]} : vector<8x32xbf16> to vector<8x8xbf16>
    %513 = vector.extract_strided_slice %489 {offsets = [0, 8], sizes = [16, 8], strides = [1, 1]} : vector<16x32xbf16> to vector<16x8xbf16>
    %cst_159 = arith.constant dense<0.000000e+00> : vector<8x16xf32>
    %514 = tpu.matmul %512, %513, %cst_159 {dimension_numbers = #tpu.dot_dimension_numbers<[1], [1], [0], [0], [0, 0, 1, 0], [], []>} : vector<8x8xbf16>, vector<16x8xbf16>, vector<8x16xf32> -> vector<8x16xf32>
    %cst_160 = arith.constant 0.353553385 : f32
    %515 = vector.broadcast %cst_160 : f32 to vector<8x16xf32>
    %516 = arith.mulf %514, %515 : vector<8x16xf32>
    %517 = vector.broadcast %491 : vector<1x16xf32> to vector<8x16xf32>
    %518 = arith.addf %516, %517 : vector<8x16xf32>
    %cst_161 = arith.constant dense<0xFF800000> : vector<8xf32>
    %519 = vector.multi_reduction <maximumf>, %518, %cst_161 [1] : vector<8x16xf32> to vector<8xf32>
    %520 = vector.shape_cast %519 : vector<8xf32> to vector<8x1xf32>
    %521 = vector.broadcast %520 : vector<8x1xf32> to vector<8x16xf32>
    %522 = arith.subf %518, %521 : vector<8x16xf32>
    %523 = math.exp %522 : vector<8x16xf32>
    %cst_162 = arith.constant dense<0.000000e+00> : vector<8xf32>
    %524 = vector.multi_reduction <add>, %523, %cst_162 [1] : vector<8x16xf32> to vector<8xf32>
    %525 = vector.shape_cast %524 : vector<8xf32> to vector<8x1xf32>
    %526 = tpu.reciprocal %525 {approx = true} : vector<8x1xf32> -> vector<8x1xf32>
    %527 = vector.broadcast %526 : vector<8x1xf32> to vector<8x16xf32>
    %528 = arith.mulf %523, %527 : vector<8x16xf32>
    %529 = arith.truncf %528 : vector<8x16xf32> to vector<8x16xbf16>
    %530 = vector.extract_strided_slice %490 {offsets = [0, 8], sizes = [16, 8], strides = [1, 1]} : vector<16x32xbf16> to vector<16x8xbf16>
    %cst_163 = arith.constant dense<0.000000e+00> : vector<8x8xf32>
    %531 = tpu.matmul %529, %530, %cst_163 {dimension_numbers = #tpu.dot_dimension_numbers<[1], [0], [0], [1], [0, 0, 1, 1], [], []>} : vector<8x16xbf16>, vector<16x8xbf16>, vector<8x8xf32> -> vector<8x8xf32>
    %532 = vector.extract_strided_slice %482 {offsets = [0, 16], sizes = [8, 8], strides = [1, 1]} : vector<8x32xbf16> to vector<8x8xbf16>
    %533 = vector.extract_strided_slice %489 {offsets = [0, 16], sizes = [16, 8], strides = [1, 1]} : vector<16x32xbf16> to vector<16x8xbf16>
    %cst_164 = arith.constant dense<0.000000e+00> : vector<8x16xf32>
    %534 = tpu.matmul %532, %533, %cst_164 {dimension_numbers = #tpu.dot_dimension_numbers<[1], [1], [0], [0], [0, 0, 1, 0], [], []>} : vector<8x8xbf16>, vector<16x8xbf16>, vector<8x16xf32> -> vector<8x16xf32>
    %cst_165 = arith.constant 0.353553385 : f32
    %535 = vector.broadcast %cst_165 : f32 to vector<8x16xf32>
    %536 = arith.mulf %534, %535 : vector<8x16xf32>
    %537 = vector.broadcast %491 : vector<1x16xf32> to vector<8x16xf32>
    %538 = arith.addf %536, %537 : vector<8x16xf32>
    %cst_166 = arith.constant dense<0xFF800000> : vector<8xf32>
    %539 = vector.multi_reduction <maximumf>, %538, %cst_166 [1] : vector<8x16xf32> to vector<8xf32>
    %540 = vector.shape_cast %539 : vector<8xf32> to vector<8x1xf32>
    %541 = vector.broadcast %540 : vector<8x1xf32> to vector<8x16xf32>
    %542 = arith.subf %538, %541 : vector<8x16xf32>
    %543 = math.exp %542 : vector<8x16xf32>
    %cst_167 = arith.constant dense<0.000000e+00> : vector<8xf32>
    %544 = vector.multi_reduction <add>, %543, %cst_167 [1] : vector<8x16xf32> to vector<8xf32>
    %545 = vector.shape_cast %544 : vector<8xf32> to vector<8x1xf32>
    %546 = tpu.reciprocal %545 {approx = true} : vector<8x1xf32> -> vector<8x1xf32>
    %547 = vector.broadcast %546 : vector<8x1xf32> to vector<8x16xf32>
    %548 = arith.mulf %543, %547 : vector<8x16xf32>
    %549 = arith.truncf %548 : vector<8x16xf32> to vector<8x16xbf16>
    %550 = vector.extract_strided_slice %490 {offsets = [0, 16], sizes = [16, 8], strides = [1, 1]} : vector<16x32xbf16> to vector<16x8xbf16>
    %cst_168 = arith.constant dense<0.000000e+00> : vector<8x8xf32>
    %551 = tpu.matmul %549, %550, %cst_168 {dimension_numbers = #tpu.dot_dimension_numbers<[1], [0], [0], [1], [0, 0, 1, 1], [], []>} : vector<8x16xbf16>, vector<16x8xbf16>, vector<8x8xf32> -> vector<8x8xf32>
    %552 = vector.extract_strided_slice %482 {offsets = [0, 24], sizes = [8, 8], strides = [1, 1]} : vector<8x32xbf16> to vector<8x8xbf16>
    %553 = vector.extract_strided_slice %489 {offsets = [0, 24], sizes = [16, 8], strides = [1, 1]} : vector<16x32xbf16> to vector<16x8xbf16>
    %cst_169 = arith.constant dense<0.000000e+00> : vector<8x16xf32>
    %554 = tpu.matmul %552, %553, %cst_169 {dimension_numbers = #tpu.dot_dimension_numbers<[1], [1], [0], [0], [0, 0, 1, 0], [], []>} : vector<8x8xbf16>, vector<16x8xbf16>, vector<8x16xf32> -> vector<8x16xf32>
    %cst_170 = arith.constant 0.353553385 : f32
    %555 = vector.broadcast %cst_170 : f32 to vector<8x16xf32>
    %556 = arith.mulf %554, %555 : vector<8x16xf32>
    %557 = vector.broadcast %491 : vector<1x16xf32> to vector<8x16xf32>
    %558 = arith.addf %556, %557 : vector<8x16xf32>
    %cst_171 = arith.constant dense<0xFF800000> : vector<8xf32>
    %559 = vector.multi_reduction <maximumf>, %558, %cst_171 [1] : vector<8x16xf32> to vector<8xf32>
    %560 = vector.shape_cast %559 : vector<8xf32> to vector<8x1xf32>
    %561 = vector.broadcast %560 : vector<8x1xf32> to vector<8x16xf32>
    %562 = arith.subf %558, %561 : vector<8x16xf32>
    %563 = math.exp %562 : vector<8x16xf32>
    %cst_172 = arith.constant dense<0.000000e+00> : vector<8xf32>
    %564 = vector.multi_reduction <add>, %563, %cst_172 [1] : vector<8x16xf32> to vector<8xf32>
    %565 = vector.shape_cast %564 : vector<8xf32> to vector<8x1xf32>
    %566 = tpu.reciprocal %565 {approx = true} : vector<8x1xf32> -> vector<8x1xf32>
    %567 = vector.broadcast %566 : vector<8x1xf32> to vector<8x16xf32>
    %568 = arith.mulf %563, %567 : vector<8x16xf32>
    %569 = arith.truncf %568 : vector<8x16xf32> to vector<8x16xbf16>
    %570 = vector.extract_strided_slice %490 {offsets = [0, 24], sizes = [16, 8], strides = [1, 1]} : vector<16x32xbf16> to vector<16x8xbf16>
    %cst_173 = arith.constant dense<0.000000e+00> : vector<8x8xf32>
    %571 = tpu.matmul %569, %570, %cst_173 {dimension_numbers = #tpu.dot_dimension_numbers<[1], [0], [0], [1], [0, 0, 1, 1], [], []>} : vector<8x16xbf16>, vector<16x8xbf16>, vector<8x8xf32> -> vector<8x8xf32>
    %572 = tpu.concatenate %511, %531, %551, %571 in 1 : vector<8x8xf32>, vector<8x8xf32>, vector<8x8xf32>, vector<8x8xf32> -> vector<8x32xf32>
    %573 = arith.truncf %572 : vector<8x32xf32> to vector<8x32xbf16>
    %c448 = arith.constant 448 : index
    %c0_174 = arith.constant 0 : index
    %574 = vector.load %arg5[%c448, %c0_174] : memref<864x128xbf16, #tpu.memory_space<vmem>>, vector<32x32xbf16>
    %cst_175 = arith.constant dense<0.000000e+00> : vector<8x32xf32>
    %575 = tpu.matmul %573, %574, %cst_175 {dimension_numbers = #tpu.dot_dimension_numbers<[1], [0], [0], [1], [0, 0, 1, 1], [], []>} : vector<8x32xbf16>, vector<32x32xbf16>, vector<8x32xf32> -> vector<8x32xf32>
    %c192_176 = arith.constant 192 : index
    %c0_177 = arith.constant 0 : index
    %576 = vector.load %arg6[%c192_176, %c0_177] : memref<376x128xf32, #tpu.memory_space<vmem>>, vector<1x32xf32>
    %577 = vector.broadcast %576 : vector<1x32xf32> to vector<8x32xf32>
    %578 = arith.addf %575, %577 : vector<8x32xf32>
    %579 = arith.addf %475, %578 : vector<8x32xf32>
    %c200 = arith.constant 200 : index
    %c0_178 = arith.constant 0 : index
    %580 = vector.load %arg6[%c200, %c0_178] : memref<376x128xf32, #tpu.memory_space<vmem>>, vector<1x32xf32>
    %c208 = arith.constant 208 : index
    %c0_179 = arith.constant 0 : index
    %581 = vector.load %arg6[%c208, %c0_179] : memref<376x128xf32, #tpu.memory_space<vmem>>, vector<1x32xf32>
    %cst_180 = arith.constant dense<0.000000e+00> : vector<8xf32>
    %582 = vector.multi_reduction <add>, %579, %cst_180 [1] : vector<8x32xf32> to vector<8xf32>
    %583 = vector.shape_cast %582 : vector<8xf32> to vector<8x1xf32>
    %cst_181 = arith.constant 3.200000e+01 : f32
    %584 = vector.broadcast %cst_181 : f32 to vector<8x1xf32>
    %585 = arith.divf %583, %584 : vector<8x1xf32>
    %586 = arith.mulf %579, %579 : vector<8x32xf32>
    %cst_182 = arith.constant dense<0.000000e+00> : vector<8xf32>
    %587 = vector.multi_reduction <add>, %586, %cst_182 [1] : vector<8x32xf32> to vector<8xf32>
    %588 = vector.shape_cast %587 : vector<8xf32> to vector<8x1xf32>
    %cst_183 = arith.constant 3.200000e+01 : f32
    %589 = vector.broadcast %cst_183 : f32 to vector<8x1xf32>
    %590 = arith.divf %588, %589 : vector<8x1xf32>
    %591 = arith.mulf %585, %585 : vector<8x1xf32>
    %592 = arith.subf %590, %591 : vector<8x1xf32>
    %593 = vector.broadcast %585 : vector<8x1xf32> to vector<8x32xf32>
    %594 = arith.subf %579, %593 : vector<8x32xf32>
    %cst_184 = arith.constant 9.99999974E-6 : f32
    %595 = vector.broadcast %cst_184 : f32 to vector<8x1xf32>
    %596 = arith.addf %592, %595 : vector<8x1xf32>
    %597 = math.rsqrt %596 : vector<8x1xf32>
    %598 = vector.broadcast %597 : vector<8x1xf32> to vector<8x32xf32>
    %599 = arith.mulf %594, %598 : vector<8x32xf32>
    %600 = vector.broadcast %580 : vector<1x32xf32> to vector<8x32xf32>
    %601 = arith.mulf %599, %600 : vector<8x32xf32>
    %602 = vector.broadcast %581 : vector<1x32xf32> to vector<8x32xf32>
    %603 = arith.addf %601, %602 : vector<8x32xf32>
    %604 = arith.truncf %603 : vector<8x32xf32> to vector<8x32xbf16>
    %c480 = arith.constant 480 : index
    %c0_185 = arith.constant 0 : index
    %605 = vector.load %arg5[%c480, %c0_185] : memref<864x128xbf16, #tpu.memory_space<vmem>>, vector<32x64xbf16>
    %cst_186 = arith.constant dense<0.000000e+00> : vector<8x64xf32>
    %606 = tpu.matmul %604, %605, %cst_186 {dimension_numbers = #tpu.dot_dimension_numbers<[1], [0], [0], [1], [0, 0, 1, 1], [], []>} : vector<8x32xbf16>, vector<32x64xbf16>, vector<8x64xf32> -> vector<8x64xf32>
    %c216 = arith.constant 216 : index
    %c0_187 = arith.constant 0 : index
    %607 = vector.load %arg6[%c216, %c0_187] : memref<376x128xf32, #tpu.memory_space<vmem>>, vector<1x64xf32>
    %608 = vector.broadcast %607 : vector<1x64xf32> to vector<8x64xf32>
    %609 = arith.addf %606, %608 : vector<8x64xf32>
    %cst_188 = arith.constant 0.000000e+00 : f32
    %610 = vector.broadcast %cst_188 : f32 to vector<8x64xf32>
    %611 = arith.maximumf %609, %610 : vector<8x64xf32>
    %612 = arith.truncf %611 : vector<8x64xf32> to vector<8x64xbf16>
    %c512 = arith.constant 512 : index
    %c0_189 = arith.constant 0 : index
    %613 = vector.load %arg5[%c512, %c0_189] : memref<864x128xbf16, #tpu.memory_space<vmem>>, vector<64x32xbf16>
    %cst_190 = arith.constant dense<0.000000e+00> : vector<8x32xf32>
    %614 = tpu.matmul %612, %613, %cst_190 {dimension_numbers = #tpu.dot_dimension_numbers<[1], [0], [0], [1], [0, 0, 1, 1], [], []>} : vector<8x64xbf16>, vector<64x32xbf16>, vector<8x32xf32> -> vector<8x32xf32>
    %c224_191 = arith.constant 224 : index
    %c0_192 = arith.constant 0 : index
    %615 = vector.load %arg6[%c224_191, %c0_192] : memref<376x128xf32, #tpu.memory_space<vmem>>, vector<1x32xf32>
    %616 = vector.broadcast %615 : vector<1x32xf32> to vector<8x32xf32>
    %617 = arith.addf %614, %616 : vector<8x32xf32>
    %618 = arith.addf %603, %617 : vector<8x32xf32>
    %c232 = arith.constant 232 : index
    %c0_193 = arith.constant 0 : index
    %619 = vector.load %arg6[%c232, %c0_193] : memref<376x128xf32, #tpu.memory_space<vmem>>, vector<1x32xf32>
    %c240 = arith.constant 240 : index
    %c0_194 = arith.constant 0 : index
    %620 = vector.load %arg6[%c240, %c0_194] : memref<376x128xf32, #tpu.memory_space<vmem>>, vector<1x32xf32>
    %cst_195 = arith.constant dense<0.000000e+00> : vector<8xf32>
    %621 = vector.multi_reduction <add>, %618, %cst_195 [1] : vector<8x32xf32> to vector<8xf32>
    %622 = vector.shape_cast %621 : vector<8xf32> to vector<8x1xf32>
    %cst_196 = arith.constant 3.200000e+01 : f32
    %623 = vector.broadcast %cst_196 : f32 to vector<8x1xf32>
    %624 = arith.divf %622, %623 : vector<8x1xf32>
    %625 = arith.mulf %618, %618 : vector<8x32xf32>
    %cst_197 = arith.constant dense<0.000000e+00> : vector<8xf32>
    %626 = vector.multi_reduction <add>, %625, %cst_197 [1] : vector<8x32xf32> to vector<8xf32>
    %627 = vector.shape_cast %626 : vector<8xf32> to vector<8x1xf32>
    %cst_198 = arith.constant 3.200000e+01 : f32
    %628 = vector.broadcast %cst_198 : f32 to vector<8x1xf32>
    %629 = arith.divf %627, %628 : vector<8x1xf32>
    %630 = arith.mulf %624, %624 : vector<8x1xf32>
    %631 = arith.subf %629, %630 : vector<8x1xf32>
    %632 = vector.broadcast %624 : vector<8x1xf32> to vector<8x32xf32>
    %633 = arith.subf %618, %632 : vector<8x32xf32>
    %cst_199 = arith.constant 9.99999974E-6 : f32
    %634 = vector.broadcast %cst_199 : f32 to vector<8x1xf32>
    %635 = arith.addf %631, %634 : vector<8x1xf32>
    %636 = math.rsqrt %635 : vector<8x1xf32>
    %637 = vector.broadcast %636 : vector<8x1xf32> to vector<8x32xf32>
    %638 = arith.mulf %633, %637 : vector<8x32xf32>
    %639 = vector.broadcast %619 : vector<1x32xf32> to vector<8x32xf32>
    %640 = arith.mulf %638, %639 : vector<8x32xf32>
    %641 = vector.broadcast %620 : vector<1x32xf32> to vector<8x32xf32>
    %642 = arith.addf %640, %641 : vector<8x32xf32>
    %643 = arith.truncf %642 : vector<8x32xf32> to vector<8x32xbf16>
    %c576 = arith.constant 576 : index
    %c0_200 = arith.constant 0 : index
    %644 = vector.load %arg5[%c576, %c0_200] : memref<864x128xbf16, #tpu.memory_space<vmem>>, vector<32x96xbf16>
    %cst_201 = arith.constant dense<0.000000e+00> : vector<8x96xf32>
    %645 = tpu.matmul %643, %644, %cst_201 {dimension_numbers = #tpu.dot_dimension_numbers<[1], [0], [0], [1], [0, 0, 1, 1], [], []>} : vector<8x32xbf16>, vector<32x96xbf16>, vector<8x96xf32> -> vector<8x96xf32>
    %c248 = arith.constant 248 : index
    %c0_202 = arith.constant 0 : index
    %646 = vector.load %arg6[%c248, %c0_202] : memref<376x128xf32, #tpu.memory_space<vmem>>, vector<1x96xf32>
    %647 = vector.broadcast %646 : vector<1x96xf32> to vector<8x96xf32>
    %648 = arith.addf %645, %647 : vector<8x96xf32>
    %649 = arith.truncf %648 : vector<8x96xf32> to vector<8x96xbf16>
    %650 = vector.extract_strided_slice %649 {offsets = [0, 0], sizes = [8, 32], strides = [1, 1]} : vector<8x96xbf16> to vector<8x32xbf16>
    %651 = vector.extract_strided_slice %649 {offsets = [0, 32], sizes = [8, 32], strides = [1, 1]} : vector<8x96xbf16> to vector<8x32xbf16>
    %652 = vector.extract_strided_slice %649 {offsets = [0, 64], sizes = [8, 32], strides = [1, 1]} : vector<8x96xbf16> to vector<8x32xbf16>
    %653 = vector.shape_cast %1 : vector<1x1x8xf32> to vector<1x8xf32>
    %654 = vector.extract_strided_slice %650 {offsets = [0, 0], sizes = [8, 8], strides = [1, 1]} : vector<8x32xbf16> to vector<8x8xbf16>
    %655 = vector.extract_strided_slice %651 {offsets = [0, 0], sizes = [8, 8], strides = [1, 1]} : vector<8x32xbf16> to vector<8x8xbf16>
    %cst_203 = arith.constant dense<0.000000e+00> : vector<8x8xf32>
    %656 = tpu.matmul %654, %655, %cst_203 {dimension_numbers = #tpu.dot_dimension_numbers<[1], [1], [0], [0], [0, 0, 1, 0], [], []>} : vector<8x8xbf16>, vector<8x8xbf16>, vector<8x8xf32> -> vector<8x8xf32>
    %cst_204 = arith.constant 0.353553385 : f32
    %657 = vector.broadcast %cst_204 : f32 to vector<8x8xf32>
    %658 = arith.mulf %656, %657 : vector<8x8xf32>
    %659 = vector.broadcast %653 : vector<1x8xf32> to vector<8x8xf32>
    %660 = arith.addf %658, %659 : vector<8x8xf32>
    %cst_205 = arith.constant dense<0xFF800000> : vector<8xf32>
    %661 = vector.multi_reduction <maximumf>, %660, %cst_205 [1] : vector<8x8xf32> to vector<8xf32>
    %662 = vector.shape_cast %661 : vector<8xf32> to vector<8x1xf32>
    %663 = vector.broadcast %662 : vector<8x1xf32> to vector<8x8xf32>
    %664 = arith.subf %660, %663 : vector<8x8xf32>
    %665 = math.exp %664 : vector<8x8xf32>
    %cst_206 = arith.constant dense<0.000000e+00> : vector<8xf32>
    %666 = vector.multi_reduction <add>, %665, %cst_206 [1] : vector<8x8xf32> to vector<8xf32>
    %667 = vector.shape_cast %666 : vector<8xf32> to vector<8x1xf32>
    %668 = tpu.reciprocal %667 {approx = true} : vector<8x1xf32> -> vector<8x1xf32>
    %669 = vector.broadcast %668 : vector<8x1xf32> to vector<8x8xf32>
    %670 = arith.mulf %665, %669 : vector<8x8xf32>
    %671 = arith.truncf %670 : vector<8x8xf32> to vector<8x8xbf16>
    %672 = vector.extract_strided_slice %652 {offsets = [0, 0], sizes = [8, 8], strides = [1, 1]} : vector<8x32xbf16> to vector<8x8xbf16>
    %cst_207 = arith.constant dense<0.000000e+00> : vector<8x8xf32>
    %673 = tpu.matmul %671, %672, %cst_207 {dimension_numbers = #tpu.dot_dimension_numbers<[1], [0], [0], [1], [0, 0, 1, 1], [], []>} : vector<8x8xbf16>, vector<8x8xbf16>, vector<8x8xf32> -> vector<8x8xf32>
    %674 = vector.extract_strided_slice %650 {offsets = [0, 8], sizes = [8, 8], strides = [1, 1]} : vector<8x32xbf16> to vector<8x8xbf16>
    %675 = vector.extract_strided_slice %651 {offsets = [0, 8], sizes = [8, 8], strides = [1, 1]} : vector<8x32xbf16> to vector<8x8xbf16>
    %cst_208 = arith.constant dense<0.000000e+00> : vector<8x8xf32>
    %676 = tpu.matmul %674, %675, %cst_208 {dimension_numbers = #tpu.dot_dimension_numbers<[1], [1], [0], [0], [0, 0, 1, 0], [], []>} : vector<8x8xbf16>, vector<8x8xbf16>, vector<8x8xf32> -> vector<8x8xf32>
    %cst_209 = arith.constant 0.353553385 : f32
    %677 = vector.broadcast %cst_209 : f32 to vector<8x8xf32>
    %678 = arith.mulf %676, %677 : vector<8x8xf32>
    %679 = vector.broadcast %653 : vector<1x8xf32> to vector<8x8xf32>
    %680 = arith.addf %678, %679 : vector<8x8xf32>
    %cst_210 = arith.constant dense<0xFF800000> : vector<8xf32>
    %681 = vector.multi_reduction <maximumf>, %680, %cst_210 [1] : vector<8x8xf32> to vector<8xf32>
    %682 = vector.shape_cast %681 : vector<8xf32> to vector<8x1xf32>
    %683 = vector.broadcast %682 : vector<8x1xf32> to vector<8x8xf32>
    %684 = arith.subf %680, %683 : vector<8x8xf32>
    %685 = math.exp %684 : vector<8x8xf32>
    %cst_211 = arith.constant dense<0.000000e+00> : vector<8xf32>
    %686 = vector.multi_reduction <add>, %685, %cst_211 [1] : vector<8x8xf32> to vector<8xf32>
    %687 = vector.shape_cast %686 : vector<8xf32> to vector<8x1xf32>
    %688 = tpu.reciprocal %687 {approx = true} : vector<8x1xf32> -> vector<8x1xf32>
    %689 = vector.broadcast %688 : vector<8x1xf32> to vector<8x8xf32>
    %690 = arith.mulf %685, %689 : vector<8x8xf32>
    %691 = arith.truncf %690 : vector<8x8xf32> to vector<8x8xbf16>
    %692 = vector.extract_strided_slice %652 {offsets = [0, 8], sizes = [8, 8], strides = [1, 1]} : vector<8x32xbf16> to vector<8x8xbf16>
    %cst_212 = arith.constant dense<0.000000e+00> : vector<8x8xf32>
    %693 = tpu.matmul %691, %692, %cst_212 {dimension_numbers = #tpu.dot_dimension_numbers<[1], [0], [0], [1], [0, 0, 1, 1], [], []>} : vector<8x8xbf16>, vector<8x8xbf16>, vector<8x8xf32> -> vector<8x8xf32>
    %694 = vector.extract_strided_slice %650 {offsets = [0, 16], sizes = [8, 8], strides = [1, 1]} : vector<8x32xbf16> to vector<8x8xbf16>
    %695 = vector.extract_strided_slice %651 {offsets = [0, 16], sizes = [8, 8], strides = [1, 1]} : vector<8x32xbf16> to vector<8x8xbf16>
    %cst_213 = arith.constant dense<0.000000e+00> : vector<8x8xf32>
    %696 = tpu.matmul %694, %695, %cst_213 {dimension_numbers = #tpu.dot_dimension_numbers<[1], [1], [0], [0], [0, 0, 1, 0], [], []>} : vector<8x8xbf16>, vector<8x8xbf16>, vector<8x8xf32> -> vector<8x8xf32>
    %cst_214 = arith.constant 0.353553385 : f32
    %697 = vector.broadcast %cst_214 : f32 to vector<8x8xf32>
    %698 = arith.mulf %696, %697 : vector<8x8xf32>
    %699 = vector.broadcast %653 : vector<1x8xf32> to vector<8x8xf32>
    %700 = arith.addf %698, %699 : vector<8x8xf32>
    %cst_215 = arith.constant dense<0xFF800000> : vector<8xf32>
    %701 = vector.multi_reduction <maximumf>, %700, %cst_215 [1] : vector<8x8xf32> to vector<8xf32>
    %702 = vector.shape_cast %701 : vector<8xf32> to vector<8x1xf32>
    %703 = vector.broadcast %702 : vector<8x1xf32> to vector<8x8xf32>
    %704 = arith.subf %700, %703 : vector<8x8xf32>
    %705 = math.exp %704 : vector<8x8xf32>
    %cst_216 = arith.constant dense<0.000000e+00> : vector<8xf32>
    %706 = vector.multi_reduction <add>, %705, %cst_216 [1] : vector<8x8xf32> to vector<8xf32>
    %707 = vector.shape_cast %706 : vector<8xf32> to vector<8x1xf32>
    %708 = tpu.reciprocal %707 {approx = true} : vector<8x1xf32> -> vector<8x1xf32>
    %709 = vector.broadcast %708 : vector<8x1xf32> to vector<8x8xf32>
    %710 = arith.mulf %705, %709 : vector<8x8xf32>
    %711 = arith.truncf %710 : vector<8x8xf32> to vector<8x8xbf16>
    %712 = vector.extract_strided_slice %652 {offsets = [0, 16], sizes = [8, 8], strides = [1, 1]} : vector<8x32xbf16> to vector<8x8xbf16>
    %cst_217 = arith.constant dense<0.000000e+00> : vector<8x8xf32>
    %713 = tpu.matmul %711, %712, %cst_217 {dimension_numbers = #tpu.dot_dimension_numbers<[1], [0], [0], [1], [0, 0, 1, 1], [], []>} : vector<8x8xbf16>, vector<8x8xbf16>, vector<8x8xf32> -> vector<8x8xf32>
    %714 = vector.extract_strided_slice %650 {offsets = [0, 24], sizes = [8, 8], strides = [1, 1]} : vector<8x32xbf16> to vector<8x8xbf16>
    %715 = vector.extract_strided_slice %651 {offsets = [0, 24], sizes = [8, 8], strides = [1, 1]} : vector<8x32xbf16> to vector<8x8xbf16>
    %cst_218 = arith.constant dense<0.000000e+00> : vector<8x8xf32>
    %716 = tpu.matmul %714, %715, %cst_218 {dimension_numbers = #tpu.dot_dimension_numbers<[1], [1], [0], [0], [0, 0, 1, 0], [], []>} : vector<8x8xbf16>, vector<8x8xbf16>, vector<8x8xf32> -> vector<8x8xf32>
    %cst_219 = arith.constant 0.353553385 : f32
    %717 = vector.broadcast %cst_219 : f32 to vector<8x8xf32>
    %718 = arith.mulf %716, %717 : vector<8x8xf32>
    %719 = vector.broadcast %653 : vector<1x8xf32> to vector<8x8xf32>
    %720 = arith.addf %718, %719 : vector<8x8xf32>
    %cst_220 = arith.constant dense<0xFF800000> : vector<8xf32>
    %721 = vector.multi_reduction <maximumf>, %720, %cst_220 [1] : vector<8x8xf32> to vector<8xf32>
    %722 = vector.shape_cast %721 : vector<8xf32> to vector<8x1xf32>
    %723 = vector.broadcast %722 : vector<8x1xf32> to vector<8x8xf32>
    %724 = arith.subf %720, %723 : vector<8x8xf32>
    %725 = math.exp %724 : vector<8x8xf32>
    %cst_221 = arith.constant dense<0.000000e+00> : vector<8xf32>
    %726 = vector.multi_reduction <add>, %725, %cst_221 [1] : vector<8x8xf32> to vector<8xf32>
    %727 = vector.shape_cast %726 : vector<8xf32> to vector<8x1xf32>
    %728 = tpu.reciprocal %727 {approx = true} : vector<8x1xf32> -> vector<8x1xf32>
    %729 = vector.broadcast %728 : vector<8x1xf32> to vector<8x8xf32>
    %730 = arith.mulf %725, %729 : vector<8x8xf32>
    %731 = arith.truncf %730 : vector<8x8xf32> to vector<8x8xbf16>
    %732 = vector.extract_strided_slice %652 {offsets = [0, 24], sizes = [8, 8], strides = [1, 1]} : vector<8x32xbf16> to vector<8x8xbf16>
    %cst_222 = arith.constant dense<0.000000e+00> : vector<8x8xf32>
    %733 = tpu.matmul %731, %732, %cst_222 {dimension_numbers = #tpu.dot_dimension_numbers<[1], [0], [0], [1], [0, 0, 1, 1], [], []>} : vector<8x8xbf16>, vector<8x8xbf16>, vector<8x8xf32> -> vector<8x8xf32>
    %734 = tpu.concatenate %673, %693, %713, %733 in 1 : vector<8x8xf32>, vector<8x8xf32>, vector<8x8xf32>, vector<8x8xf32> -> vector<8x32xf32>
    %735 = arith.truncf %734 : vector<8x32xf32> to vector<8x32xbf16>
    %c608 = arith.constant 608 : index
    %c0_223 = arith.constant 0 : index
    %736 = vector.load %arg5[%c608, %c0_223] : memref<864x128xbf16, #tpu.memory_space<vmem>>, vector<32x32xbf16>
    %cst_224 = arith.constant dense<0.000000e+00> : vector<8x32xf32>
    %737 = tpu.matmul %735, %736, %cst_224 {dimension_numbers = #tpu.dot_dimension_numbers<[1], [0], [0], [1], [0, 0, 1, 1], [], []>} : vector<8x32xbf16>, vector<32x32xbf16>, vector<8x32xf32> -> vector<8x32xf32>
    %c256_225 = arith.constant 256 : index
    %c0_226 = arith.constant 0 : index
    %738 = vector.load %arg6[%c256_225, %c0_226] : memref<376x128xf32, #tpu.memory_space<vmem>>, vector<1x32xf32>
    %739 = vector.broadcast %738 : vector<1x32xf32> to vector<8x32xf32>
    %740 = arith.addf %737, %739 : vector<8x32xf32>
    %741 = arith.addf %642, %740 : vector<8x32xf32>
    %c264 = arith.constant 264 : index
    %c0_227 = arith.constant 0 : index
    %742 = vector.load %arg6[%c264, %c0_227] : memref<376x128xf32, #tpu.memory_space<vmem>>, vector<1x32xf32>
    %c272 = arith.constant 272 : index
    %c0_228 = arith.constant 0 : index
    %743 = vector.load %arg6[%c272, %c0_228] : memref<376x128xf32, #tpu.memory_space<vmem>>, vector<1x32xf32>
    %cst_229 = arith.constant dense<0.000000e+00> : vector<8xf32>
    %744 = vector.multi_reduction <add>, %741, %cst_229 [1] : vector<8x32xf32> to vector<8xf32>
    %745 = vector.shape_cast %744 : vector<8xf32> to vector<8x1xf32>
    %cst_230 = arith.constant 3.200000e+01 : f32
    %746 = vector.broadcast %cst_230 : f32 to vector<8x1xf32>
    %747 = arith.divf %745, %746 : vector<8x1xf32>
    %748 = arith.mulf %741, %741 : vector<8x32xf32>
    %cst_231 = arith.constant dense<0.000000e+00> : vector<8xf32>
    %749 = vector.multi_reduction <add>, %748, %cst_231 [1] : vector<8x32xf32> to vector<8xf32>
    %750 = vector.shape_cast %749 : vector<8xf32> to vector<8x1xf32>
    %cst_232 = arith.constant 3.200000e+01 : f32
    %751 = vector.broadcast %cst_232 : f32 to vector<8x1xf32>
    %752 = arith.divf %750, %751 : vector<8x1xf32>
    %753 = arith.mulf %747, %747 : vector<8x1xf32>
    %754 = arith.subf %752, %753 : vector<8x1xf32>
    %755 = vector.broadcast %747 : vector<8x1xf32> to vector<8x32xf32>
    %756 = arith.subf %741, %755 : vector<8x32xf32>
    %cst_233 = arith.constant 9.99999974E-6 : f32
    %757 = vector.broadcast %cst_233 : f32 to vector<8x1xf32>
    %758 = arith.addf %754, %757 : vector<8x1xf32>
    %759 = math.rsqrt %758 : vector<8x1xf32>
    %760 = vector.broadcast %759 : vector<8x1xf32> to vector<8x32xf32>
    %761 = arith.mulf %756, %760 : vector<8x32xf32>
    %762 = vector.broadcast %742 : vector<1x32xf32> to vector<8x32xf32>
    %763 = arith.mulf %761, %762 : vector<8x32xf32>
    %764 = vector.broadcast %743 : vector<1x32xf32> to vector<8x32xf32>
    %765 = arith.addf %763, %764 : vector<8x32xf32>
    %766 = arith.truncf %765 : vector<8x32xf32> to vector<8x32xbf16>
    %c640 = arith.constant 640 : index
    %c0_234 = arith.constant 0 : index
    %767 = vector.load %arg5[%c640, %c0_234] : memref<864x128xbf16, #tpu.memory_space<vmem>>, vector<32x32xbf16>
    %cst_235 = arith.constant dense<0.000000e+00> : vector<8x32xf32>
    %768 = tpu.matmul %766, %767, %cst_235 {dimension_numbers = #tpu.dot_dimension_numbers<[1], [0], [0], [1], [0, 0, 1, 1], [], []>} : vector<8x32xbf16>, vector<32x32xbf16>, vector<8x32xf32> -> vector<8x32xf32>
    %c280 = arith.constant 280 : index
    %c0_236 = arith.constant 0 : index
    %769 = vector.load %arg6[%c280, %c0_236] : memref<376x128xf32, #tpu.memory_space<vmem>>, vector<1x32xf32>
    %770 = vector.broadcast %769 : vector<1x32xf32> to vector<8x32xf32>
    %771 = arith.addf %768, %770 : vector<8x32xf32>
    %772 = arith.truncf %771 : vector<8x32xf32> to vector<8x32xbf16>
    %c672 = arith.constant 672 : index
    %c0_237 = arith.constant 0 : index
    %773 = vector.load %arg5[%c672, %c0_237] : memref<864x128xbf16, #tpu.memory_space<vmem>>, vector<32x64xbf16>
    %cst_238 = arith.constant dense<0.000000e+00> : vector<16x64xf32>
    %774 = tpu.matmul %351, %773, %cst_238 {dimension_numbers = #tpu.dot_dimension_numbers<[1], [0], [0], [1], [0, 0, 1, 1], [], []>} : vector<16x32xbf16>, vector<32x64xbf16>, vector<16x64xf32> -> vector<16x64xf32>
    %c288 = arith.constant 288 : index
    %c0_239 = arith.constant 0 : index
    %775 = vector.load %arg6[%c288, %c0_239] : memref<376x128xf32, #tpu.memory_space<vmem>>, vector<1x64xf32>
    %776 = vector.broadcast %775 : vector<1x64xf32> to vector<16x64xf32>
    %777 = arith.addf %774, %776 : vector<16x64xf32>
    %778 = arith.truncf %777 : vector<16x64xf32> to vector<16x64xbf16>
    %779 = vector.extract_strided_slice %778 {offsets = [0, 0], sizes = [16, 32], strides = [1, 1]} : vector<16x64xbf16> to vector<16x32xbf16>
    %780 = vector.extract_strided_slice %778 {offsets = [0, 32], sizes = [16, 32], strides = [1, 1]} : vector<16x64xbf16> to vector<16x32xbf16>
    %781 = vector.shape_cast %0 : vector<1x1x16xf32> to vector<1x16xf32>
    %782 = vector.extract_strided_slice %772 {offsets = [0, 0], sizes = [8, 8], strides = [1, 1]} : vector<8x32xbf16> to vector<8x8xbf16>
    %783 = vector.extract_strided_slice %779 {offsets = [0, 0], sizes = [16, 8], strides = [1, 1]} : vector<16x32xbf16> to vector<16x8xbf16>
    %cst_240 = arith.constant dense<0.000000e+00> : vector<8x16xf32>
    %784 = tpu.matmul %782, %783, %cst_240 {dimension_numbers = #tpu.dot_dimension_numbers<[1], [1], [0], [0], [0, 0, 1, 0], [], []>} : vector<8x8xbf16>, vector<16x8xbf16>, vector<8x16xf32> -> vector<8x16xf32>
    %cst_241 = arith.constant 0.353553385 : f32
    %785 = vector.broadcast %cst_241 : f32 to vector<8x16xf32>
    %786 = arith.mulf %784, %785 : vector<8x16xf32>
    %787 = vector.broadcast %781 : vector<1x16xf32> to vector<8x16xf32>
    %788 = arith.addf %786, %787 : vector<8x16xf32>
    %cst_242 = arith.constant dense<0xFF800000> : vector<8xf32>
    %789 = vector.multi_reduction <maximumf>, %788, %cst_242 [1] : vector<8x16xf32> to vector<8xf32>
    %790 = vector.shape_cast %789 : vector<8xf32> to vector<8x1xf32>
    %791 = vector.broadcast %790 : vector<8x1xf32> to vector<8x16xf32>
    %792 = arith.subf %788, %791 : vector<8x16xf32>
    %793 = math.exp %792 : vector<8x16xf32>
    %cst_243 = arith.constant dense<0.000000e+00> : vector<8xf32>
    %794 = vector.multi_reduction <add>, %793, %cst_243 [1] : vector<8x16xf32> to vector<8xf32>
    %795 = vector.shape_cast %794 : vector<8xf32> to vector<8x1xf32>
    %796 = tpu.reciprocal %795 {approx = true} : vector<8x1xf32> -> vector<8x1xf32>
    %797 = vector.broadcast %796 : vector<8x1xf32> to vector<8x16xf32>
    %798 = arith.mulf %793, %797 : vector<8x16xf32>
    %799 = arith.truncf %798 : vector<8x16xf32> to vector<8x16xbf16>
    %800 = vector.extract_strided_slice %780 {offsets = [0, 0], sizes = [16, 8], strides = [1, 1]} : vector<16x32xbf16> to vector<16x8xbf16>
    %cst_244 = arith.constant dense<0.000000e+00> : vector<8x8xf32>
    %801 = tpu.matmul %799, %800, %cst_244 {dimension_numbers = #tpu.dot_dimension_numbers<[1], [0], [0], [1], [0, 0, 1, 1], [], []>} : vector<8x16xbf16>, vector<16x8xbf16>, vector<8x8xf32> -> vector<8x8xf32>
    %802 = vector.extract_strided_slice %772 {offsets = [0, 8], sizes = [8, 8], strides = [1, 1]} : vector<8x32xbf16> to vector<8x8xbf16>
    %803 = vector.extract_strided_slice %779 {offsets = [0, 8], sizes = [16, 8], strides = [1, 1]} : vector<16x32xbf16> to vector<16x8xbf16>
    %cst_245 = arith.constant dense<0.000000e+00> : vector<8x16xf32>
    %804 = tpu.matmul %802, %803, %cst_245 {dimension_numbers = #tpu.dot_dimension_numbers<[1], [1], [0], [0], [0, 0, 1, 0], [], []>} : vector<8x8xbf16>, vector<16x8xbf16>, vector<8x16xf32> -> vector<8x16xf32>
    %cst_246 = arith.constant 0.353553385 : f32
    %805 = vector.broadcast %cst_246 : f32 to vector<8x16xf32>
    %806 = arith.mulf %804, %805 : vector<8x16xf32>
    %807 = vector.broadcast %781 : vector<1x16xf32> to vector<8x16xf32>
    %808 = arith.addf %806, %807 : vector<8x16xf32>
    %cst_247 = arith.constant dense<0xFF800000> : vector<8xf32>
    %809 = vector.multi_reduction <maximumf>, %808, %cst_247 [1] : vector<8x16xf32> to vector<8xf32>
    %810 = vector.shape_cast %809 : vector<8xf32> to vector<8x1xf32>
    %811 = vector.broadcast %810 : vector<8x1xf32> to vector<8x16xf32>
    %812 = arith.subf %808, %811 : vector<8x16xf32>
    %813 = math.exp %812 : vector<8x16xf32>
    %cst_248 = arith.constant dense<0.000000e+00> : vector<8xf32>
    %814 = vector.multi_reduction <add>, %813, %cst_248 [1] : vector<8x16xf32> to vector<8xf32>
    %815 = vector.shape_cast %814 : vector<8xf32> to vector<8x1xf32>
    %816 = tpu.reciprocal %815 {approx = true} : vector<8x1xf32> -> vector<8x1xf32>
    %817 = vector.broadcast %816 : vector<8x1xf32> to vector<8x16xf32>
    %818 = arith.mulf %813, %817 : vector<8x16xf32>
    %819 = arith.truncf %818 : vector<8x16xf32> to vector<8x16xbf16>
    %820 = vector.extract_strided_slice %780 {offsets = [0, 8], sizes = [16, 8], strides = [1, 1]} : vector<16x32xbf16> to vector<16x8xbf16>
    %cst_249 = arith.constant dense<0.000000e+00> : vector<8x8xf32>
    %821 = tpu.matmul %819, %820, %cst_249 {dimension_numbers = #tpu.dot_dimension_numbers<[1], [0], [0], [1], [0, 0, 1, 1], [], []>} : vector<8x16xbf16>, vector<16x8xbf16>, vector<8x8xf32> -> vector<8x8xf32>
    %822 = vector.extract_strided_slice %772 {offsets = [0, 16], sizes = [8, 8], strides = [1, 1]} : vector<8x32xbf16> to vector<8x8xbf16>
    %823 = vector.extract_strided_slice %779 {offsets = [0, 16], sizes = [16, 8], strides = [1, 1]} : vector<16x32xbf16> to vector<16x8xbf16>
    %cst_250 = arith.constant dense<0.000000e+00> : vector<8x16xf32>
    %824 = tpu.matmul %822, %823, %cst_250 {dimension_numbers = #tpu.dot_dimension_numbers<[1], [1], [0], [0], [0, 0, 1, 0], [], []>} : vector<8x8xbf16>, vector<16x8xbf16>, vector<8x16xf32> -> vector<8x16xf32>
    %cst_251 = arith.constant 0.353553385 : f32
    %825 = vector.broadcast %cst_251 : f32 to vector<8x16xf32>
    %826 = arith.mulf %824, %825 : vector<8x16xf32>
    %827 = vector.broadcast %781 : vector<1x16xf32> to vector<8x16xf32>
    %828 = arith.addf %826, %827 : vector<8x16xf32>
    %cst_252 = arith.constant dense<0xFF800000> : vector<8xf32>
    %829 = vector.multi_reduction <maximumf>, %828, %cst_252 [1] : vector<8x16xf32> to vector<8xf32>
    %830 = vector.shape_cast %829 : vector<8xf32> to vector<8x1xf32>
    %831 = vector.broadcast %830 : vector<8x1xf32> to vector<8x16xf32>
    %832 = arith.subf %828, %831 : vector<8x16xf32>
    %833 = math.exp %832 : vector<8x16xf32>
    %cst_253 = arith.constant dense<0.000000e+00> : vector<8xf32>
    %834 = vector.multi_reduction <add>, %833, %cst_253 [1] : vector<8x16xf32> to vector<8xf32>
    %835 = vector.shape_cast %834 : vector<8xf32> to vector<8x1xf32>
    %836 = tpu.reciprocal %835 {approx = true} : vector<8x1xf32> -> vector<8x1xf32>
    %837 = vector.broadcast %836 : vector<8x1xf32> to vector<8x16xf32>
    %838 = arith.mulf %833, %837 : vector<8x16xf32>
    %839 = arith.truncf %838 : vector<8x16xf32> to vector<8x16xbf16>
    %840 = vector.extract_strided_slice %780 {offsets = [0, 16], sizes = [16, 8], strides = [1, 1]} : vector<16x32xbf16> to vector<16x8xbf16>
    %cst_254 = arith.constant dense<0.000000e+00> : vector<8x8xf32>
    %841 = tpu.matmul %839, %840, %cst_254 {dimension_numbers = #tpu.dot_dimension_numbers<[1], [0], [0], [1], [0, 0, 1, 1], [], []>} : vector<8x16xbf16>, vector<16x8xbf16>, vector<8x8xf32> -> vector<8x8xf32>
    %842 = vector.extract_strided_slice %772 {offsets = [0, 24], sizes = [8, 8], strides = [1, 1]} : vector<8x32xbf16> to vector<8x8xbf16>
    %843 = vector.extract_strided_slice %779 {offsets = [0, 24], sizes = [16, 8], strides = [1, 1]} : vector<16x32xbf16> to vector<16x8xbf16>
    %cst_255 = arith.constant dense<0.000000e+00> : vector<8x16xf32>
    %844 = tpu.matmul %842, %843, %cst_255 {dimension_numbers = #tpu.dot_dimension_numbers<[1], [1], [0], [0], [0, 0, 1, 0], [], []>} : vector<8x8xbf16>, vector<16x8xbf16>, vector<8x16xf32> -> vector<8x16xf32>
    %cst_256 = arith.constant 0.353553385 : f32
    %845 = vector.broadcast %cst_256 : f32 to vector<8x16xf32>
    %846 = arith.mulf %844, %845 : vector<8x16xf32>
    %847 = vector.broadcast %781 : vector<1x16xf32> to vector<8x16xf32>
    %848 = arith.addf %846, %847 : vector<8x16xf32>
    %cst_257 = arith.constant dense<0xFF800000> : vector<8xf32>
    %849 = vector.multi_reduction <maximumf>, %848, %cst_257 [1] : vector<8x16xf32> to vector<8xf32>
    %850 = vector.shape_cast %849 : vector<8xf32> to vector<8x1xf32>
    %851 = vector.broadcast %850 : vector<8x1xf32> to vector<8x16xf32>
    %852 = arith.subf %848, %851 : vector<8x16xf32>
    %853 = math.exp %852 : vector<8x16xf32>
    %cst_258 = arith.constant dense<0.000000e+00> : vector<8xf32>
    %854 = vector.multi_reduction <add>, %853, %cst_258 [1] : vector<8x16xf32> to vector<8xf32>
    %855 = vector.shape_cast %854 : vector<8xf32> to vector<8x1xf32>
    %856 = tpu.reciprocal %855 {approx = true} : vector<8x1xf32> -> vector<8x1xf32>
    %857 = vector.broadcast %856 : vector<8x1xf32> to vector<8x16xf32>
    %858 = arith.mulf %853, %857 : vector<8x16xf32>
    %859 = arith.truncf %858 : vector<8x16xf32> to vector<8x16xbf16>
    %860 = vector.extract_strided_slice %780 {offsets = [0, 24], sizes = [16, 8], strides = [1, 1]} : vector<16x32xbf16> to vector<16x8xbf16>
    %cst_259 = arith.constant dense<0.000000e+00> : vector<8x8xf32>
    %861 = tpu.matmul %859, %860, %cst_259 {dimension_numbers = #tpu.dot_dimension_numbers<[1], [0], [0], [1], [0, 0, 1, 1], [], []>} : vector<8x16xbf16>, vector<16x8xbf16>, vector<8x8xf32> -> vector<8x8xf32>
    %862 = tpu.concatenate %801, %821, %841, %861 in 1 : vector<8x8xf32>, vector<8x8xf32>, vector<8x8xf32>, vector<8x8xf32> -> vector<8x32xf32>
    %863 = arith.truncf %862 : vector<8x32xf32> to vector<8x32xbf16>
    %c704 = arith.constant 704 : index
    %c0_260 = arith.constant 0 : index
    %864 = vector.load %arg5[%c704, %c0_260] : memref<864x128xbf16, #tpu.memory_space<vmem>>, vector<32x32xbf16>
    %cst_261 = arith.constant dense<0.000000e+00> : vector<8x32xf32>
    %865 = tpu.matmul %863, %864, %cst_261 {dimension_numbers = #tpu.dot_dimension_numbers<[1], [0], [0], [1], [0, 0, 1, 1], [], []>} : vector<8x32xbf16>, vector<32x32xbf16>, vector<8x32xf32> -> vector<8x32xf32>
    %c296 = arith.constant 296 : index
    %c0_262 = arith.constant 0 : index
    %866 = vector.load %arg6[%c296, %c0_262] : memref<376x128xf32, #tpu.memory_space<vmem>>, vector<1x32xf32>
    %867 = vector.broadcast %866 : vector<1x32xf32> to vector<8x32xf32>
    %868 = arith.addf %865, %867 : vector<8x32xf32>
    %869 = arith.addf %765, %868 : vector<8x32xf32>
    %c304 = arith.constant 304 : index
    %c0_263 = arith.constant 0 : index
    %870 = vector.load %arg6[%c304, %c0_263] : memref<376x128xf32, #tpu.memory_space<vmem>>, vector<1x32xf32>
    %c312 = arith.constant 312 : index
    %c0_264 = arith.constant 0 : index
    %871 = vector.load %arg6[%c312, %c0_264] : memref<376x128xf32, #tpu.memory_space<vmem>>, vector<1x32xf32>
    %cst_265 = arith.constant dense<0.000000e+00> : vector<8xf32>
    %872 = vector.multi_reduction <add>, %869, %cst_265 [1] : vector<8x32xf32> to vector<8xf32>
    %873 = vector.shape_cast %872 : vector<8xf32> to vector<8x1xf32>
    %cst_266 = arith.constant 3.200000e+01 : f32
    %874 = vector.broadcast %cst_266 : f32 to vector<8x1xf32>
    %875 = arith.divf %873, %874 : vector<8x1xf32>
    %876 = arith.mulf %869, %869 : vector<8x32xf32>
    %cst_267 = arith.constant dense<0.000000e+00> : vector<8xf32>
    %877 = vector.multi_reduction <add>, %876, %cst_267 [1] : vector<8x32xf32> to vector<8xf32>
    %878 = vector.shape_cast %877 : vector<8xf32> to vector<8x1xf32>
    %cst_268 = arith.constant 3.200000e+01 : f32
    %879 = vector.broadcast %cst_268 : f32 to vector<8x1xf32>
    %880 = arith.divf %878, %879 : vector<8x1xf32>
    %881 = arith.mulf %875, %875 : vector<8x1xf32>
    %882 = arith.subf %880, %881 : vector<8x1xf32>
    %883 = vector.broadcast %875 : vector<8x1xf32> to vector<8x32xf32>
    %884 = arith.subf %869, %883 : vector<8x32xf32>
    %cst_269 = arith.constant 9.99999974E-6 : f32
    %885 = vector.broadcast %cst_269 : f32 to vector<8x1xf32>
    %886 = arith.addf %882, %885 : vector<8x1xf32>
    %887 = math.rsqrt %886 : vector<8x1xf32>
    %888 = vector.broadcast %887 : vector<8x1xf32> to vector<8x32xf32>
    %889 = arith.mulf %884, %888 : vector<8x32xf32>
    %890 = vector.broadcast %870 : vector<1x32xf32> to vector<8x32xf32>
    %891 = arith.mulf %889, %890 : vector<8x32xf32>
    %892 = vector.broadcast %871 : vector<1x32xf32> to vector<8x32xf32>
    %893 = arith.addf %891, %892 : vector<8x32xf32>
    %894 = arith.truncf %893 : vector<8x32xf32> to vector<8x32xbf16>
    %c736 = arith.constant 736 : index
    %c0_270 = arith.constant 0 : index
    %895 = vector.load %arg5[%c736, %c0_270] : memref<864x128xbf16, #tpu.memory_space<vmem>>, vector<32x64xbf16>
    %cst_271 = arith.constant dense<0.000000e+00> : vector<8x64xf32>
    %896 = tpu.matmul %894, %895, %cst_271 {dimension_numbers = #tpu.dot_dimension_numbers<[1], [0], [0], [1], [0, 0, 1, 1], [], []>} : vector<8x32xbf16>, vector<32x64xbf16>, vector<8x64xf32> -> vector<8x64xf32>
    %c320_272 = arith.constant 320 : index
    %c0_273 = arith.constant 0 : index
    %897 = vector.load %arg6[%c320_272, %c0_273] : memref<376x128xf32, #tpu.memory_space<vmem>>, vector<1x64xf32>
    %898 = vector.broadcast %897 : vector<1x64xf32> to vector<8x64xf32>
    %899 = arith.addf %896, %898 : vector<8x64xf32>
    %cst_274 = arith.constant 0.000000e+00 : f32
    %900 = vector.broadcast %cst_274 : f32 to vector<8x64xf32>
    %901 = arith.maximumf %899, %900 : vector<8x64xf32>
    %902 = arith.truncf %901 : vector<8x64xf32> to vector<8x64xbf16>
    %c768 = arith.constant 768 : index
    %c0_275 = arith.constant 0 : index
    %903 = vector.load %arg5[%c768, %c0_275] : memref<864x128xbf16, #tpu.memory_space<vmem>>, vector<64x32xbf16>
    %cst_276 = arith.constant dense<0.000000e+00> : vector<8x32xf32>
    %904 = tpu.matmul %902, %903, %cst_276 {dimension_numbers = #tpu.dot_dimension_numbers<[1], [0], [0], [1], [0, 0, 1, 1], [], []>} : vector<8x64xbf16>, vector<64x32xbf16>, vector<8x32xf32> -> vector<8x32xf32>
    %c328 = arith.constant 328 : index
    %c0_277 = arith.constant 0 : index
    %905 = vector.load %arg6[%c328, %c0_277] : memref<376x128xf32, #tpu.memory_space<vmem>>, vector<1x32xf32>
    %906 = vector.broadcast %905 : vector<1x32xf32> to vector<8x32xf32>
    %907 = arith.addf %904, %906 : vector<8x32xf32>
    %908 = arith.addf %893, %907 : vector<8x32xf32>
    %c336 = arith.constant 336 : index
    %c0_278 = arith.constant 0 : index
    %909 = vector.load %arg6[%c336, %c0_278] : memref<376x128xf32, #tpu.memory_space<vmem>>, vector<1x32xf32>
    %c344 = arith.constant 344 : index
    %c0_279 = arith.constant 0 : index
    %910 = vector.load %arg6[%c344, %c0_279] : memref<376x128xf32, #tpu.memory_space<vmem>>, vector<1x32xf32>
    %cst_280 = arith.constant dense<0.000000e+00> : vector<8xf32>
    %911 = vector.multi_reduction <add>, %908, %cst_280 [1] : vector<8x32xf32> to vector<8xf32>
    %912 = vector.shape_cast %911 : vector<8xf32> to vector<8x1xf32>
    %cst_281 = arith.constant 3.200000e+01 : f32
    %913 = vector.broadcast %cst_281 : f32 to vector<8x1xf32>
    %914 = arith.divf %912, %913 : vector<8x1xf32>
    %915 = arith.mulf %908, %908 : vector<8x32xf32>
    %cst_282 = arith.constant dense<0.000000e+00> : vector<8xf32>
    %916 = vector.multi_reduction <add>, %915, %cst_282 [1] : vector<8x32xf32> to vector<8xf32>
    %917 = vector.shape_cast %916 : vector<8xf32> to vector<8x1xf32>
    %cst_283 = arith.constant 3.200000e+01 : f32
    %918 = vector.broadcast %cst_283 : f32 to vector<8x1xf32>
    %919 = arith.divf %917, %918 : vector<8x1xf32>
    %920 = arith.mulf %914, %914 : vector<8x1xf32>
    %921 = arith.subf %919, %920 : vector<8x1xf32>
    %922 = vector.broadcast %914 : vector<8x1xf32> to vector<8x32xf32>
    %923 = arith.subf %908, %922 : vector<8x32xf32>
    %cst_284 = arith.constant 9.99999974E-6 : f32
    %924 = vector.broadcast %cst_284 : f32 to vector<8x1xf32>
    %925 = arith.addf %921, %924 : vector<8x1xf32>
    %926 = math.rsqrt %925 : vector<8x1xf32>
    %927 = vector.broadcast %926 : vector<8x1xf32> to vector<8x32xf32>
    %928 = arith.mulf %923, %927 : vector<8x32xf32>
    %929 = vector.broadcast %909 : vector<1x32xf32> to vector<8x32xf32>
    %930 = arith.mulf %928, %929 : vector<8x32xf32>
    %931 = vector.broadcast %910 : vector<1x32xf32> to vector<8x32xf32>
    %932 = arith.addf %930, %931 : vector<8x32xf32>
    %c352_285 = arith.constant 352 : index
    %c0_286 = arith.constant 0 : index
    %933 = vector.load %arg6[%c352_285, %c0_286] : memref<376x128xf32, #tpu.memory_space<vmem>>, vector<1x32xf32>
    %c360 = arith.constant 360 : index
    %c0_287 = arith.constant 0 : index
    %934 = vector.load %arg6[%c360, %c0_287] : memref<376x128xf32, #tpu.memory_space<vmem>>, vector<1x32xf32>
    %cst_288 = arith.constant dense<0.000000e+00> : vector<8xf32>
    %935 = vector.multi_reduction <add>, %932, %cst_288 [1] : vector<8x32xf32> to vector<8xf32>
    %936 = vector.shape_cast %935 : vector<8xf32> to vector<8x1xf32>
    %cst_289 = arith.constant 3.200000e+01 : f32
    %937 = vector.broadcast %cst_289 : f32 to vector<8x1xf32>
    %938 = arith.divf %936, %937 : vector<8x1xf32>
    %939 = arith.mulf %932, %932 : vector<8x32xf32>
    %cst_290 = arith.constant dense<0.000000e+00> : vector<8xf32>
    %940 = vector.multi_reduction <add>, %939, %cst_290 [1] : vector<8x32xf32> to vector<8xf32>
    %941 = vector.shape_cast %940 : vector<8xf32> to vector<8x1xf32>
    %cst_291 = arith.constant 3.200000e+01 : f32
    %942 = vector.broadcast %cst_291 : f32 to vector<8x1xf32>
    %943 = arith.divf %941, %942 : vector<8x1xf32>
    %944 = arith.mulf %938, %938 : vector<8x1xf32>
    %945 = arith.subf %943, %944 : vector<8x1xf32>
    %946 = vector.broadcast %938 : vector<8x1xf32> to vector<8x32xf32>
    %947 = arith.subf %932, %946 : vector<8x32xf32>
    %cst_292 = arith.constant 9.99999974E-6 : f32
    %948 = vector.broadcast %cst_292 : f32 to vector<8x1xf32>
    %949 = arith.addf %945, %948 : vector<8x1xf32>
    %950 = math.rsqrt %949 : vector<8x1xf32>
    %951 = vector.broadcast %950 : vector<8x1xf32> to vector<8x32xf32>
    %952 = arith.mulf %947, %951 : vector<8x32xf32>
    %953 = vector.broadcast %933 : vector<1x32xf32> to vector<8x32xf32>
    %954 = arith.mulf %952, %953 : vector<8x32xf32>
    %955 = vector.broadcast %934 : vector<1x32xf32> to vector<8x32xf32>
    %956 = arith.addf %954, %955 : vector<8x32xf32>
    %957 = arith.truncf %956 : vector<8x32xf32> to vector<8x32xbf16>
    %c832 = arith.constant 832 : index
    %c0_293 = arith.constant 0 : index
    %958 = vector.load %arg5[%c832, %c0_293] : memref<864x128xbf16, #tpu.memory_space<vmem>>, vector<32x128xbf16>
    %cst_294 = arith.constant dense<0.000000e+00> : vector<8x128xf32>
    %959 = tpu.matmul %957, %958, %cst_294 {dimension_numbers = #tpu.dot_dimension_numbers<[1], [0], [0], [1], [0, 0, 1, 1], [], []>} : vector<8x32xbf16>, vector<32x128xbf16>, vector<8x128xf32> -> vector<8x128xf32>
    %c368 = arith.constant 368 : index
    %c0_295 = arith.constant 0 : index
    %960 = vector.load %arg6[%c368, %c0_295] : memref<376x128xf32, #tpu.memory_space<vmem>>, vector<1x128xf32>
    %961 = vector.broadcast %960 : vector<1x128xf32> to vector<8x128xf32>
    %962 = arith.addf %959, %961 : vector<8x128xf32>
    %c0_296 = arith.constant 0 : index
    %c0_297 = arith.constant 0 : index
    %963 = vector.load %arg7[%c0_296, %c0_297] : memref<8x128xf32, #tpu.memory_space<vmem>>, vector<8x128xf32>
    tpu.vector_store %arg7[%c0_296, %c0_297], %962 {strides = array<i32>} : memref<8x128xf32, #tpu.memory_space<vmem>>, vector<8x128xf32>,
    return
  }
  func.func @transform_0(%arg0: i32) -> (i32, i32) {
    %c0_i32 = arith.constant 0 : i32
    %c0_i32_0 = arith.constant 0 : i32
    return %arg0, %c0_i32 : i32, i32
  }
  func.func @transform_1(%arg0: i32) -> (i32, i32) {
    %c0_i32 = arith.constant 0 : i32
    %c0_i32_0 = arith.constant 0 : i32
    return %arg0, %c0_i32 : i32, i32
  }
  func.func @transform_2(%arg0: i32) -> (i32, i32, i32) {
    %c0_i32 = arith.constant 0 : i32
    %c0_i32_0 = arith.constant 0 : i32
    %c0_i32_1 = arith.constant 0 : i32
    return %arg0, %c0_i32, %c0_i32_0 : i32, i32, i32
  }
  func.func @transform_3(%arg0: i32) -> (i32, i32, i32) {
    %c0_i32 = arith.constant 0 : i32
    %c0_i32_0 = arith.constant 0 : i32
    %c0_i32_1 = arith.constant 0 : i32
    return %arg0, %c0_i32, %c0_i32_0 : i32, i32, i32
  }
  func.func @transform_4(%arg0: i32) -> (i32, i32) {
    %c0_i32 = arith.constant 0 : i32
    %c0_i32_0 = arith.constant 0 : i32
    %c0_i32_1 = arith.constant 0 : i32
    return %c0_i32, %c0_i32_0 : i32, i32
  }
  func.func @transform_5(%arg0: i32) -> (i32, i32) {
    %c0_i32 = arith.constant 0 : i32
    %c0_i32_0 = arith.constant 0 : i32
    %c0_i32_1 = arith.constant 0 : i32
    return %c0_i32, %c0_i32_0 : i32, i32
  }
  func.func @transform_6(%arg0: i32) -> (i32, i32) {
    %c0_i32 = arith.constant 0 : i32
    %c0_i32_0 = arith.constant 0 : i32
    return %arg0, %c0_i32 : i32, i32
  }
}

</mosaic_0001>

<llo_original>
// kernel: p2w_forward.1
$region0: #{p2w_forward.1}
  #allocation0 [shape = 'u32[]', space=smem, size = 0x4, offset = 0x4, fixed_abs, tag = 'smem constant byte address 0x4 - core index']
  #allocation1 [shape = 'u32[144,128]{1,0:T(1,128)}', space=vmem, size = 0x12000, scoped, tag = 'internal scratch']
  %s0 = inlined_call_operand.vmem [shape: f32[32,32], index: 0, kind: input, shape index: {}]
  %s1 = inlined_call_operand.vmem [shape: f32[16,32], index: 1, kind: input, shape index: {}]
  %s2 = inlined_call_operand.vmem [shape: f32[2,1,16], index: 2, kind: input, shape index: {}]
  %s3 = inlined_call_operand.vmem [shape: f32[2,1,8], index: 3, kind: input, shape index: {}]
  %s4 = inlined_call_operand.vmem [shape: bf16[864,128], index: 4, kind: input, shape index: {}]
  %s5 = inlined_call_operand.vmem [shape: f32[376,128], index: 5, kind: input, shape index: {}]
  %s6 = inlined_call_operand.hbm [shape: f32[16,128], index: 6, kind: output, shape index: {}]
  %s7 = sld [smem:[#allocation0]]
  $region57: #{p2w_forward.1} parent=0
    _
  %s9 = ssub.s32 1, %s7
  %s10 = scalar_select 0, %s9, %s7
  $region1: #{p2w_forward.1} parent=0
    #allocation2 [shape = 'u8[8192]{0}', space=vmem, size = 0x2000, scoped, tag = 'output window, operand 0']
    #allocation3 [shape = 's32[2]{0}', space=sflag, size = 0x8, scoped, tag = 'scoped memory for p2w_forward.1']
    %11 = vsyncpa [#allocation3], 0
    %s12 = scalar_lea.sflag [#allocation3], 1
    %13 = vsyncpa %s12, 0
    loop: start=0, step=1, limit=4
    $region2: #{p2w_forward.1} parent=1 // loop_pre_header
      _
    $region3: #{p2w_forward.1} parent=1 // loop_header
      %s15 = sphi 0, %s19
      %p16 = scmp.ge.s32.totalorder %s15, 4
      %s25 = sphi 0, %s27
      %s28 = sphi 0, %s25
      %s29 = sphi 0, %s28
      %s45 = sphi 0, %s29
      %s51 = sphi 0, %s53
      %s54 = sphi 0, %s51
      %s55 = sphi 0, %s54
      %s71 = sphi 0, %s55
      %s77 = sphi 0, %s79
      %s80 = sphi 0, %s77
      %s81 = sphi 0, %s80
      %s97 = sphi 0, %s81
      %s103 = sphi 0, %s105
      %s106 = sphi 0, %s103
      %s107 = sphi 0, %s106
      %s123 = sphi 0, %s107
      %s127 = sphi 0, %s127
      %s129 = sphi 0, %s127
      %s130 = sphi 0, %s129
      %s144 = sphi 0, %s130
      %s148 = sphi 0, %s148
      %s150 = sphi 0, %s148
      %s151 = sphi 0, %s150
      %s165 = sphi 0, %s151
      %s171 = sphi 0, %s173
      %s174 = sphi 0, %s171
      %s175 = sphi 0, %s174
      %s191 = sphi 0, %s175
    $region4: #{p2w_forward.1} parent=1 // loop_header_branch
      %18 = sbr.rel (%p16) target = $region8
    $region5: #{p2w_forward.1} parent=1 // loop_body
      %s20 = ssub.s32 %s15, 1
      %s21 = ssub.s32 %s15, 2
      %s22 = sadd.s32 %s15, 1
      %s23 = ssub.s32 %s15, %s22
      %p24 = scmp.eq.s32.totalorder %s23, 0
      %s26 = sadd.s32 %s25, 1
      %s27 = scalar_select %p24, %s25, %s26
      %p30 = pneg %p24
      %p31 = scmp.eq.s32.totalorder %s15, 1
      %p32 = por %p30, %p31
      %p33 = scmp.ne.s32.totalorder %s25, %s28
      %p34 = scmp.eq.s32.totalorder %s15, 0
      %p35 = por %p33, %p34
      %p36 = scmp.ne.s32.totalorder %s25, %s28
      %p37 = scmp.eq.s32.totalorder %s20, 1
      %p38 = por %p36, %p37
      %p39 = scmp.ne.s32.totalorder %s28, %s29
      %p40 = scmp.eq.s32.totalorder %s20, 0
      %p41 = por %p39, %p40
      %p42 = scmp.ne.s32.totalorder %s28, %s29
      %p43 = scmp.eq.s32.totalorder %s21, 1
      %p44 = por %p42, %p43
      %p46 = scmp.ne.s32.totalorder %s29, %s45
      %p47 = scmp.eq.s32.totalorder %s21, 0
      %p48 = por %p46, %p47
      %s49 = ssub.s32 %s15, %s22
      %p50 = scmp.eq.s32.totalorder %s49, 0
      %s52 = sadd.s32 %s51, 1
      %s53 = scalar_select %p50, %s51, %s52
      %p56 = pneg %p50
      %p57 = scmp.eq.s32.totalorder %s15, 1
      %p58 = por %p56, %p57
      %p59 = scmp.ne.s32.totalorder %s51, %s54
      %p60 = scmp.eq.s32.totalorder %s15, 0
      %p61 = por %p59, %p60
      %p62 = scmp.ne.s32.totalorder %s51, %s54
      %p63 = scmp.eq.s32.totalorder %s20, 1
      %p64 = por %p62, %p63
      %p65 = scmp.ne.s32.totalorder %s54, %s55
      %p66 = scmp.eq.s32.totalorder %s20, 0
      %p67 = por %p65, %p66
      %p68 = scmp.ne.s32.totalorder %s54, %s55
      %p69 = scmp.eq.s32.totalorder %s21, 1
      %p70 = por %p68, %p69
      %p72 = scmp.ne.s32.totalorder %s55, %s71
      %p73 = scmp.eq.s32.totalorder %s21, 0
      %p74 = por %p72, %p73
      %s75 = ssub.s32 %s15, %s22
      %p76 = scmp.eq.s32.totalorder %s75, 0
      %s78 = sadd.s32 %s77, 1
      %s79 = scalar_select %p76, %s77, %s78
      %p82 = pneg %p76
      %p83 = scmp.eq.s32.totalorder %s15, 1
      %p84 = por %p82, %p83
      %p85 = scmp.ne.s32.totalorder %s77, %s80
      %p86 = scmp.eq.s32.totalorder %s15, 0
      %p87 = por %p85, %p86
      %p88 = scmp.ne.s32.totalorder %s77, %s80
      %p89 = scmp.eq.s32.totalorder %s20, 1
      %p90 = por %p88, %p89
      %p91 = scmp.ne.s32.totalorder %s80, %s81
      %p92 = scmp.eq.s32.totalorder %s20, 0
      %p93 = por %p91, %p92
      %p94 = scmp.ne.s32.totalorder %s80, %s81
      %p95 = scmp.eq.s32.totalorder %s21, 1
      %p96 = por %p94, %p95
      %p98 = scmp.ne.s32.totalorder %s81, %s97
      %p99 = scmp.eq.s32.totalorder %s21, 0
      %p100 = por %p98, %p99
      %s101 = ssub.s32 %s15, %s22
      %p102 = scmp.eq.s32.totalorder %s101, 0
      %s104 = sadd.s32 %s103, 1
      %s105 = scalar_select %p102, %s103, %s104
      %p108 = pneg %p102
      %p109 = scmp.eq.s32.totalorder %s15, 1
      %p110 = por %p108, %p109
      %p111 = scmp.ne.s32.totalorder %s103, %s106
      %p112 = scmp.eq.s32.totalorder %s15, 0
      %p113 = por %p111, %p112
      %p114 = scmp.ne.s32.totalorder %s103, %s106
      %p115 = scmp.eq.s32.totalorder %s20, 1
      %p116 = por %p114, %p115
      %p117 = scmp.ne.s32.totalorder %s106, %s107
      %p118 = scmp.eq.s32.totalorder %s20, 0
      %p119 = por %p117, %p118
      %p120 = scmp.ne.s32.totalorder %s106, %s107
      %p121 = scmp.eq.s32.totalorder %s21, 1
      %p122 = por %p120, %p121
      %p124 = scmp.ne.s32.totalorder %s107, %s123
      %p125 = scmp.eq.s32.totalorder %s21, 0
      %p126 = por %p124, %p125
      %s128 = sadd.s32 %s127, 1
      %p131 = scmp.eq.s32.totalorder %s15, 1
      %p132 = scmp.ne.s32.totalorder %s127, %s129
      %p133 = scmp.eq.s32.totalorder %s15, 0
      %p134 = por %p132, %p133
      %p135 = scmp.ne.s32.totalorder %s127, %s129
      %p136 = scmp.eq.s32.totalorder %s20, 1
      %p137 = por %p135, %p136
      %p138 = scmp.ne.s32.totalorder %s129, %s130
      %p139 = scmp.eq.s32.totalorder %s20, 0
      %p140 = por %p138, %p139
      %p141 = scmp.ne.s32.totalorder %s129, %s130
      %p142 = scmp.eq.s32.totalorder %s21, 1
      %p143 = por %p141, %p142
      %p145 = scmp.ne.s32.totalorder %s130, %s144
      %p146 = scmp.eq.s32.totalorder %s21, 0
      %p147 = por %p145, %p146
      %s149 = sadd.s32 %s148, 1
      %p152 = scmp.eq.s32.totalorder %s15, 1
      %p153 = scmp.ne.s32.totalorder %s148, %s150
      %p154 = scmp.eq.s32.totalorder %s15, 0
      %p155 = por %p153, %p154
      %p156 = scmp.ne.s32.totalorder %s148, %s150
      %p157 = scmp.eq.s32.totalorder %s20, 1
      %p158 = por %p156, %p157
      %p159 = scmp.ne.s32.totalorder %s150, %s151
      %p160 = scmp.eq.s32.totalorder %s20, 0
      %p161 = por %p159, %p160
      %p162 = scmp.ne.s32.totalorder %s150, %s151
      %p163 = scmp.eq.s32.totalorder %s21, 1
      %p164 = por %p162, %p163
      %p166 = scmp.ne.s32.totalorder %s151, %s165
      %p167 = scmp.eq.s32.totalorder %s21, 0
      %p168 = por %p166, %p167
      %s169 = ssub.s32 %s15, %s22
      %p170 = scmp.eq.s32.totalorder %s169, 0
      %s172 = sadd.s32 %s171, 1
      %s173 = scalar_select %p170, %s171, %s172
      %p176 = pneg %p170
      %p177 = scmp.eq.s32.totalorder %s15, 1
      %p178 = por %p176, %p177
      %p179 = scmp.ne.s32.totalorder %s171, %s174
      %p180 = scmp.eq.s32.totalorder %s15, 0
      %p181 = por %p179, %p180
      %p182 = scmp.ne.s32.totalorder %s171, %s174
      %p183 = scmp.eq.s32.totalorder %s20, 1
      %p184 = por %p182, %p183
      %p185 = scmp.ne.s32.totalorder %s174, %s175
      %p186 = scmp.eq.s32.totalorder %s20, 0
      %p187 = por %p185, %p186
      %p188 = scmp.ne.s32.totalorder %s174, %s175
      %p189 = scmp.eq.s32.totalorder %s21, 1
      %p190 = por %p188, %p189
      %p192 = scmp.ne.s32.totalorder %s175, %s191
      %p193 = scmp.eq.s32.totalorder %s21, 0
      %p194 = por %p192, %p193
      %p195 = scmp.le.s32.totalorder 1, %s15
      %p196 = scmp.lt.s32.totalorder %s15, 3
      %p197 = pnand %p195, %p196
      %p198 = pneg %p197
      // Predicated region
      $region9: #{p2w_forward.1} parent=5 // pred_check
        _
      $region10: #{p2w_forward.1} parent=5 // pred_check_branch
        %200 = sbr.rel (%p197) target = $region12
      $region11: #{p2w_forward.1} parent=5 // pred_region
        %s201 = ssub.s32 %s15, 1
        // Predicated region
        $region13: #{p2w_forward.1} parent=11 // pred_check
          %p202 = pneg %p140
        $region14: #{p2w_forward.1} parent=11 // pred_check_branch
          %204 = sbr.rel (%p202) target = $region16
        $region15: #{p2w_forward.1} parent=11 // pred_region
          _
        $region16: #{p2w_forward.1} parent=11 // pred_fallthru
          _
        // Predicated region
        $region17: #{p2w_forward.1} parent=11 // pred_check
          %p205 = pneg %p161
        $region18: #{p2w_forward.1} parent=11 // pred_check_branch
          %207 = sbr.rel (%p205) target = $region20
        $region19: #{p2w_forward.1} parent=11 // pred_region
          _
        $region20: #{p2w_forward.1} parent=11 // pred_fallthru
          _
      $region12: #{p2w_forward.1} parent=5 // pred_fallthru
        _
      %p208 = scmp.lt.s32.totalorder %s15, 2
      // Predicated region
      $region21: #{p2w_forward.1} parent=5 // pred_check
        %p209 = pneg %p208
      $region22: #{p2w_forward.1} parent=5 // pred_check_branch
        %211 = sbr.rel (%p209) target = $region24
      $region23: #{p2w_forward.1} parent=5 // pred_region
        // Predicated region
        $region25: #{p2w_forward.1} parent=23 // pred_check
          %p212 = pneg %p35
        $region26: #{p2w_forward.1} parent=23 // pred_check_branch
          %214 = sbr.rel (%p212) target = $region28
        $region27: #{p2w_forward.1} parent=23 // pred_region
          %s215 = smul.u32 2, %s15
          %p216 = scmp.lt.s32.totalorder %s215, 3
          %s217 = scalar_select %p216, %s215, 3
          %s218 = smul.addr %s217, 8
          %s219 = scalar_lea.vmem %s0, %s218
          %s220 = smul.u32 2, %s15
        $region28: #{p2w_forward.1} parent=23 // pred_fallthru
          _
        // Predicated region
        $region29: #{p2w_forward.1} parent=23 // pred_check
          %p221 = pneg %p61
        $region30: #{p2w_forward.1} parent=23 // pred_check_branch
          %223 = sbr.rel (%p221) target = $region32
        $region31: #{p2w_forward.1} parent=23 // pred_region
          %p224 = scmp.lt.s32.totalorder %s15, 1
          %s225 = scalar_select %p224, %s15, 1
          %s226 = smul.addr %s225, 8
          %s227 = scalar_lea.vmem %s1, %s226
        $region32: #{p2w_forward.1} parent=23 // pred_fallthru
          _
        // Predicated region
        $region33: #{p2w_forward.1} parent=23 // pred_check
          %p228 = pneg %p87
        $region34: #{p2w_forward.1} parent=23 // pred_check_branch
          %230 = sbr.rel (%p228) target = $region36
        $region35: #{p2w_forward.1} parent=23 // pred_region
          %p231 = scmp.lt.s32.totalorder %s15, 1
          %s232 = scalar_select %p231, %s15, 1
          %s233 = scalar_lea.vmem %s2, %s232
        $region36: #{p2w_forward.1} parent=23 // pred_fallthru
          _
        // Predicated region
        $region37: #{p2w_forward.1} parent=23 // pred_check
          %p234 = pneg %p113
        $region38: #{p2w_forward.1} parent=23 // pred_check_branch
          %236 = sbr.rel (%p234) target = $region40
        $region39: #{p2w_forward.1} parent=23 // pred_region
          %p237 = scmp.lt.s32.totalorder %s15, 1
          %s238 = scalar_select %p237, %s15, 1
          %s239 = scalar_lea.vmem %s3, %s238
        $region40: #{p2w_forward.1} parent=23 // pred_fallthru
          _
      $region24: #{p2w_forward.1} parent=5 // pred_fallthru
        _
      %p240 = scmp.le.s32.totalorder 1, %s15
      %p241 = scmp.lt.s32.totalorder %s15, 3
      %p242 = pnand %p240, %p241
      %p243 = pneg %p242
      // Predicated region
      $region41: #{p2w_forward.1} parent=5 // pred_check
        _
      $region42: #{p2w_forward.1} parent=5 // pred_check_branch
        %245 = sbr.rel (%p242) target = $region44
      $region43: #{p2w_forward.1} parent=5 // pred_region
        %s246 = ssub.s32 %s15, 1
        %s247 = smul.u32 2, %s20
        %p248 = scmp.lt.s32.totalorder %s247, 3
        %s249 = scalar_select %p248, %s247, 3
        %s250 = smul.addr %s249, 8
        %s251 = scalar_lea.vmem %s0, %s250
        %p252 = pneg %p41
        %p253 = pneg %p38
        %p254 = scmp.lt.s32.totalorder %s20, 1
        %s255 = scalar_select %p254, %s20, 1
        %s256 = smul.addr %s255, 8
        %s257 = scalar_lea.vmem %s1, %s256
        %p258 = pneg %p67
        %p259 = pneg %p64
        %p260 = scmp.lt.s32.totalorder %s20, 1
        %s261 = scalar_select %p260, %s20, 1
        %s262 = scalar_lea.vmem %s2, %s261
        %p263 = pneg %p93
        %p264 = pneg %p90
        %p265 = scmp.lt.s32.totalorder %s20, 1
        %s266 = scalar_select %p265, %s20, 1
        %s267 = scalar_lea.vmem %s3, %s266
        %p268 = pneg %p119
        %p269 = pneg %p116
        %p270 = pneg %p140
        %p271 = pneg %p137
        %p272 = pneg %p161
        %p273 = pneg %p158
        %p274 = pneg %p187
        %p275 = pneg %p184
        %s276 = sand.u32 %s174, 1
        %s277 = scalar_lea.sflag [#allocation3], %s276
        %s278 = sand.u32 %s174, 1
        %s279 = smul.addr %s278, 8
        %s280 = scalar_lea.vmem [#allocation2], %s279
        %s281 = smul.u32 2, %s20
        %p282 = scmp.lt.s32.totalorder %s281, 3
        %s283 = scalar_select %p282, %s281, 3
        %s284 = smul.addr %s283, 8
        %s285 = scalar_lea.vmem %s0, %s284
        %s286 = smul.u32 2, %s20
        %p287 = scmp.lt.s32.totalorder %s20, 1
        %s288 = scalar_select %p287, %s20, 1
        %s289 = smul.addr %s288, 8
        %s290 = scalar_lea.vmem %s1, %s289
        %p291 = scmp.lt.s32.totalorder %s20, 1
        %s292 = scalar_select %p291, %s20, 1
        %s293 = scalar_lea.vmem %s2, %s292
        %p294 = scmp.lt.s32.totalorder %s20, 1
        %s295 = scalar_select %p294, %s20, 1
        %s296 = scalar_lea.vmem %s3, %s295
        %v298 = vld [vmem:[%s293] sm:$0x1]
        %v299 = vld [vmem:[%s296] sm:$0x1]
        %v300 = vld [vmem:[%s285] sm:$0xff]
        %v301 = vld [vmem:[%s285 + $0x8] sm:$0xff]
        %v302 = vpack.c.bf16 %v301, %v300
        %v303 = vld [vmem:[%s4] sm:$0xf]
        %v304 = vld [vmem:[%s4 + $0x4] sm:$0xf]
        %v305 = vld [vmem:[%s4 + $0x8] sm:$0xf]
        %v306 = vld [vmem:[%s4 + $0xc] sm:$0xf]
        %v307 = vld [vmem:[%s5] sm:$0x1]
        %v308 = vlaneseq
        %v309 = vshrl.u32 %v308, 7
        %v310 = vsub.s32 0, %v309
        %v311 = vrot.slane %v307, %v310
        %v316 = vunpack.c.l.b16 %v303
        %v317 = vunpack.c.l.b16 %v304
        %v318 = vunpack.c.l.b16 %v305
        %v319 = vunpack.c.l.b16 %v306
        %v320 = vpack.c.b16 %v317, %v316
        %v321 = vpack.c.b16 %v319, %v318
        %vm324 = vcmask 261120
        %v326 = vsel %vm324, %v302, 0
        %328 = vmatprep.subr.bf16.mxu0 0
        %329 = vmatpush1.bf16.msra.mxu0 %v320
        %330 = vmatprep.subr.bf16.mxu0 0
        %331 = vmatpush1.bf16.msra.mxu0 %v321
        %332 = vmatprep.subr.bf16.mxu0 0
        %333 = vmatpush1.bf16.msra.mxu0 0
        %334 = vmatprep.subr.bf16.mxu0 0
        %335 = vmatpush1.bf16.msra.mxu0 0
        %336 = vmatprep.subr.bf16.mxu0 0
        %337 = vmatpush1.bf16.msra.mxu0 0
        %338 = vmatprep.subr.bf16.mxu0 0
        %339 = vmatpush1.bf16.msra.mxu0 0
        %340 = vmatprep.subr.bf16.mxu0 0
        %341 = vmatpush1.bf16.msra.mxu0 0
        %342 = vmatprep.subr.bf16.mxu0 0
        %343 = vmatpush1.bf16.msra.mxu0 0
        %344 = vmatprep.subr.bf16.mxu0 0
        %345 = vmatpush1.bf16.msra.mxu0 0
        %346 = vmatprep.subr.bf16.mxu0 0
        %347 = vmatpush1.bf16.msra.mxu0 0
        %348 = vmatprep.subr.bf16.mxu0 0
        %349 = vmatpush1.bf16.msra.mxu0 0
        %350 = vmatprep.subr.bf16.mxu0 0
        %351 = vmatpush1.bf16.msra.mxu0 0
        %352 = vmatprep.subr.bf16.mxu0 0
        %353 = vmatpush1.bf16.msra.mxu0 0
        %354 = vmatprep.subr.bf16.mxu0 0
        %355 = vmatpush1.bf16.msra.mxu0 0
        %356 = vmatprep.subr.bf16.mxu0 0
        %357 = vmatpush1.bf16.msra.mxu0 0
        %358 = vmatprep.subr.bf16.mxu0 0
        %359 = vmatpush1.bf16.msra.mxu0 0
        %360 = vmatprep.mubr.bf16.mxu0 0
        %361 = vmatmul.mubr.bf16.gmra.mrb[0].mxu0 %v326
        %v362 = vpop.f32.mrb[0].mxu0
        %v363 = vadd.f32 %v311, %v362
        %v364 = vpop.f32.mrb[0].mxu0
        %v365 = vpop.f32.mrb[0].mxu0
        %v366 = vadd.f32 %v311, %v365
        %v367 = vpop.f32.mrb[0].mxu0
        %368 = vdwg.mxu0
        %v369 = vpack.c.bf16 %v366, %v363
        %371 = vrot.lane.b32.xlu0 %v369, 96
        %v372 = vpop.permute.xlu0 %371
        %vm373 = vcmask 64512
        %v375 = vsel %vm373, %v369, 0
        %v378 = vsel %vm373, %v372, 0
        %380 = vmatprep.subr.bf16.mxu0 0
        %381 = vmatpush1.bf16.xpose.msra.mxu0 %v378
        %382 = vmatprep.subr.bf16.mxu0 0
        %383 = vmatpush1.bf16.xpose.msra.mxu0 0
        %384 = vmatprep.subr.bf16.mxu0 0
        %385 = vmatpush1.bf16.xpose.msra.mxu0 0
        %386 = vmatprep.subr.bf16.mxu0 0
        %387 = vmatpush1.bf16.xpose.msra.mxu0 0
        %388 = vmatprep.subr.bf16.mxu0 0
        %389 = vmatpush1.bf16.xpose.msra.mxu0 0
        %390 = vmatprep.subr.bf16.mxu0 0
        %391 = vmatpush1.bf16.xpose.msra.mxu0 0
        %392 = vmatprep.subr.bf16.mxu0 0
        %393 = vmatpush1.bf16.xpose.msra.mxu0 0
        %394 = vmatprep.subr.bf16.mxu0 0
        %395 = vmatpush1.bf16.xpose.msra.mxu0 0
        %396 = vmatprep.subr.bf16.mxu0 0
        %397 = vmatpush1.bf16.xpose.msra.mxu0 0
        %398 = vmatprep.subr.bf16.mxu0 0
        %399 = vmatpush1.bf16.xpose.msra.mxu0 0
        %400 = vmatprep.subr.bf16.mxu0 0
        %401 = vmatpush1.bf16.xpose.msra.mxu0 0
        %402 = vmatprep.subr.bf16.mxu0 0
        %403 = vmatpush1.bf16.xpose.msra.mxu0 0
        %404 = vmatprep.subr.bf16.mxu0 0
        %405 = vmatpush1.bf16.xpose.msra.mxu0 0
        %406 = vmatprep.subr.bf16.mxu0 0
        %407 = vmatpush1.bf16.xpose.msra.mxu0 0
        %408 = vmatprep.subr.bf16.mxu0 0
        %409 = vmatpush1.bf16.xpose.msra.mxu0 0
        %410 = vmatprep.subr.bf16.mxu0 0
        %411 = vmatpush1.bf16.xpose.msra.mxu0 0
        %412 = vmatprep.mubr.bf16.mxu0 0
        %413 = vmatmul.mubr.bf16.gmra.mrb[0].mxu0 %v375
        %v414 = vpop.f32.mrb[0].mxu0
        %v415 = vadd.f32 0.0, %v414
        %v416 = vpop.f32.mrb[0].mxu0
        %v417 = vpop.f32.mrb[0].mxu0
        %v418 = vadd.f32 0.0, %v417
        %v419 = vpop.f32.mrb[0].mxu0
        %420 = vdwg.mxu0
        %v421 = vmul.f32 %v415, 0.35355338
        %v422 = vmul.f32 %v418, 0.35355338
        %v424 = vlaneseq
        %v425 = vshrl.u32 %v424, 7
        %v426 = vsub.s32 0, %v425
        %v427 = vrot.slane %v298, %v426
        %v429 = vadd.f32 %v421, %v427
        %v430 = vadd.f32 %v422, %v427
        %vm431 = vcmask 130048
        %v432 = vsel %vm431, %v429, -inf
        %433 = vmax.xlane.f32.xlu0 %v432
        %v434 = vpop.xlane.xlu0 %433
        %v435 = vsel %vm431, %v430, -inf
        %436 = vmax.xlane.f32.xlu0 %v435
        %v437 = vpop.xlane.xlu0 %436
        %v438 = vsub.f32 %v429, %v434
        %v439 = vsub.f32 %v430, %v437
        %v440 = vmul.f32 %v438, 1.442695
        %v441 = vpow.pop %v440
        %v442 = vmul.f32 %v439, 1.442695
        %v443 = vpow.pop %v442
        %v444 = vsel %vm431, %v441, 0.0
        %445 = vadd.xlane.f32.xlu0 %v444
        %v446 = vpop.xlane.xlu0 %445
        %v447 = vsel %vm431, %v443, 0.0
        %448 = vadd.xlane.f32.xlu0 %v447
        %v449 = vpop.xlane.xlu0 %448
        %v450 = vrcp.pop %v446
        %v451 = vrcp.pop %v449
        %v452 = vmul.f32 %v441, %v450
        %v453 = vmul.f32 %v443, %v451
        %v454 = vpack.c.bf16 %v453, %v452
        %455 = vrot.lane.b32.xlu0 %v369, 64
        %v456 = vpop.permute.xlu0 %455
        %v459 = vsel %vm431, %v454, 0
        %461 = vmatprep.subr.bf16.mxu0 0
        %462 = vmatpush1.bf16.msra.mxu0 %v456
        %463 = vmatprep.subr.bf16.mxu0 0
        %464 = vmatpush1.bf16.msra.mxu0 0
        %465 = vmatprep.subr.bf16.mxu0 0
        %466 = vmatpush1.bf16.msra.mxu0 0
        %467 = vmatprep.subr.bf16.mxu0 0
        %468 = vmatpush1.bf16.msra.mxu0 0
        %469 = vmatprep.subr.bf16.mxu0 0
        %470 = vmatpush1.bf16.msra.mxu0 0
        %471 = vmatprep.subr.bf16.mxu0 0
        %472 = vmatpush1.bf16.msra.mxu0 0
        %473 = vmatprep.subr.bf16.mxu0 0
        %474 = vmatpush1.bf16.msra.mxu0 0
        %475 = vmatprep.subr.bf16.mxu0 0
        %476 = vmatpush1.bf16.msra.mxu0 0
        %477 = vmatprep.subr.bf16.mxu0 0
        %478 = vmatpush1.bf16.msra.mxu0 0
        %479 = vmatprep.subr.bf16.mxu0 0
        %480 = vmatpush1.bf16.msra.mxu0 0
        %481 = vmatprep.subr.bf16.mxu0 0
        %482 = vmatpush1.bf16.msra.mxu0 0
        %483 = vmatprep.subr.bf16.mxu0 0
        %484 = vmatpush1.bf16.msra.mxu0 0
        %485 = vmatprep.subr.bf16.mxu0 0
        %486 = vmatpush1.bf16.msra.mxu0 0
        %487 = vmatprep.subr.bf16.mxu0 0
        %488 = vmatpush1.bf16.msra.mxu0 0
        %489 = vmatprep.subr.bf16.mxu0 0
        %490 = vmatpush1.bf16.msra.mxu0 0
        %491 = vmatprep.subr.bf16.mxu0 0
        %492 = vmatpush1.bf16.msra.mxu0 0
        %493 = vmatprep.mubr.bf16.mxu0 0
        %494 = vmatmul.mubr.bf16.gmra.mrb[0].mxu0 %v459
        %v495 = vpop.f32.mrb[0].mxu0
        %v496 = vadd.f32 0.0, %v495
        %v497 = vpop.f32.mrb[0].mxu0
        %v498 = vpop.f32.mrb[0].mxu0
        %v499 = vadd.f32 0.0, %v498
        %v500 = vpop.f32.mrb[0].mxu0
        %501 = vdwg.mxu0
        %502 = vrot.lane.b32.xlu0 %v369, 120
        %v503 = vpop.permute.xlu0 %502
        %504 = vrot.lane.b32.xlu0 %v369, 88
        %v505 = vpop.permute.xlu0 %504
        %v507 = vsel %vm373, %v503, 0
        %v510 = vsel %vm373, %v505, 0
        %512 = vmatprep.subr.bf16.mxu0 0
        %513 = vmatpush1.bf16.xpose.msra.mxu0 %v510
        %514 = vmatprep.subr.bf16.mxu0 0
        %515 = vmatpush1.bf16.xpose.msra.mxu0 0
        %516 = vmatprep.subr.bf16.mxu0 0
        %517 = vmatpush1.bf16.xpose.msra.mxu0 0
        %518 = vmatprep.subr.bf16.mxu0 0
        %519 = vmatpush1.bf16.xpose.msra.mxu0 0
        %520 = vmatprep.subr.bf16.mxu0 0
        %521 = vmatpush1.bf16.xpose.msra.mxu0 0
        %522 = vmatprep.subr.bf16.mxu0 0
        %523 = vmatpush1.bf16.xpose.msra.mxu0 0
        %524 = vmatprep.subr.bf16.mxu0 0
        %525 = vmatpush1.bf16.xpose.msra.mxu0 0
        %526 = vmatprep.subr.bf16.mxu0 0
        %527 = vmatpush1.bf16.xpose.msra.mxu0 0
        %528 = vmatprep.subr.bf16.mxu0 0
        %529 = vmatpush1.bf16.xpose.msra.mxu0 0
        %530 = vmatprep.subr.bf16.mxu0 0
        %531 = vmatpush1.bf16.xpose.msra.mxu0 0
        %532 = vmatprep.subr.bf16.mxu0 0
        %533 = vmatpush1.bf16.xpose.msra.mxu0 0
        %534 = vmatprep.subr.bf16.mxu0 0
        %535 = vmatpush1.bf16.xpose.msra.mxu0 0
        %536 = vmatprep.subr.bf16.mxu0 0
        %537 = vmatpush1.bf16.xpose.msra.mxu0 0
        %538 = vmatprep.subr.bf16.mxu0 0
        %539 = vmatpush1.bf16.xpose.msra.mxu0 0
        %540 = vmatprep.subr.bf16.mxu0 0
        %541 = vmatpush1.bf16.xpose.msra.mxu0 0
        %542 = vmatprep.subr.bf16.mxu0 0
        %543 = vmatpush1.bf16.xpose.msra.mxu0 0
        %544 = vmatprep.mubr.bf16.mxu0 0
        %545 = vmatmul.mubr.bf16.gmra.mrb[0].mxu0 %v507
        %v546 = vpop.f32.mrb[0].mxu0
        %v547 = vadd.f32 0.0, %v546
        %v548 = vpop.f32.mrb[0].mxu0
        %v549 = vpop.f32.mrb[0].mxu0
        %v550 = vadd.f32 0.0, %v549
        %v551 = vpop.f32.mrb[0].mxu0
        %552 = vdwg.mxu0
        %v553 = vmul.f32 %v547, 0.35355338
        %v554 = vmul.f32 %v550, 0.35355338
        %v555 = vadd.f32 %v553, %v427
        %v556 = vadd.f32 %v554, %v427
        %v557 = vsel %vm431, %v555, -inf
        %558 = vmax.xlane.f32.xlu0 %v557
        %v559 = vpop.xlane.xlu0 %558
        %v560 = vsel %vm431, %v556, -inf
        %561 = vmax.xlane.f32.xlu0 %v560
        %v562 = vpop.xlane.xlu0 %561
        %v563 = vsub.f32 %v555, %v559
        %v564 = vsub.f32 %v556, %v562
        %v565 = vmul.f32 %v563, 1.442695
        %v566 = vpow.pop %v565
        %v567 = vmul.f32 %v564, 1.442695
        %v568 = vpow.pop %v567
        %v569 = vsel %vm431, %v566, 0.0
        %570 = vadd.xlane.f32.xlu0 %v569
        %v571 = vpop.xlane.xlu0 %570
        %v572 = vsel %vm431, %v568, 0.0
        %573 = vadd.xlane.f32.xlu0 %v572
        %v574 = vpop.xlane.xlu0 %573
        %v575 = vrcp.pop %v571
        %v576 = vrcp.pop %v574
        %v577 = vmul.f32 %v566, %v575
        %v578 = vmul.f32 %v568, %v576
        %v579 = vpack.c.bf16 %v578, %v577
        %580 = vrot.lane.b32.xlu0 %v369, 56
        %v581 = vpop.permute.xlu0 %580
        %v584 = vsel %vm431, %v579, 0
        %586 = vmatprep.subr.bf16.mxu0 0
        %587 = vmatpush1.bf16.msra.mxu0 %v581
        %588 = vmatprep.subr.bf16.mxu0 0
        %589 = vmatpush1.bf16.msra.mxu0 0
        %590 = vmatprep.subr.bf16.mxu0 0
        %591 = vmatpush1.bf16.msra.mxu0 0
        %592 = vmatprep.subr.bf16.mxu0 0
        %593 = vmatpush1.bf16.msra.mxu0 0
        %594 = vmatprep.subr.bf16.mxu0 0
        %595 = vmatpush1.bf16.msra.mxu0 0
        %596 = vmatprep.subr.bf16.mxu0 0
        %597 = vmatpush1.bf16.msra.mxu0 0
        %598 = vmatprep.subr.bf16.mxu0 0
        %599 = vmatpush1.bf16.msra.mxu0 0
        %600 = vmatprep.subr.bf16.mxu0 0
        %601 = vmatpush1.bf16.msra.mxu0 0
        %602 = vmatprep.subr.bf16.mxu0 0
        %603 = vmatpush1.bf16.msra.mxu0 0
        %604 = vmatprep.subr.bf16.mxu0 0
        %605 = vmatpush1.bf16.msra.mxu0 0
        %606 = vmatprep.subr.bf16.mxu0 0
        %607 = vmatpush1.bf16.msra.mxu0 0
        %608 = vmatprep.subr.bf16.mxu0 0
        %609 = vmatpush1.bf16.msra.mxu0 0
        %610 = vmatprep.subr.bf16.mxu0 0
        %611 = vmatpush1.bf16.msra.mxu0 0
        %612 = vmatprep.subr.bf16.mxu0 0
        %613 = vmatpush1.bf16.msra.mxu0 0
        %614 = vmatprep.subr.bf16.mxu0 0
        %615 = vmatpush1.bf16.msra.mxu0 0
        %616 = vmatprep.subr.bf16.mxu0 0
        %617 = vmatpush1.bf16.msra.mxu0 0
        %618 = vmatprep.mubr.bf16.mxu0 0
        %619 = vmatmul.mubr.bf16.gmra.mrb[0].mxu0 %v584
        %v620 = vpop.f32.mrb[0].mxu0
        %v621 = vadd.f32 0.0, %v620
        %v622 = vpop.f32.mrb[0].mxu0
        %v623 = vpop.f32.mrb[0].mxu0
        %v624 = vadd.f32 0.0, %v623
        %v625 = vpop.f32.mrb[0].mxu0
        %626 = vdwg.mxu0
        %627 = vrot.lane.b32.xlu0 %v369, 112
        %v628 = vpop.permute.xlu0 %627
        %629 = vrot.lane.b32.xlu0 %v369, 80
        %v630 = vpop.permute.xlu0 %629
        %v632 = vsel %vm373, %v628, 0
        %v635 = vsel %vm373, %v630, 0
        %637 = vmatprep.subr.bf16.mxu0 0
        %638 = vmatpush1.bf16.xpose.msra.mxu0 %v635
        %639 = vmatprep.subr.bf16.mxu0 0
        %640 = vmatpush1.bf16.xpose.msra.mxu0 0
        %641 = vmatprep.subr.bf16.mxu0 0
        %642 = vmatpush1.bf16.xpose.msra.mxu0 0
        %643 = vmatprep.subr.bf16.mxu0 0
        %644 = vmatpush1.bf16.xpose.msra.mxu0 0
        %645 = vmatprep.subr.bf16.mxu0 0
        %646 = vmatpush1.bf16.xpose.msra.mxu0 0
        %647 = vmatprep.subr.bf16.mxu0 0
        %648 = vmatpush1.bf16.xpose.msra.mxu0 0
        %649 = vmatprep.subr.bf16.mxu0 0
        %650 = vmatpush1.bf16.xpose.msra.mxu0 0
        %651 = vmatprep.subr.bf16.mxu0 0
        %652 = vmatpush1.bf16.xpose.msra.mxu0 0
        %653 = vmatprep.subr.bf16.mxu0 0
        %654 = vmatpush1.bf16.xpose.msra.mxu0 0
        %655 = vmatprep.subr.bf16.mxu0 0
        %656 = vmatpush1.bf16.xpose.msra.mxu0 0
        %657 = vmatprep.subr.bf16.mxu0 0
        %658 = vmatpush1.bf16.xpose.msra.mxu0 0
        %659 = vmatprep.subr.bf16.mxu0 0
        %660 = vmatpush1.bf16.xpose.msra.mxu0 0
        %661 = vmatprep.subr.bf16.mxu0 0
        %662 = vmatpush1.bf16.xpose.msra.mxu0 0
        %663 = vmatprep.subr.bf16.mxu0 0
        %664 = vmatpush1.bf16.xpose.msra.mxu0 0
        %665 = vmatprep.subr.bf16.mxu0 0
        %666 = vmatpush1.bf16.xpose.msra.mxu0 0
        %667 = vmatprep.subr.bf16.mxu0 0
        %668 = vmatpush1.bf16.xpose.msra.mxu0 0
        %669 = vmatprep.mubr.bf16.mxu0 0
        %670 = vmatmul.mubr.bf16.gmra.mrb[0].mxu0 %v632
        %v671 = vpop.f32.mrb[0].mxu0
        %v672 = vadd.f32 0.0, %v671
        %v673 = vpop.f32.mrb[0].mxu0
        %v674 = vpop.f32.mrb[0].mxu0
        %v675 = vadd.f32 0.0, %v674
        %v676 = vpop.f32.mrb[0].mxu0
        %677 = vdwg.mxu0
        %v678 = vmul.f32 %v672, 0.35355338
        %v679 = vmul.f32 %v675, 0.35355338
        %v680 = vadd.f32 %v678, %v427
        %v681 = vadd.f32 %v679, %v427
        %v682 = vsel %vm431, %v680, -inf
        %683 = vmax.xlane.f32.xlu0 %v682
        %v684 = vpop.xlane.xlu0 %683
        %v685 = vsel %vm431, %v681, -inf
        %686 = vmax.xlane.f32.xlu0 %v685
        %v687 = vpop.xlane.xlu0 %686
        %v688 = vsub.f32 %v680, %v684
        %v689 = vsub.f32 %v681, %v687
        %v690 = vmul.f32 %v688, 1.442695
        %v691 = vpow.pop %v690
        %v692 = vmul.f32 %v689, 1.442695
        %v693 = vpow.pop %v692
        %v694 = vsel %vm431, %v691, 0.0
        %695 = vadd.xlane.f32.xlu0 %v694
        %v696 = vpop.xlane.xlu0 %695
        %v697 = vsel %vm431, %v693, 0.0
        %698 = vadd.xlane.f32.xlu0 %v697
        %v699 = vpop.xlane.xlu0 %698
        %v700 = vrcp.pop %v696
        %v701 = vrcp.pop %v699
        %v702 = vmul.f32 %v691, %v700
        %v703 = vmul.f32 %v693, %v701
        %v704 = vpack.c.bf16 %v703, %v702
        %705 = vrot.lane.b32.xlu0 %v369, 48
        %v706 = vpop.permute.xlu0 %705
        %v709 = vsel %vm431, %v704, 0
        %711 = vmatprep.subr.bf16.mxu0 0
        %712 = vmatpush1.bf16.msra.mxu0 %v706
        %713 = vmatprep.subr.bf16.mxu0 0
        %714 = vmatpush1.bf16.msra.mxu0 0
        %715 = vmatprep.subr.bf16.mxu0 0
        %716 = vmatpush1.bf16.msra.mxu0 0
        %717 = vmatprep.subr.bf16.mxu0 0
        %718 = vmatpush1.bf16.msra.mxu0 0
        %719 = vmatprep.subr.bf16.mxu0 0
        %720 = vmatpush1.bf16.msra.mxu0 0
        %721 = vmatprep.subr.bf16.mxu0 0
        %722 = vmatpush1.bf16.msra.mxu0 0
        %723 = vmatprep.subr.bf16.mxu0 0
        %724 = vmatpush1.bf16.msra.mxu0 0
        %725 = vmatprep.subr.bf16.mxu0 0
        %726 = vmatpush1.bf16.msra.mxu0 0
        %727 = vmatprep.subr.bf16.mxu0 0
        %728 = vmatpush1.bf16.msra.mxu0 0
        %729 = vmatprep.subr.bf16.mxu0 0
        %730 = vmatpush1.bf16.msra.mxu0 0
        %731 = vmatprep.subr.bf16.mxu0 0
        %732 = vmatpush1.bf16.msra.mxu0 0
        %733 = vmatprep.subr.bf16.mxu0 0
        %734 = vmatpush1.bf16.msra.mxu0 0
        %735 = vmatprep.subr.bf16.mxu0 0
        %736 = vmatpush1.bf16.msra.mxu0 0
        %737 = vmatprep.subr.bf16.mxu0 0
        %738 = vmatpush1.bf16.msra.mxu0 0
        %739 = vmatprep.subr.bf16.mxu0 0
        %740 = vmatpush1.bf16.msra.mxu0 0
        %741 = vmatprep.subr.bf16.mxu0 0
        %742 = vmatpush1.bf16.msra.mxu0 0
        %743 = vmatprep.mubr.bf16.mxu0 0
        %744 = vmatmul.mubr.bf16.gmra.mrb[0].mxu0 %v709
        %v745 = vpop.f32.mrb[0].mxu0
        %v746 = vadd.f32 0.0, %v745
        %v747 = vpop.f32.mrb[0].mxu0
        %v748 = vpop.f32.mrb[0].mxu0
        %v749 = vadd.f32 0.0, %v748
        %v750 = vpop.f32.mrb[0].mxu0
        %751 = vdwg.mxu0
        %752 = vrot.lane.b32.xlu0 %v369, 104
        %v753 = vpop.permute.xlu0 %752
        %754 = vrot.lane.b32.xlu0 %v369, 72
        %v755 = vpop.permute.xlu0 %754
        %v757 = vsel %vm373, %v753, 0
        %v760 = vsel %vm373, %v755, 0
        %762 = vmatprep.subr.bf16.mxu0 0
        %763 = vmatpush1.bf16.xpose.msra.mxu0 %v760
        %764 = vmatprep.subr.bf16.mxu0 0
        %765 = vmatpush1.bf16.xpose.msra.mxu0 0
        %766 = vmatprep.subr.bf16.mxu0 0
        %767 = vmatpush1.bf16.xpose.msra.mxu0 0
        %768 = vmatprep.subr.bf16.mxu0 0
        %769 = vmatpush1.bf16.xpose.msra.mxu0 0
        %770 = vmatprep.subr.bf16.mxu0 0
        %771 = vmatpush1.bf16.xpose.msra.mxu0 0
        %772 = vmatprep.subr.bf16.mxu0 0
        %773 = vmatpush1.bf16.xpose.msra.mxu0 0
        %774 = vmatprep.subr.bf16.mxu0 0
        %775 = vmatpush1.bf16.xpose.msra.mxu0 0
        %776 = vmatprep.subr.bf16.mxu0 0
        %777 = vmatpush1.bf16.xpose.msra.mxu0 0
        %778 = vmatprep.subr.bf16.mxu0 0
        %779 = vmatpush1.bf16.xpose.msra.mxu0 0
        %780 = vmatprep.subr.bf16.mxu0 0
        %781 = vmatpush1.bf16.xpose.msra.mxu0 0
        %782 = vmatprep.subr.bf16.mxu0 0
        %783 = vmatpush1.bf16.xpose.msra.mxu0 0
        %784 = vmatprep.subr.bf16.mxu0 0
        %785 = vmatpush1.bf16.xpose.msra.mxu0 0
        %786 = vmatprep.subr.bf16.mxu0 0
        %787 = vmatpush1.bf16.xpose.msra.mxu0 0
        %788 = vmatprep.subr.bf16.mxu0 0
        %789 = vmatpush1.bf16.xpose.msra.mxu0 0
        %790 = vmatprep.subr.bf16.mxu0 0
        %791 = vmatpush1.bf16.xpose.msra.mxu0 0
        %792 = vmatprep.subr.bf16.mxu0 0
        %793 = vmatpush1.bf16.xpose.msra.mxu0 0
        %794 = vmatprep.mubr.bf16.mxu0 0
        %795 = vmatmul.mubr.bf16.gmra.mrb[0].mxu0 %v757
        %v796 = vpop.f32.mrb[0].mxu0
        %v797 = vadd.f32 0.0, %v796
        %v798 = vpop.f32.mrb[0].mxu0
        %v799 = vpop.f32.mrb[0].mxu0
        %v800 = vadd.f32 0.0, %v799
        %v801 = vpop.f32.mrb[0].mxu0
        %802 = vdwg.mxu0
        %v803 = vmul.f32 %v797, 0.35355338
        %v804 = vmul.f32 %v800, 0.35355338
        %v805 = vadd.f32 %v803, %v427
        %v806 = vadd.f32 %v804, %v427
        %v807 = vsel %vm431, %v805, -inf
        %808 = vmax.xlane.f32.xlu0 %v807
        %v809 = vpop.xlane.xlu0 %808
        %v810 = vsel %vm431, %v806, -inf
        %811 = vmax.xlane.f32.xlu0 %v810
        %v812 = vpop.xlane.xlu0 %811
        %v813 = vsub.f32 %v805, %v809
        %v814 = vsub.f32 %v806, %v812
        %v815 = vmul.f32 %v813, 1.442695
        %v816 = vpow.pop %v815
        %v817 = vmul.f32 %v814, 1.442695
        %v818 = vpow.pop %v817
        %v819 = vsel %vm431, %v816, 0.0
        %820 = vadd.xlane.f32.xlu0 %v819
        %v821 = vpop.xlane.xlu0 %820
        %v822 = vsel %vm431, %v818, 0.0
        %823 = vadd.xlane.f32.xlu0 %v822
        %v824 = vpop.xlane.xlu0 %823
        %v825 = vrcp.pop %v821
        %v826 = vrcp.pop %v824
        %v827 = vmul.f32 %v816, %v825
        %v828 = vmul.f32 %v818, %v826
        %v829 = vpack.c.bf16 %v828, %v827
        %830 = vrot.lane.b32.xlu0 %v369, 40
        %v831 = vpop.permute.xlu0 %830
        %v834 = vsel %vm431, %v829, 0
        %836 = vmatprep.subr.bf16.mxu0 0
        %837 = vmatpush1.bf16.msra.mxu0 %v831
        %838 = vmatprep.subr.bf16.mxu0 0
        %839 = vmatpush1.bf16.msra.mxu0 0
        %840 = vmatprep.subr.bf16.mxu0 0
        %841 = vmatpush1.bf16.msra.mxu0 0
        %842 = vmatprep.subr.bf16.mxu0 0
        %843 = vmatpush1.bf16.msra.mxu0 0
        %844 = vmatprep.subr.bf16.mxu0 0
        %845 = vmatpush1.bf16.msra.mxu0 0
        %846 = vmatprep.subr.bf16.mxu0 0
        %847 = vmatpush1.bf16.msra.mxu0 0
        %848 = vmatprep.subr.bf16.mxu0 0
        %849 = vmatpush1.bf16.msra.mxu0 0
        %850 = vmatprep.subr.bf16.mxu0 0
        %851 = vmatpush1.bf16.msra.mxu0 0
        %852 = vmatprep.subr.bf16.mxu0 0
        %853 = vmatpush1.bf16.msra.mxu0 0
        %854 = vmatprep.subr.bf16.mxu0 0
        %855 = vmatpush1.bf16.msra.mxu0 0
        %856 = vmatprep.subr.bf16.mxu0 0
        %857 = vmatpush1.bf16.msra.mxu0 0
        %858 = vmatprep.subr.bf16.mxu0 0
        %859 = vmatpush1.bf16.msra.mxu0 0
        %860 = vmatprep.subr.bf16.mxu0 0
        %861 = vmatpush1.bf16.msra.mxu0 0
        %862 = vmatprep.subr.bf16.mxu0 0
        %863 = vmatpush1.bf16.msra.mxu0 0
        %864 = vmatprep.subr.bf16.mxu0 0
        %865 = vmatpush1.bf16.msra.mxu0 0
        %866 = vmatprep.subr.bf16.mxu0 0
        %867 = vmatpush1.bf16.msra.mxu0 0
        %868 = vmatprep.mubr.bf16.mxu0 0
        %869 = vmatmul.mubr.bf16.gmra.mrb[0].mxu0 %v834
        %v870 = vpop.f32.mrb[0].mxu0
        %v871 = vadd.f32 0.0, %v870
        %v872 = vpop.f32.mrb[0].mxu0
        %v873 = vpop.f32.mrb[0].mxu0
        %v874 = vadd.f32 0.0, %v873
        %v875 = vpop.f32.mrb[0].mxu0
        %876 = vdwg.mxu0
        %879 = vrot.lane.b32.xlu0 %v621, 8
        %v880 = vpop.permute.xlu0 %879
        %881 = vrot.lane.b32.xlu0 %v624, 8
        %v882 = vpop.permute.xlu0 %881
        %887 = vrot.lane.b32.xlu0 %v746, 16
        %v888 = vpop.permute.xlu0 %887
        %889 = vrot.lane.b32.xlu0 %v749, 16
        %v890 = vpop.permute.xlu0 %889
        %895 = vrot.lane.b32.xlu0 %v871, 24
        %v896 = vpop.permute.xlu0 %895
        %897 = vrot.lane.b32.xlu0 %v874, 24
        %v898 = vpop.permute.xlu0 %897
        %v901 = vsel %vm373, %v496, %v880
        %v902 = vsel %vm373, %v499, %v882
        %v903 = vsel %vm431, %v901, %v888
        %v904 = vsel %vm431, %v902, %v890
        %vm905 = vcmask 195584
        %v906 = vsel %vm905, %v903, %v896
        %v907 = vsel %vm905, %v904, %v898
        %v908 = vpack.c.bf16 %v907, %v906
        %v909 = vld [vmem:[%s4 + $0x10] sm:$0xf]
        %v910 = vld [vmem:[%s4 + $0x14] sm:$0xf]
        %v911 = vld [vmem:[%s4 + $0x18] sm:$0xf]
        %v912 = vld [vmem:[%s4 + $0x1c] sm:$0xf]
        %v913 = vld [vmem:[%s5 + $0x8] sm:$0x1]
        %v914 = vlaneseq
        %v915 = vshrl.u32 %v914, 7
        %v916 = vsub.s32 0, %v915
        %v917 = vrot.slane %v913, %v916
        %v922 = vunpack.c.l.b16 %v909
        %v923 = vunpack.c.l.b16 %v910
        %v924 = vunpack.c.l.b16 %v911
        %v925 = vunpack.c.l.b16 %v912
        %v926 = vpack.c.b16 %v923, %v922
        %v927 = vpack.c.b16 %v925, %v924
        %v931 = vsel %vm324, %v908, 0
        %933 = vmatprep.subr.bf16.mxu0 0
        %934 = vmatpush1.bf16.msra.mxu0 %v926
        %935 = vmatprep.subr.bf16.mxu0 0
        %936 = vmatpush1.bf16.msra.mxu0 %v927
        %937 = vmatprep.subr.bf16.mxu0 0
        %938 = vmatpush1.bf16.msra.mxu0 0
        %939 = vmatprep.subr.bf16.mxu0 0
        %940 = vmatpush1.bf16.msra.mxu0 0
        %941 = vmatprep.subr.bf16.mxu0 0
        %942 = vmatpush1.bf16.msra.mxu0 0
        %943 = vmatprep.subr.bf16.mxu0 0
        %944 = vmatpush1.bf16.msra.mxu0 0
        %945 = vmatprep.subr.bf16.mxu0 0
        %946 = vmatpush1.bf16.msra.mxu0 0
        %947 = vmatprep.subr.bf16.mxu0 0
        %948 = vmatpush1.bf16.msra.mxu0 0
        %949 = vmatprep.subr.bf16.mxu0 0
        %950 = vmatpush1.bf16.msra.mxu0 0
        %951 = vmatprep.subr.bf16.mxu0 0
        %952 = vmatpush1.bf16.msra.mxu0 0
        %953 = vmatprep.subr.bf16.mxu0 0
        %954 = vmatpush1.bf16.msra.mxu0 0
        %955 = vmatprep.subr.bf16.mxu0 0
        %956 = vmatpush1.bf16.msra.mxu0 0
        %957 = vmatprep.subr.bf16.mxu0 0
        %958 = vmatpush1.bf16.msra.mxu0 0
        %959 = vmatprep.subr.bf16.mxu0 0
        %960 = vmatpush1.bf16.msra.mxu0 0
        %961 = vmatprep.subr.bf16.mxu0 0
        %962 = vmatpush1.bf16.msra.mxu0 0
        %963 = vmatprep.subr.bf16.mxu0 0
        %964 = vmatpush1.bf16.msra.mxu0 0
        %965 = vmatprep.mubr.bf16.mxu0 0
        %966 = vmatmul.mubr.bf16.gmra.mrb[0].mxu0 %v931
        %v967 = vpop.f32.mrb[0].mxu0
        %v968 = vadd.f32 %v917, %v967
        %v969 = vpop.f32.mrb[0].mxu0
        %v970 = vpop.f32.mrb[0].mxu0
        %v971 = vadd.f32 %v917, %v970
        %v972 = vpop.f32.mrb[0].mxu0
        %973 = vdwg.mxu0
        %v974 = vadd.f32 %v300, %v968
        %v975 = vadd.f32 %v301, %v971
        %v976 = vld [vmem:[%s5 + $0x10] sm:$0x1]
        %v977 = vld [vmem:[%s5 + $0x18] sm:$0x1]
        %v978 = vsel %vm324, %v974, 0.0
        %979 = vadd.xlane.f32.xlu0 %v978
        %v980 = vpop.xlane.xlu0 %979
        %v981 = vsel %vm324, %v975, 0.0
        %982 = vadd.xlane.f32.xlu0 %v981
        %v983 = vpop.xlane.xlu0 %982
        %v984 = vrcp.pop 32.0
        %v985 = vmul.f32 %v980, %v984
        %v986 = vmul.f32 %v983, %v984
        %v987 = vmul.f32 %v974, %v974
        %v988 = vmul.f32 %v975, %v975
        %v989 = vsel %vm324, %v987, 0.0
        %990 = vadd.xlane.f32.xlu0 %v989
        %v991 = vpop.xlane.xlu0 %990
        %v992 = vsel %vm324, %v988, 0.0
        %993 = vadd.xlane.f32.xlu0 %v992
        %v994 = vpop.xlane.xlu0 %993
        %v995 = vmul.f32 %v991, %v984
        %v996 = vmul.f32 %v994, %v984
        %v997 = vmul.f32 %v985, %v985
        %v998 = vmul.f32 %v986, %v986
        %v999 = vsub.f32 %v995, %v997
        %v1000 = vsub.f32 %v996, %v998
        %v1001 = vsub.f32 %v974, %v985
        %v1002 = vsub.f32 %v975, %v986
        %v1003 = vadd.f32 %v999, 1e-05
        %v1004 = vadd.f32 %v1000, 1e-05
        %v1005 = vrsqrt.pop %v1003
        %v1006 = vrsqrt.pop %v1004
        %v1007 = vmul.f32 %v1001, %v1005
        %v1008 = vmul.f32 %v1002, %v1006
        %v1009 = vlaneseq
        %v1010 = vshrl.u32 %v1009, 7
        %v1011 = vsub.s32 0, %v1010
        %v1012 = vrot.slane %v976, %v1011
        %v1013 = vmul.f32 %v1007, %v1012
        %v1014 = vmul.f32 %v1008, %v1012
        %v1015 = vlaneseq
        %v1016 = vshrl.u32 %v1015, 7
        %v1017 = vsub.s32 0, %v1016
        %v1018 = vrot.slane %v977, %v1017
        %v1019 = vadd.f32 %v1013, %v1018
        %v1020 = vadd.f32 %v1014, %v1018
        %v1021 = vpack.c.bf16 %v1020, %v1019
        %v1022 = vld [vmem:[%s4 + $0x20] sm:$0xf]
        %v1023 = vld [vmem:[%s4 + $0x24] sm:$0xf]
        %v1024 = vld [vmem:[%s4 + $0x28] sm:$0xf]
        %v1025 = vld [vmem:[%s4 + $0x2c] sm:$0xf]
        %v1026 = vld [vmem:[%s5 + $0x20] sm:$0x1]
        %v1027 = vlaneseq
        %v1028 = vshrl.u32 %v1027, 7
        %v1029 = vsub.s32 0, %v1028
        %v1030 = vrot.slane %v1026, %v1029
        %v1035 = vunpack.c.l.b16 %v1022
        %v1036 = vunpack.c.l.b16 %v1023
        %v1037 = vunpack.c.l.b16 %v1024
        %v1038 = vunpack.c.l.b16 %v1025
        %v1039 = vpack.c.b16 %v1036, %v1035
        %v1040 = vpack.c.b16 %v1038, %v1037
        %v1044 = vsel %vm324, %v1021, 0
        %1046 = vmatprep.subr.bf16.mxu0 0
        %1047 = vmatpush1.bf16.msra.mxu0 %v1039
        %1048 = vmatprep.subr.bf16.mxu0 0
        %1049 = vmatpush1.bf16.msra.mxu0 %v1040
        %1050 = vmatprep.subr.bf16.mxu0 0
        %1051 = vmatpush1.bf16.msra.mxu0 0
        %1052 = vmatprep.subr.bf16.mxu0 0
        %1053 = vmatpush1.bf16.msra.mxu0 0
        %1054 = vmatprep.subr.bf16.mxu0 0
        %1055 = vmatpush1.bf16.msra.mxu0 0
        %1056 = vmatprep.subr.bf16.mxu0 0
        %1057 = vmatpush1.bf16.msra.mxu0 0
        %1058 = vmatprep.subr.bf16.mxu0 0
        %1059 = vmatpush1.bf16.msra.mxu0 0
        %1060 = vmatprep.subr.bf16.mxu0 0
        %1061 = vmatpush1.bf16.msra.mxu0 0
        %1062 = vmatprep.subr.bf16.mxu0 0
        %1063 = vmatpush1.bf16.msra.mxu0 0
        %1064 = vmatprep.subr.bf16.mxu0 0
        %1065 = vmatpush1.bf16.msra.mxu0 0
        %1066 = vmatprep.subr.bf16.mxu0 0
        %1067 = vmatpush1.bf16.msra.mxu0 0
        %1068 = vmatprep.subr.bf16.mxu0 0
        %1069 = vmatpush1.bf16.msra.mxu0 0
        %1070 = vmatprep.subr.bf16.mxu0 0
        %1071 = vmatpush1.bf16.msra.mxu0 0
        %1072 = vmatprep.subr.bf16.mxu0 0
        %1073 = vmatpush1.bf16.msra.mxu0 0
        %1074 = vmatprep.subr.bf16.mxu0 0
        %1075 = vmatpush1.bf16.msra.mxu0 0
        %1076 = vmatprep.subr.bf16.mxu0 0
        %1077 = vmatpush1.bf16.msra.mxu0 0
        %1078 = vmatprep.mubr.bf16.mxu0 0
        %1079 = vmatmul.mubr.bf16.gmra.mrb[0].mxu0 %v1044
        %v1080 = vpop.f32.mrb[0].mxu0
        %v1081 = vadd.f32 %v1030, %v1080
        %v1082 = vpop.f32.mrb[0].mxu0
        %v1083 = vpop.f32.mrb[0].mxu0
        %v1084 = vadd.f32 %v1030, %v1083
        %v1085 = vpop.f32.mrb[0].mxu0
        %1086 = vdwg.mxu0
        %v1087 = vmax.f32 %v1081, 0.0
        %v1088 = vmax.f32 %v1084, 0.0
        %v1089 = vpack.c.bf16 %v1088, %v1087
        %v1090 = vld [vmem:[%s4 + $0x30] sm:$0xf]
        %v1091 = vld [vmem:[%s4 + $0x34] sm:$0xf]
        %v1092 = vld [vmem:[%s4 + $0x38] sm:$0xf]
        %v1093 = vld [vmem:[%s4 + $0x3c] sm:$0xf]
        %v1094 = vld [vmem:[%s4 + $0x40] sm:$0xf]
        %v1095 = vld [vmem:[%s4 + $0x44] sm:$0xf]
        %v1096 = vld [vmem:[%s4 + $0x48] sm:$0xf]
        %v1097 = vld [vmem:[%s4 + $0x4c] sm:$0xf]
        %v1098 = vld [vmem:[%s5 + $0x28] sm:$0x1]
        %v1099 = vlaneseq
        %v1100 = vshrl.u32 %v1099, 7
        %v1101 = vsub.s32 0, %v1100
        %v1102 = vrot.slane %v1098, %v1101
        %v1111 = vunpack.c.l.b16 %v1090
        %v1112 = vunpack.c.l.b16 %v1091
        %v1113 = vunpack.c.l.b16 %v1092
        %v1114 = vunpack.c.l.b16 %v1093
        %v1115 = vunpack.c.l.b16 %v1094
        %v1116 = vunpack.c.l.b16 %v1095
        %v1117 = vunpack.c.l.b16 %v1096
        %v1118 = vunpack.c.l.b16 %v1097
        %v1119 = vpack.c.b16 %v1112, %v1111
        %v1120 = vpack.c.b16 %v1114, %v1113
        %v1121 = vpack.c.b16 %v1116, %v1115
        %v1122 = vpack.c.b16 %v1118, %v1117
        %vm1127 = vcmask 523264
        %v1129 = vsel %vm1127, %v1089, 0
        %1131 = vmatprep.subr.bf16.mxu0 0
        %1132 = vmatpush1.bf16.msra.mxu0 %v1119
        %1133 = vmatprep.subr.bf16.mxu0 0
        %1134 = vmatpush1.bf16.msra.mxu0 %v1120
        %1135 = vmatprep.subr.bf16.mxu0 0
        %1136 = vmatpush1.bf16.msra.mxu0 %v1121
        %1137 = vmatprep.subr.bf16.mxu0 0
        %1138 = vmatpush1.bf16.msra.mxu0 %v1122
        %1139 = vmatprep.subr.bf16.mxu0 0
        %1140 = vmatpush1.bf16.msra.mxu0 0
        %1141 = vmatprep.subr.bf16.mxu0 0
        %1142 = vmatpush1.bf16.msra.mxu0 0
        %1143 = vmatprep.subr.bf16.mxu0 0
        %1144 = vmatpush1.bf16.msra.mxu0 0
        %1145 = vmatprep.subr.bf16.mxu0 0
        %1146 = vmatpush1.bf16.msra.mxu0 0
        %1147 = vmatprep.subr.bf16.mxu0 0
        %1148 = vmatpush1.bf16.msra.mxu0 0
        %1149 = vmatprep.subr.bf16.mxu0 0
        %1150 = vmatpush1.bf16.msra.mxu0 0
        %1151 = vmatprep.subr.bf16.mxu0 0
        %1152 = vmatpush1.bf16.msra.mxu0 0
        %1153 = vmatprep.subr.bf16.mxu0 0
        %1154 = vmatpush1.bf16.msra.mxu0 0
        %1155 = vmatprep.subr.bf16.mxu0 0
        %1156 = vmatpush1.bf16.msra.mxu0 0
        %1157 = vmatprep.subr.bf16.mxu0 0
        %1158 = vmatpush1.bf16.msra.mxu0 0
        %1159 = vmatprep.subr.bf16.mxu0 0
        %1160 = vmatpush1.bf16.msra.mxu0 0
        %1161 = vmatprep.subr.bf16.mxu0 0
        %1162 = vmatpush1.bf16.msra.mxu0 0
        %1163 = vmatprep.mubr.bf16.mxu0 0
        %1164 = vmatmul.mubr.bf16.gmra.mrb[0].mxu0 %v1129
        %v1165 = vpop.f32.mrb[0].mxu0
        %v1166 = vadd.f32 %v1102, %v1165
        %v1167 = vpop.f32.mrb[0].mxu0
        %v1168 = vpop.f32.mrb[0].mxu0
        %v1169 = vadd.f32 %v1102, %v1168
        %v1170 = vpop.f32.mrb[0].mxu0
        %1171 = vdwg.mxu0
        %v1172 = vadd.f32 %v1019, %v1166
        %v1173 = vadd.f32 %v1020, %v1169
        %v1174 = vld [vmem:[%s5 + $0x30] sm:$0x1]
        %v1175 = vld [vmem:[%s5 + $0x38] sm:$0x1]
        %v1176 = vsel %vm324, %v1172, 0.0
        %1177 = vadd.xlane.f32.xlu0 %v1176
        %v1178 = vpop.xlane.xlu0 %1177
        %v1179 = vsel %vm324, %v1173, 0.0
        %1180 = vadd.xlane.f32.xlu0 %v1179
        %v1181 = vpop.xlane.xlu0 %1180
        %v1182 = vmul.f32 %v1178, %v984
        %v1183 = vmul.f32 %v1181, %v984
        %v1184 = vmul.f32 %v1172, %v1172
        %v1185 = vmul.f32 %v1173, %v1173
        %v1186 = vsel %vm324, %v1184, 0.0
        %1187 = vadd.xlane.f32.xlu0 %v1186
        %v1188 = vpop.xlane.xlu0 %1187
        %v1189 = vsel %vm324, %v1185, 0.0
        %1190 = vadd.xlane.f32.xlu0 %v1189
        %v1191 = vpop.xlane.xlu0 %1190
        %v1192 = vmul.f32 %v1188, %v984
        %v1193 = vmul.f32 %v1191, %v984
        %v1194 = vmul.f32 %v1182, %v1182
        %v1195 = vmul.f32 %v1183, %v1183
        %v1196 = vsub.f32 %v1192, %v1194
        %v1197 = vsub.f32 %v1193, %v1195
        %v1198 = vsub.f32 %v1172, %v1182
        %v1199 = vsub.f32 %v1173, %v1183
        %v1200 = vadd.f32 %v1196, 1e-05
        %v1201 = vadd.f32 %v1197, 1e-05
        %v1202 = vrsqrt.pop %v1200
        %v1203 = vrsqrt.pop %v1201
        %v1204 = vmul.f32 %v1198, %v1202
        %v1205 = vmul.f32 %v1199, %v1203
        %v1206 = vlaneseq
        %v1207 = vshrl.u32 %v1206, 7
        %v1208 = vsub.s32 0, %v1207
        %v1209 = vrot.slane %v1174, %v1208
        %v1210 = vmul.f32 %v1204, %v1209
        %v1211 = vmul.f32 %v1205, %v1209
        %v1212 = vlaneseq
        %v1213 = vshrl.u32 %v1212, 7
        %v1214 = vsub.s32 0, %v1213
        %v1215 = vrot.slane %v1175, %v1214
        %v1216 = vadd.f32 %v1210, %v1215
        %v1217 = vadd.f32 %v1211, %v1215
        %v1218 = vpack.c.bf16 %v1217, %v1216
        %v1219 = vld [vmem:[%s4 + $0x50] sm:$0xf]
        %v1220 = vld [vmem:[%s4 + $0x54] sm:$0xf]
        %v1221 = vld [vmem:[%s4 + $0x58] sm:$0xf]
        %v1222 = vld [vmem:[%s4 + $0x5c] sm:$0xf]
        %v1223 = vld [vmem:[%s5 + $0x40] sm:$0x1]
        %v1224 = vlaneseq
        %v1225 = vshrl.u32 %v1224, 7
        %v1226 = vsub.s32 0, %v1225
        %v1227 = vrot.slane %v1223, %v1226
        %v1232 = vunpack.c.l.b16 %v1219
        %v1233 = vunpack.c.l.b16 %v1220
        %v1234 = vunpack.c.l.b16 %v1221
        %v1235 = vunpack.c.l.b16 %v1222
        %v1236 = vpack.c.b16 %v1233, %v1232
        %v1237 = vpack.c.b16 %v1235, %v1234
        %v1241 = vsel %vm324, %v1218, 0
        %1243 = vmatprep.subr.bf16.mxu0 0
        %1244 = vmatpush1.bf16.msra.mxu0 %v1236
        %1245 = vmatprep.subr.bf16.mxu0 0
        %1246 = vmatpush1.bf16.msra.mxu0 %v1237
        %1247 = vmatprep.subr.bf16.mxu0 0
        %1248 = vmatpush1.bf16.msra.mxu0 0
        %1249 = vmatprep.subr.bf16.mxu0 0
        %1250 = vmatpush1.bf16.msra.mxu0 0
        %1251 = vmatprep.subr.bf16.mxu0 0
        %1252 = vmatpush1.bf16.msra.mxu0 0
        %1253 = vmatprep.subr.bf16.mxu0 0
        %1254 = vmatpush1.bf16.msra.mxu0 0
        %1255 = vmatprep.subr.bf16.mxu0 0
        %1256 = vmatpush1.bf16.msra.mxu0 0
        %1257 = vmatprep.subr.bf16.mxu0 0
        %1258 = vmatpush1.bf16.msra.mxu0 0
        %1259 = vmatprep.subr.bf16.mxu0 0
        %1260 = vmatpush1.bf16.msra.mxu0 0
        %1261 = vmatprep.subr.bf16.mxu0 0
        %1262 = vmatpush1.bf16.msra.mxu0 0
        %1263 = vmatprep.subr.bf16.mxu0 0
        %1264 = vmatpush1.bf16.msra.mxu0 0
        %1265 = vmatprep.subr.bf16.mxu0 0
        %1266 = vmatpush1.bf16.msra.mxu0 0
        %1267 = vmatprep.subr.bf16.mxu0 0
        %1268 = vmatpush1.bf16.msra.mxu0 0
        %1269 = vmatprep.subr.bf16.mxu0 0
        %1270 = vmatpush1.bf16.msra.mxu0 0
        %1271 = vmatprep.subr.bf16.mxu0 0
        %1272 = vmatpush1.bf16.msra.mxu0 0
        %1273 = vmatprep.subr.bf16.mxu0 0
        %1274 = vmatpush1.bf16.msra.mxu0 0
        %1275 = vmatprep.mubr.bf16.mxu0 0
        %1276 = vmatmul.mubr.bf16.gmra.mrb[0].mxu0 %v1241
        %v1277 = vpop.f32.mrb[0].mxu0
        %v1278 = vadd.f32 %v1227, %v1277
        %v1279 = vpop.f32.mrb[0].mxu0
        %v1280 = vpop.f32.mrb[0].mxu0
        %v1281 = vadd.f32 %v1227, %v1280
        %v1282 = vpop.f32.mrb[0].mxu0
        %1283 = vdwg.mxu0
        %v1284 = vpack.c.bf16 %v1281, %v1278
        %1286 = vrot.lane.b32.xlu0 %v1284, 96
        %v1287 = vpop.permute.xlu0 %1286
        %v1289 = vsel %vm373, %v1284, 0
        %v1292 = vsel %vm373, %v1287, 0
        %1294 = vmatprep.subr.bf16.mxu0 0
        %1295 = vmatpush1.bf16.xpose.msra.mxu0 %v1292
        %1296 = vmatprep.subr.bf16.mxu0 0
        %1297 = vmatpush1.bf16.xpose.msra.mxu0 0
        %1298 = vmatprep.subr.bf16.mxu0 0
        %1299 = vmatpush1.bf16.xpose.msra.mxu0 0
        %1300 = vmatprep.subr.bf16.mxu0 0
        %1301 = vmatpush1.bf16.xpose.msra.mxu0 0
        %1302 = vmatprep.subr.bf16.mxu0 0
        %1303 = vmatpush1.bf16.xpose.msra.mxu0 0
        %1304 = vmatprep.subr.bf16.mxu0 0
        %1305 = vmatpush1.bf16.xpose.msra.mxu0 0
        %1306 = vmatprep.subr.bf16.mxu0 0
        %1307 = vmatpush1.bf16.xpose.msra.mxu0 0
        %1308 = vmatprep.subr.bf16.mxu0 0
        %1309 = vmatpush1.bf16.xpose.msra.mxu0 0
        %1310 = vmatprep.subr.bf16.mxu0 0
        %1311 = vmatpush1.bf16.xpose.msra.mxu0 0
        %1312 = vmatprep.subr.bf16.mxu0 0
        %1313 = vmatpush1.bf16.xpose.msra.mxu0 0
        %1314 = vmatprep.subr.bf16.mxu0 0
        %1315 = vmatpush1.bf16.xpose.msra.mxu0 0
        %1316 = vmatprep.subr.bf16.mxu0 0
        %1317 = vmatpush1.bf16.xpose.msra.mxu0 0
        %1318 = vmatprep.subr.bf16.mxu0 0
        %1319 = vmatpush1.bf16.xpose.msra.mxu0 0
        %1320 = vmatprep.subr.bf16.mxu0 0
        %1321 = vmatpush1.bf16.xpose.msra.mxu0 0
        %1322 = vmatprep.subr.bf16.mxu0 0
        %1323 = vmatpush1.bf16.xpose.msra.mxu0 0
        %1324 = vmatprep.subr.bf16.mxu0 0
        %1325 = vmatpush1.bf16.xpose.msra.mxu0 0
        %1326 = vmatprep.mubr.bf16.mxu0 0
        %1327 = vmatmul.mubr.bf16.gmra.mrb[0].mxu0 %v1289
        %v1328 = vpop.f32.mrb[0].mxu0
        %v1329 = vadd.f32 0.0, %v1328
        %v1330 = vpop.f32.mrb[0].mxu0
        %v1331 = vpop.f32.mrb[0].mxu0
        %v1332 = vadd.f32 0.0, %v1331
        %v1333 = vpop.f32.mrb[0].mxu0
        %1334 = vdwg.mxu0
        %v1335 = vmul.f32 %v1329, 0.35355338
        %v1336 = vmul.f32 %v1332, 0.35355338
        %v1337 = vadd.f32 %v1335, %v427
        %v1338 = vadd.f32 %v1336, %v427
        %v1339 = vsel %vm431, %v1337, -inf
        %1340 = vmax.xlane.f32.xlu0 %v1339
        %v1341 = vpop.xlane.xlu0 %1340
        %v1342 = vsel %vm431, %v1338, -inf
        %1343 = vmax.xlane.f32.xlu0 %v1342
        %v1344 = vpop.xlane.xlu0 %1343
        %v1345 = vsub.f32 %v1337, %v1341
        %v1346 = vsub.f32 %v1338, %v1344
        %v1347 = vmul.f32 %v1345, 1.442695
        %v1348 = vpow.pop %v1347
        %v1349 = vmul.f32 %v1346, 1.442695
        %v1350 = vpow.pop %v1349
        %v1351 = vsel %vm431, %v1348, 0.0
        %1352 = vadd.xlane.f32.xlu0 %v1351
        %v1353 = vpop.xlane.xlu0 %1352
        %v1354 = vsel %vm431, %v1350, 0.0
        %1355 = vadd.xlane.f32.xlu0 %v1354
        %v1356 = vpop.xlane.xlu0 %1355
        %v1357 = vrcp.pop %v1353
        %v1358 = vrcp.pop %v1356
        %v1359 = vmul.f32 %v1348, %v1357
        %v1360 = vmul.f32 %v1350, %v1358
        %v1361 = vpack.c.bf16 %v1360, %v1359
        %1362 = vrot.lane.b32.xlu0 %v1284, 64
        %v1363 = vpop.permute.xlu0 %1362
        %v1366 = vsel %vm431, %v1361, 0
        %1368 = vmatprep.subr.bf16.mxu0 0
        %1369 = vmatpush1.bf16.msra.mxu0 %v1363
        %1370 = vmatprep.subr.bf16.mxu0 0
        %1371 = vmatpush1.bf16.msra.mxu0 0
        %1372 = vmatprep.subr.bf16.mxu0 0
        %1373 = vmatpush1.bf16.msra.mxu0 0
        %1374 = vmatprep.subr.bf16.mxu0 0
        %1375 = vmatpush1.bf16.msra.mxu0 0
        %1376 = vmatprep.subr.bf16.mxu0 0
        %1377 = vmatpush1.bf16.msra.mxu0 0
        %1378 = vmatprep.subr.bf16.mxu0 0
        %1379 = vmatpush1.bf16.msra.mxu0 0
        %1380 = vmatprep.subr.bf16.mxu0 0
        %1381 = vmatpush1.bf16.msra.mxu0 0
        %1382 = vmatprep.subr.bf16.mxu0 0
        %1383 = vmatpush1.bf16.msra.mxu0 0
        %1384 = vmatprep.subr.bf16.mxu0 0
        %1385 = vmatpush1.bf16.msra.mxu0 0
        %1386 = vmatprep.subr.bf16.mxu0 0
        %1387 = vmatpush1.bf16.msra.mxu0 0
        %1388 = vmatprep.subr.bf16.mxu0 0
        %1389 = vmatpush1.bf16.msra.mxu0 0
        %1390 = vmatprep.subr.bf16.mxu0 0
        %1391 = vmatpush1.bf16.msra.mxu0 0
        %1392 = vmatprep.subr.bf16.mxu0 0
        %1393 = vmatpush1.bf16.msra.mxu0 0
        %1394 = vmatprep.subr.bf16.mxu0 0
        %1395 = vmatpush1.bf16.msra.mxu0 0
        %1396 = vmatprep.subr.bf16.mxu0 0
        %1397 = vmatpush1.bf16.msra.mxu0 0
        %1398 = vmatprep.subr.bf16.mxu0 0
        %1399 = vmatpush1.bf16.msra.mxu0 0
        %1400 = vmatprep.mubr.bf16.mxu0 0
        %1401 = vmatmul.mubr.bf16.gmra.mrb[0].mxu0 %v1366
        %v1402 = vpop.f32.mrb[0].mxu0
        %v1403 = vadd.f32 0.0, %v1402
        %v1404 = vpop.f32.mrb[0].mxu0
        %v1405 = vpop.f32.mrb[0].mxu0
        %v1406 = vadd.f32 0.0, %v1405
        %v1407 = vpop.f32.mrb[0].mxu0
        %1408 = vdwg.mxu0
        %1409 = vrot.lane.b32.xlu0 %v1284, 120
        %v1410 = vpop.permute.xlu0 %1409
        %1411 = vrot.lane.b32.xlu0 %v1284, 88
        %v1412 = vpop.permute.xlu0 %1411
        %v1414 = vsel %vm373, %v1410, 0
        %v1417 = vsel %vm373, %v1412, 0
        %1419 = vmatprep.subr.bf16.mxu0 0
        %1420 = vmatpush1.bf16.xpose.msra.mxu0 %v1417
        %1421 = vmatprep.subr.bf16.mxu0 0
        %1422 = vmatpush1.bf16.xpose.msra.mxu0 0
        %1423 = vmatprep.subr.bf16.mxu0 0
        %1424 = vmatpush1.bf16.xpose.msra.mxu0 0
        %1425 = vmatprep.subr.bf16.mxu0 0
        %1426 = vmatpush1.bf16.xpose.msra.mxu0 0
        %1427 = vmatprep.subr.bf16.mxu0 0
        %1428 = vmatpush1.bf16.xpose.msra.mxu0 0
        %1429 = vmatprep.subr.bf16.mxu0 0
        %1430 = vmatpush1.bf16.xpose.msra.mxu0 0
        %1431 = vmatprep.subr.bf16.mxu0 0
        %1432 = vmatpush1.bf16.xpose.msra.mxu0 0
        %1433 = vmatprep.subr.bf16.mxu0 0
        %1434 = vmatpush1.bf16.xpose.msra.mxu0 0
        %1435 = vmatprep.subr.bf16.mxu0 0
        %1436 = vmatpush1.bf16.xpose.msra.mxu0 0
        %1437 = vmatprep.subr.bf16.mxu0 0
        %1438 = vmatpush1.bf16.xpose.msra.mxu0 0
        %1439 = vmatprep.subr.bf16.mxu0 0
        %1440 = vmatpush1.bf16.xpose.msra.mxu0 0
        %1441 = vmatprep.subr.bf16.mxu0 0
        %1442 = vmatpush1.bf16.xpose.msra.mxu0 0
        %1443 = vmatprep.subr.bf16.mxu0 0
        %1444 = vmatpush1.bf16.xpose.msra.mxu0 0
        %1445 = vmatprep.subr.bf16.mxu0 0
        %1446 = vmatpush1.bf16.xpose.msra.mxu0 0
        %1447 = vmatprep.subr.bf16.mxu0 0
        %1448 = vmatpush1.bf16.xpose.msra.mxu0 0
        %1449 = vmatprep.subr.bf16.mxu0 0
        %1450 = vmatpush1.bf16.xpose.msra.mxu0 0
        %1451 = vmatprep.mubr.bf16.mxu0 0
        %1452 = vmatmul.mubr.bf16.gmra.mrb[0].mxu0 %v1414
        %v1453 = vpop.f32.mrb[0].mxu0
        %v1454 = vadd.f32 0.0, %v1453
        %v1455 = vpop.f32.mrb[0].mxu0
        %v1456 = vpop.f32.mrb[0].mxu0
        %v1457 = vadd.f32 0.0, %v1456
        %v1458 = vpop.f32.mrb[0].mxu0
        %1459 = vdwg.mxu0
        %v1460 = vmul.f32 %v1454, 0.35355338
        %v1461 = vmul.f32 %v1457, 0.35355338
        %v1462 = vadd.f32 %v1460, %v427
        %v1463 = vadd.f32 %v1461, %v427
        %v1464 = vsel %vm431, %v1462, -inf
        %1465 = vmax.xlane.f32.xlu0 %v1464
        %v1466 = vpop.xlane.xlu0 %1465
        %v1467 = vsel %vm431, %v1463, -inf
        %1468 = vmax.xlane.f32.xlu0 %v1467
        %v1469 = vpop.xlane.xlu0 %1468
        %v1470 = vsub.f32 %v1462, %v1466
        %v1471 = vsub.f32 %v1463, %v1469
        %v1472 = vmul.f32 %v1470, 1.442695
        %v1473 = vpow.pop %v1472
        %v1474 = vmul.f32 %v1471, 1.442695
        %v1475 = vpow.pop %v1474
        %v1476 = vsel %vm431, %v1473, 0.0
        %1477 = vadd.xlane.f32.xlu0 %v1476
        %v1478 = vpop.xlane.xlu0 %1477
        %v1479 = vsel %vm431, %v1475, 0.0
        %1480 = vadd.xlane.f32.xlu0 %v1479
        %v1481 = vpop.xlane.xlu0 %1480
        %v1482 = vrcp.pop %v1478
        %v1483 = vrcp.pop %v1481
        %v1484 = vmul.f32 %v1473, %v1482
        %v1485 = vmul.f32 %v1475, %v1483
        %v1486 = vpack.c.bf16 %v1485, %v1484
        %1487 = vrot.lane.b32.xlu0 %v1284, 56
        %v1488 = vpop.permute.xlu0 %1487
        %v1491 = vsel %vm431, %v1486, 0
        %1493 = vmatprep.subr.bf16.mxu0 0
        %1494 = vmatpush1.bf16.msra.mxu0 %v1488
        %1495 = vmatprep.subr.bf16.mxu0 0
        %1496 = vmatpush1.bf16.msra.mxu0 0
        %1497 = vmatprep.subr.bf16.mxu0 0
        %1498 = vmatpush1.bf16.msra.mxu0 0
        %1499 = vmatprep.subr.bf16.mxu0 0
        %1500 = vmatpush1.bf16.msra.mxu0 0
        %1501 = vmatprep.subr.bf16.mxu0 0
        %1502 = vmatpush1.bf16.msra.mxu0 0
        %1503 = vmatprep.subr.bf16.mxu0 0
        %1504 = vmatpush1.bf16.msra.mxu0 0
        %1505 = vmatprep.subr.bf16.mxu0 0
        %1506 = vmatpush1.bf16.msra.mxu0 0
        %1507 = vmatprep.subr.bf16.mxu0 0
        %1508 = vmatpush1.bf16.msra.mxu0 0
        %1509 = vmatprep.subr.bf16.mxu0 0
        %1510 = vmatpush1.bf16.msra.mxu0 0
        %1511 = vmatprep.subr.bf16.mxu0 0
        %1512 = vmatpush1.bf16.msra.mxu0 0
        %1513 = vmatprep.subr.bf16.mxu0 0
        %1514 = vmatpush1.bf16.msra.mxu0 0
        %1515 = vmatprep.subr.bf16.mxu0 0
        %1516 = vmatpush1.bf16.msra.mxu0 0
        %1517 = vmatprep.subr.bf16.mxu0 0
        %1518 = vmatpush1.bf16.msra.mxu0 0
        %1519 = vmatprep.subr.bf16.mxu0 0
        %1520 = vmatpush1.bf16.msra.mxu0 0
        %1521 = vmatprep.subr.bf16.mxu0 0
        %1522 = vmatpush1.bf16.msra.mxu0 0
        %1523 = vmatprep.subr.bf16.mxu0 0
        %1524 = vmatpush1.bf16.msra.mxu0 0
        %1525 = vmatprep.mubr.bf16.mxu0 0
        %1526 = vmatmul.mubr.bf16.gmra.mrb[0].mxu0 %v1491
        %v1527 = vpop.f32.mrb[0].mxu0
        %v1528 = vadd.f32 0.0, %v1527
        %v1529 = vpop.f32.mrb[0].mxu0
        %v1530 = vpop.f32.mrb[0].mxu0
        %v1531 = vadd.f32 0.0, %v1530
        %v1532 = vpop.f32.mrb[0].mxu0
        %1533 = vdwg.mxu0
        %1534 = vrot.lane.b32.xlu0 %v1284, 112
        %v1535 = vpop.permute.xlu0 %1534
        %1536 = vrot.lane.b32.xlu0 %v1284, 80
        %v1537 = vpop.permute.xlu0 %1536
        %v1539 = vsel %vm373, %v1535, 0
        %v1542 = vsel %vm373, %v1537, 0
        %1544 = vmatprep.subr.bf16.mxu0 0
        %1545 = vmatpush1.bf16.xpose.msra.mxu0 %v1542
        %1546 = vmatprep.subr.bf16.mxu0 0
        %1547 = vmatpush1.bf16.xpose.msra.mxu0 0
        %1548 = vmatprep.subr.bf16.mxu0 0
        %1549 = vmatpush1.bf16.xpose.msra.mxu0 0
        %1550 = vmatprep.subr.bf16.mxu0 0
        %1551 = vmatpush1.bf16.xpose.msra.mxu0 0
        %1552 = vmatprep.subr.bf16.mxu0 0
        %1553 = vmatpush1.bf16.xpose.msra.mxu0 0
        %1554 = vmatprep.subr.bf16.mxu0 0
        %1555 = vmatpush1.bf16.xpose.msra.mxu0 0
        %1556 = vmatprep.subr.bf16.mxu0 0
        %1557 = vmatpush1.bf16.xpose.msra.mxu0 0
        %1558 = vmatprep.subr.bf16.mxu0 0
        %1559 = vmatpush1.bf16.xpose.msra.mxu0 0
        %1560 = vmatprep.subr.bf16.mxu0 0
        %1561 = vmatpush1.bf16.xpose.msra.mxu0 0
        %1562 = vmatprep.subr.bf16.mxu0 0
        %1563 = vmatpush1.bf16.xpose.msra.mxu0 0
        %1564 = vmatprep.subr.bf16.mxu0 0
        %1565 = vmatpush1.bf16.xpose.msra.mxu0 0
        %1566 = vmatprep.subr.bf16.mxu0 0
        %1567 = vmatpush1.bf16.xpose.msra.mxu0 0
        %1568 = vmatprep.subr.bf16.mxu0 0
        %1569 = vmatpush1.bf16.xpose.msra.mxu0 0
        %1570 = vmatprep.subr.bf16.mxu0 0
        %1571 = vmatpush1.bf16.xpose.msra.mxu0 0
        %1572 = vmatprep.subr.bf16.mxu0 0
        %1573 = vmatpush1.bf16.xpose.msra.mxu0 0
        %1574 = vmatprep.subr.bf16.mxu0 0
        %1575 = vmatpush1.bf16.xpose.msra.mxu0 0
        %1576 = vmatprep.mubr.bf16.mxu0 0
        %1577 = vmatmul.mubr.bf16.gmra.mrb[0].mxu0 %v1539
        %v1578 = vpop.f32.mrb[0].mxu0
        %v1579 = vadd.f32 0.0, %v1578
        %v1580 = vpop.f32.mrb[0].mxu0
        %v1581 = vpop.f32.mrb[0].mxu0
        %v1582 = vadd.f32 0.0, %v1581
        %v1583 = vpop.f32.mrb[0].mxu0
        %1584 = vdwg.mxu0
        %v1585 = vmul.f32 %v1579, 0.35355338
        %v1586 = vmul.f32 %v1582, 0.35355338
        %v1587 = vadd.f32 %v1585, %v427
        %v1588 = vadd.f32 %v1586, %v427
        %v1589 = vsel %vm431, %v1587, -inf
        %1590 = vmax.xlane.f32.xlu0 %v1589
        %v1591 = vpop.xlane.xlu0 %1590
        %v1592 = vsel %vm431, %v1588, -inf
        %1593 = vmax.xlane.f32.xlu0 %v1592
        %v1594 = vpop.xlane.xlu0 %1593
        %v1595 = vsub.f32 %v1587, %v1591
        %v1596 = vsub.f32 %v1588, %v1594
        %v1597 = vmul.f32 %v1595, 1.442695
        %v1598 = vpow.pop %v1597
        %v1599 = vmul.f32 %v1596, 1.442695
        %v1600 = vpow.pop %v1599
        %v1601 = vsel %vm431, %v1598, 0.0
        %1602 = vadd.xlane.f32.xlu0 %v1601
        %v1603 = vpop.xlane.xlu0 %1602
        %v1604 = vsel %vm431, %v1600, 0.0
        %1605 = vadd.xlane.f32.xlu0 %v1604
        %v1606 = vpop.xlane.xlu0 %1605
        %v1607 = vrcp.pop %v1603
        %v1608 = vrcp.pop %v1606
        %v1609 = vmul.f32 %v1598, %v1607
        %v1610 = vmul.f32 %v1600, %v1608
        %v1611 = vpack.c.bf16 %v1610, %v1609
        %1612 = vrot.lane.b32.xlu0 %v1284, 48
        %v1613 = vpop.permute.xlu0 %1612
        %v1616 = vsel %vm431, %v1611, 0
        %1618 = vmatprep.subr.bf16.mxu0 0
        %1619 = vmatpush1.bf16.msra.mxu0 %v1613
        %1620 = vmatprep.subr.bf16.mxu0 0
        %1621 = vmatpush1.bf16.msra.mxu0 0
        %1622 = vmatprep.subr.bf16.mxu0 0
        %1623 = vmatpush1.bf16.msra.mxu0 0
        %1624 = vmatprep.subr.bf16.mxu0 0
        %1625 = vmatpush1.bf16.msra.mxu0 0
        %1626 = vmatprep.subr.bf16.mxu0 0
        %1627 = vmatpush1.bf16.msra.mxu0 0
        %1628 = vmatprep.subr.bf16.mxu0 0
        %1629 = vmatpush1.bf16.msra.mxu0 0
        %1630 = vmatprep.subr.bf16.mxu0 0
        %1631 = vmatpush1.bf16.msra.mxu0 0
        %1632 = vmatprep.subr.bf16.mxu0 0
        %1633 = vmatpush1.bf16.msra.mxu0 0
        %1634 = vmatprep.subr.bf16.mxu0 0
        %1635 = vmatpush1.bf16.msra.mxu0 0
        %1636 = vmatprep.subr.bf16.mxu0 0
        %1637 = vmatpush1.bf16.msra.mxu0 0
        %1638 = vmatprep.subr.bf16.mxu0 0
        %1639 = vmatpush1.bf16.msra.mxu0 0
        %1640 = vmatprep.subr.bf16.mxu0 0
        %1641 = vmatpush1.bf16.msra.mxu0 0
        %1642 = vmatprep.subr.bf16.mxu0 0
        %1643 = vmatpush1.bf16.msra.mxu0 0
        %1644 = vmatprep.subr.bf16.mxu0 0
        %1645 = vmatpush1.bf16.msra.mxu0 0
        %1646 = vmatprep.subr.bf16.mxu0 0
        %1647 = vmatpush1.bf16.msra.mxu0 0
        %1648 = vmatprep.subr.bf16.mxu0 0
        %1649 = vmatpush1.bf16.msra.mxu0 0
        %1650 = vmatprep.mubr.bf16.mxu0 0
        %1651 = vmatmul.mubr.bf16.gmra.mrb[0].mxu0 %v1616
        %v1652 = vpop.f32.mrb[0].mxu0
        %v1653 = vadd.f32 0.0, %v1652
        %v1654 = vpop.f32.mrb[0].mxu0
        %v1655 = vpop.f32.mrb[0].mxu0
        %v1656 = vadd.f32 0.0, %v1655
        %v1657 = vpop.f32.mrb[0].mxu0
        %1658 = vdwg.mxu0
        %1659 = vrot.lane.b32.xlu0 %v1284, 104
        %v1660 = vpop.permute.xlu0 %1659
        %1661 = vrot.lane.b32.xlu0 %v1284, 72
        %v1662 = vpop.permute.xlu0 %1661
        %v1664 = vsel %vm373, %v1660, 0
        %v1667 = vsel %vm373, %v1662, 0
        %1669 = vmatprep.subr.bf16.mxu0 0
        %1670 = vmatpush1.bf16.xpose.msra.mxu0 %v1667
        %1671 = vmatprep.subr.bf16.mxu0 0
        %1672 = vmatpush1.bf16.xpose.msra.mxu0 0
        %1673 = vmatprep.subr.bf16.mxu0 0
        %1674 = vmatpush1.bf16.xpose.msra.mxu0 0
        %1675 = vmatprep.subr.bf16.mxu0 0
        %1676 = vmatpush1.bf16.xpose.msra.mxu0 0
        %1677 = vmatprep.subr.bf16.mxu0 0
        %1678 = vmatpush1.bf16.xpose.msra.mxu0 0
        %1679 = vmatprep.subr.bf16.mxu0 0
        %1680 = vmatpush1.bf16.xpose.msra.mxu0 0
        %1681 = vmatprep.subr.bf16.mxu0 0
        %1682 = vmatpush1.bf16.xpose.msra.mxu0 0
        %1683 = vmatprep.subr.bf16.mxu0 0
        %1684 = vmatpush1.bf16.xpose.msra.mxu0 0
        %1685 = vmatprep.subr.bf16.mxu0 0
        %1686 = vmatpush1.bf16.xpose.msra.mxu0 0
        %1687 = vmatprep.subr.bf16.mxu0 0
        %1688 = vmatpush1.bf16.xpose.msra.mxu0 0
        %1689 = vmatprep.subr.bf16.mxu0 0
        %1690 = vmatpush1.bf16.xpose.msra.mxu0 0
        %1691 = vmatprep.subr.bf16.mxu0 0
        %1692 = vmatpush1.bf16.xpose.msra.mxu0 0
        %1693 = vmatprep.subr.bf16.mxu0 0
        %1694 = vmatpush1.bf16.xpose.msra.mxu0 0
        %1695 = vmatprep.subr.bf16.mxu0 0
        %1696 = vmatpush1.bf16.xpose.msra.mxu0 0
        %1697 = vmatprep.subr.bf16.mxu0 0
        %1698 = vmatpush1.bf16.xpose.msra.mxu0 0
        %1699 = vmatprep.subr.bf16.mxu0 0
        %1700 = vmatpush1.bf16.xpose.msra.mxu0 0
        %1701 = vmatprep.mubr.bf16.mxu0 0
        %1702 = vmatmul.mubr.bf16.gmra.mrb[0].mxu0 %v1664
        %v1703 = vpop.f32.mrb[0].mxu0
        %v1704 = vadd.f32 0.0, %v1703
        %v1705 = vpop.f32.mrb[0].mxu0
        %v1706 = vpop.f32.mrb[0].mxu0
        %v1707 = vadd.f32 0.0, %v1706
        %v1708 = vpop.f32.mrb[0].mxu0
        %1709 = vdwg.mxu0
        %v1710 = vmul.f32 %v1704, 0.35355338
        %v1711 = vmul.f32 %v1707, 0.35355338
        %v1712 = vadd.f32 %v1710, %v427
        %v1713 = vadd.f32 %v1711, %v427
        %v1714 = vsel %vm431, %v1712, -inf
        %1715 = vmax.xlane.f32.xlu0 %v1714
        %v1716 = vpop.xlane.xlu0 %1715
        %v1717 = vsel %vm431, %v1713, -inf
        %1718 = vmax.xlane.f32.xlu0 %v1717
        %v1719 = vpop.xlane.xlu0 %1718
        %v1720 = vsub.f32 %v1712, %v1716
        %v1721 = vsub.f32 %v1713, %v1719
        %v1722 = vmul.f32 %v1720, 1.442695
        %v1723 = vpow.pop %v1722
        %v1724 = vmul.f32 %v1721, 1.442695
        %v1725 = vpow.pop %v1724
        %v1726 = vsel %vm431, %v1723, 0.0
        %1727 = vadd.xlane.f32.xlu0 %v1726
        %v1728 = vpop.xlane.xlu0 %1727
        %v1729 = vsel %vm431, %v1725, 0.0
        %1730 = vadd.xlane.f32.xlu0 %v1729
        %v1731 = vpop.xlane.xlu0 %1730
        %v1732 = vrcp.pop %v1728
        %v1733 = vrcp.pop %v1731
        %v1734 = vmul.f32 %v1723, %v1732
        %v1735 = vmul.f32 %v1725, %v1733
        %v1736 = vpack.c.bf16 %v1735, %v1734
        %1737 = vrot.lane.b32.xlu0 %v1284, 40
        %v1738 = vpop.permute.xlu0 %1737
        %v1741 = vsel %vm431, %v1736, 0
        %1743 = vmatprep.subr.bf16.mxu0 0
        %1744 = vmatpush1.bf16.msra.mxu0 %v1738
        %1745 = vmatprep.subr.bf16.mxu0 0
        %1746 = vmatpush1.bf16.msra.mxu0 0
        %1747 = vmatprep.subr.bf16.mxu0 0
        %1748 = vmatpush1.bf16.msra.mxu0 0
        %1749 = vmatprep.subr.bf16.mxu0 0
        %1750 = vmatpush1.bf16.msra.mxu0 0
        %1751 = vmatprep.subr.bf16.mxu0 0
        %1752 = vmatpush1.bf16.msra.mxu0 0
        %1753 = vmatprep.subr.bf16.mxu0 0
        %1754 = vmatpush1.bf16.msra.mxu0 0
        %1755 = vmatprep.subr.bf16.mxu0 0
        %1756 = vmatpush1.bf16.msra.mxu0 0
        %1757 = vmatprep.subr.bf16.mxu0 0
        %1758 = vmatpush1.bf16.msra.mxu0 0
        %1759 = vmatprep.subr.bf16.mxu0 0
        %1760 = vmatpush1.bf16.msra.mxu0 0
        %1761 = vmatprep.subr.bf16.mxu0 0
        %1762 = vmatpush1.bf16.msra.mxu0 0
        %1763 = vmatprep.subr.bf16.mxu0 0
        %1764 = vmatpush1.bf16.msra.mxu0 0
        %1765 = vmatprep.subr.bf16.mxu0 0
        %1766 = vmatpush1.bf16.msra.mxu0 0
        %1767 = vmatprep.subr.bf16.mxu0 0
        %1768 = vmatpush1.bf16.msra.mxu0 0
        %1769 = vmatprep.subr.bf16.mxu0 0
        %1770 = vmatpush1.bf16.msra.mxu0 0
        %1771 = vmatprep.subr.bf16.mxu0 0
        %1772 = vmatpush1.bf16.msra.mxu0 0
        %1773 = vmatprep.subr.bf16.mxu0 0
        %1774 = vmatpush1.bf16.msra.mxu0 0
        %1775 = vmatprep.mubr.bf16.mxu0 0
        %1776 = vmatmul.mubr.bf16.gmra.mrb[0].mxu0 %v1741
        %v1777 = vpop.f32.mrb[0].mxu0
        %v1778 = vadd.f32 0.0, %v1777
        %v1779 = vpop.f32.mrb[0].mxu0
        %v1780 = vpop.f32.mrb[0].mxu0
        %v1781 = vadd.f32 0.0, %v1780
        %v1782 = vpop.f32.mrb[0].mxu0
        %1783 = vdwg.mxu0
        %1786 = vrot.lane.b32.xlu0 %v1528, 8
        %v1787 = vpop.permute.xlu0 %1786
        %1788 = vrot.lane.b32.xlu0 %v1531, 8
        %v1789 = vpop.permute.xlu0 %1788
        %1794 = vrot.lane.b32.xlu0 %v1653, 16
        %v1795 = vpop.permute.xlu0 %1794
        %1796 = vrot.lane.b32.xlu0 %v1656, 16
        %v1797 = vpop.permute.xlu0 %1796
        %1802 = vrot.lane.b32.xlu0 %v1778, 24
        %v1803 = vpop.permute.xlu0 %1802
        %1804 = vrot.lane.b32.xlu0 %v1781, 24
        %v1805 = vpop.permute.xlu0 %1804
        %v1808 = vsel %vm373, %v1403, %v1787
        %v1809 = vsel %vm373, %v1406, %v1789
        %v1810 = vsel %vm431, %v1808, %v1795
        %v1811 = vsel %vm431, %v1809, %v1797
        %v1812 = vsel %vm905, %v1810, %v1803
        %v1813 = vsel %vm905, %v1811, %v1805
        %v1814 = vpack.c.bf16 %v1813, %v1812
        %v1815 = vld [vmem:[%s4 + $0x60] sm:$0xf]
        %v1816 = vld [vmem:[%s4 + $0x64] sm:$0xf]
        %v1817 = vld [vmem:[%s4 + $0x68] sm:$0xf]
        %v1818 = vld [vmem:[%s4 + $0x6c] sm:$0xf]
        %v1819 = vld [vmem:[%s5 + $0x48] sm:$0x1]
        %v1820 = vlaneseq
        %v1821 = vshrl.u32 %v1820, 7
        %v1822 = vsub.s32 0, %v1821
        %v1823 = vrot.slane %v1819, %v1822
        %v1828 = vunpack.c.l.b16 %v1815
        %v1829 = vunpack.c.l.b16 %v1816
        %v1830 = vunpack.c.l.b16 %v1817
        %v1831 = vunpack.c.l.b16 %v1818
        %v1832 = vpack.c.b16 %v1829, %v1828
        %v1833 = vpack.c.b16 %v1831, %v1830
        %v1837 = vsel %vm324, %v1814, 0
        %1839 = vmatprep.subr.bf16.mxu0 0
        %1840 = vmatpush1.bf16.msra.mxu0 %v1832
        %1841 = vmatprep.subr.bf16.mxu0 0
        %1842 = vmatpush1.bf16.msra.mxu0 %v1833
        %1843 = vmatprep.subr.bf16.mxu0 0
        %1844 = vmatpush1.bf16.msra.mxu0 0
        %1845 = vmatprep.subr.bf16.mxu0 0
        %1846 = vmatpush1.bf16.msra.mxu0 0
        %1847 = vmatprep.subr.bf16.mxu0 0
        %1848 = vmatpush1.bf16.msra.mxu0 0
        %1849 = vmatprep.subr.bf16.mxu0 0
        %1850 = vmatpush1.bf16.msra.mxu0 0
        %1851 = vmatprep.subr.bf16.mxu0 0
        %1852 = vmatpush1.bf16.msra.mxu0 0
        %1853 = vmatprep.subr.bf16.mxu0 0
        %1854 = vmatpush1.bf16.msra.mxu0 0
        %1855 = vmatprep.subr.bf16.mxu0 0
        %1856 = vmatpush1.bf16.msra.mxu0 0
        %1857 = vmatprep.subr.bf16.mxu0 0
        %1858 = vmatpush1.bf16.msra.mxu0 0
        %1859 = vmatprep.subr.bf16.mxu0 0
        %1860 = vmatpush1.bf16.msra.mxu0 0
        %1861 = vmatprep.subr.bf16.mxu0 0
        %1862 = vmatpush1.bf16.msra.mxu0 0
        %1863 = vmatprep.subr.bf16.mxu0 0
        %1864 = vmatpush1.bf16.msra.mxu0 0
        %1865 = vmatprep.subr.bf16.mxu0 0
        %1866 = vmatpush1.bf16.msra.mxu0 0
        %1867 = vmatprep.subr.bf16.mxu0 0
        %1868 = vmatpush1.bf16.msra.mxu0 0
        %1869 = vmatprep.subr.bf16.mxu0 0
        %1870 = vmatpush1.bf16.msra.mxu0 0
        %1871 = vmatprep.mubr.bf16.mxu0 0
        %1872 = vmatmul.mubr.bf16.gmra.mrb[0].mxu0 %v1837
        %v1873 = vpop.f32.mrb[0].mxu0
        %v1874 = vadd.f32 %v1823, %v1873
        %v1875 = vpop.f32.mrb[0].mxu0
        %v1876 = vpop.f32.mrb[0].mxu0
        %v1877 = vadd.f32 %v1823, %v1876
        %v1878 = vpop.f32.mrb[0].mxu0
        %1879 = vdwg.mxu0
        %v1880 = vadd.f32 %v1216, %v1874
        %v1881 = vadd.f32 %v1217, %v1877
        %v1882 = vld [vmem:[%s5 + $0x50] sm:$0x1]
        %v1883 = vld [vmem:[%s5 + $0x58] sm:$0x1]
        %v1884 = vsel %vm324, %v1880, 0.0
        %1885 = vadd.xlane.f32.xlu0 %v1884
        %v1886 = vpop.xlane.xlu0 %1885
        %v1887 = vsel %vm324, %v1881, 0.0
        %1888 = vadd.xlane.f32.xlu0 %v1887
        %v1889 = vpop.xlane.xlu0 %1888
        %v1890 = vmul.f32 %v1886, %v984
        %v1891 = vmul.f32 %v1889, %v984
        %v1892 = vmul.f32 %v1880, %v1880
        %v1893 = vmul.f32 %v1881, %v1881
        %v1894 = vsel %vm324, %v1892, 0.0
        %1895 = vadd.xlane.f32.xlu0 %v1894
        %v1896 = vpop.xlane.xlu0 %1895
        %v1897 = vsel %vm324, %v1893, 0.0
        %1898 = vadd.xlane.f32.xlu0 %v1897
        %v1899 = vpop.xlane.xlu0 %1898
        %v1900 = vmul.f32 %v1896, %v984
        %v1901 = vmul.f32 %v1899, %v984
        %v1902 = vmul.f32 %v1890, %v1890
        %v1903 = vmul.f32 %v1891, %v1891
        %v1904 = vsub.f32 %v1900, %v1902
        %v1905 = vsub.f32 %v1901, %v1903
        %v1906 = vsub.f32 %v1880, %v1890
        %v1907 = vsub.f32 %v1881, %v1891
        %v1908 = vadd.f32 %v1904, 1e-05
        %v1909 = vadd.f32 %v1905, 1e-05
        %v1910 = vrsqrt.pop %v1908
        %v1911 = vrsqrt.pop %v1909
        %v1912 = vmul.f32 %v1906, %v1910
        %v1913 = vmul.f32 %v1907, %v1911
        %v1914 = vlaneseq
        %v1915 = vshrl.u32 %v1914, 7
        %v1916 = vsub.s32 0, %v1915
        %v1917 = vrot.slane %v1882, %v1916
        %v1918 = vmul.f32 %v1912, %v1917
        %v1919 = vmul.f32 %v1913, %v1917
        %v1920 = vlaneseq
        %v1921 = vshrl.u32 %v1920, 7
        %v1922 = vsub.s32 0, %v1921
        %v1923 = vrot.slane %v1883, %v1922
        %v1924 = vadd.f32 %v1918, %v1923
        %v1925 = vadd.f32 %v1919, %v1923
        %v1926 = vpack.c.bf16 %v1925, %v1924
        %v1927 = vld [vmem:[%s4 + $0x70] sm:$0xf]
        %v1928 = vld [vmem:[%s4 + $0x74] sm:$0xf]
        %v1929 = vld [vmem:[%s4 + $0x78] sm:$0xf]
        %v1930 = vld [vmem:[%s4 + $0x7c] sm:$0xf]
        %v1931 = vld [vmem:[%s5 + $0x60] sm:$0x1]
        %v1932 = vlaneseq
        %v1933 = vshrl.u32 %v1932, 7
        %v1934 = vsub.s32 0, %v1933
        %v1935 = vrot.slane %v1931, %v1934
        %v1940 = vunpack.c.l.b16 %v1927
        %v1941 = vunpack.c.l.b16 %v1928
        %v1942 = vunpack.c.l.b16 %v1929
        %v1943 = vunpack.c.l.b16 %v1930
        %v1944 = vpack.c.b16 %v1941, %v1940
        %v1945 = vpack.c.b16 %v1943, %v1942
        %v1949 = vsel %vm324, %v1926, 0
        %1951 = vmatprep.subr.bf16.mxu0 0
        %1952 = vmatpush1.bf16.msra.mxu0 %v1944
        %1953 = vmatprep.subr.bf16.mxu0 0
        %1954 = vmatpush1.bf16.msra.mxu0 %v1945
        %1955 = vmatprep.subr.bf16.mxu0 0
        %1956 = vmatpush1.bf16.msra.mxu0 0
        %1957 = vmatprep.subr.bf16.mxu0 0
        %1958 = vmatpush1.bf16.msra.mxu0 0
        %1959 = vmatprep.subr.bf16.mxu0 0
        %1960 = vmatpush1.bf16.msra.mxu0 0
        %1961 = vmatprep.subr.bf16.mxu0 0
        %1962 = vmatpush1.bf16.msra.mxu0 0
        %1963 = vmatprep.subr.bf16.mxu0 0
        %1964 = vmatpush1.bf16.msra.mxu0 0
        %1965 = vmatprep.subr.bf16.mxu0 0
        %1966 = vmatpush1.bf16.msra.mxu0 0
        %1967 = vmatprep.subr.bf16.mxu0 0
        %1968 = vmatpush1.bf16.msra.mxu0 0
        %1969 = vmatprep.subr.bf16.mxu0 0
        %1970 = vmatpush1.bf16.msra.mxu0 0
        %1971 = vmatprep.subr.bf16.mxu0 0
        %1972 = vmatpush1.bf16.msra.mxu0 0
        %1973 = vmatprep.subr.bf16.mxu0 0
        %1974 = vmatpush1.bf16.msra.mxu0 0
        %1975 = vmatprep.subr.bf16.mxu0 0
        %1976 = vmatpush1.bf16.msra.mxu0 0
        %1977 = vmatprep.subr.bf16.mxu0 0
        %1978 = vmatpush1.bf16.msra.mxu0 0
        %1979 = vmatprep.subr.bf16.mxu0 0
        %1980 = vmatpush1.bf16.msra.mxu0 0
        %1981 = vmatprep.subr.bf16.mxu0 0
        %1982 = vmatpush1.bf16.msra.mxu0 0
        %1983 = vmatprep.mubr.bf16.mxu0 0
        %1984 = vmatmul.mubr.bf16.gmra.mrb[0].mxu0 %v1949
        %v1985 = vpop.f32.mrb[0].mxu0
        %v1986 = vadd.f32 %v1935, %v1985
        %v1987 = vpop.f32.mrb[0].mxu0
        %v1988 = vpop.f32.mrb[0].mxu0
        %v1989 = vadd.f32 %v1935, %v1988
        %v1990 = vpop.f32.mrb[0].mxu0
        %1991 = vdwg.mxu0
        %v1992 = vmax.f32 %v1986, 0.0
        %v1993 = vmax.f32 %v1989, 0.0
        %v1994 = vpack.c.bf16 %v1993, %v1992
        %v1995 = vld [vmem:[%s4 + $0x80] sm:$0xf]
        %v1996 = vld [vmem:[%s4 + $0x84] sm:$0xf]
        %v1997 = vld [vmem:[%s4 + $0x88] sm:$0xf]
        %v1998 = vld [vmem:[%s4 + $0x8c] sm:$0xf]
        %v1999 = vld [vmem:[%s4 + $0x90] sm:$0xf]
        %v2000 = vld [vmem:[%s4 + $0x94] sm:$0xf]
        %v2001 = vld [vmem:[%s4 + $0x98] sm:$0xf]
        %v2002 = vld [vmem:[%s4 + $0x9c] sm:$0xf]
        %v2003 = vld [vmem:[%s5 + $0x68] sm:$0x1]
        %v2004 = vlaneseq
        %v2005 = vshrl.u32 %v2004, 7
        %v2006 = vsub.s32 0, %v2005
        %v2007 = vrot.slane %v2003, %v2006
        %v2016 = vunpack.c.l.b16 %v1995
        %v2017 = vunpack.c.l.b16 %v1996
        %v2018 = vunpack.c.l.b16 %v1997
        %v2019 = vunpack.c.l.b16 %v1998
        %v2020 = vunpack.c.l.b16 %v1999
        %v2021 = vunpack.c.l.b16 %v2000
        %v2022 = vunpack.c.l.b16 %v2001
        %v2023 = vunpack.c.l.b16 %v2002
        %v2024 = vpack.c.b16 %v2017, %v2016
        %v2025 = vpack.c.b16 %v2019, %v2018
        %v2026 = vpack.c.b16 %v2021, %v2020
        %v2027 = vpack.c.b16 %v2023, %v2022
        %v2033 = vsel %vm1127, %v1994, 0
        %2035 = vmatprep.subr.bf16.mxu0 0
        %2036 = vmatpush1.bf16.msra.mxu0 %v2024
        %2037 = vmatprep.subr.bf16.mxu0 0
        %2038 = vmatpush1.bf16.msra.mxu0 %v2025
        %2039 = vmatprep.subr.bf16.mxu0 0
        %2040 = vmatpush1.bf16.msra.mxu0 %v2026
        %2041 = vmatprep.subr.bf16.mxu0 0
        %2042 = vmatpush1.bf16.msra.mxu0 %v2027
        %2043 = vmatprep.subr.bf16.mxu0 0
        %2044 = vmatpush1.bf16.msra.mxu0 0
        %2045 = vmatprep.subr.bf16.mxu0 0
        %2046 = vmatpush1.bf16.msra.mxu0 0
        %2047 = vmatprep.subr.bf16.mxu0 0
        %2048 = vmatpush1.bf16.msra.mxu0 0
        %2049 = vmatprep.subr.bf16.mxu0 0
        %2050 = vmatpush1.bf16.msra.mxu0 0
        %2051 = vmatprep.subr.bf16.mxu0 0
        %2052 = vmatpush1.bf16.msra.mxu0 0
        %2053 = vmatprep.subr.bf16.mxu0 0
        %2054 = vmatpush1.bf16.msra.mxu0 0
        %2055 = vmatprep.subr.bf16.mxu0 0
        %2056 = vmatpush1.bf16.msra.mxu0 0
        %2057 = vmatprep.subr.bf16.mxu0 0
        %2058 = vmatpush1.bf16.msra.mxu0 0
        %2059 = vmatprep.subr.bf16.mxu0 0
        %2060 = vmatpush1.bf16.msra.mxu0 0
        %2061 = vmatprep.subr.bf16.mxu0 0
        %2062 = vmatpush1.bf16.msra.mxu0 0
        %2063 = vmatprep.subr.bf16.mxu0 0
        %2064 = vmatpush1.bf16.msra.mxu0 0
        %2065 = vmatprep.subr.bf16.mxu0 0
        %2066 = vmatpush1.bf16.msra.mxu0 0
        %2067 = vmatprep.mubr.bf16.mxu0 0
        %2068 = vmatmul.mubr.bf16.gmra.mrb[0].mxu0 %v2033
        %v2069 = vpop.f32.mrb[0].mxu0
        %v2070 = vadd.f32 %v2007, %v2069
        %v2071 = vpop.f32.mrb[0].mxu0
        %v2072 = vpop.f32.mrb[0].mxu0
        %v2073 = vadd.f32 %v2007, %v2072
        %v2074 = vpop.f32.mrb[0].mxu0
        %2075 = vdwg.mxu0
        %v2076 = vadd.f32 %v1924, %v2070
        %v2077 = vadd.f32 %v1925, %v2073
        %v2078 = vld [vmem:[%s5 + $0x70] sm:$0x1]
        %v2079 = vld [vmem:[%s5 + $0x78] sm:$0x1]
        %v2080 = vsel %vm324, %v2076, 0.0
        %2081 = vadd.xlane.f32.xlu0 %v2080
        %v2082 = vpop.xlane.xlu0 %2081
        %v2083 = vsel %vm324, %v2077, 0.0
        %2084 = vadd.xlane.f32.xlu0 %v2083
        %v2085 = vpop.xlane.xlu0 %2084
        %v2086 = vmul.f32 %v2082, %v984
        %v2087 = vmul.f32 %v2085, %v984
        %v2088 = vmul.f32 %v2076, %v2076
        %v2089 = vmul.f32 %v2077, %v2077
        %v2090 = vsel %vm324, %v2088, 0.0
        %2091 = vadd.xlane.f32.xlu0 %v2090
        %v2092 = vpop.xlane.xlu0 %2091
        %v2093 = vsel %vm324, %v2089, 0.0
        %2094 = vadd.xlane.f32.xlu0 %v2093
        %v2095 = vpop.xlane.xlu0 %2094
        %v2096 = vmul.f32 %v2092, %v984
        %v2097 = vmul.f32 %v2095, %v984
        %v2098 = vmul.f32 %v2086, %v2086
        %v2099 = vmul.f32 %v2087, %v2087
        %v2100 = vsub.f32 %v2096, %v2098
        %v2101 = vsub.f32 %v2097, %v2099
        %v2102 = vsub.f32 %v2076, %v2086
        %v2103 = vsub.f32 %v2077, %v2087
        %v2104 = vadd.f32 %v2100, 1e-05
        %v2105 = vadd.f32 %v2101, 1e-05
        %v2106 = vrsqrt.pop %v2104
        %v2107 = vrsqrt.pop %v2105
        %v2108 = vmul.f32 %v2102, %v2106
        %v2109 = vmul.f32 %v2103, %v2107
        %v2110 = vlaneseq
        %v2111 = vshrl.u32 %v2110, 7
        %v2112 = vsub.s32 0, %v2111
        %v2113 = vrot.slane %v2078, %v2112
        %v2114 = vmul.f32 %v2108, %v2113
        %v2115 = vmul.f32 %v2109, %v2113
        %v2116 = vlaneseq
        %v2117 = vshrl.u32 %v2116, 7
        %v2118 = vsub.s32 0, %v2117
        %v2119 = vrot.slane %v2079, %v2118
        %v2120 = vadd.f32 %v2114, %v2119
        %v2121 = vadd.f32 %v2115, %v2119
        %v2122 = vld [vmem:[%s5 + $0x80] sm:$0x1]
        %v2123 = vld [vmem:[%s5 + $0x88] sm:$0x1]
        %v2124 = vsel %vm324, %v2120, 0.0
        %2125 = vadd.xlane.f32.xlu0 %v2124
        %v2126 = vpop.xlane.xlu0 %2125
        %v2127 = vsel %vm324, %v2121, 0.0
        %2128 = vadd.xlane.f32.xlu0 %v2127
        %v2129 = vpop.xlane.xlu0 %2128
        %v2130 = vmul.f32 %v2126, %v984
        %v2131 = vmul.f32 %v2129, %v984
        %v2132 = vmul.f32 %v2120, %v2120
        %v2133 = vmul.f32 %v2121, %v2121
        %v2134 = vsel %vm324, %v2132, 0.0
        %2135 = vadd.xlane.f32.xlu0 %v2134
        %v2136 = vpop.xlane.xlu0 %2135
        %v2137 = vsel %vm324, %v2133, 0.0
        %2138 = vadd.xlane.f32.xlu0 %v2137
        %v2139 = vpop.xlane.xlu0 %2138
        %v2140 = vmul.f32 %v2136, %v984
        %v2141 = vmul.f32 %v2139, %v984
        %v2142 = vmul.f32 %v2130, %v2130
        %v2143 = vmul.f32 %v2131, %v2131
        %v2144 = vsub.f32 %v2140, %v2142
        %v2145 = vsub.f32 %v2141, %v2143
        %v2146 = vsub.f32 %v2120, %v2130
        %v2147 = vsub.f32 %v2121, %v2131
        %v2148 = vadd.f32 %v2144, 1e-05
        %v2149 = vadd.f32 %v2145, 1e-05
        %v2150 = vrsqrt.pop %v2148
        %v2151 = vrsqrt.pop %v2149
        %v2152 = vmul.f32 %v2146, %v2150
        %v2153 = vmul.f32 %v2147, %v2151
        %v2154 = vlaneseq
        %v2155 = vshrl.u32 %v2154, 7
        %v2156 = vsub.s32 0, %v2155
        %v2157 = vrot.slane %v2122, %v2156
        %v2158 = vmul.f32 %v2152, %v2157
        %v2159 = vmul.f32 %v2153, %v2157
        %v2160 = vlaneseq
        %v2161 = vshrl.u32 %v2160, 7
        %v2162 = vsub.s32 0, %v2161
        %v2163 = vrot.slane %v2123, %v2162
        %v2164 = vadd.f32 %v2158, %v2163
        %v2165 = vadd.f32 %v2159, %v2163
        %v2166 = vpack.c.bf16 %v2165, %v2164
        %v2167 = vld [vmem:[%s290] sm:$0xff]
        %v2168 = vpack.c.bf16 %v2167, %v2167
        %v2169 = vld [vmem:[%s4 + $0xa0] sm:$0xf]
        %v2170 = vld [vmem:[%s4 + $0xa4] sm:$0xf]
        %v2171 = vld [vmem:[%s4 + $0xa8] sm:$0xf]
        %v2172 = vld [vmem:[%s4 + $0xac] sm:$0xf]
        %v2173 = vld [vmem:[%s5 + $0x90] sm:$0x1]
        %v2174 = vlaneseq
        %v2175 = vshrl.u32 %v2174, 7
        %v2176 = vsub.s32 0, %v2175
        %v2177 = vrot.slane %v2173, %v2176
        %v2182 = vunpack.c.l.b16 %v2169
        %v2183 = vunpack.c.l.b16 %v2170
        %v2184 = vunpack.c.l.b16 %v2171
        %v2185 = vunpack.c.l.b16 %v2172
        %v2186 = vpack.c.b16 %v2183, %v2182
        %v2187 = vpack.c.b16 %v2185, %v2184
        %v2191 = vsel %vm324, %v2168, 0
        %2193 = vmatprep.subr.bf16.mxu0 0
        %2194 = vmatpush1.bf16.msra.mxu0 %v2186
        %2195 = vmatprep.subr.bf16.mxu0 0
        %2196 = vmatpush1.bf16.msra.mxu0 %v2187
        %2197 = vmatprep.subr.bf16.mxu0 0
        %2198 = vmatpush1.bf16.msra.mxu0 0
        %2199 = vmatprep.subr.bf16.mxu0 0
        %2200 = vmatpush1.bf16.msra.mxu0 0
        %2201 = vmatprep.subr.bf16.mxu0 0
        %2202 = vmatpush1.bf16.msra.mxu0 0
        %2203 = vmatprep.subr.bf16.mxu0 0
        %2204 = vmatpush1.bf16.msra.mxu0 0
        %2205 = vmatprep.subr.bf16.mxu0 0
        %2206 = vmatpush1.bf16.msra.mxu0 0
        %2207 = vmatprep.subr.bf16.mxu0 0
        %2208 = vmatpush1.bf16.msra.mxu0 0
        %2209 = vmatprep.subr.bf16.mxu0 0
        %2210 = vmatpush1.bf16.msra.mxu0 0
        %2211 = vmatprep.subr.bf16.mxu0 0
        %2212 = vmatpush1.bf16.msra.mxu0 0
        %2213 = vmatprep.subr.bf16.mxu0 0
        %2214 = vmatpush1.bf16.msra.mxu0 0
        %2215 = vmatprep.subr.bf16.mxu0 0
        %2216 = vmatpush1.bf16.msra.mxu0 0
        %2217 = vmatprep.subr.bf16.mxu0 0
        %2218 = vmatpush1.bf16.msra.mxu0 0
        %2219 = vmatprep.subr.bf16.mxu0 0
        %2220 = vmatpush1.bf16.msra.mxu0 0
        %2221 = vmatprep.subr.bf16.mxu0 0
        %2222 = vmatpush1.bf16.msra.mxu0 0
        %2223 = vmatprep.subr.bf16.mxu0 0
        %2224 = vmatpush1.bf16.msra.mxu0 0
        %2225 = vmatprep.mubr.bf16.mxu0 0
        %2226 = vmatmul.mubr.bf16.gmra.mrb[0].mxu0 %v2191
        %v2227 = vpop.f32.mrb[0].mxu0
        %v2228 = vadd.f32 %v2177, %v2227
        %v2229 = vpop.f32.mrb[0].mxu0
        %v2230 = vpop.f32.mrb[0].mxu0
        %v2231 = vpop.f32.mrb[0].mxu0
        %2232 = vdwg.mxu0
        %v2233 = vpack.c.bf16 %v2228, %v2228
        %2235 = vrot.lane.b32.xlu0 %v2233, 96
        %v2236 = vpop.permute.xlu0 %2235
        %v2238 = vsel %vm373, %v2233, 0
        %v2241 = vsel %vm373, %v2236, 0
        %2243 = vmatprep.subr.bf16.mxu0 0
        %2244 = vmatpush1.bf16.xpose.msra.mxu0 %v2241
        %2245 = vmatprep.subr.bf16.mxu0 0
        %2246 = vmatpush1.bf16.xpose.msra.mxu0 0
        %2247 = vmatprep.subr.bf16.mxu0 0
        %2248 = vmatpush1.bf16.xpose.msra.mxu0 0
        %2249 = vmatprep.subr.bf16.mxu0 0
        %2250 = vmatpush1.bf16.xpose.msra.mxu0 0
        %2251 = vmatprep.subr.bf16.mxu0 0
        %2252 = vmatpush1.bf16.xpose.msra.mxu0 0
        %2253 = vmatprep.subr.bf16.mxu0 0
        %2254 = vmatpush1.bf16.xpose.msra.mxu0 0
        %2255 = vmatprep.subr.bf16.mxu0 0
        %2256 = vmatpush1.bf16.xpose.msra.mxu0 0
        %2257 = vmatprep.subr.bf16.mxu0 0
        %2258 = vmatpush1.bf16.xpose.msra.mxu0 0
        %2259 = vmatprep.subr.bf16.mxu0 0
        %2260 = vmatpush1.bf16.xpose.msra.mxu0 0
        %2261 = vmatprep.subr.bf16.mxu0 0
        %2262 = vmatpush1.bf16.xpose.msra.mxu0 0
        %2263 = vmatprep.subr.bf16.mxu0 0
        %2264 = vmatpush1.bf16.xpose.msra.mxu0 0
        %2265 = vmatprep.subr.bf16.mxu0 0
        %2266 = vmatpush1.bf16.xpose.msra.mxu0 0
        %2267 = vmatprep.subr.bf16.mxu0 0
        %2268 = vmatpush1.bf16.xpose.msra.mxu0 0
        %2269 = vmatprep.subr.bf16.mxu0 0
        %2270 = vmatpush1.bf16.xpose.msra.mxu0 0
        %2271 = vmatprep.subr.bf16.mxu0 0
        %2272 = vmatpush1.bf16.xpose.msra.mxu0 0
        %2273 = vmatprep.subr.bf16.mxu0 0
        %2274 = vmatpush1.bf16.xpose.msra.mxu0 0
        %2275 = vmatprep.mubr.bf16.mxu0 0
        %2276 = vmatmul.mubr.bf16.gmra.mrb[0].mxu0 %v2238
        %v2277 = vpop.f32.mrb[0].mxu0
        %v2278 = vadd.f32 0.0, %v2277
        %v2279 = vpop.f32.mrb[0].mxu0
        %v2280 = vpop.f32.mrb[0].mxu0
        %v2281 = vpop.f32.mrb[0].mxu0
        %2282 = vdwg.mxu0
        %v2283 = vmul.f32 %v2278, 0.35355338
        %v2285 = vlaneseq
        %v2286 = vshrl.u32 %v2285, 7
        %v2287 = vsub.s32 0, %v2286
        %v2288 = vrot.slane %v299, %v2287
        %v2290 = vadd.f32 %v2283, %v2288
        %v2291 = vsel %vm373, %v2290, -inf
        %2292 = vmax.xlane.f32.xlu0 %v2291
        %v2293 = vpop.xlane.xlu0 %2292
        %v2294 = vsub.f32 %v2290, %v2293
        %v2295 = vmul.f32 %v2294, 1.442695
        %v2296 = vpow.pop %v2295
        %v2297 = vsel %vm373, %v2296, 0.0
        %2298 = vadd.xlane.f32.xlu0 %v2297
        %v2299 = vpop.xlane.xlu0 %2298
        %v2300 = vrcp.pop %v2299
        %v2301 = vmul.f32 %v2296, %v2300
        %v2302 = vpack.c.bf16 %v2301, %v2301
        %2303 = vrot.lane.b32.xlu0 %v2233, 64
        %v2304 = vpop.permute.xlu0 %2303
        %v2306 = vsel %vm373, %v2302, 0
        %vm2308 = vcmask 1043456
        %v2310 = vsel %vm2308, %v2304, 0
        %2312 = vmatprep.subr.bf16.mxu0 0
        %2313 = vmatpush1.bf16.msra.mxu0 %v2310
        %2314 = vmatprep.subr.bf16.mxu0 0
        %2315 = vmatpush1.bf16.msra.mxu0 0
        %2316 = vmatprep.subr.bf16.mxu0 0
        %2317 = vmatpush1.bf16.msra.mxu0 0
        %2318 = vmatprep.subr.bf16.mxu0 0
        %2319 = vmatpush1.bf16.msra.mxu0 0
        %2320 = vmatprep.subr.bf16.mxu0 0
        %2321 = vmatpush1.bf16.msra.mxu0 0
        %2322 = vmatprep.subr.bf16.mxu0 0
        %2323 = vmatpush1.bf16.msra.mxu0 0
        %2324 = vmatprep.subr.bf16.mxu0 0
        %2325 = vmatpush1.bf16.msra.mxu0 0
        %2326 = vmatprep.subr.bf16.mxu0 0
        %2327 = vmatpush1.bf16.msra.mxu0 0
        %2328 = vmatprep.subr.bf16.mxu0 0
        %2329 = vmatpush1.bf16.msra.mxu0 0
        %2330 = vmatprep.subr.bf16.mxu0 0
        %2331 = vmatpush1.bf16.msra.mxu0 0
        %2332 = vmatprep.subr.bf16.mxu0 0
        %2333 = vmatpush1.bf16.msra.mxu0 0
        %2334 = vmatprep.subr.bf16.mxu0 0
        %2335 = vmatpush1.bf16.msra.mxu0 0
        %2336 = vmatprep.subr.bf16.mxu0 0
        %2337 = vmatpush1.bf16.msra.mxu0 0
        %2338 = vmatprep.subr.bf16.mxu0 0
        %2339 = vmatpush1.bf16.msra.mxu0 0
        %2340 = vmatprep.subr.bf16.mxu0 0
        %2341 = vmatpush1.bf16.msra.mxu0 0
        %2342 = vmatprep.subr.bf16.mxu0 0
        %2343 = vmatpush1.bf16.msra.mxu0 0
        %2344 = vmatprep.mubr.bf16.mxu0 0
        %2345 = vmatmul.mubr.bf16.gmra.mrb[0].mxu0 %v2306
        %v2346 = vpop.f32.mrb[0].mxu0
        %v2347 = vadd.f32 0.0, %v2346
        %v2348 = vpop.f32.mrb[0].mxu0
        %v2349 = vpop.f32.mrb[0].mxu0
        %v2350 = vpop.f32.mrb[0].mxu0
        %2351 = vdwg.mxu0
        %2352 = vrot.lane.b32.xlu0 %v2233, 120
        %v2353 = vpop.permute.xlu0 %2352
        %2354 = vrot.lane.b32.xlu0 %v2233, 88
        %v2355 = vpop.permute.xlu0 %2354
        %v2357 = vsel %vm373, %v2353, 0
        %v2360 = vsel %vm373, %v2355, 0
        %2362 = vmatprep.subr.bf16.mxu0 0
        %2363 = vmatpush1.bf16.xpose.msra.mxu0 %v2360
        %2364 = vmatprep.subr.bf16.mxu0 0
        %2365 = vmatpush1.bf16.xpose.msra.mxu0 0
        %2366 = vmatprep.subr.bf16.mxu0 0
        %2367 = vmatpush1.bf16.xpose.msra.mxu0 0
        %2368 = vmatprep.subr.bf16.mxu0 0
        %2369 = vmatpush1.bf16.xpose.msra.mxu0 0
        %2370 = vmatprep.subr.bf16.mxu0 0
        %2371 = vmatpush1.bf16.xpose.msra.mxu0 0
        %2372 = vmatprep.subr.bf16.mxu0 0
        %2373 = vmatpush1.bf16.xpose.msra.mxu0 0
        %2374 = vmatprep.subr.bf16.mxu0 0
        %2375 = vmatpush1.bf16.xpose.msra.mxu0 0
        %2376 = vmatprep.subr.bf16.mxu0 0
        %2377 = vmatpush1.bf16.xpose.msra.mxu0 0
        %2378 = vmatprep.subr.bf16.mxu0 0
        %2379 = vmatpush1.bf16.xpose.msra.mxu0 0
        %2380 = vmatprep.subr.bf16.mxu0 0
        %2381 = vmatpush1.bf16.xpose.msra.mxu0 0
        %2382 = vmatprep.subr.bf16.mxu0 0
        %2383 = vmatpush1.bf16.xpose.msra.mxu0 0
        %2384 = vmatprep.subr.bf16.mxu0 0
        %2385 = vmatpush1.bf16.xpose.msra.mxu0 0
        %2386 = vmatprep.subr.bf16.mxu0 0
        %2387 = vmatpush1.bf16.xpose.msra.mxu0 0
        %2388 = vmatprep.subr.bf16.mxu0 0
        %2389 = vmatpush1.bf16.xpose.msra.mxu0 0
        %2390 = vmatprep.subr.bf16.mxu0 0
        %2391 = vmatpush1.bf16.xpose.msra.mxu0 0
        %2392 = vmatprep.subr.bf16.mxu0 0
        %2393 = vmatpush1.bf16.xpose.msra.mxu0 0
        %2394 = vmatprep.mubr.bf16.mxu0 0
        %2395 = vmatmul.mubr.bf16.gmra.mrb[0].mxu0 %v2357
        %v2396 = vpop.f32.mrb[0].mxu0
        %v2397 = vadd.f32 0.0, %v2396
        %v2398 = vpop.f32.mrb[0].mxu0
        %v2399 = vpop.f32.mrb[0].mxu0
        %v2400 = vpop.f32.mrb[0].mxu0
        %2401 = vdwg.mxu0
        %v2402 = vmul.f32 %v2397, 0.35355338
        %v2403 = vadd.f32 %v2402, %v2288
        %v2404 = vsel %vm373, %v2403, -inf
        %2405 = vmax.xlane.f32.xlu0 %v2404
        %v2406 = vpop.xlane.xlu0 %2405
        %v2407 = vsub.f32 %v2403, %v2406
        %v2408 = vmul.f32 %v2407, 1.442695
        %v2409 = vpow.pop %v2408
        %v2410 = vsel %vm373, %v2409, 0.0
        %2411 = vadd.xlane.f32.xlu0 %v2410
        %v2412 = vpop.xlane.xlu0 %2411
        %v2413 = vrcp.pop %v2412
        %v2414 = vmul.f32 %v2409, %v2413
        %v2415 = vpack.c.bf16 %v2414, %v2414
        %2416 = vrot.lane.b32.xlu0 %v2233, 56
        %v2417 = vpop.permute.xlu0 %2416
        %v2419 = vsel %vm373, %v2415, 0
        %v2422 = vsel %vm2308, %v2417, 0
        %2424 = vmatprep.subr.bf16.mxu0 0
        %2425 = vmatpush1.bf16.msra.mxu0 %v2422
        %2426 = vmatprep.subr.bf16.mxu0 0
        %2427 = vmatpush1.bf16.msra.mxu0 0
        %2428 = vmatprep.subr.bf16.mxu0 0
        %2429 = vmatpush1.bf16.msra.mxu0 0
        %2430 = vmatprep.subr.bf16.mxu0 0
        %2431 = vmatpush1.bf16.msra.mxu0 0
        %2432 = vmatprep.subr.bf16.mxu0 0
        %2433 = vmatpush1.bf16.msra.mxu0 0
        %2434 = vmatprep.subr.bf16.mxu0 0
        %2435 = vmatpush1.bf16.msra.mxu0 0
        %2436 = vmatprep.subr.bf16.mxu0 0
        %2437 = vmatpush1.bf16.msra.mxu0 0
        %2438 = vmatprep.subr.bf16.mxu0 0
        %2439 = vmatpush1.bf16.msra.mxu0 0
        %2440 = vmatprep.subr.bf16.mxu0 0
        %2441 = vmatpush1.bf16.msra.mxu0 0
        %2442 = vmatprep.subr.bf16.mxu0 0
        %2443 = vmatpush1.bf16.msra.mxu0 0
        %2444 = vmatprep.subr.bf16.mxu0 0
        %2445 = vmatpush1.bf16.msra.mxu0 0
        %2446 = vmatprep.subr.bf16.mxu0 0
        %2447 = vmatpush1.bf16.msra.mxu0 0
        %2448 = vmatprep.subr.bf16.mxu0 0
        %2449 = vmatpush1.bf16.msra.mxu0 0
        %2450 = vmatprep.subr.bf16.mxu0 0
        %2451 = vmatpush1.bf16.msra.mxu0 0
        %2452 = vmatprep.subr.bf16.mxu0 0
        %2453 = vmatpush1.bf16.msra.mxu0 0
        %2454 = vmatprep.subr.bf16.mxu0 0
        %2455 = vmatpush1.bf16.msra.mxu0 0
        %2456 = vmatprep.mubr.bf16.mxu0 0
        %2457 = vmatmul.mubr.bf16.gmra.mrb[0].mxu0 %v2419
        %v2458 = vpop.f32.mrb[0].mxu0
        %v2459 = vadd.f32 0.0, %v2458
        %v2460 = vpop.f32.mrb[0].mxu0
        %v2461 = vpop.f32.mrb[0].mxu0
        %v2462 = vpop.f32.mrb[0].mxu0
        %2463 = vdwg.mxu0
        %2464 = vrot.lane.b32.xlu0 %v2233, 112
        %v2465 = vpop.permute.xlu0 %2464
        %2466 = vrot.lane.b32.xlu0 %v2233, 80
        %v2467 = vpop.permute.xlu0 %2466
        %v2469 = vsel %vm373, %v2465, 0
        %v2472 = vsel %vm373, %v2467, 0
        %2474 = vmatprep.subr.bf16.mxu0 0
        %2475 = vmatpush1.bf16.xpose.msra.mxu0 %v2472
        %2476 = vmatprep.subr.bf16.mxu0 0
        %2477 = vmatpush1.bf16.xpose.msra.mxu0 0
        %2478 = vmatprep.subr.bf16.mxu0 0
        %2479 = vmatpush1.bf16.xpose.msra.mxu0 0
        %2480 = vmatprep.subr.bf16.mxu0 0
        %2481 = vmatpush1.bf16.xpose.msra.mxu0 0
        %2482 = vmatprep.subr.bf16.mxu0 0
        %2483 = vmatpush1.bf16.xpose.msra.mxu0 0
        %2484 = vmatprep.subr.bf16.mxu0 0
        %2485 = vmatpush1.bf16.xpose.msra.mxu0 0
        %2486 = vmatprep.subr.bf16.mxu0 0
        %2487 = vmatpush1.bf16.xpose.msra.mxu0 0
        %2488 = vmatprep.subr.bf16.mxu0 0
        %2489 = vmatpush1.bf16.xpose.msra.mxu0 0
        %2490 = vmatprep.subr.bf16.mxu0 0
        %2491 = vmatpush1.bf16.xpose.msra.mxu0 0
        %2492 = vmatprep.subr.bf16.mxu0 0
        %2493 = vmatpush1.bf16.xpose.msra.mxu0 0
        %2494 = vmatprep.subr.bf16.mxu0 0
        %2495 = vmatpush1.bf16.xpose.msra.mxu0 0
        %2496 = vmatprep.subr.bf16.mxu0 0
        %2497 = vmatpush1.bf16.xpose.msra.mxu0 0
        %2498 = vmatprep.subr.bf16.mxu0 0
        %2499 = vmatpush1.bf16.xpose.msra.mxu0 0
        %2500 = vmatprep.subr.bf16.mxu0 0
        %2501 = vmatpush1.bf16.xpose.msra.mxu0 0
        %2502 = vmatprep.subr.bf16.mxu0 0
        %2503 = vmatpush1.bf16.xpose.msra.mxu0 0
        %2504 = vmatprep.subr.bf16.mxu0 0
        %2505 = vmatpush1.bf16.xpose.msra.mxu0 0
        %2506 = vmatprep.mubr.bf16.mxu0 0
        %2507 = vmatmul.mubr.bf16.gmra.mrb[0].mxu0 %v2469
        %v2508 = vpop.f32.mrb[0].mxu0
        %v2509 = vadd.f32 0.0, %v2508
        %v2510 = vpop.f32.mrb[0].mxu0
        %v2511 = vpop.f32.mrb[0].mxu0
        %v2512 = vpop.f32.mrb[0].mxu0
        %2513 = vdwg.mxu0
        %v2514 = vmul.f32 %v2509, 0.35355338
        %v2515 = vadd.f32 %v2514, %v2288
        %v2516 = vsel %vm373, %v2515, -inf
        %2517 = vmax.xlane.f32.xlu0 %v2516
        %v2518 = vpop.xlane.xlu0 %2517
        %v2519 = vsub.f32 %v2515, %v2518
        %v2520 = vmul.f32 %v2519, 1.442695
        %v2521 = vpow.pop %v2520
        %v2522 = vsel %vm373, %v2521, 0.0
        %2523 = vadd.xlane.f32.xlu0 %v2522
        %v2524 = vpop.xlane.xlu0 %2523
        %v2525 = vrcp.pop %v2524
        %v2526 = vmul.f32 %v2521, %v2525
        %v2527 = vpack.c.bf16 %v2526, %v2526
        %2528 = vrot.lane.b32.xlu0 %v2233, 48
        %v2529 = vpop.permute.xlu0 %2528
        %v2531 = vsel %vm373, %v2527, 0
        %v2534 = vsel %vm2308, %v2529, 0
        %2536 = vmatprep.subr.bf16.mxu0 0
        %2537 = vmatpush1.bf16.msra.mxu0 %v2534
        %2538 = vmatprep.subr.bf16.mxu0 0
        %2539 = vmatpush1.bf16.msra.mxu0 0
        %2540 = vmatprep.subr.bf16.mxu0 0
        %2541 = vmatpush1.bf16.msra.mxu0 0
        %2542 = vmatprep.subr.bf16.mxu0 0
        %2543 = vmatpush1.bf16.msra.mxu0 0
        %2544 = vmatprep.subr.bf16.mxu0 0
        %2545 = vmatpush1.bf16.msra.mxu0 0
        %2546 = vmatprep.subr.bf16.mxu0 0
        %2547 = vmatpush1.bf16.msra.mxu0 0
        %2548 = vmatprep.subr.bf16.mxu0 0
        %2549 = vmatpush1.bf16.msra.mxu0 0
        %2550 = vmatprep.subr.bf16.mxu0 0
        %2551 = vmatpush1.bf16.msra.mxu0 0
        %2552 = vmatprep.subr.bf16.mxu0 0
        %2553 = vmatpush1.bf16.msra.mxu0 0
        %2554 = vmatprep.subr.bf16.mxu0 0
        %2555 = vmatpush1.bf16.msra.mxu0 0
        %2556 = vmatprep.subr.bf16.mxu0 0
        %2557 = vmatpush1.bf16.msra.mxu0 0
        %2558 = vmatprep.subr.bf16.mxu0 0
        %2559 = vmatpush1.bf16.msra.mxu0 0
        %2560 = vmatprep.subr.bf16.mxu0 0
        %2561 = vmatpush1.bf16.msra.mxu0 0
        %2562 = vmatprep.subr.bf16.mxu0 0
        %2563 = vmatpush1.bf16.msra.mxu0 0
        %2564 = vmatprep.subr.bf16.mxu0 0
        %2565 = vmatpush1.bf16.msra.mxu0 0
        %2566 = vmatprep.subr.bf16.mxu0 0
        %2567 = vmatpush1.bf16.msra.mxu0 0
        %2568 = vmatprep.mubr.bf16.mxu0 0
        %2569 = vmatmul.mubr.bf16.gmra.mrb[0].mxu0 %v2531
        %v2570 = vpop.f32.mrb[0].mxu0
        %v2571 = vadd.f32 0.0, %v2570
        %v2572 = vpop.f32.mrb[0].mxu0
        %v2573 = vpop.f32.mrb[0].mxu0
        %v2574 = vpop.f32.mrb[0].mxu0
        %2575 = vdwg.mxu0
        %2576 = vrot.lane.b32.xlu0 %v2233, 104
        %v2577 = vpop.permute.xlu0 %2576
        %2578 = vrot.lane.b32.xlu0 %v2233, 72
        %v2579 = vpop.permute.xlu0 %2578
        %v2581 = vsel %vm373, %v2577, 0
        %v2584 = vsel %vm373, %v2579, 0
        %2586 = vmatprep.subr.bf16.mxu0 0
        %2587 = vmatpush1.bf16.xpose.msra.mxu0 %v2584
        %2588 = vmatprep.subr.bf16.mxu0 0
        %2589 = vmatpush1.bf16.xpose.msra.mxu0 0
        %2590 = vmatprep.subr.bf16.mxu0 0
        %2591 = vmatpush1.bf16.xpose.msra.mxu0 0
        %2592 = vmatprep.subr.bf16.mxu0 0
        %2593 = vmatpush1.bf16.xpose.msra.mxu0 0
        %2594 = vmatprep.subr.bf16.mxu0 0
        %2595 = vmatpush1.bf16.xpose.msra.mxu0 0
        %2596 = vmatprep.subr.bf16.mxu0 0
        %2597 = vmatpush1.bf16.xpose.msra.mxu0 0
        %2598 = vmatprep.subr.bf16.mxu0 0
        %2599 = vmatpush1.bf16.xpose.msra.mxu0 0
        %2600 = vmatprep.subr.bf16.mxu0 0
        %2601 = vmatpush1.bf16.xpose.msra.mxu0 0
        %2602 = vmatprep.subr.bf16.mxu0 0
        %2603 = vmatpush1.bf16.xpose.msra.mxu0 0
        %2604 = vmatprep.subr.bf16.mxu0 0
        %2605 = vmatpush1.bf16.xpose.msra.mxu0 0
        %2606 = vmatprep.subr.bf16.mxu0 0
        %2607 = vmatpush1.bf16.xpose.msra.mxu0 0
        %2608 = vmatprep.subr.bf16.mxu0 0
        %2609 = vmatpush1.bf16.xpose.msra.mxu0 0
        %2610 = vmatprep.subr.bf16.mxu0 0
        %2611 = vmatpush1.bf16.xpose.msra.mxu0 0
        %2612 = vmatprep.subr.bf16.mxu0 0
        %2613 = vmatpush1.bf16.xpose.msra.mxu0 0
        %2614 = vmatprep.subr.bf16.mxu0 0
        %2615 = vmatpush1.bf16.xpose.msra.mxu0 0
        %2616 = vmatprep.subr.bf16.mxu0 0
        %2617 = vmatpush1.bf16.xpose.msra.mxu0 0
        %2618 = vmatprep.mubr.bf16.mxu0 0
        %2619 = vmatmul.mubr.bf16.gmra.mrb[0].mxu0 %v2581
        %v2620 = vpop.f32.mrb[0].mxu0
        %v2621 = vadd.f32 0.0, %v2620
        %v2622 = vpop.f32.mrb[0].mxu0
        %v2623 = vpop.f32.mrb[0].mxu0
        %v2624 = vpop.f32.mrb[0].mxu0
        %2625 = vdwg.mxu0
        %v2626 = vmul.f32 %v2621, 0.35355338
        %v2627 = vadd.f32 %v2626, %v2288
        %v2628 = vsel %vm373, %v2627, -inf
        %2629 = vmax.xlane.f32.xlu0 %v2628
        %v2630 = vpop.xlane.xlu0 %2629
        %v2631 = vsub.f32 %v2627, %v2630
        %v2632 = vmul.f32 %v2631, 1.442695
        %v2633 = vpow.pop %v2632
        %v2634 = vsel %vm373, %v2633, 0.0
        %2635 = vadd.xlane.f32.xlu0 %v2634
        %v2636 = vpop.xlane.xlu0 %2635
        %v2637 = vrcp.pop %v2636
        %v2638 = vmul.f32 %v2633, %v2637
        %v2639 = vpack.c.bf16 %v2638, %v2638
        %2640 = vrot.lane.b32.xlu0 %v2233, 40
        %v2641 = vpop.permute.xlu0 %2640
        %v2643 = vsel %vm373, %v2639, 0
        %v2646 = vsel %vm2308, %v2641, 0
        %2648 = vmatprep.subr.bf16.mxu0 0
        %2649 = vmatpush1.bf16.msra.mxu0 %v2646
        %2650 = vmatprep.subr.bf16.mxu0 0
        %2651 = vmatpush1.bf16.msra.mxu0 0
        %2652 = vmatprep.subr.bf16.mxu0 0
        %2653 = vmatpush1.bf16.msra.mxu0 0
        %2654 = vmatprep.subr.bf16.mxu0 0
        %2655 = vmatpush1.bf16.msra.mxu0 0
        %2656 = vmatprep.subr.bf16.mxu0 0
        %2657 = vmatpush1.bf16.msra.mxu0 0
        %2658 = vmatprep.subr.bf16.mxu0 0
        %2659 = vmatpush1.bf16.msra.mxu0 0
        %2660 = vmatprep.subr.bf16.mxu0 0
        %2661 = vmatpush1.bf16.msra.mxu0 0
        %2662 = vmatprep.subr.bf16.mxu0 0
        %2663 = vmatpush1.bf16.msra.mxu0 0
        %2664 = vmatprep.subr.bf16.mxu0 0
        %2665 = vmatpush1.bf16.msra.mxu0 0
        %2666 = vmatprep.subr.bf16.mxu0 0
        %2667 = vmatpush1.bf16.msra.mxu0 0
        %2668 = vmatprep.subr.bf16.mxu0 0
        %2669 = vmatpush1.bf16.msra.mxu0 0
        %2670 = vmatprep.subr.bf16.mxu0 0
        %2671 = vmatpush1.bf16.msra.mxu0 0
        %2672 = vmatprep.subr.bf16.mxu0 0
        %2673 = vmatpush1.bf16.msra.mxu0 0
        %2674 = vmatprep.subr.bf16.mxu0 0
        %2675 = vmatpush1.bf16.msra.mxu0 0
        %2676 = vmatprep.subr.bf16.mxu0 0
        %2677 = vmatpush1.bf16.msra.mxu0 0
        %2678 = vmatprep.subr.bf16.mxu0 0
        %2679 = vmatpush1.bf16.msra.mxu0 0
        %2680 = vmatprep.mubr.bf16.mxu0 0
        %2681 = vmatmul.mubr.bf16.gmra.mrb[0].mxu0 %v2643
        %v2682 = vpop.f32.mrb[0].mxu0
        %v2683 = vadd.f32 0.0, %v2682
        %v2684 = vpop.f32.mrb[0].mxu0
        %v2685 = vpop.f32.mrb[0].mxu0
        %v2686 = vpop.f32.mrb[0].mxu0
        %2687 = vdwg.mxu0
        %2689 = vrot.lane.b32.xlu0 %v2459, 8
        %v2690 = vpop.permute.xlu0 %2689
        %2693 = vrot.lane.b32.xlu0 %v2571, 16
        %v2694 = vpop.permute.xlu0 %2693
        %2697 = vrot.lane.b32.xlu0 %v2683, 24
        %v2698 = vpop.permute.xlu0 %2697
        %v2700 = vsel %vm373, %v2347, %v2690
        %v2701 = vsel %vm431, %v2700, %v2694
        %v2702 = vsel %vm905, %v2701, %v2698
        %v2703 = vpack.c.bf16 %v2702, %v2702
        %v2704 = vld [vmem:[%s4 + $0xb0] sm:$0xf]
        %v2705 = vld [vmem:[%s4 + $0xb4] sm:$0xf]
        %v2706 = vld [vmem:[%s4 + $0xb8] sm:$0xf]
        %v2707 = vld [vmem:[%s4 + $0xbc] sm:$0xf]
        %v2708 = vld [vmem:[%s5 + $0x98] sm:$0x1]
        %v2709 = vlaneseq
        %v2710 = vshrl.u32 %v2709, 7
        %v2711 = vsub.s32 0, %v2710
        %v2712 = vrot.slane %v2708, %v2711
        %v2717 = vunpack.c.l.b16 %v2704
        %v2718 = vunpack.c.l.b16 %v2705
        %v2719 = vunpack.c.l.b16 %v2706
        %v2720 = vunpack.c.l.b16 %v2707
        %v2721 = vpack.c.b16 %v2718, %v2717
        %v2722 = vpack.c.b16 %v2720, %v2719
        %v2726 = vsel %vm324, %v2703, 0
        %2728 = vmatprep.subr.bf16.mxu0 0
        %2729 = vmatpush1.bf16.msra.mxu0 %v2721
        %2730 = vmatprep.subr.bf16.mxu0 0
        %2731 = vmatpush1.bf16.msra.mxu0 %v2722
        %2732 = vmatprep.subr.bf16.mxu0 0
        %2733 = vmatpush1.bf16.msra.mxu0 0
        %2734 = vmatprep.subr.bf16.mxu0 0
        %2735 = vmatpush1.bf16.msra.mxu0 0
        %2736 = vmatprep.subr.bf16.mxu0 0
        %2737 = vmatpush1.bf16.msra.mxu0 0
        %2738 = vmatprep.subr.bf16.mxu0 0
        %2739 = vmatpush1.bf16.msra.mxu0 0
        %2740 = vmatprep.subr.bf16.mxu0 0
        %2741 = vmatpush1.bf16.msra.mxu0 0
        %2742 = vmatprep.subr.bf16.mxu0 0
        %2743 = vmatpush1.bf16.msra.mxu0 0
        %2744 = vmatprep.subr.bf16.mxu0 0
        %2745 = vmatpush1.bf16.msra.mxu0 0
        %2746 = vmatprep.subr.bf16.mxu0 0
        %2747 = vmatpush1.bf16.msra.mxu0 0
        %2748 = vmatprep.subr.bf16.mxu0 0
        %2749 = vmatpush1.bf16.msra.mxu0 0
        %2750 = vmatprep.subr.bf16.mxu0 0
        %2751 = vmatpush1.bf16.msra.mxu0 0
        %2752 = vmatprep.subr.bf16.mxu0 0
        %2753 = vmatpush1.bf16.msra.mxu0 0
        %2754 = vmatprep.subr.bf16.mxu0 0
        %2755 = vmatpush1.bf16.msra.mxu0 0
        %2756 = vmatprep.subr.bf16.mxu0 0
        %2757 = vmatpush1.bf16.msra.mxu0 0
        %2758 = vmatprep.subr.bf16.mxu0 0
        %2759 = vmatpush1.bf16.msra.mxu0 0
        %2760 = vmatprep.mubr.bf16.mxu0 0
        %2761 = vmatmul.mubr.bf16.gmra.mrb[0].mxu0 %v2726
        %v2762 = vpop.f32.mrb[0].mxu0
        %v2763 = vadd.f32 %v2712, %v2762
        %v2764 = vpop.f32.mrb[0].mxu0
        %v2765 = vpop.f32.mrb[0].mxu0
        %v2766 = vpop.f32.mrb[0].mxu0
        %2767 = vdwg.mxu0
        %v2768 = vadd.f32 %v2167, %v2763
        %v2769 = vld [vmem:[%s5 + $0xa0] sm:$0x1]
        %v2770 = vld [vmem:[%s5 + $0xa8] sm:$0x1]
        %v2771 = vsel %vm324, %v2768, 0.0
        %2772 = vadd.xlane.f32.xlu0 %v2771
        %v2773 = vpop.xlane.xlu0 %2772
        %v2774 = vmul.f32 %v2773, %v984
        %v2775 = vmul.f32 %v2768, %v2768
        %v2776 = vsel %vm324, %v2775, 0.0
        %2777 = vadd.xlane.f32.xlu0 %v2776
        %v2778 = vpop.xlane.xlu0 %2777
        %v2779 = vmul.f32 %v2778, %v984
        %v2780 = vmul.f32 %v2774, %v2774
        %v2781 = vsub.f32 %v2779, %v2780
        %v2782 = vsub.f32 %v2768, %v2774
        %v2783 = vadd.f32 %v2781, 1e-05
        %v2784 = vrsqrt.pop %v2783
        %v2785 = vmul.f32 %v2782, %v2784
        %v2786 = vlaneseq
        %v2787 = vshrl.u32 %v2786, 7
        %v2788 = vsub.s32 0, %v2787
        %v2789 = vrot.slane %v2769, %v2788
        %v2790 = vmul.f32 %v2785, %v2789
        %v2791 = vlaneseq
        %v2792 = vshrl.u32 %v2791, 7
        %v2793 = vsub.s32 0, %v2792
        %v2794 = vrot.slane %v2770, %v2793
        %v2795 = vadd.f32 %v2790, %v2794
        %v2796 = vpack.c.bf16 %v2795, %v2795
        %v2797 = vld [vmem:[%s4 + $0xc0] sm:$0xf]
        %v2798 = vld [vmem:[%s4 + $0xc4] sm:$0xf]
        %v2799 = vld [vmem:[%s4 + $0xc8] sm:$0xf]
        %v2800 = vld [vmem:[%s4 + $0xcc] sm:$0xf]
        %v2801 = vld [vmem:[%s5 + $0xb0] sm:$0x1]
        %v2802 = vlaneseq
        %v2803 = vshrl.u32 %v2802, 7
        %v2804 = vsub.s32 0, %v2803
        %v2805 = vrot.slane %v2801, %v2804
        %v2810 = vunpack.c.l.b16 %v2797
        %v2811 = vunpack.c.l.b16 %v2798
        %v2812 = vunpack.c.l.b16 %v2799
        %v2813 = vunpack.c.l.b16 %v2800
        %v2814 = vpack.c.b16 %v2811, %v2810
        %v2815 = vpack.c.b16 %v2813, %v2812
        %v2819 = vsel %vm324, %v2796, 0
        %2821 = vmatprep.subr.bf16.mxu0 0
        %2822 = vmatpush1.bf16.msra.mxu0 %v2814
        %2823 = vmatprep.subr.bf16.mxu0 0
        %2824 = vmatpush1.bf16.msra.mxu0 %v2815
        %2825 = vmatprep.subr.bf16.mxu0 0
        %2826 = vmatpush1.bf16.msra.mxu0 0
        %2827 = vmatprep.subr.bf16.mxu0 0
        %2828 = vmatpush1.bf16.msra.mxu0 0
        %2829 = vmatprep.subr.bf16.mxu0 0
        %2830 = vmatpush1.bf16.msra.mxu0 0
        %2831 = vmatprep.subr.bf16.mxu0 0
        %2832 = vmatpush1.bf16.msra.mxu0 0
        %2833 = vmatprep.subr.bf16.mxu0 0
        %2834 = vmatpush1.bf16.msra.mxu0 0
        %2835 = vmatprep.subr.bf16.mxu0 0
        %2836 = vmatpush1.bf16.msra.mxu0 0
        %2837 = vmatprep.subr.bf16.mxu0 0
        %2838 = vmatpush1.bf16.msra.mxu0 0
        %2839 = vmatprep.subr.bf16.mxu0 0
        %2840 = vmatpush1.bf16.msra.mxu0 0
        %2841 = vmatprep.subr.bf16.mxu0 0
        %2842 = vmatpush1.bf16.msra.mxu0 0
        %2843 = vmatprep.subr.bf16.mxu0 0
        %2844 = vmatpush1.bf16.msra.mxu0 0
        %2845 = vmatprep.subr.bf16.mxu0 0
        %2846 = vmatpush1.bf16.msra.mxu0 0
        %2847 = vmatprep.subr.bf16.mxu0 0
        %2848 = vmatpush1.bf16.msra.mxu0 0
        %2849 = vmatprep.subr.bf16.mxu0 0
        %2850 = vmatpush1.bf16.msra.mxu0 0
        %2851 = vmatprep.subr.bf16.mxu0 0
        %2852 = vmatpush1.bf16.msra.mxu0 0
        %2853 = vmatprep.mubr.bf16.mxu0 0
        %2854 = vmatmul.mubr.bf16.gmra.mrb[0].mxu0 %v2819
        %v2855 = vpop.f32.mrb[0].mxu0
        %v2856 = vadd.f32 %v2805, %v2855
        %v2857 = vpop.f32.mrb[0].mxu0
        %v2858 = vpop.f32.mrb[0].mxu0
        %v2859 = vpop.f32.mrb[0].mxu0
        %2860 = vdwg.mxu0
        %v2861 = vpack.c.bf16 %v2856, %v2856
        %v2862 = vld [vmem:[%s4 + $0xd0] sm:$0xf]
        %v2863 = vld [vmem:[%s4 + $0xd4] sm:$0xf]
        %v2864 = vld [vmem:[%s4 + $0xd8] sm:$0xf]
        %v2865 = vld [vmem:[%s4 + $0xdc] sm:$0xf]
        %v2866 = vld [vmem:[%s5 + $0xb8] sm:$0x1]
        %v2867 = vlaneseq
        %v2868 = vshrl.u32 %v2867, 7
        %v2869 = vsub.s32 0, %v2868
        %v2870 = vrot.slane %v2866, %v2869
        %v2875 = vunpack.c.l.b16 %v2862
        %v2876 = vunpack.c.l.b16 %v2863
        %v2877 = vunpack.c.l.b16 %v2864
        %v2878 = vunpack.c.l.b16 %v2865
        %v2879 = vpack.c.b16 %v2876, %v2875
        %v2880 = vpack.c.b16 %v2878, %v2877
        %v2884 = vsel %vm324, %v2166, 0
        %2886 = vmatprep.subr.bf16.mxu0 0
        %2887 = vmatpush1.bf16.msra.mxu0 %v2879
        %2888 = vmatprep.subr.bf16.mxu0 0
        %2889 = vmatpush1.bf16.msra.mxu0 %v2880
        %2890 = vmatprep.subr.bf16.mxu0 0
        %2891 = vmatpush1.bf16.msra.mxu0 0
        %2892 = vmatprep.subr.bf16.mxu0 0
        %2893 = vmatpush1.bf16.msra.mxu0 0
        %2894 = vmatprep.subr.bf16.mxu0 0
        %2895 = vmatpush1.bf16.msra.mxu0 0
        %2896 = vmatprep.subr.bf16.mxu0 0
        %2897 = vmatpush1.bf16.msra.mxu0 0
        %2898 = vmatprep.subr.bf16.mxu0 0
        %2899 = vmatpush1.bf16.msra.mxu0 0
        %2900 = vmatprep.subr.bf16.mxu0 0
        %2901 = vmatpush1.bf16.msra.mxu0 0
        %2902 = vmatprep.subr.bf16.mxu0 0
        %2903 = vmatpush1.bf16.msra.mxu0 0
        %2904 = vmatprep.subr.bf16.mxu0 0
        %2905 = vmatpush1.bf16.msra.mxu0 0
        %2906 = vmatprep.subr.bf16.mxu0 0
        %2907 = vmatpush1.bf16.msra.mxu0 0
        %2908 = vmatprep.subr.bf16.mxu0 0
        %2909 = vmatpush1.bf16.msra.mxu0 0
        %2910 = vmatprep.subr.bf16.mxu0 0
        %2911 = vmatpush1.bf16.msra.mxu0 0
        %2912 = vmatprep.subr.bf16.mxu0 0
        %2913 = vmatpush1.bf16.msra.mxu0 0
        %2914 = vmatprep.subr.bf16.mxu0 0
        %2915 = vmatpush1.bf16.msra.mxu0 0
        %2916 = vmatprep.subr.bf16.mxu0 0
        %2917 = vmatpush1.bf16.msra.mxu0 0
        %2918 = vmatprep.mubr.bf16.mxu0 0
        %2919 = vmatmul.mubr.bf16.gmra.mrb[0].mxu0 %v2884
        %v2920 = vpop.f32.mrb[0].mxu0
        %v2921 = vadd.f32 %v2870, %v2920
        %v2922 = vpop.f32.mrb[0].mxu0
        %v2923 = vpop.f32.mrb[0].mxu0
        %v2924 = vadd.f32 %v2870, %v2923
        %v2925 = vpop.f32.mrb[0].mxu0
        %2926 = vdwg.mxu0
        %v2927 = vpack.c.bf16 %v2924, %v2921
        %v2929 = vsel %vm373, %v2861, 0
        %v2932 = vsel %vm373, %v2927, 0
        %2934 = vmatprep.subr.bf16.mxu0 0
        %2935 = vmatpush1.bf16.xpose.msra.mxu0 %v2932
        %2936 = vmatprep.subr.bf16.mxu0 0
        %2937 = vmatpush1.bf16.xpose.msra.mxu0 0
        %2938 = vmatprep.subr.bf16.mxu0 0
        %2939 = vmatpush1.bf16.xpose.msra.mxu0 0
        %2940 = vmatprep.subr.bf16.mxu0 0
        %2941 = vmatpush1.bf16.xpose.msra.mxu0 0
        %2942 = vmatprep.subr.bf16.mxu0 0
        %2943 = vmatpush1.bf16.xpose.msra.mxu0 0
        %2944 = vmatprep.subr.bf16.mxu0 0
        %2945 = vmatpush1.bf16.xpose.msra.mxu0 0
        %2946 = vmatprep.subr.bf16.mxu0 0
        %2947 = vmatpush1.bf16.xpose.msra.mxu0 0
        %2948 = vmatprep.subr.bf16.mxu0 0
        %2949 = vmatpush1.bf16.xpose.msra.mxu0 0
        %2950 = vmatprep.subr.bf16.mxu0 0
        %2951 = vmatpush1.bf16.xpose.msra.mxu0 0
        %2952 = vmatprep.subr.bf16.mxu0 0
        %2953 = vmatpush1.bf16.xpose.msra.mxu0 0
        %2954 = vmatprep.subr.bf16.mxu0 0
        %2955 = vmatpush1.bf16.xpose.msra.mxu0 0
        %2956 = vmatprep.subr.bf16.mxu0 0
        %2957 = vmatpush1.bf16.xpose.msra.mxu0 0
        %2958 = vmatprep.subr.bf16.mxu0 0
        %2959 = vmatpush1.bf16.xpose.msra.mxu0 0
        %2960 = vmatprep.subr.bf16.mxu0 0
        %2961 = vmatpush1.bf16.xpose.msra.mxu0 0
        %2962 = vmatprep.subr.bf16.mxu0 0
        %2963 = vmatpush1.bf16.xpose.msra.mxu0 0
        %2964 = vmatprep.subr.bf16.mxu0 0
        %2965 = vmatpush1.bf16.xpose.msra.mxu0 0
        %2966 = vmatprep.mubr.bf16.mxu0 0
        %2967 = vmatmul.mubr.bf16.gmra.mrb[0].mxu0 %v2929
        %v2968 = vpop.f32.mrb[0].mxu0
        %v2969 = vadd.f32 0.0, %v2968
        %v2970 = vpop.f32.mrb[0].mxu0
        %v2971 = vpop.f32.mrb[0].mxu0
        %v2972 = vpop.f32.mrb[0].mxu0
        %2973 = vdwg.mxu0
        %v2974 = vmul.f32 %v2969, 0.35355338
        %v2975 = vadd.f32 %v2974, %v427
        %v2976 = vsel %vm431, %v2975, -inf
        %2977 = vmax.xlane.f32.xlu0 %v2976
        %v2978 = vpop.xlane.xlu0 %2977
        %v2979 = vsub.f32 %v2975, %v2978
        %v2980 = vmul.f32 %v2979, 1.442695
        %v2981 = vpow.pop %v2980
        %v2982 = vsel %vm431, %v2981, 0.0
        %2983 = vadd.xlane.f32.xlu0 %v2982
        %v2984 = vpop.xlane.xlu0 %2983
        %v2985 = vrcp.pop %v2984
        %v2986 = vmul.f32 %v2981, %v2985
        %v2987 = vpack.c.bf16 %v2986, %v2986
        %2989 = vrot.lane.b32.xlu0 %v2927, 96
        %v2990 = vpop.permute.xlu0 %2989
        %v2993 = vsel %vm431, %v2987, 0
        %2995 = vmatprep.subr.bf16.mxu0 0
        %2996 = vmatpush1.bf16.msra.mxu0 %v2990
        %2997 = vmatprep.subr.bf16.mxu0 0
        %2998 = vmatpush1.bf16.msra.mxu0 0
        %2999 = vmatprep.subr.bf16.mxu0 0
        %3000 = vmatpush1.bf16.msra.mxu0 0
        %3001 = vmatprep.subr.bf16.mxu0 0
        %3002 = vmatpush1.bf16.msra.mxu0 0
        %3003 = vmatprep.subr.bf16.mxu0 0
        %3004 = vmatpush1.bf16.msra.mxu0 0
        %3005 = vmatprep.subr.bf16.mxu0 0
        %3006 = vmatpush1.bf16.msra.mxu0 0
        %3007 = vmatprep.subr.bf16.mxu0 0
        %3008 = vmatpush1.bf16.msra.mxu0 0
        %3009 = vmatprep.subr.bf16.mxu0 0
        %3010 = vmatpush1.bf16.msra.mxu0 0
        %3011 = vmatprep.subr.bf16.mxu0 0
        %3012 = vmatpush1.bf16.msra.mxu0 0
        %3013 = vmatprep.subr.bf16.mxu0 0
        %3014 = vmatpush1.bf16.msra.mxu0 0
        %3015 = vmatprep.subr.bf16.mxu0 0
        %3016 = vmatpush1.bf16.msra.mxu0 0
        %3017 = vmatprep.subr.bf16.mxu0 0
        %3018 = vmatpush1.bf16.msra.mxu0 0
        %3019 = vmatprep.subr.bf16.mxu0 0
        %3020 = vmatpush1.bf16.msra.mxu0 0
        %3021 = vmatprep.subr.bf16.mxu0 0
        %3022 = vmatpush1.bf16.msra.mxu0 0
        %3023 = vmatprep.subr.bf16.mxu0 0
        %3024 = vmatpush1.bf16.msra.mxu0 0
        %3025 = vmatprep.subr.bf16.mxu0 0
        %3026 = vmatpush1.bf16.msra.mxu0 0
        %3027 = vmatprep.mubr.bf16.mxu0 0
        %3028 = vmatmul.mubr.bf16.gmra.mrb[0].mxu0 %v2993
        %v3029 = vpop.f32.mrb[0].mxu0
        %v3030 = vadd.f32 0.0, %v3029
        %v3031 = vpop.f32.mrb[0].mxu0
        %v3032 = vpop.f32.mrb[0].mxu0
        %v3033 = vpop.f32.mrb[0].mxu0
        %3034 = vdwg.mxu0
        %3036 = vrot.lane.b32.xlu0 %v2861, 120
        %v3037 = vpop.permute.xlu0 %3036
        %3038 = vrot.lane.b32.xlu0 %v2927, 120
        %v3039 = vpop.permute.xlu0 %3038
        %v3041 = vsel %vm373, %v3037, 0
        %v3044 = vsel %vm373, %v3039, 0
        %3046 = vmatprep.subr.bf16.mxu0 0
        %3047 = vmatpush1.bf16.xpose.msra.mxu0 %v3044
        %3048 = vmatprep.subr.bf16.mxu0 0
        %3049 = vmatpush1.bf16.xpose.msra.mxu0 0
        %3050 = vmatprep.subr.bf16.mxu0 0
        %3051 = vmatpush1.bf16.xpose.msra.mxu0 0
        %3052 = vmatprep.subr.bf16.mxu0 0
        %3053 = vmatpush1.bf16.xpose.msra.mxu0 0
        %3054 = vmatprep.subr.bf16.mxu0 0
        %3055 = vmatpush1.bf16.xpose.msra.mxu0 0
        %3056 = vmatprep.subr.bf16.mxu0 0
        %3057 = vmatpush1.bf16.xpose.msra.mxu0 0
        %3058 = vmatprep.subr.bf16.mxu0 0
        %3059 = vmatpush1.bf16.xpose.msra.mxu0 0
        %3060 = vmatprep.subr.bf16.mxu0 0
        %3061 = vmatpush1.bf16.xpose.msra.mxu0 0
        %3062 = vmatprep.subr.bf16.mxu0 0
        %3063 = vmatpush1.bf16.xpose.msra.mxu0 0
        %3064 = vmatprep.subr.bf16.mxu0 0
        %3065 = vmatpush1.bf16.xpose.msra.mxu0 0
        %3066 = vmatprep.subr.bf16.mxu0 0
        %3067 = vmatpush1.bf16.xpose.msra.mxu0 0
        %3068 = vmatprep.subr.bf16.mxu0 0
        %3069 = vmatpush1.bf16.xpose.msra.mxu0 0
        %3070 = vmatprep.subr.bf16.mxu0 0
        %3071 = vmatpush1.bf16.xpose.msra.mxu0 0
        %3072 = vmatprep.subr.bf16.mxu0 0
        %3073 = vmatpush1.bf16.xpose.msra.mxu0 0
        %3074 = vmatprep.subr.bf16.mxu0 0
        %3075 = vmatpush1.bf16.xpose.msra.mxu0 0
        %3076 = vmatprep.subr.bf16.mxu0 0
        %3077 = vmatpush1.bf16.xpose.msra.mxu0 0
        %3078 = vmatprep.mubr.bf16.mxu0 0
        %3079 = vmatmul.mubr.bf16.gmra.mrb[0].mxu0 %v3041
        %v3080 = vpop.f32.mrb[0].mxu0
        %v3081 = vadd.f32 0.0, %v3080
        %v3082 = vpop.f32.mrb[0].mxu0
        %v3083 = vpop.f32.mrb[0].mxu0
        %v3084 = vpop.f32.mrb[0].mxu0
        %3085 = vdwg.mxu0
        %v3086 = vmul.f32 %v3081, 0.35355338
        %v3087 = vadd.f32 %v3086, %v427
        %v3088 = vsel %vm431, %v3087, -inf
        %3089 = vmax.xlane.f32.xlu0 %v3088
        %v3090 = vpop.xlane.xlu0 %3089
        %v3091 = vsub.f32 %v3087, %v3090
        %v3092 = vmul.f32 %v3091, 1.442695
        %v3093 = vpow.pop %v3092
        %v3094 = vsel %vm431, %v3093, 0.0
        %3095 = vadd.xlane.f32.xlu0 %v3094
        %v3096 = vpop.xlane.xlu0 %3095
        %v3097 = vrcp.pop %v3096
        %v3098 = vmul.f32 %v3093, %v3097
        %v3099 = vpack.c.bf16 %v3098, %v3098
        %3100 = vrot.lane.b32.xlu0 %v2927, 88
        %v3101 = vpop.permute.xlu0 %3100
        %v3104 = vsel %vm431, %v3099, 0
        %3106 = vmatprep.subr.bf16.mxu0 0
        %3107 = vmatpush1.bf16.msra.mxu0 %v3101
        %3108 = vmatprep.subr.bf16.mxu0 0
        %3109 = vmatpush1.bf16.msra.mxu0 0
        %3110 = vmatprep.subr.bf16.mxu0 0
        %3111 = vmatpush1.bf16.msra.mxu0 0
        %3112 = vmatprep.subr.bf16.mxu0 0
        %3113 = vmatpush1.bf16.msra.mxu0 0
        %3114 = vmatprep.subr.bf16.mxu0 0
        %3115 = vmatpush1.bf16.msra.mxu0 0
        %3116 = vmatprep.subr.bf16.mxu0 0
        %3117 = vmatpush1.bf16.msra.mxu0 0
        %3118 = vmatprep.subr.bf16.mxu0 0
        %3119 = vmatpush1.bf16.msra.mxu0 0
        %3120 = vmatprep.subr.bf16.mxu0 0
        %3121 = vmatpush1.bf16.msra.mxu0 0
        %3122 = vmatprep.subr.bf16.mxu0 0
        %3123 = vmatpush1.bf16.msra.mxu0 0
        %3124 = vmatprep.subr.bf16.mxu0 0
        %3125 = vmatpush1.bf16.msra.mxu0 0
        %3126 = vmatprep.subr.bf16.mxu0 0
        %3127 = vmatpush1.bf16.msra.mxu0 0
        %3128 = vmatprep.subr.bf16.mxu0 0
        %3129 = vmatpush1.bf16.msra.mxu0 0
        %3130 = vmatprep.subr.bf16.mxu0 0
        %3131 = vmatpush1.bf16.msra.mxu0 0
        %3132 = vmatprep.subr.bf16.mxu0 0
        %3133 = vmatpush1.bf16.msra.mxu0 0
        %3134 = vmatprep.subr.bf16.mxu0 0
        %3135 = vmatpush1.bf16.msra.mxu0 0
        %3136 = vmatprep.subr.bf16.mxu0 0
        %3137 = vmatpush1.bf16.msra.mxu0 0
        %3138 = vmatprep.mubr.bf16.mxu0 0
        %3139 = vmatmul.mubr.bf16.gmra.mrb[0].mxu0 %v3104
        %v3140 = vpop.f32.mrb[0].mxu0
        %v3141 = vadd.f32 0.0, %v3140
        %v3142 = vpop.f32.mrb[0].mxu0
        %v3143 = vpop.f32.mrb[0].mxu0
        %v3144 = vpop.f32.mrb[0].mxu0
        %3145 = vdwg.mxu0
        %3146 = vrot.lane.b32.xlu0 %v2861, 112
        %v3147 = vpop.permute.xlu0 %3146
        %3148 = vrot.lane.b32.xlu0 %v2927, 112
        %v3149 = vpop.permute.xlu0 %3148
        %v3151 = vsel %vm373, %v3147, 0
        %v3154 = vsel %vm373, %v3149, 0
        %3156 = vmatprep.subr.bf16.mxu0 0
        %3157 = vmatpush1.bf16.xpose.msra.mxu0 %v3154
        %3158 = vmatprep.subr.bf16.mxu0 0
        %3159 = vmatpush1.bf16.xpose.msra.mxu0 0
        %3160 = vmatprep.subr.bf16.mxu0 0
        %3161 = vmatpush1.bf16.xpose.msra.mxu0 0
        %3162 = vmatprep.subr.bf16.mxu0 0
        %3163 = vmatpush1.bf16.xpose.msra.mxu0 0
        %3164 = vmatprep.subr.bf16.mxu0 0
        %3165 = vmatpush1.bf16.xpose.msra.mxu0 0
        %3166 = vmatprep.subr.bf16.mxu0 0
        %3167 = vmatpush1.bf16.xpose.msra.mxu0 0
        %3168 = vmatprep.subr.bf16.mxu0 0
        %3169 = vmatpush1.bf16.xpose.msra.mxu0 0
        %3170 = vmatprep.subr.bf16.mxu0 0
        %3171 = vmatpush1.bf16.xpose.msra.mxu0 0
        %3172 = vmatprep.subr.bf16.mxu0 0
        %3173 = vmatpush1.bf16.xpose.msra.mxu0 0
        %3174 = vmatprep.subr.bf16.mxu0 0
        %3175 = vmatpush1.bf16.xpose.msra.mxu0 0
        %3176 = vmatprep.subr.bf16.mxu0 0
        %3177 = vmatpush1.bf16.xpose.msra.mxu0 0
        %3178 = vmatprep.subr.bf16.mxu0 0
        %3179 = vmatpush1.bf16.xpose.msra.mxu0 0
        %3180 = vmatprep.subr.bf16.mxu0 0
        %3181 = vmatpush1.bf16.xpose.msra.mxu0 0
        %3182 = vmatprep.subr.bf16.mxu0 0
        %3183 = vmatpush1.bf16.xpose.msra.mxu0 0
        %3184 = vmatprep.subr.bf16.mxu0 0
        %3185 = vmatpush1.bf16.xpose.msra.mxu0 0
        %3186 = vmatprep.subr.bf16.mxu0 0
        %3187 = vmatpush1.bf16.xpose.msra.mxu0 0
        %3188 = vmatprep.mubr.bf16.mxu0 0
        %3189 = vmatmul.mubr.bf16.gmra.mrb[0].mxu0 %v3151
        %v3190 = vpop.f32.mrb[0].mxu0
        %v3191 = vadd.f32 0.0, %v3190
        %v3192 = vpop.f32.mrb[0].mxu0
        %v3193 = vpop.f32.mrb[0].mxu0
        %v3194 = vpop.f32.mrb[0].mxu0
        %3195 = vdwg.mxu0
        %v3196 = vmul.f32 %v3191, 0.35355338
        %v3197 = vadd.f32 %v3196, %v427
        %v3198 = vsel %vm431, %v3197, -inf
        %3199 = vmax.xlane.f32.xlu0 %v3198
        %v3200 = vpop.xlane.xlu0 %3199
        %v3201 = vsub.f32 %v3197, %v3200
        %v3202 = vmul.f32 %v3201, 1.442695
        %v3203 = vpow.pop %v3202
        %v3204 = vsel %vm431, %v3203, 0.0
        %3205 = vadd.xlane.f32.xlu0 %v3204
        %v3206 = vpop.xlane.xlu0 %3205
        %v3207 = vrcp.pop %v3206
        %v3208 = vmul.f32 %v3203, %v3207
        %v3209 = vpack.c.bf16 %v3208, %v3208
        %3210 = vrot.lane.b32.xlu0 %v2927, 80
        %v3211 = vpop.permute.xlu0 %3210
        %v3214 = vsel %vm431, %v3209, 0
        %3216 = vmatprep.subr.bf16.mxu0 0
        %3217 = vmatpush1.bf16.msra.mxu0 %v3211
        %3218 = vmatprep.subr.bf16.mxu0 0
        %3219 = vmatpush1.bf16.msra.mxu0 0
        %3220 = vmatprep.subr.bf16.mxu0 0
        %3221 = vmatpush1.bf16.msra.mxu0 0
        %3222 = vmatprep.subr.bf16.mxu0 0
        %3223 = vmatpush1.bf16.msra.mxu0 0
        %3224 = vmatprep.subr.bf16.mxu0 0
        %3225 = vmatpush1.bf16.msra.mxu0 0
        %3226 = vmatprep.subr.bf16.mxu0 0
        %3227 = vmatpush1.bf16.msra.mxu0 0
        %3228 = vmatprep.subr.bf16.mxu0 0
        %3229 = vmatpush1.bf16.msra.mxu0 0
        %3230 = vmatprep.subr.bf16.mxu0 0
        %3231 = vmatpush1.bf16.msra.mxu0 0
        %3232 = vmatprep.subr.bf16.mxu0 0
        %3233 = vmatpush1.bf16.msra.mxu0 0
        %3234 = vmatprep.subr.bf16.mxu0 0
        %3235 = vmatpush1.bf16.msra.mxu0 0
        %3236 = vmatprep.subr.bf16.mxu0 0
        %3237 = vmatpush1.bf16.msra.mxu0 0
        %3238 = vmatprep.subr.bf16.mxu0 0
        %3239 = vmatpush1.bf16.msra.mxu0 0
        %3240 = vmatprep.subr.bf16.mxu0 0
        %3241 = vmatpush1.bf16.msra.mxu0 0
        %3242 = vmatprep.subr.bf16.mxu0 0
        %3243 = vmatpush1.bf16.msra.mxu0 0
        %3244 = vmatprep.subr.bf16.mxu0 0
        %3245 = vmatpush1.bf16.msra.mxu0 0
        %3246 = vmatprep.subr.bf16.mxu0 0
        %3247 = vmatpush1.bf16.msra.mxu0 0
        %3248 = vmatprep.mubr.bf16.mxu0 0
        %3249 = vmatmul.mubr.bf16.gmra.mrb[0].mxu0 %v3214
        %v3250 = vpop.f32.mrb[0].mxu0
        %v3251 = vadd.f32 0.0, %v3250
        %v3252 = vpop.f32.mrb[0].mxu0
        %v3253 = vpop.f32.mrb[0].mxu0
        %v3254 = vpop.f32.mrb[0].mxu0
        %3255 = vdwg.mxu0
        %3256 = vrot.lane.b32.xlu0 %v2861, 104
        %v3257 = vpop.permute.xlu0 %3256
        %3258 = vrot.lane.b32.xlu0 %v2927, 104
        %v3259 = vpop.permute.xlu0 %3258
        %v3261 = vsel %vm373, %v3257, 0
        %v3264 = vsel %vm373, %v3259, 0
        %3266 = vmatprep.subr.bf16.mxu0 0
        %3267 = vmatpush1.bf16.xpose.msra.mxu0 %v3264
        %3268 = vmatprep.subr.bf16.mxu0 0
        %3269 = vmatpush1.bf16.xpose.msra.mxu0 0
        %3270 = vmatprep.subr.bf16.mxu0 0
        %3271 = vmatpush1.bf16.xpose.msra.mxu0 0
        %3272 = vmatprep.subr.bf16.mxu0 0
        %3273 = vmatpush1.bf16.xpose.msra.mxu0 0
        %3274 = vmatprep.subr.bf16.mxu0 0
        %3275 = vmatpush1.bf16.xpose.msra.mxu0 0
        %3276 = vmatprep.subr.bf16.mxu0 0
        %3277 = vmatpush1.bf16.xpose.msra.mxu0 0
        %3278 = vmatprep.subr.bf16.mxu0 0
        %3279 = vmatpush1.bf16.xpose.msra.mxu0 0
        %3280 = vmatprep.subr.bf16.mxu0 0
        %3281 = vmatpush1.bf16.xpose.msra.mxu0 0
        %3282 = vmatprep.subr.bf16.mxu0 0
        %3283 = vmatpush1.bf16.xpose.msra.mxu0 0
        %3284 = vmatprep.subr.bf16.mxu0 0
        %3285 = vmatpush1.bf16.xpose.msra.mxu0 0
        %3286 = vmatprep.subr.bf16.mxu0 0
        %3287 = vmatpush1.bf16.xpose.msra.mxu0 0
        %3288 = vmatprep.subr.bf16.mxu0 0
        %3289 = vmatpush1.bf16.xpose.msra.mxu0 0
        %3290 = vmatprep.subr.bf16.mxu0 0
        %3291 = vmatpush1.bf16.xpose.msra.mxu0 0
        %3292 = vmatprep.subr.bf16.mxu0 0
        %3293 = vmatpush1.bf16.xpose.msra.mxu0 0
        %3294 = vmatprep.subr.bf16.mxu0 0
        %3295 = vmatpush1.bf16.xpose.msra.mxu0 0
        %3296 = vmatprep.subr.bf16.mxu0 0
        %3297 = vmatpush1.bf16.xpose.msra.mxu0 0
        %3298 = vmatprep.mubr.bf16.mxu0 0
        %3299 = vmatmul.mubr.bf16.gmra.mrb[0].mxu0 %v3261
        %v3300 = vpop.f32.mrb[0].mxu0
        %v3301 = vadd.f32 0.0, %v3300
        %v3302 = vpop.f32.mrb[0].mxu0
        %v3303 = vpop.f32.mrb[0].mxu0
        %v3304 = vpop.f32.mrb[0].mxu0
        %3305 = vdwg.mxu0
        %v3306 = vmul.f32 %v3301, 0.35355338
        %v3307 = vadd.f32 %v3306, %v427
        %v3308 = vsel %vm431, %v3307, -inf
        %3309 = vmax.xlane.f32.xlu0 %v3308
        %v3310 = vpop.xlane.xlu0 %3309
        %v3311 = vsub.f32 %v3307, %v3310
        %v3312 = vmul.f32 %v3311, 1.442695
        %v3313 = vpow.pop %v3312
        %v3314 = vsel %vm431, %v3313, 0.0
        %3315 = vadd.xlane.f32.xlu0 %v3314
        %v3316 = vpop.xlane.xlu0 %3315
        %v3317 = vrcp.pop %v3316
        %v3318 = vmul.f32 %v3313, %v3317
        %v3319 = vpack.c.bf16 %v3318, %v3318
        %3320 = vrot.lane.b32.xlu0 %v2927, 72
        %v3321 = vpop.permute.xlu0 %3320
        %v3324 = vsel %vm431, %v3319, 0
        %3326 = vmatprep.subr.bf16.mxu0 0
        %3327 = vmatpush1.bf16.msra.mxu0 %v3321
        %3328 = vmatprep.subr.bf16.mxu0 0
        %3329 = vmatpush1.bf16.msra.mxu0 0
        %3330 = vmatprep.subr.bf16.mxu0 0
        %3331 = vmatpush1.bf16.msra.mxu0 0
        %3332 = vmatprep.subr.bf16.mxu0 0
        %3333 = vmatpush1.bf16.msra.mxu0 0
        %3334 = vmatprep.subr.bf16.mxu0 0
        %3335 = vmatpush1.bf16.msra.mxu0 0
        %3336 = vmatprep.subr.bf16.mxu0 0
        %3337 = vmatpush1.bf16.msra.mxu0 0
        %3338 = vmatprep.subr.bf16.mxu0 0
        %3339 = vmatpush1.bf16.msra.mxu0 0
        %3340 = vmatprep.subr.bf16.mxu0 0
        %3341 = vmatpush1.bf16.msra.mxu0 0
        %3342 = vmatprep.subr.bf16.mxu0 0
        %3343 = vmatpush1.bf16.msra.mxu0 0
        %3344 = vmatprep.subr.bf16.mxu0 0
        %3345 = vmatpush1.bf16.msra.mxu0 0
        %3346 = vmatprep.subr.bf16.mxu0 0
        %3347 = vmatpush1.bf16.msra.mxu0 0
        %3348 = vmatprep.subr.bf16.mxu0 0
        %3349 = vmatpush1.bf16.msra.mxu0 0
        %3350 = vmatprep.subr.bf16.mxu0 0
        %3351 = vmatpush1.bf16.msra.mxu0 0
        %3352 = vmatprep.subr.bf16.mxu0 0
        %3353 = vmatpush1.bf16.msra.mxu0 0
        %3354 = vmatprep.subr.bf16.mxu0 0
        %3355 = vmatpush1.bf16.msra.mxu0 0
        %3356 = vmatprep.subr.bf16.mxu0 0
        %3357 = vmatpush1.bf16.msra.mxu0 0
        %3358 = vmatprep.mubr.bf16.mxu0 0
        %3359 = vmatmul.mubr.bf16.gmra.mrb[0].mxu0 %v3324
        %v3360 = vpop.f32.mrb[0].mxu0
        %v3361 = vadd.f32 0.0, %v3360
        %v3362 = vpop.f32.mrb[0].mxu0
        %v3363 = vpop.f32.mrb[0].mxu0
        %v3364 = vpop.f32.mrb[0].mxu0
        %3365 = vdwg.mxu0
        %3367 = vrot.lane.b32.xlu0 %v3141, 8
        %v3368 = vpop.permute.xlu0 %3367
        %3371 = vrot.lane.b32.xlu0 %v3251, 16
        %v3372 = vpop.permute.xlu0 %3371
        %3375 = vrot.lane.b32.xlu0 %v3361, 24
        %v3376 = vpop.permute.xlu0 %3375
        %v3378 = vsel %vm373, %v3030, %v3368
        %v3379 = vsel %vm431, %v3378, %v3372
        %v3380 = vsel %vm905, %v3379, %v3376
        %v3381 = vpack.c.bf16 %v3380, %v3380
        %v3382 = vld [vmem:[%s4 + $0xe0] sm:$0xf]
        %v3383 = vld [vmem:[%s4 + $0xe4] sm:$0xf]
        %v3384 = vld [vmem:[%s4 + $0xe8] sm:$0xf]
        %v3385 = vld [vmem:[%s4 + $0xec] sm:$0xf]
        %v3386 = vld [vmem:[%s5 + $0xc0] sm:$0x1]
        %v3387 = vlaneseq
        %v3388 = vshrl.u32 %v3387, 7
        %v3389 = vsub.s32 0, %v3388
        %v3390 = vrot.slane %v3386, %v3389
        %v3395 = vunpack.c.l.b16 %v3382
        %v3396 = vunpack.c.l.b16 %v3383
        %v3397 = vunpack.c.l.b16 %v3384
        %v3398 = vunpack.c.l.b16 %v3385
        %v3399 = vpack.c.b16 %v3396, %v3395
        %v3400 = vpack.c.b16 %v3398, %v3397
        %v3404 = vsel %vm324, %v3381, 0
        %3406 = vmatprep.subr.bf16.mxu0 0
        %3407 = vmatpush1.bf16.msra.mxu0 %v3399
        %3408 = vmatprep.subr.bf16.mxu0 0
        %3409 = vmatpush1.bf16.msra.mxu0 %v3400
        %3410 = vmatprep.subr.bf16.mxu0 0
        %3411 = vmatpush1.bf16.msra.mxu0 0
        %3412 = vmatprep.subr.bf16.mxu0 0
        %3413 = vmatpush1.bf16.msra.mxu0 0
        %3414 = vmatprep.subr.bf16.mxu0 0
        %3415 = vmatpush1.bf16.msra.mxu0 0
        %3416 = vmatprep.subr.bf16.mxu0 0
        %3417 = vmatpush1.bf16.msra.mxu0 0
        %3418 = vmatprep.subr.bf16.mxu0 0
        %3419 = vmatpush1.bf16.msra.mxu0 0
        %3420 = vmatprep.subr.bf16.mxu0 0
        %3421 = vmatpush1.bf16.msra.mxu0 0
        %3422 = vmatprep.subr.bf16.mxu0 0
        %3423 = vmatpush1.bf16.msra.mxu0 0
        %3424 = vmatprep.subr.bf16.mxu0 0
        %3425 = vmatpush1.bf16.msra.mxu0 0
        %3426 = vmatprep.subr.bf16.mxu0 0
        %3427 = vmatpush1.bf16.msra.mxu0 0
        %3428 = vmatprep.subr.bf16.mxu0 0
        %3429 = vmatpush1.bf16.msra.mxu0 0
        %3430 = vmatprep.subr.bf16.mxu0 0
        %3431 = vmatpush1.bf16.msra.mxu0 0
        %3432 = vmatprep.subr.bf16.mxu0 0
        %3433 = vmatpush1.bf16.msra.mxu0 0
        %3434 = vmatprep.subr.bf16.mxu0 0
        %3435 = vmatpush1.bf16.msra.mxu0 0
        %3436 = vmatprep.subr.bf16.mxu0 0
        %3437 = vmatpush1.bf16.msra.mxu0 0
        %3438 = vmatprep.mubr.bf16.mxu0 0
        %3439 = vmatmul.mubr.bf16.gmra.mrb[0].mxu0 %v3404
        %v3440 = vpop.f32.mrb[0].mxu0
        %v3441 = vadd.f32 %v3390, %v3440
        %v3442 = vpop.f32.mrb[0].mxu0
        %v3443 = vpop.f32.mrb[0].mxu0
        %v3444 = vpop.f32.mrb[0].mxu0
        %3445 = vdwg.mxu0
        %v3446 = vadd.f32 %v2795, %v3441
        %v3447 = vld [vmem:[%s5 + $0xc8] sm:$0x1]
        %v3448 = vld [vmem:[%s5 + $0xd0] sm:$0x1]
        %v3449 = vsel %vm324, %v3446, 0.0
        %3450 = vadd.xlane.f32.xlu0 %v3449
        %v3451 = vpop.xlane.xlu0 %3450
        %v3452 = vmul.f32 %v3451, %v984
        %v3453 = vmul.f32 %v3446, %v3446
        %v3454 = vsel %vm324, %v3453, 0.0
        %3455 = vadd.xlane.f32.xlu0 %v3454
        %v3456 = vpop.xlane.xlu0 %3455
        %v3457 = vmul.f32 %v3456, %v984
        %v3458 = vmul.f32 %v3452, %v3452
        %v3459 = vsub.f32 %v3457, %v3458
        %v3460 = vsub.f32 %v3446, %v3452
        %v3461 = vadd.f32 %v3459, 1e-05
        %v3462 = vrsqrt.pop %v3461
        %v3463 = vmul.f32 %v3460, %v3462
        %v3464 = vlaneseq
        %v3465 = vshrl.u32 %v3464, 7
        %v3466 = vsub.s32 0, %v3465
        %v3467 = vrot.slane %v3447, %v3466
        %v3468 = vmul.f32 %v3463, %v3467
        %v3469 = vlaneseq
        %v3470 = vshrl.u32 %v3469, 7
        %v3471 = vsub.s32 0, %v3470
        %v3472 = vrot.slane %v3448, %v3471
        %v3473 = vadd.f32 %v3468, %v3472
        %v3474 = vpack.c.bf16 %v3473, %v3473
        %v3475 = vld [vmem:[%s4 + $0xf0] sm:$0xf]
        %v3476 = vld [vmem:[%s4 + $0xf4] sm:$0xf]
        %v3477 = vld [vmem:[%s4 + $0xf8] sm:$0xf]
        %v3478 = vld [vmem:[%s4 + $0xfc] sm:$0xf]
        %v3479 = vld [vmem:[%s5 + $0xd8] sm:$0x1]
        %v3480 = vlaneseq
        %v3481 = vshrl.u32 %v3480, 7
        %v3482 = vsub.s32 0, %v3481
        %v3483 = vrot.slane %v3479, %v3482
        %v3488 = vunpack.c.l.b16 %v3475
        %v3489 = vunpack.c.l.b16 %v3476
        %v3490 = vunpack.c.l.b16 %v3477
        %v3491 = vunpack.c.l.b16 %v3478
        %v3492 = vpack.c.b16 %v3489, %v3488
        %v3493 = vpack.c.b16 %v3491, %v3490
        %v3497 = vsel %vm324, %v3474, 0
        %3499 = vmatprep.subr.bf16.mxu0 0
        %3500 = vmatpush1.bf16.msra.mxu0 %v3492
        %3501 = vmatprep.subr.bf16.mxu0 0
        %3502 = vmatpush1.bf16.msra.mxu0 %v3493
        %3503 = vmatprep.subr.bf16.mxu0 0
        %3504 = vmatpush1.bf16.msra.mxu0 0
        %3505 = vmatprep.subr.bf16.mxu0 0
        %3506 = vmatpush1.bf16.msra.mxu0 0
        %3507 = vmatprep.subr.bf16.mxu0 0
        %3508 = vmatpush1.bf16.msra.mxu0 0
        %3509 = vmatprep.subr.bf16.mxu0 0
        %3510 = vmatpush1.bf16.msra.mxu0 0
        %3511 = vmatprep.subr.bf16.mxu0 0
        %3512 = vmatpush1.bf16.msra.mxu0 0
        %3513 = vmatprep.subr.bf16.mxu0 0
        %3514 = vmatpush1.bf16.msra.mxu0 0
        %3515 = vmatprep.subr.bf16.mxu0 0
        %3516 = vmatpush1.bf16.msra.mxu0 0
        %3517 = vmatprep.subr.bf16.mxu0 0
        %3518 = vmatpush1.bf16.msra.mxu0 0
        %3519 = vmatprep.subr.bf16.mxu0 0
        %3520 = vmatpush1.bf16.msra.mxu0 0
        %3521 = vmatprep.subr.bf16.mxu0 0
        %3522 = vmatpush1.bf16.msra.mxu0 0
        %3523 = vmatprep.subr.bf16.mxu0 0
        %3524 = vmatpush1.bf16.msra.mxu0 0
        %3525 = vmatprep.subr.bf16.mxu0 0
        %3526 = vmatpush1.bf16.msra.mxu0 0
        %3527 = vmatprep.subr.bf16.mxu0 0
        %3528 = vmatpush1.bf16.msra.mxu0 0
        %3529 = vmatprep.subr.bf16.mxu0 0
        %3530 = vmatpush1.bf16.msra.mxu0 0
        %3531 = vmatprep.mubr.bf16.mxu0 0
        %3532 = vmatmul.mubr.bf16.gmra.mrb[0].mxu0 %v3497
        %v3533 = vpop.f32.mrb[0].mxu0
        %v3534 = vadd.f32 %v3483, %v3533
        %v3535 = vpop.f32.mrb[0].mxu0
        %v3536 = vpop.f32.mrb[0].mxu0
        %v3537 = vpop.f32.mrb[0].mxu0
        %3538 = vdwg.mxu0
        %v3539 = vmax.f32 %v3534, 0.0
        %v3540 = vpack.c.bf16 %v3539, %v3539
        %v3541 = vld [vmem:[%s4 + $0x100] sm:$0xf]
        %v3542 = vld [vmem:[%s4 + $0x104] sm:$0xf]
        %v3543 = vld [vmem:[%s4 + $0x108] sm:$0xf]
        %v3544 = vld [vmem:[%s4 + $0x10c] sm:$0xf]
        %v3545 = vld [vmem:[%s4 + $0x110] sm:$0xf]
        %v3546 = vld [vmem:[%s4 + $0x114] sm:$0xf]
        %v3547 = vld [vmem:[%s4 + $0x118] sm:$0xf]
        %v3548 = vld [vmem:[%s4 + $0x11c] sm:$0xf]
        %v3549 = vld [vmem:[%s5 + $0xe0] sm:$0x1]
        %v3550 = vlaneseq
        %v3551 = vshrl.u32 %v3550, 7
        %v3552 = vsub.s32 0, %v3551
        %v3553 = vrot.slane %v3549, %v3552
        %v3562 = vunpack.c.l.b16 %v3541
        %v3563 = vunpack.c.l.b16 %v3542
        %v3564 = vunpack.c.l.b16 %v3543
        %v3565 = vunpack.c.l.b16 %v3544
        %v3566 = vunpack.c.l.b16 %v3545
        %v3567 = vunpack.c.l.b16 %v3546
        %v3568 = vunpack.c.l.b16 %v3547
        %v3569 = vunpack.c.l.b16 %v3548
        %v3570 = vpack.c.b16 %v3563, %v3562
        %v3571 = vpack.c.b16 %v3565, %v3564
        %v3572 = vpack.c.b16 %v3567, %v3566
        %v3573 = vpack.c.b16 %v3569, %v3568
        %v3579 = vsel %vm1127, %v3540, 0
        %3581 = vmatprep.subr.bf16.mxu0 0
        %3582 = vmatpush1.bf16.msra.mxu0 %v3570
        %3583 = vmatprep.subr.bf16.mxu0 0
        %3584 = vmatpush1.bf16.msra.mxu0 %v3571
        %3585 = vmatprep.subr.bf16.mxu0 0
        %3586 = vmatpush1.bf16.msra.mxu0 %v3572
        %3587 = vmatprep.subr.bf16.mxu0 0
        %3588 = vmatpush1.bf16.msra.mxu0 %v3573
        %3589 = vmatprep.subr.bf16.mxu0 0
        %3590 = vmatpush1.bf16.msra.mxu0 0
        %3591 = vmatprep.subr.bf16.mxu0 0
        %3592 = vmatpush1.bf16.msra.mxu0 0
        %3593 = vmatprep.subr.bf16.mxu0 0
        %3594 = vmatpush1.bf16.msra.mxu0 0
        %3595 = vmatprep.subr.bf16.mxu0 0
        %3596 = vmatpush1.bf16.msra.mxu0 0
        %3597 = vmatprep.subr.bf16.mxu0 0
        %3598 = vmatpush1.bf16.msra.mxu0 0
        %3599 = vmatprep.subr.bf16.mxu0 0
        %3600 = vmatpush1.bf16.msra.mxu0 0
        %3601 = vmatprep.subr.bf16.mxu0 0
        %3602 = vmatpush1.bf16.msra.mxu0 0
        %3603 = vmatprep.subr.bf16.mxu0 0
        %3604 = vmatpush1.bf16.msra.mxu0 0
        %3605 = vmatprep.subr.bf16.mxu0 0
        %3606 = vmatpush1.bf16.msra.mxu0 0
        %3607 = vmatprep.subr.bf16.mxu0 0
        %3608 = vmatpush1.bf16.msra.mxu0 0
        %3609 = vmatprep.subr.bf16.mxu0 0
        %3610 = vmatpush1.bf16.msra.mxu0 0
        %3611 = vmatprep.subr.bf16.mxu0 0
        %3612 = vmatpush1.bf16.msra.mxu0 0
        %3613 = vmatprep.mubr.bf16.mxu0 0
        %3614 = vmatmul.mubr.bf16.gmra.mrb[0].mxu0 %v3579
        %v3615 = vpop.f32.mrb[0].mxu0
        %v3616 = vadd.f32 %v3553, %v3615
        %v3617 = vpop.f32.mrb[0].mxu0
        %v3618 = vpop.f32.mrb[0].mxu0
        %v3619 = vpop.f32.mrb[0].mxu0
        %3620 = vdwg.mxu0
        %v3621 = vadd.f32 %v3473, %v3616
        %v3622 = vld [vmem:[%s5 + $0xe8] sm:$0x1]
        %v3623 = vld [vmem:[%s5 + $0xf0] sm:$0x1]
        %v3624 = vsel %vm324, %v3621, 0.0
        %3625 = vadd.xlane.f32.xlu0 %v3624
        %v3626 = vpop.xlane.xlu0 %3625
        %v3627 = vmul.f32 %v3626, %v984
        %v3628 = vmul.f32 %v3621, %v3621
        %v3629 = vsel %vm324, %v3628, 0.0
        %3630 = vadd.xlane.f32.xlu0 %v3629
        %v3631 = vpop.xlane.xlu0 %3630
        %v3632 = vmul.f32 %v3631, %v984
        %v3633 = vmul.f32 %v3627, %v3627
        %v3634 = vsub.f32 %v3632, %v3633
        %v3635 = vsub.f32 %v3621, %v3627
        %v3636 = vadd.f32 %v3634, 1e-05
        %v3637 = vrsqrt.pop %v3636
        %v3638 = vmul.f32 %v3635, %v3637
        %v3639 = vlaneseq
        %v3640 = vshrl.u32 %v3639, 7
        %v3641 = vsub.s32 0, %v3640
        %v3642 = vrot.slane %v3622, %v3641
        %v3643 = vmul.f32 %v3638, %v3642
        %v3644 = vlaneseq
        %v3645 = vshrl.u32 %v3644, 7
        %v3646 = vsub.s32 0, %v3645
        %v3647 = vrot.slane %v3623, %v3646
        %v3648 = vadd.f32 %v3643, %v3647
        %v3649 = vpack.c.bf16 %v3648, %v3648
        %v3650 = vld [vmem:[%s4 + $0x120] sm:$0xf]
        %v3651 = vld [vmem:[%s4 + $0x124] sm:$0xf]
        %v3652 = vld [vmem:[%s4 + $0x128] sm:$0xf]
        %v3653 = vld [vmem:[%s4 + $0x12c] sm:$0xf]
        %v3654 = vld [vmem:[%s5 + $0xf8] sm:$0x1]
        %v3655 = vlaneseq
        %v3656 = vshrl.u32 %v3655, 7
        %v3657 = vsub.s32 0, %v3656
        %v3658 = vrot.slane %v3654, %v3657
        %v3663 = vunpack.c.l.b16 %v3650
        %v3664 = vunpack.c.l.b16 %v3651
        %v3665 = vunpack.c.l.b16 %v3652
        %v3666 = vunpack.c.l.b16 %v3653
        %v3667 = vpack.c.b16 %v3664, %v3663
        %v3668 = vpack.c.b16 %v3666, %v3665
        %v3672 = vsel %vm324, %v3649, 0
        %3674 = vmatprep.subr.bf16.mxu0 0
        %3675 = vmatpush1.bf16.msra.mxu0 %v3667
        %3676 = vmatprep.subr.bf16.mxu0 0
        %3677 = vmatpush1.bf16.msra.mxu0 %v3668
        %3678 = vmatprep.subr.bf16.mxu0 0
        %3679 = vmatpush1.bf16.msra.mxu0 0
        %3680 = vmatprep.subr.bf16.mxu0 0
        %3681 = vmatpush1.bf16.msra.mxu0 0
        %3682 = vmatprep.subr.bf16.mxu0 0
        %3683 = vmatpush1.bf16.msra.mxu0 0
        %3684 = vmatprep.subr.bf16.mxu0 0
        %3685 = vmatpush1.bf16.msra.mxu0 0
        %3686 = vmatprep.subr.bf16.mxu0 0
        %3687 = vmatpush1.bf16.msra.mxu0 0
        %3688 = vmatprep.subr.bf16.mxu0 0
        %3689 = vmatpush1.bf16.msra.mxu0 0
        %3690 = vmatprep.subr.bf16.mxu0 0
        %3691 = vmatpush1.bf16.msra.mxu0 0
        %3692 = vmatprep.subr.bf16.mxu0 0
        %3693 = vmatpush1.bf16.msra.mxu0 0
        %3694 = vmatprep.subr.bf16.mxu0 0
        %3695 = vmatpush1.bf16.msra.mxu0 0
        %3696 = vmatprep.subr.bf16.mxu0 0
        %3697 = vmatpush1.bf16.msra.mxu0 0
        %3698 = vmatprep.subr.bf16.mxu0 0
        %3699 = vmatpush1.bf16.msra.mxu0 0
        %3700 = vmatprep.subr.bf16.mxu0 0
        %3701 = vmatpush1.bf16.msra.mxu0 0
        %3702 = vmatprep.subr.bf16.mxu0 0
        %3703 = vmatpush1.bf16.msra.mxu0 0
        %3704 = vmatprep.subr.bf16.mxu0 0
        %3705 = vmatpush1.bf16.msra.mxu0 0
        %3706 = vmatprep.mubr.bf16.mxu0 0
        %3707 = vmatmul.mubr.bf16.gmra.mrb[0].mxu0 %v3672
        %v3708 = vpop.f32.mrb[0].mxu0
        %v3709 = vadd.f32 %v3658, %v3708
        %v3710 = vpop.f32.mrb[0].mxu0
        %v3711 = vpop.f32.mrb[0].mxu0
        %v3712 = vpop.f32.mrb[0].mxu0
        %3713 = vdwg.mxu0
        %v3714 = vpack.c.bf16 %v3709, %v3709
        %3716 = vrot.lane.b32.xlu0 %v3714, 96
        %v3717 = vpop.permute.xlu0 %3716
        %v3719 = vsel %vm373, %v3714, 0
        %v3722 = vsel %vm373, %v3717, 0
        %3724 = vmatprep.subr.bf16.mxu0 0
        %3725 = vmatpush1.bf16.xpose.msra.mxu0 %v3722
        %3726 = vmatprep.subr.bf16.mxu0 0
        %3727 = vmatpush1.bf16.xpose.msra.mxu0 0
        %3728 = vmatprep.subr.bf16.mxu0 0
        %3729 = vmatpush1.bf16.xpose.msra.mxu0 0
        %3730 = vmatprep.subr.bf16.mxu0 0
        %3731 = vmatpush1.bf16.xpose.msra.mxu0 0
        %3732 = vmatprep.subr.bf16.mxu0 0
        %3733 = vmatpush1.bf16.xpose.msra.mxu0 0
        %3734 = vmatprep.subr.bf16.mxu0 0
        %3735 = vmatpush1.bf16.xpose.msra.mxu0 0
        %3736 = vmatprep.subr.bf16.mxu0 0
        %3737 = vmatpush1.bf16.xpose.msra.mxu0 0
        %3738 = vmatprep.subr.bf16.mxu0 0
        %3739 = vmatpush1.bf16.xpose.msra.mxu0 0
        %3740 = vmatprep.subr.bf16.mxu0 0
        %3741 = vmatpush1.bf16.xpose.msra.mxu0 0
        %3742 = vmatprep.subr.bf16.mxu0 0
        %3743 = vmatpush1.bf16.xpose.msra.mxu0 0
        %3744 = vmatprep.subr.bf16.mxu0 0
        %3745 = vmatpush1.bf16.xpose.msra.mxu0 0
        %3746 = vmatprep.subr.bf16.mxu0 0
        %3747 = vmatpush1.bf16.xpose.msra.mxu0 0
        %3748 = vmatprep.subr.bf16.mxu0 0
        %3749 = vmatpush1.bf16.xpose.msra.mxu0 0
        %3750 = vmatprep.subr.bf16.mxu0 0
        %3751 = vmatpush1.bf16.xpose.msra.mxu0 0
        %3752 = vmatprep.subr.bf16.mxu0 0
        %3753 = vmatpush1.bf16.xpose.msra.mxu0 0
        %3754 = vmatprep.subr.bf16.mxu0 0
        %3755 = vmatpush1.bf16.xpose.msra.mxu0 0
        %3756 = vmatprep.mubr.bf16.mxu0 0
        %3757 = vmatmul.mubr.bf16.gmra.mrb[0].mxu0 %v3719
        %v3758 = vpop.f32.mrb[0].mxu0
        %v3759 = vadd.f32 0.0, %v3758
        %v3760 = vpop.f32.mrb[0].mxu0
        %v3761 = vpop.f32.mrb[0].mxu0
        %v3762 = vpop.f32.mrb[0].mxu0
        %3763 = vdwg.mxu0
        %v3764 = vmul.f32 %v3759, 0.35355338
        %v3765 = vadd.f32 %v3764, %v2288
        %v3766 = vsel %vm373, %v3765, -inf
        %3767 = vmax.xlane.f32.xlu0 %v3766
        %v3768 = vpop.xlane.xlu0 %3767
        %v3769 = vsub.f32 %v3765, %v3768
        %v3770 = vmul.f32 %v3769, 1.442695
        %v3771 = vpow.pop %v3770
        %v3772 = vsel %vm373, %v3771, 0.0
        %3773 = vadd.xlane.f32.xlu0 %v3772
        %v3774 = vpop.xlane.xlu0 %3773
        %v3775 = vrcp.pop %v3774
        %v3776 = vmul.f32 %v3771, %v3775
        %v3777 = vpack.c.bf16 %v3776, %v3776
        %3778 = vrot.lane.b32.xlu0 %v3714, 64
        %v3779 = vpop.permute.xlu0 %3778
        %v3781 = vsel %vm373, %v3777, 0
        %v3784 = vsel %vm2308, %v3779, 0
        %3786 = vmatprep.subr.bf16.mxu0 0
        %3787 = vmatpush1.bf16.msra.mxu0 %v3784
        %3788 = vmatprep.subr.bf16.mxu0 0
        %3789 = vmatpush1.bf16.msra.mxu0 0
        %3790 = vmatprep.subr.bf16.mxu0 0
        %3791 = vmatpush1.bf16.msra.mxu0 0
        %3792 = vmatprep.subr.bf16.mxu0 0
        %3793 = vmatpush1.bf16.msra.mxu0 0
        %3794 = vmatprep.subr.bf16.mxu0 0
        %3795 = vmatpush1.bf16.msra.mxu0 0
        %3796 = vmatprep.subr.bf16.mxu0 0
        %3797 = vmatpush1.bf16.msra.mxu0 0
        %3798 = vmatprep.subr.bf16.mxu0 0
        %3799 = vmatpush1.bf16.msra.mxu0 0
        %3800 = vmatprep.subr.bf16.mxu0 0
        %3801 = vmatpush1.bf16.msra.mxu0 0
        %3802 = vmatprep.subr.bf16.mxu0 0
        %3803 = vmatpush1.bf16.msra.mxu0 0
        %3804 = vmatprep.subr.bf16.mxu0 0
        %3805 = vmatpush1.bf16.msra.mxu0 0
        %3806 = vmatprep.subr.bf16.mxu0 0
        %3807 = vmatpush1.bf16.msra.mxu0 0
        %3808 = vmatprep.subr.bf16.mxu0 0
        %3809 = vmatpush1.bf16.msra.mxu0 0
        %3810 = vmatprep.subr.bf16.mxu0 0
        %3811 = vmatpush1.bf16.msra.mxu0 0
        %3812 = vmatprep.subr.bf16.mxu0 0
        %3813 = vmatpush1.bf16.msra.mxu0 0
        %3814 = vmatprep.subr.bf16.mxu0 0
        %3815 = vmatpush1.bf16.msra.mxu0 0
        %3816 = vmatprep.subr.bf16.mxu0 0
        %3817 = vmatpush1.bf16.msra.mxu0 0
        %3818 = vmatprep.mubr.bf16.mxu0 0
        %3819 = vmatmul.mubr.bf16.gmra.mrb[0].mxu0 %v3781
        %v3820 = vpop.f32.mrb[0].mxu0
        %v3821 = vadd.f32 0.0, %v3820
        %v3822 = vpop.f32.mrb[0].mxu0
        %v3823 = vpop.f32.mrb[0].mxu0
        %v3824 = vpop.f32.mrb[0].mxu0
        %3825 = vdwg.mxu0
        %3826 = vrot.lane.b32.xlu0 %v3714, 120
        %v3827 = vpop.permute.xlu0 %3826
        %3828 = vrot.lane.b32.xlu0 %v3714, 88
        %v3829 = vpop.permute.xlu0 %3828
        %v3831 = vsel %vm373, %v3827, 0
        %v3834 = vsel %vm373, %v3829, 0
        %3836 = vmatprep.subr.bf16.mxu0 0
        %3837 = vmatpush1.bf16.xpose.msra.mxu0 %v3834
        %3838 = vmatprep.subr.bf16.mxu0 0
        %3839 = vmatpush1.bf16.xpose.msra.mxu0 0
        %3840 = vmatprep.subr.bf16.mxu0 0
        %3841 = vmatpush1.bf16.xpose.msra.mxu0 0
        %3842 = vmatprep.subr.bf16.mxu0 0
        %3843 = vmatpush1.bf16.xpose.msra.mxu0 0
        %3844 = vmatprep.subr.bf16.mxu0 0
        %3845 = vmatpush1.bf16.xpose.msra.mxu0 0
        %3846 = vmatprep.subr.bf16.mxu0 0
        %3847 = vmatpush1.bf16.xpose.msra.mxu0 0
        %3848 = vmatprep.subr.bf16.mxu0 0
        %3849 = vmatpush1.bf16.xpose.msra.mxu0 0
        %3850 = vmatprep.subr.bf16.mxu0 0
        %3851 = vmatpush1.bf16.xpose.msra.mxu0 0
        %3852 = vmatprep.subr.bf16.mxu0 0
        %3853 = vmatpush1.bf16.xpose.msra.mxu0 0
        %3854 = vmatprep.subr.bf16.mxu0 0
        %3855 = vmatpush1.bf16.xpose.msra.mxu0 0
        %3856 = vmatprep.subr.bf16.mxu0 0
        %3857 = vmatpush1.bf16.xpose.msra.mxu0 0
        %3858 = vmatprep.subr.bf16.mxu0 0
        %3859 = vmatpush1.bf16.xpose.msra.mxu0 0
        %3860 = vmatprep.subr.bf16.mxu0 0
        %3861 = vmatpush1.bf16.xpose.msra.mxu0 0
        %3862 = vmatprep.subr.bf16.mxu0 0
        %3863 = vmatpush1.bf16.xpose.msra.mxu0 0
        %3864 = vmatprep.subr.bf16.mxu0 0
        %3865 = vmatpush1.bf16.xpose.msra.mxu0 0
        %3866 = vmatprep.subr.bf16.mxu0 0
        %3867 = vmatpush1.bf16.xpose.msra.mxu0 0
        %3868 = vmatprep.mubr.bf16.mxu0 0
        %3869 = vmatmul.mubr.bf16.gmra.mrb[0].mxu0 %v3831
        %v3870 = vpop.f32.mrb[0].mxu0
        %v3871 = vadd.f32 0.0, %v3870
        %v3872 = vpop.f32.mrb[0].mxu0
        %v3873 = vpop.f32.mrb[0].mxu0
        %v3874 = vpop.f32.mrb[0].mxu0
        %3875 = vdwg.mxu0
        %v3876 = vmul.f32 %v3871, 0.35355338
        %v3877 = vadd.f32 %v3876, %v2288
        %v3878 = vsel %vm373, %v3877, -inf
        %3879 = vmax.xlane.f32.xlu0 %v3878
        %v3880 = vpop.xlane.xlu0 %3879
        %v3881 = vsub.f32 %v3877, %v3880
        %v3882 = vmul.f32 %v3881, 1.442695
        %v3883 = vpow.pop %v3882
        %v3884 = vsel %vm373, %v3883, 0.0
        %3885 = vadd.xlane.f32.xlu0 %v3884
        %v3886 = vpop.xlane.xlu0 %3885
        %v3887 = vrcp.pop %v3886
        %v3888 = vmul.f32 %v3883, %v3887
        %v3889 = vpack.c.bf16 %v3888, %v3888
        %3890 = vrot.lane.b32.xlu0 %v3714, 56
        %v3891 = vpop.permute.xlu0 %3890
        %v3893 = vsel %vm373, %v3889, 0
        %v3896 = vsel %vm2308, %v3891, 0
        %3898 = vmatprep.subr.bf16.mxu0 0
        %3899 = vmatpush1.bf16.msra.mxu0 %v3896
        %3900 = vmatprep.subr.bf16.mxu0 0
        %3901 = vmatpush1.bf16.msra.mxu0 0
        %3902 = vmatprep.subr.bf16.mxu0 0
        %3903 = vmatpush1.bf16.msra.mxu0 0
        %3904 = vmatprep.subr.bf16.mxu0 0
        %3905 = vmatpush1.bf16.msra.mxu0 0
        %3906 = vmatprep.subr.bf16.mxu0 0
        %3907 = vmatpush1.bf16.msra.mxu0 0
        %3908 = vmatprep.subr.bf16.mxu0 0
        %3909 = vmatpush1.bf16.msra.mxu0 0
        %3910 = vmatprep.subr.bf16.mxu0 0
        %3911 = vmatpush1.bf16.msra.mxu0 0
        %3912 = vmatprep.subr.bf16.mxu0 0
        %3913 = vmatpush1.bf16.msra.mxu0 0
        %3914 = vmatprep.subr.bf16.mxu0 0
        %3915 = vmatpush1.bf16.msra.mxu0 0
        %3916 = vmatprep.subr.bf16.mxu0 0
        %3917 = vmatpush1.bf16.msra.mxu0 0
        %3918 = vmatprep.subr.bf16.mxu0 0
        %3919 = vmatpush1.bf16.msra.mxu0 0
        %3920 = vmatprep.subr.bf16.mxu0 0
        %3921 = vmatpush1.bf16.msra.mxu0 0
        %3922 = vmatprep.subr.bf16.mxu0 0
        %3923 = vmatpush1.bf16.msra.mxu0 0
        %3924 = vmatprep.subr.bf16.mxu0 0
        %3925 = vmatpush1.bf16.msra.mxu0 0
        %3926 = vmatprep.subr.bf16.mxu0 0
        %3927 = vmatpush1.bf16.msra.mxu0 0
        %3928 = vmatprep.subr.bf16.mxu0 0
        %3929 = vmatpush1.bf16.msra.mxu0 0
        %3930 = vmatprep.mubr.bf16.mxu0 0
        %3931 = vmatmul.mubr.bf16.gmra.mrb[0].mxu0 %v3893
        %v3932 = vpop.f32.mrb[0].mxu0
        %v3933 = vadd.f32 0.0, %v3932
        %v3934 = vpop.f32.mrb[0].mxu0
        %v3935 = vpop.f32.mrb[0].mxu0
        %v3936 = vpop.f32.mrb[0].mxu0
        %3937 = vdwg.mxu0
        %3938 = vrot.lane.b32.xlu0 %v3714, 112
        %v3939 = vpop.permute.xlu0 %3938
        %3940 = vrot.lane.b32.xlu0 %v3714, 80
        %v3941 = vpop.permute.xlu0 %3940
        %v3943 = vsel %vm373, %v3939, 0
        %v3946 = vsel %vm373, %v3941, 0
        %3948 = vmatprep.subr.bf16.mxu0 0
        %3949 = vmatpush1.bf16.xpose.msra.mxu0 %v3946
        %3950 = vmatprep.subr.bf16.mxu0 0
        %3951 = vmatpush1.bf16.xpose.msra.mxu0 0
        %3952 = vmatprep.subr.bf16.mxu0 0
        %3953 = vmatpush1.bf16.xpose.msra.mxu0 0
        %3954 = vmatprep.subr.bf16.mxu0 0
        %3955 = vmatpush1.bf16.xpose.msra.mxu0 0
        %3956 = vmatprep.subr.bf16.mxu0 0
        %3957 = vmatpush1.bf16.xpose.msra.mxu0 0
        %3958 = vmatprep.subr.bf16.mxu0 0
        %3959 = vmatpush1.bf16.xpose.msra.mxu0 0
        %3960 = vmatprep.subr.bf16.mxu0 0
        %3961 = vmatpush1.bf16.xpose.msra.mxu0 0
        %3962 = vmatprep.subr.bf16.mxu0 0
        %3963 = vmatpush1.bf16.xpose.msra.mxu0 0
        %3964 = vmatprep.subr.bf16.mxu0 0
        %3965 = vmatpush1.bf16.xpose.msra.mxu0 0
        %3966 = vmatprep.subr.bf16.mxu0 0
        %3967 = vmatpush1.bf16.xpose.msra.mxu0 0
        %3968 = vmatprep.subr.bf16.mxu0 0
        %3969 = vmatpush1.bf16.xpose.msra.mxu0 0
        %3970 = vmatprep.subr.bf16.mxu0 0
        %3971 = vmatpush1.bf16.xpose.msra.mxu0 0
        %3972 = vmatprep.subr.bf16.mxu0 0
        %3973 = vmatpush1.bf16.xpose.msra.mxu0 0
        %3974 = vmatprep.subr.bf16.mxu0 0
        %3975 = vmatpush1.bf16.xpose.msra.mxu0 0
        %3976 = vmatprep.subr.bf16.mxu0 0
        %3977 = vmatpush1.bf16.xpose.msra.mxu0 0
        %3978 = vmatprep.subr.bf16.mxu0 0
        %3979 = vmatpush1.bf16.xpose.msra.mxu0 0
        %3980 = vmatprep.mubr.bf16.mxu0 0
        %3981 = vmatmul.mubr.bf16.gmra.mrb[0].mxu0 %v3943
        %v3982 = vpop.f32.mrb[0].mxu0
        %v3983 = vadd.f32 0.0, %v3982
        %v3984 = vpop.f32.mrb[0].mxu0
        %v3985 = vpop.f32.mrb[0].mxu0
        %v3986 = vpop.f32.mrb[0].mxu0
        %3987 = vdwg.mxu0
        %v3988 = vmul.f32 %v3983, 0.35355338
        %v3989 = vadd.f32 %v3988, %v2288
        %v3990 = vsel %vm373, %v3989, -inf
        %3991 = vmax.xlane.f32.xlu0 %v3990
        %v3992 = vpop.xlane.xlu0 %3991
        %v3993 = vsub.f32 %v3989, %v3992
        %v3994 = vmul.f32 %v3993, 1.442695
        %v3995 = vpow.pop %v3994
        %v3996 = vsel %vm373, %v3995, 0.0
        %3997 = vadd.xlane.f32.xlu0 %v3996
        %v3998 = vpop.xlane.xlu0 %3997
        %v3999 = vrcp.pop %v3998
        %v4000 = vmul.f32 %v3995, %v3999
        %v4001 = vpack.c.bf16 %v4000, %v4000
        %4002 = vrot.lane.b32.xlu0 %v3714, 48
        %v4003 = vpop.permute.xlu0 %4002
        %v4005 = vsel %vm373, %v4001, 0
        %v4008 = vsel %vm2308, %v4003, 0
        %4010 = vmatprep.subr.bf16.mxu0 0
        %4011 = vmatpush1.bf16.msra.mxu0 %v4008
        %4012 = vmatprep.subr.bf16.mxu0 0
        %4013 = vmatpush1.bf16.msra.mxu0 0
        %4014 = vmatprep.subr.bf16.mxu0 0
        %4015 = vmatpush1.bf16.msra.mxu0 0
        %4016 = vmatprep.subr.bf16.mxu0 0
        %4017 = vmatpush1.bf16.msra.mxu0 0
        %4018 = vmatprep.subr.bf16.mxu0 0
        %4019 = vmatpush1.bf16.msra.mxu0 0
        %4020 = vmatprep.subr.bf16.mxu0 0
        %4021 = vmatpush1.bf16.msra.mxu0 0
        %4022 = vmatprep.subr.bf16.mxu0 0
        %4023 = vmatpush1.bf16.msra.mxu0 0
        %4024 = vmatprep.subr.bf16.mxu0 0
        %4025 = vmatpush1.bf16.msra.mxu0 0
        %4026 = vmatprep.subr.bf16.mxu0 0
        %4027 = vmatpush1.bf16.msra.mxu0 0
        %4028 = vmatprep.subr.bf16.mxu0 0
        %4029 = vmatpush1.bf16.msra.mxu0 0
        %4030 = vmatprep.subr.bf16.mxu0 0
        %4031 = vmatpush1.bf16.msra.mxu0 0
        %4032 = vmatprep.subr.bf16.mxu0 0
        %4033 = vmatpush1.bf16.msra.mxu0 0
        %4034 = vmatprep.subr.bf16.mxu0 0
        %4035 = vmatpush1.bf16.msra.mxu0 0
        %4036 = vmatprep.subr.bf16.mxu0 0
        %4037 = vmatpush1.bf16.msra.mxu0 0
        %4038 = vmatprep.subr.bf16.mxu0 0
        %4039 = vmatpush1.bf16.msra.mxu0 0
        %4040 = vmatprep.subr.bf16.mxu0 0
        %4041 = vmatpush1.bf16.msra.mxu0 0
        %4042 = vmatprep.mubr.bf16.mxu0 0
        %4043 = vmatmul.mubr.bf16.gmra.mrb[0].mxu0 %v4005
        %v4044 = vpop.f32.mrb[0].mxu0
        %v4045 = vadd.f32 0.0, %v4044
        %v4046 = vpop.f32.mrb[0].mxu0
        %v4047 = vpop.f32.mrb[0].mxu0
        %v4048 = vpop.f32.mrb[0].mxu0
        %4049 = vdwg.mxu0
        %4050 = vrot.lane.b32.xlu0 %v3714, 104
        %v4051 = vpop.permute.xlu0 %4050
        %4052 = vrot.lane.b32.xlu0 %v3714, 72
        %v4053 = vpop.permute.xlu0 %4052
        %v4055 = vsel %vm373, %v4051, 0
        %v4058 = vsel %vm373, %v4053, 0
        %4060 = vmatprep.subr.bf16.mxu0 0
        %4061 = vmatpush1.bf16.xpose.msra.mxu0 %v4058
        %4062 = vmatprep.subr.bf16.mxu0 0
        %4063 = vmatpush1.bf16.xpose.msra.mxu0 0
        %4064 = vmatprep.subr.bf16.mxu0 0
        %4065 = vmatpush1.bf16.xpose.msra.mxu0 0
        %4066 = vmatprep.subr.bf16.mxu0 0
        %4067 = vmatpush1.bf16.xpose.msra.mxu0 0
        %4068 = vmatprep.subr.bf16.mxu0 0
        %4069 = vmatpush1.bf16.xpose.msra.mxu0 0
        %4070 = vmatprep.subr.bf16.mxu0 0
        %4071 = vmatpush1.bf16.xpose.msra.mxu0 0
        %4072 = vmatprep.subr.bf16.mxu0 0
        %4073 = vmatpush1.bf16.xpose.msra.mxu0 0
        %4074 = vmatprep.subr.bf16.mxu0 0
        %4075 = vmatpush1.bf16.xpose.msra.mxu0 0
        %4076 = vmatprep.subr.bf16.mxu0 0
        %4077 = vmatpush1.bf16.xpose.msra.mxu0 0
        %4078 = vmatprep.subr.bf16.mxu0 0
        %4079 = vmatpush1.bf16.xpose.msra.mxu0 0
        %4080 = vmatprep.subr.bf16.mxu0 0
        %4081 = vmatpush1.bf16.xpose.msra.mxu0 0
        %4082 = vmatprep.subr.bf16.mxu0 0
        %4083 = vmatpush1.bf16.xpose.msra.mxu0 0
        %4084 = vmatprep.subr.bf16.mxu0 0
        %4085 = vmatpush1.bf16.xpose.msra.mxu0 0
        %4086 = vmatprep.subr.bf16.mxu0 0
        %4087 = vmatpush1.bf16.xpose.msra.mxu0 0
        %4088 = vmatprep.subr.bf16.mxu0 0
        %4089 = vmatpush1.bf16.xpose.msra.mxu0 0
        %4090 = vmatprep.subr.bf16.mxu0 0
        %4091 = vmatpush1.bf16.xpose.msra.mxu0 0
        %4092 = vmatprep.mubr.bf16.mxu0 0
        %4093 = vmatmul.mubr.bf16.gmra.mrb[0].mxu0 %v4055
        %v4094 = vpop.f32.mrb[0].mxu0
        %v4095 = vadd.f32 0.0, %v4094
        %v4096 = vpop.f32.mrb[0].mxu0
        %v4097 = vpop.f32.mrb[0].mxu0
        %v4098 = vpop.f32.mrb[0].mxu0
        %4099 = vdwg.mxu0
        %v4100 = vmul.f32 %v4095, 0.35355338
        %v4101 = vadd.f32 %v4100, %v2288
        %v4102 = vsel %vm373, %v4101, -inf
        %4103 = vmax.xlane.f32.xlu0 %v4102
        %v4104 = vpop.xlane.xlu0 %4103
        %v4105 = vsub.f32 %v4101, %v4104
        %v4106 = vmul.f32 %v4105, 1.442695
        %v4107 = vpow.pop %v4106
        %v4108 = vsel %vm373, %v4107, 0.0
        %4109 = vadd.xlane.f32.xlu0 %v4108
        %v4110 = vpop.xlane.xlu0 %4109
        %v4111 = vrcp.pop %v4110
        %v4112 = vmul.f32 %v4107, %v4111
        %v4113 = vpack.c.bf16 %v4112, %v4112
        %4114 = vrot.lane.b32.xlu0 %v3714, 40
        %v4115 = vpop.permute.xlu0 %4114
        %v4117 = vsel %vm373, %v4113, 0
        %v4120 = vsel %vm2308, %v4115, 0
        %4122 = vmatprep.subr.bf16.mxu0 0
        %4123 = vmatpush1.bf16.msra.mxu0 %v4120
        %4124 = vmatprep.subr.bf16.mxu0 0
        %4125 = vmatpush1.bf16.msra.mxu0 0
        %4126 = vmatprep.subr.bf16.mxu0 0
        %4127 = vmatpush1.bf16.msra.mxu0 0
        %4128 = vmatprep.subr.bf16.mxu0 0
        %4129 = vmatpush1.bf16.msra.mxu0 0
        %4130 = vmatprep.subr.bf16.mxu0 0
        %4131 = vmatpush1.bf16.msra.mxu0 0
        %4132 = vmatprep.subr.bf16.mxu0 0
        %4133 = vmatpush1.bf16.msra.mxu0 0
        %4134 = vmatprep.subr.bf16.mxu0 0
        %4135 = vmatpush1.bf16.msra.mxu0 0
        %4136 = vmatprep.subr.bf16.mxu0 0
        %4137 = vmatpush1.bf16.msra.mxu0 0
        %4138 = vmatprep.subr.bf16.mxu0 0
        %4139 = vmatpush1.bf16.msra.mxu0 0
        %4140 = vmatprep.subr.bf16.mxu0 0
        %4141 = vmatpush1.bf16.msra.mxu0 0
        %4142 = vmatprep.subr.bf16.mxu0 0
        %4143 = vmatpush1.bf16.msra.mxu0 0
        %4144 = vmatprep.subr.bf16.mxu0 0
        %4145 = vmatpush1.bf16.msra.mxu0 0
        %4146 = vmatprep.subr.bf16.mxu0 0
        %4147 = vmatpush1.bf16.msra.mxu0 0
        %4148 = vmatprep.subr.bf16.mxu0 0
        %4149 = vmatpush1.bf16.msra.mxu0 0
        %4150 = vmatprep.subr.bf16.mxu0 0
        %4151 = vmatpush1.bf16.msra.mxu0 0
        %4152 = vmatprep.subr.bf16.mxu0 0
        %4153 = vmatpush1.bf16.msra.mxu0 0
        %4154 = vmatprep.mubr.bf16.mxu0 0
        %4155 = vmatmul.mubr.bf16.gmra.mrb[0].mxu0 %v4117
        %v4156 = vpop.f32.mrb[0].mxu0
        %v4157 = vadd.f32 0.0, %v4156
        %v4158 = vpop.f32.mrb[0].mxu0
        %v4159 = vpop.f32.mrb[0].mxu0
        %v4160 = vpop.f32.mrb[0].mxu0
        %4161 = vdwg.mxu0
        %4163 = vrot.lane.b32.xlu0 %v3933, 8
        %v4164 = vpop.permute.xlu0 %4163
        %4167 = vrot.lane.b32.xlu0 %v4045, 16
        %v4168 = vpop.permute.xlu0 %4167
        %4171 = vrot.lane.b32.xlu0 %v4157, 24
        %v4172 = vpop.permute.xlu0 %4171
        %v4174 = vsel %vm373, %v3821, %v4164
        %v4175 = vsel %vm431, %v4174, %v4168
        %v4176 = vsel %vm905, %v4175, %v4172
        %v4177 = vpack.c.bf16 %v4176, %v4176
        %v4178 = vld [vmem:[%s4 + $0x130] sm:$0xf]
        %v4179 = vld [vmem:[%s4 + $0x134] sm:$0xf]
        %v4180 = vld [vmem:[%s4 + $0x138] sm:$0xf]
        %v4181 = vld [vmem:[%s4 + $0x13c] sm:$0xf]
        %v4182 = vld [vmem:[%s5 + $0x100] sm:$0x1]
        %v4183 = vlaneseq
        %v4184 = vshrl.u32 %v4183, 7
        %v4185 = vsub.s32 0, %v4184
        %v4186 = vrot.slane %v4182, %v4185
        %v4191 = vunpack.c.l.b16 %v4178
        %v4192 = vunpack.c.l.b16 %v4179
        %v4193 = vunpack.c.l.b16 %v4180
        %v4194 = vunpack.c.l.b16 %v4181
        %v4195 = vpack.c.b16 %v4192, %v4191
        %v4196 = vpack.c.b16 %v4194, %v4193
        %v4200 = vsel %vm324, %v4177, 0
        %4202 = vmatprep.subr.bf16.mxu0 0
        %4203 = vmatpush1.bf16.msra.mxu0 %v4195
        %4204 = vmatprep.subr.bf16.mxu0 0
        %4205 = vmatpush1.bf16.msra.mxu0 %v4196
        %4206 = vmatprep.subr.bf16.mxu0 0
        %4207 = vmatpush1.bf16.msra.mxu0 0
        %4208 = vmatprep.subr.bf16.mxu0 0
        %4209 = vmatpush1.bf16.msra.mxu0 0
        %4210 = vmatprep.subr.bf16.mxu0 0
        %4211 = vmatpush1.bf16.msra.mxu0 0
        %4212 = vmatprep.subr.bf16.mxu0 0
        %4213 = vmatpush1.bf16.msra.mxu0 0
        %4214 = vmatprep.subr.bf16.mxu0 0
        %4215 = vmatpush1.bf16.msra.mxu0 0
        %4216 = vmatprep.subr.bf16.mxu0 0
        %4217 = vmatpush1.bf16.msra.mxu0 0
        %4218 = vmatprep.subr.bf16.mxu0 0
        %4219 = vmatpush1.bf16.msra.mxu0 0
        %4220 = vmatprep.subr.bf16.mxu0 0
        %4221 = vmatpush1.bf16.msra.mxu0 0
        %4222 = vmatprep.subr.bf16.mxu0 0
        %4223 = vmatpush1.bf16.msra.mxu0 0
        %4224 = vmatprep.subr.bf16.mxu0 0
        %4225 = vmatpush1.bf16.msra.mxu0 0
        %4226 = vmatprep.subr.bf16.mxu0 0
        %4227 = vmatpush1.bf16.msra.mxu0 0
        %4228 = vmatprep.subr.bf16.mxu0 0
        %4229 = vmatpush1.bf16.msra.mxu0 0
        %4230 = vmatprep.subr.bf16.mxu0 0
        %4231 = vmatpush1.bf16.msra.mxu0 0
        %4232 = vmatprep.subr.bf16.mxu0 0
        %4233 = vmatpush1.bf16.msra.mxu0 0
        %4234 = vmatprep.mubr.bf16.mxu0 0
        %4235 = vmatmul.mubr.bf16.gmra.mrb[0].mxu0 %v4200
        %v4236 = vpop.f32.mrb[0].mxu0
        %v4237 = vadd.f32 %v4186, %v4236
        %v4238 = vpop.f32.mrb[0].mxu0
        %v4239 = vpop.f32.mrb[0].mxu0
        %v4240 = vpop.f32.mrb[0].mxu0
        %4241 = vdwg.mxu0
        %v4242 = vadd.f32 %v3648, %v4237
        %v4243 = vld [vmem:[%s5 + $0x108] sm:$0x1]
        %v4244 = vld [vmem:[%s5 + $0x110] sm:$0x1]
        %v4245 = vsel %vm324, %v4242, 0.0
        %4246 = vadd.xlane.f32.xlu0 %v4245
        %v4247 = vpop.xlane.xlu0 %4246
        %v4248 = vmul.f32 %v4247, %v984
        %v4249 = vmul.f32 %v4242, %v4242
        %v4250 = vsel %vm324, %v4249, 0.0
        %4251 = vadd.xlane.f32.xlu0 %v4250
        %v4252 = vpop.xlane.xlu0 %4251
        %v4253 = vmul.f32 %v4252, %v984
        %v4254 = vmul.f32 %v4248, %v4248
        %v4255 = vsub.f32 %v4253, %v4254
        %v4256 = vsub.f32 %v4242, %v4248
        %v4257 = vadd.f32 %v4255, 1e-05
        %v4258 = vrsqrt.pop %v4257
        %v4259 = vmul.f32 %v4256, %v4258
        %v4260 = vlaneseq
        %v4261 = vshrl.u32 %v4260, 7
        %v4262 = vsub.s32 0, %v4261
        %v4263 = vrot.slane %v4243, %v4262
        %v4264 = vmul.f32 %v4259, %v4263
        %v4265 = vlaneseq
        %v4266 = vshrl.u32 %v4265, 7
        %v4267 = vsub.s32 0, %v4266
        %v4268 = vrot.slane %v4244, %v4267
        %v4269 = vadd.f32 %v4264, %v4268
        %v4270 = vpack.c.bf16 %v4269, %v4269
        %v4271 = vld [vmem:[%s4 + $0x140] sm:$0xf]
        %v4272 = vld [vmem:[%s4 + $0x144] sm:$0xf]
        %v4273 = vld [vmem:[%s4 + $0x148] sm:$0xf]
        %v4274 = vld [vmem:[%s4 + $0x14c] sm:$0xf]
        %v4275 = vld [vmem:[%s5 + $0x118] sm:$0x1]
        %v4276 = vlaneseq
        %v4277 = vshrl.u32 %v4276, 7
        %v4278 = vsub.s32 0, %v4277
        %v4279 = vrot.slane %v4275, %v4278
        %v4284 = vunpack.c.l.b16 %v4271
        %v4285 = vunpack.c.l.b16 %v4272
        %v4286 = vunpack.c.l.b16 %v4273
        %v4287 = vunpack.c.l.b16 %v4274
        %v4288 = vpack.c.b16 %v4285, %v4284
        %v4289 = vpack.c.b16 %v4287, %v4286
        %v4293 = vsel %vm324, %v4270, 0
        %4295 = vmatprep.subr.bf16.mxu0 0
        %4296 = vmatpush1.bf16.msra.mxu0 %v4288
        %4297 = vmatprep.subr.bf16.mxu0 0
        %4298 = vmatpush1.bf16.msra.mxu0 %v4289
        %4299 = vmatprep.subr.bf16.mxu0 0
        %4300 = vmatpush1.bf16.msra.mxu0 0
        %4301 = vmatprep.subr.bf16.mxu0 0
        %4302 = vmatpush1.bf16.msra.mxu0 0
        %4303 = vmatprep.subr.bf16.mxu0 0
        %4304 = vmatpush1.bf16.msra.mxu0 0
        %4305 = vmatprep.subr.bf16.mxu0 0
        %4306 = vmatpush1.bf16.msra.mxu0 0
        %4307 = vmatprep.subr.bf16.mxu0 0
        %4308 = vmatpush1.bf16.msra.mxu0 0
        %4309 = vmatprep.subr.bf16.mxu0 0
        %4310 = vmatpush1.bf16.msra.mxu0 0
        %4311 = vmatprep.subr.bf16.mxu0 0
        %4312 = vmatpush1.bf16.msra.mxu0 0
        %4313 = vmatprep.subr.bf16.mxu0 0
        %4314 = vmatpush1.bf16.msra.mxu0 0
        %4315 = vmatprep.subr.bf16.mxu0 0
        %4316 = vmatpush1.bf16.msra.mxu0 0
        %4317 = vmatprep.subr.bf16.mxu0 0
        %4318 = vmatpush1.bf16.msra.mxu0 0
        %4319 = vmatprep.subr.bf16.mxu0 0
        %4320 = vmatpush1.bf16.msra.mxu0 0
        %4321 = vmatprep.subr.bf16.mxu0 0
        %4322 = vmatpush1.bf16.msra.mxu0 0
        %4323 = vmatprep.subr.bf16.mxu0 0
        %4324 = vmatpush1.bf16.msra.mxu0 0
        %4325 = vmatprep.subr.bf16.mxu0 0
        %4326 = vmatpush1.bf16.msra.mxu0 0
        %4327 = vmatprep.mubr.bf16.mxu0 0
        %4328 = vmatmul.mubr.bf16.gmra.mrb[0].mxu0 %v4293
        %v4329 = vpop.f32.mrb[0].mxu0
        %v4330 = vadd.f32 %v4279, %v4329
        %v4331 = vpop.f32.mrb[0].mxu0
        %v4332 = vpop.f32.mrb[0].mxu0
        %v4333 = vpop.f32.mrb[0].mxu0
        %4334 = vdwg.mxu0
        %v4335 = vpack.c.bf16 %v4330, %v4330
        %v4336 = vld [vmem:[%s4 + $0x150] sm:$0xf]
        %v4337 = vld [vmem:[%s4 + $0x154] sm:$0xf]
        %v4338 = vld [vmem:[%s4 + $0x158] sm:$0xf]
        %v4339 = vld [vmem:[%s4 + $0x15c] sm:$0xf]
        %v4340 = vld [vmem:[%s5 + $0x120] sm:$0x1]
        %v4341 = vlaneseq
        %v4342 = vshrl.u32 %v4341, 7
        %v4343 = vsub.s32 0, %v4342
        %v4344 = vrot.slane %v4340, %v4343
        %v4349 = vunpack.c.l.b16 %v4336
        %v4350 = vunpack.c.l.b16 %v4337
        %v4351 = vunpack.c.l.b16 %v4338
        %v4352 = vunpack.c.l.b16 %v4339
        %v4353 = vpack.c.b16 %v4350, %v4349
        %v4354 = vpack.c.b16 %v4352, %v4351
        %4357 = vmatprep.subr.bf16.mxu0 0
        %4358 = vmatpush1.bf16.msra.mxu0 %v4353
        %4359 = vmatprep.subr.bf16.mxu0 0
        %4360 = vmatpush1.bf16.msra.mxu0 %v4354
        %4361 = vmatprep.subr.bf16.mxu0 0
        %4362 = vmatpush1.bf16.msra.mxu0 0
        %4363 = vmatprep.subr.bf16.mxu0 0
        %4364 = vmatpush1.bf16.msra.mxu0 0
        %4365 = vmatprep.subr.bf16.mxu0 0
        %4366 = vmatpush1.bf16.msra.mxu0 0
        %4367 = vmatprep.subr.bf16.mxu0 0
        %4368 = vmatpush1.bf16.msra.mxu0 0
        %4369 = vmatprep.subr.bf16.mxu0 0
        %4370 = vmatpush1.bf16.msra.mxu0 0
        %4371 = vmatprep.subr.bf16.mxu0 0
        %4372 = vmatpush1.bf16.msra.mxu0 0
        %4373 = vmatprep.subr.bf16.mxu0 0
        %4374 = vmatpush1.bf16.msra.mxu0 0
        %4375 = vmatprep.subr.bf16.mxu0 0
        %4376 = vmatpush1.bf16.msra.mxu0 0
        %4377 = vmatprep.subr.bf16.mxu0 0
        %4378 = vmatpush1.bf16.msra.mxu0 0
        %4379 = vmatprep.subr.bf16.mxu0 0
        %4380 = vmatpush1.bf16.msra.mxu0 0
        %4381 = vmatprep.subr.bf16.mxu0 0
        %4382 = vmatpush1.bf16.msra.mxu0 0
        %4383 = vmatprep.subr.bf16.mxu0 0
        %4384 = vmatpush1.bf16.msra.mxu0 0
        %4385 = vmatprep.subr.bf16.mxu0 0
        %4386 = vmatpush1.bf16.msra.mxu0 0
        %4387 = vmatprep.subr.bf16.mxu0 0
        %4388 = vmatpush1.bf16.msra.mxu0 0
        %4389 = vmatprep.mubr.bf16.mxu0 0
        %4390 = vmatmul.mubr.bf16.gmra.mrb[0].mxu0 %v2884
        %v4391 = vpop.f32.mrb[0].mxu0
        %v4392 = vadd.f32 %v4344, %v4391
        %v4393 = vpop.f32.mrb[0].mxu0
        %v4394 = vpop.f32.mrb[0].mxu0
        %v4395 = vadd.f32 %v4344, %v4394
        %v4396 = vpop.f32.mrb[0].mxu0
        %4397 = vdwg.mxu0
        %v4398 = vpack.c.bf16 %v4395, %v4392
        %v4400 = vsel %vm373, %v4335, 0
        %v4403 = vsel %vm373, %v4398, 0
        %4405 = vmatprep.subr.bf16.mxu0 0
        %4406 = vmatpush1.bf16.xpose.msra.mxu0 %v4403
        %4407 = vmatprep.subr.bf16.mxu0 0
        %4408 = vmatpush1.bf16.xpose.msra.mxu0 0
        %4409 = vmatprep.subr.bf16.mxu0 0
        %4410 = vmatpush1.bf16.xpose.msra.mxu0 0
        %4411 = vmatprep.subr.bf16.mxu0 0
        %4412 = vmatpush1.bf16.xpose.msra.mxu0 0
        %4413 = vmatprep.subr.bf16.mxu0 0
        %4414 = vmatpush1.bf16.xpose.msra.mxu0 0
        %4415 = vmatprep.subr.bf16.mxu0 0
        %4416 = vmatpush1.bf16.xpose.msra.mxu0 0
        %4417 = vmatprep.subr.bf16.mxu0 0
        %4418 = vmatpush1.bf16.xpose.msra.mxu0 0
        %4419 = vmatprep.subr.bf16.mxu0 0
        %4420 = vmatpush1.bf16.xpose.msra.mxu0 0
        %4421 = vmatprep.subr.bf16.mxu0 0
        %4422 = vmatpush1.bf16.xpose.msra.mxu0 0
        %4423 = vmatprep.subr.bf16.mxu0 0
        %4424 = vmatpush1.bf16.xpose.msra.mxu0 0
        %4425 = vmatprep.subr.bf16.mxu0 0
        %4426 = vmatpush1.bf16.xpose.msra.mxu0 0
        %4427 = vmatprep.subr.bf16.mxu0 0
        %4428 = vmatpush1.bf16.xpose.msra.mxu0 0
        %4429 = vmatprep.subr.bf16.mxu0 0
        %4430 = vmatpush1.bf16.xpose.msra.mxu0 0
        %4431 = vmatprep.subr.bf16.mxu0 0
        %4432 = vmatpush1.bf16.xpose.msra.mxu0 0
        %4433 = vmatprep.subr.bf16.mxu0 0
        %4434 = vmatpush1.bf16.xpose.msra.mxu0 0
        %4435 = vmatprep.subr.bf16.mxu0 0
        %4436 = vmatpush1.bf16.xpose.msra.mxu0 0
        %4437 = vmatprep.mubr.bf16.mxu0 0
        %4438 = vmatmul.mubr.bf16.gmra.mrb[0].mxu0 %v4400
        %v4439 = vpop.f32.mrb[0].mxu0
        %v4440 = vadd.f32 0.0, %v4439
        %v4441 = vpop.f32.mrb[0].mxu0
        %v4442 = vpop.f32.mrb[0].mxu0
        %v4443 = vpop.f32.mrb[0].mxu0
        %4444 = vdwg.mxu0
        %v4445 = vmul.f32 %v4440, 0.35355338
        %v4446 = vadd.f32 %v4445, %v427
        %v4447 = vsel %vm431, %v4446, -inf
        %4448 = vmax.xlane.f32.xlu0 %v4447
        %v4449 = vpop.xlane.xlu0 %4448
        %v4450 = vsub.f32 %v4446, %v4449
        %v4451 = vmul.f32 %v4450, 1.442695
        %v4452 = vpow.pop %v4451
        %v4453 = vsel %vm431, %v4452, 0.0
        %4454 = vadd.xlane.f32.xlu0 %v4453
        %v4455 = vpop.xlane.xlu0 %4454
        %v4456 = vrcp.pop %v4455
        %v4457 = vmul.f32 %v4452, %v4456
        %v4458 = vpack.c.bf16 %v4457, %v4457
        %4460 = vrot.lane.b32.xlu0 %v4398, 96
        %v4461 = vpop.permute.xlu0 %4460
        %v4464 = vsel %vm431, %v4458, 0
        %4466 = vmatprep.subr.bf16.mxu0 0
        %4467 = vmatpush1.bf16.msra.mxu0 %v4461
        %4468 = vmatprep.subr.bf16.mxu0 0
        %4469 = vmatpush1.bf16.msra.mxu0 0
        %4470 = vmatprep.subr.bf16.mxu0 0
        %4471 = vmatpush1.bf16.msra.mxu0 0
        %4472 = vmatprep.subr.bf16.mxu0 0
        %4473 = vmatpush1.bf16.msra.mxu0 0
        %4474 = vmatprep.subr.bf16.mxu0 0
        %4475 = vmatpush1.bf16.msra.mxu0 0
        %4476 = vmatprep.subr.bf16.mxu0 0
        %4477 = vmatpush1.bf16.msra.mxu0 0
        %4478 = vmatprep.subr.bf16.mxu0 0
        %4479 = vmatpush1.bf16.msra.mxu0 0
        %4480 = vmatprep.subr.bf16.mxu0 0
        %4481 = vmatpush1.bf16.msra.mxu0 0
        %4482 = vmatprep.subr.bf16.mxu0 0
        %4483 = vmatpush1.bf16.msra.mxu0 0
        %4484 = vmatprep.subr.bf16.mxu0 0
        %4485 = vmatpush1.bf16.msra.mxu0 0
        %4486 = vmatprep.subr.bf16.mxu0 0
        %4487 = vmatpush1.bf16.msra.mxu0 0
        %4488 = vmatprep.subr.bf16.mxu0 0
        %4489 = vmatpush1.bf16.msra.mxu0 0
        %4490 = vmatprep.subr.bf16.mxu0 0
        %4491 = vmatpush1.bf16.msra.mxu0 0
        %4492 = vmatprep.subr.bf16.mxu0 0
        %4493 = vmatpush1.bf16.msra.mxu0 0
        %4494 = vmatprep.subr.bf16.mxu0 0
        %4495 = vmatpush1.bf16.msra.mxu0 0
        %4496 = vmatprep.subr.bf16.mxu0 0
        %4497 = vmatpush1.bf16.msra.mxu0 0
        %4498 = vmatprep.mubr.bf16.mxu0 0
        %4499 = vmatmul.mubr.bf16.gmra.mrb[0].mxu0 %v4464
        %v4500 = vpop.f32.mrb[0].mxu0
        %v4501 = vadd.f32 0.0, %v4500
        %v4502 = vpop.f32.mrb[0].mxu0
        %v4503 = vpop.f32.mrb[0].mxu0
        %v4504 = vpop.f32.mrb[0].mxu0
        %4505 = vdwg.mxu0
        %4507 = vrot.lane.b32.xlu0 %v4335, 120
        %v4508 = vpop.permute.xlu0 %4507
        %4509 = vrot.lane.b32.xlu0 %v4398, 120
        %v4510 = vpop.permute.xlu0 %4509
        %v4512 = vsel %vm373, %v4508, 0
        %v4515 = vsel %vm373, %v4510, 0
        %4517 = vmatprep.subr.bf16.mxu0 0
        %4518 = vmatpush1.bf16.xpose.msra.mxu0 %v4515
        %4519 = vmatprep.subr.bf16.mxu0 0
        %4520 = vmatpush1.bf16.xpose.msra.mxu0 0
        %4521 = vmatprep.subr.bf16.mxu0 0
        %4522 = vmatpush1.bf16.xpose.msra.mxu0 0
        %4523 = vmatprep.subr.bf16.mxu0 0
        %4524 = vmatpush1.bf16.xpose.msra.mxu0 0
        %4525 = vmatprep.subr.bf16.mxu0 0
        %4526 = vmatpush1.bf16.xpose.msra.mxu0 0
        %4527 = vmatprep.subr.bf16.mxu0 0
        %4528 = vmatpush1.bf16.xpose.msra.mxu0 0
        %4529 = vmatprep.subr.bf16.mxu0 0
        %4530 = vmatpush1.bf16.xpose.msra.mxu0 0
        %4531 = vmatprep.subr.bf16.mxu0 0
        %4532 = vmatpush1.bf16.xpose.msra.mxu0 0
        %4533 = vmatprep.subr.bf16.mxu0 0
        %4534 = vmatpush1.bf16.xpose.msra.mxu0 0
        %4535 = vmatprep.subr.bf16.mxu0 0
        %4536 = vmatpush1.bf16.xpose.msra.mxu0 0
        %4537 = vmatprep.subr.bf16.mxu0 0
        %4538 = vmatpush1.bf16.xpose.msra.mxu0 0
        %4539 = vmatprep.subr.bf16.mxu0 0
        %4540 = vmatpush1.bf16.xpose.msra.mxu0 0
        %4541 = vmatprep.subr.bf16.mxu0 0
        %4542 = vmatpush1.bf16.xpose.msra.mxu0 0
        %4543 = vmatprep.subr.bf16.mxu0 0
        %4544 = vmatpush1.bf16.xpose.msra.mxu0 0
        %4545 = vmatprep.subr.bf16.mxu0 0
        %4546 = vmatpush1.bf16.xpose.msra.mxu0 0
        %4547 = vmatprep.subr.bf16.mxu0 0
        %4548 = vmatpush1.bf16.xpose.msra.mxu0 0
        %4549 = vmatprep.mubr.bf16.mxu0 0
        %4550 = vmatmul.mubr.bf16.gmra.mrb[0].mxu0 %v4512
        %v4551 = vpop.f32.mrb[0].mxu0
        %v4552 = vadd.f32 0.0, %v4551
        %v4553 = vpop.f32.mrb[0].mxu0
        %v4554 = vpop.f32.mrb[0].mxu0
        %v4555 = vpop.f32.mrb[0].mxu0
        %4556 = vdwg.mxu0
        %v4557 = vmul.f32 %v4552, 0.35355338
        %v4558 = vadd.f32 %v4557, %v427
        %v4559 = vsel %vm431, %v4558, -inf
        %4560 = vmax.xlane.f32.xlu0 %v4559
        %v4561 = vpop.xlane.xlu0 %4560
        %v4562 = vsub.f32 %v4558, %v4561
        %v4563 = vmul.f32 %v4562, 1.442695
        %v4564 = vpow.pop %v4563
        %v4565 = vsel %vm431, %v4564, 0.0
        %4566 = vadd.xlane.f32.xlu0 %v4565
        %v4567 = vpop.xlane.xlu0 %4566
        %v4568 = vrcp.pop %v4567
        %v4569 = vmul.f32 %v4564, %v4568
        %v4570 = vpack.c.bf16 %v4569, %v4569
        %4571 = vrot.lane.b32.xlu0 %v4398, 88
        %v4572 = vpop.permute.xlu0 %4571
        %v4575 = vsel %vm431, %v4570, 0
        %4577 = vmatprep.subr.bf16.mxu0 0
        %4578 = vmatpush1.bf16.msra.mxu0 %v4572
        %4579 = vmatprep.subr.bf16.mxu0 0
        %4580 = vmatpush1.bf16.msra.mxu0 0
        %4581 = vmatprep.subr.bf16.mxu0 0
        %4582 = vmatpush1.bf16.msra.mxu0 0
        %4583 = vmatprep.subr.bf16.mxu0 0
        %4584 = vmatpush1.bf16.msra.mxu0 0
        %4585 = vmatprep.subr.bf16.mxu0 0
        %4586 = vmatpush1.bf16.msra.mxu0 0
        %4587 = vmatprep.subr.bf16.mxu0 0
        %4588 = vmatpush1.bf16.msra.mxu0 0
        %4589 = vmatprep.subr.bf16.mxu0 0
        %4590 = vmatpush1.bf16.msra.mxu0 0
        %4591 = vmatprep.subr.bf16.mxu0 0
        %4592 = vmatpush1.bf16.msra.mxu0 0
        %4593 = vmatprep.subr.bf16.mxu0 0
        %4594 = vmatpush1.bf16.msra.mxu0 0
        %4595 = vmatprep.subr.bf16.mxu0 0
        %4596 = vmatpush1.bf16.msra.mxu0 0
        %4597 = vmatprep.subr.bf16.mxu0 0
        %4598 = vmatpush1.bf16.msra.mxu0 0
        %4599 = vmatprep.subr.bf16.mxu0 0
        %4600 = vmatpush1.bf16.msra.mxu0 0
        %4601 = vmatprep.subr.bf16.mxu0 0
        %4602 = vmatpush1.bf16.msra.mxu0 0
        %4603 = vmatprep.subr.bf16.mxu0 0
        %4604 = vmatpush1.bf16.msra.mxu0 0
        %4605 = vmatprep.subr.bf16.mxu0 0
        %4606 = vmatpush1.bf16.msra.mxu0 0
        %4607 = vmatprep.subr.bf16.mxu0 0
        %4608 = vmatpush1.bf16.msra.mxu0 0
        %4609 = vmatprep.mubr.bf16.mxu0 0
        %4610 = vmatmul.mubr.bf16.gmra.mrb[0].mxu0 %v4575
        %v4611 = vpop.f32.mrb[0].mxu0
        %v4612 = vadd.f32 0.0, %v4611
        %v4613 = vpop.f32.mrb[0].mxu0
        %v4614 = vpop.f32.mrb[0].mxu0
        %v4615 = vpop.f32.mrb[0].mxu0
        %4616 = vdwg.mxu0
        %4617 = vrot.lane.b32.xlu0 %v4335, 112
        %v4618 = vpop.permute.xlu0 %4617
        %4619 = vrot.lane.b32.xlu0 %v4398, 112
        %v4620 = vpop.permute.xlu0 %4619
        %v4622 = vsel %vm373, %v4618, 0
        %v4625 = vsel %vm373, %v4620, 0
        %4627 = vmatprep.subr.bf16.mxu0 0
        %4628 = vmatpush1.bf16.xpose.msra.mxu0 %v4625
        %4629 = vmatprep.subr.bf16.mxu0 0
        %4630 = vmatpush1.bf16.xpose.msra.mxu0 0
        %4631 = vmatprep.subr.bf16.mxu0 0
        %4632 = vmatpush1.bf16.xpose.msra.mxu0 0
        %4633 = vmatprep.subr.bf16.mxu0 0
        %4634 = vmatpush1.bf16.xpose.msra.mxu0 0
        %4635 = vmatprep.subr.bf16.mxu0 0
        %4636 = vmatpush1.bf16.xpose.msra.mxu0 0
        %4637 = vmatprep.subr.bf16.mxu0 0
        %4638 = vmatpush1.bf16.xpose.msra.mxu0 0
        %4639 = vmatprep.subr.bf16.mxu0 0
        %4640 = vmatpush1.bf16.xpose.msra.mxu0 0
        %4641 = vmatprep.subr.bf16.mxu0 0
        %4642 = vmatpush1.bf16.xpose.msra.mxu0 0
        %4643 = vmatprep.subr.bf16.mxu0 0
        %4644 = vmatpush1.bf16.xpose.msra.mxu0 0
        %4645 = vmatprep.subr.bf16.mxu0 0
        %4646 = vmatpush1.bf16.xpose.msra.mxu0 0
        %4647 = vmatprep.subr.bf16.mxu0 0
        %4648 = vmatpush1.bf16.xpose.msra.mxu0 0
        %4649 = vmatprep.subr.bf16.mxu0 0
        %4650 = vmatpush1.bf16.xpose.msra.mxu0 0
        %4651 = vmatprep.subr.bf16.mxu0 0
        %4652 = vmatpush1.bf16.xpose.msra.mxu0 0
        %4653 = vmatprep.subr.bf16.mxu0 0
        %4654 = vmatpush1.bf16.xpose.msra.mxu0 0
        %4655 = vmatprep.subr.bf16.mxu0 0
        %4656 = vmatpush1.bf16.xpose.msra.mxu0 0
        %4657 = vmatprep.subr.bf16.mxu0 0
        %4658 = vmatpush1.bf16.xpose.msra.mxu0 0
        %4659 = vmatprep.mubr.bf16.mxu0 0
        %4660 = vmatmul.mubr.bf16.gmra.mrb[0].mxu0 %v4622
        %v4661 = vpop.f32.mrb[0].mxu0
        %v4662 = vadd.f32 0.0, %v4661
        %v4663 = vpop.f32.mrb[0].mxu0
        %v4664 = vpop.f32.mrb[0].mxu0
        %v4665 = vpop.f32.mrb[0].mxu0
        %4666 = vdwg.mxu0
        %v4667 = vmul.f32 %v4662, 0.35355338
        %v4668 = vadd.f32 %v4667, %v427
        %v4669 = vsel %vm431, %v4668, -inf
        %4670 = vmax.xlane.f32.xlu0 %v4669
        %v4671 = vpop.xlane.xlu0 %4670
        %v4672 = vsub.f32 %v4668, %v4671
        %v4673 = vmul.f32 %v4672, 1.442695
        %v4674 = vpow.pop %v4673
        %v4675 = vsel %vm431, %v4674, 0.0
        %4676 = vadd.xlane.f32.xlu0 %v4675
        %v4677 = vpop.xlane.xlu0 %4676
        %v4678 = vrcp.pop %v4677
        %v4679 = vmul.f32 %v4674, %v4678
        %v4680 = vpack.c.bf16 %v4679, %v4679
        %4681 = vrot.lane.b32.xlu0 %v4398, 80
        %v4682 = vpop.permute.xlu0 %4681
        %v4685 = vsel %vm431, %v4680, 0
        %4687 = vmatprep.subr.bf16.mxu0 0
        %4688 = vmatpush1.bf16.msra.mxu0 %v4682
        %4689 = vmatprep.subr.bf16.mxu0 0
        %4690 = vmatpush1.bf16.msra.mxu0 0
        %4691 = vmatprep.subr.bf16.mxu0 0
        %4692 = vmatpush1.bf16.msra.mxu0 0
        %4693 = vmatprep.subr.bf16.mxu0 0
        %4694 = vmatpush1.bf16.msra.mxu0 0
        %4695 = vmatprep.subr.bf16.mxu0 0
        %4696 = vmatpush1.bf16.msra.mxu0 0
        %4697 = vmatprep.subr.bf16.mxu0 0
        %4698 = vmatpush1.bf16.msra.mxu0 0
        %4699 = vmatprep.subr.bf16.mxu0 0
        %4700 = vmatpush1.bf16.msra.mxu0 0
        %4701 = vmatprep.subr.bf16.mxu0 0
        %4702 = vmatpush1.bf16.msra.mxu0 0
        %4703 = vmatprep.subr.bf16.mxu0 0
        %4704 = vmatpush1.bf16.msra.mxu0 0
        %4705 = vmatprep.subr.bf16.mxu0 0
        %4706 = vmatpush1.bf16.msra.mxu0 0
        %4707 = vmatprep.subr.bf16.mxu0 0
        %4708 = vmatpush1.bf16.msra.mxu0 0
        %4709 = vmatprep.subr.bf16.mxu0 0
        %4710 = vmatpush1.bf16.msra.mxu0 0
        %4711 = vmatprep.subr.bf16.mxu0 0
        %4712 = vmatpush1.bf16.msra.mxu0 0
        %4713 = vmatprep.subr.bf16.mxu0 0
        %4714 = vmatpush1.bf16.msra.mxu0 0
        %4715 = vmatprep.subr.bf16.mxu0 0
        %4716 = vmatpush1.bf16.msra.mxu0 0
        %4717 = vmatprep.subr.bf16.mxu0 0
        %4718 = vmatpush1.bf16.msra.mxu0 0
        %4719 = vmatprep.mubr.bf16.mxu0 0
        %4720 = vmatmul.mubr.bf16.gmra.mrb[0].mxu0 %v4685
        %v4721 = vpop.f32.mrb[0].mxu0
        %v4722 = vadd.f32 0.0, %v4721
        %v4723 = vpop.f32.mrb[0].mxu0
        %v4724 = vpop.f32.mrb[0].mxu0
        %v4725 = vpop.f32.mrb[0].mxu0
        %4726 = vdwg.mxu0
        %4727 = vrot.lane.b32.xlu0 %v4335, 104
        %v4728 = vpop.permute.xlu0 %4727
        %4729 = vrot.lane.b32.xlu0 %v4398, 104
        %v4730 = vpop.permute.xlu0 %4729
        %v4732 = vsel %vm373, %v4728, 0
        %v4735 = vsel %vm373, %v4730, 0
        %4737 = vmatprep.subr.bf16.mxu0 0
        %4738 = vmatpush1.bf16.xpose.msra.mxu0 %v4735
        %4739 = vmatprep.subr.bf16.mxu0 0
        %4740 = vmatpush1.bf16.xpose.msra.mxu0 0
        %4741 = vmatprep.subr.bf16.mxu0 0
        %4742 = vmatpush1.bf16.xpose.msra.mxu0 0
        %4743 = vmatprep.subr.bf16.mxu0 0
        %4744 = vmatpush1.bf16.xpose.msra.mxu0 0
        %4745 = vmatprep.subr.bf16.mxu0 0
        %4746 = vmatpush1.bf16.xpose.msra.mxu0 0
        %4747 = vmatprep.subr.bf16.mxu0 0
        %4748 = vmatpush1.bf16.xpose.msra.mxu0 0
        %4749 = vmatprep.subr.bf16.mxu0 0
        %4750 = vmatpush1.bf16.xpose.msra.mxu0 0
        %4751 = vmatprep.subr.bf16.mxu0 0
        %4752 = vmatpush1.bf16.xpose.msra.mxu0 0
        %4753 = vmatprep.subr.bf16.mxu0 0
        %4754 = vmatpush1.bf16.xpose.msra.mxu0 0
        %4755 = vmatprep.subr.bf16.mxu0 0
        %4756 = vmatpush1.bf16.xpose.msra.mxu0 0
        %4757 = vmatprep.subr.bf16.mxu0 0
        %4758 = vmatpush1.bf16.xpose.msra.mxu0 0
        %4759 = vmatprep.subr.bf16.mxu0 0
        %4760 = vmatpush1.bf16.xpose.msra.mxu0 0
        %4761 = vmatprep.subr.bf16.mxu0 0
        %4762 = vmatpush1.bf16.xpose.msra.mxu0 0
        %4763 = vmatprep.subr.bf16.mxu0 0
        %4764 = vmatpush1.bf16.xpose.msra.mxu0 0
        %4765 = vmatprep.subr.bf16.mxu0 0
        %4766 = vmatpush1.bf16.xpose.msra.mxu0 0
        %4767 = vmatprep.subr.bf16.mxu0 0
        %4768 = vmatpush1.bf16.xpose.msra.mxu0 0
        %4769 = vmatprep.mubr.bf16.mxu0 0
        %4770 = vmatmul.mubr.bf16.gmra.mrb[0].mxu0 %v4732
        %v4771 = vpop.f32.mrb[0].mxu0
        %v4772 = vadd.f32 0.0, %v4771
        %v4773 = vpop.f32.mrb[0].mxu0
        %v4774 = vpop.f32.mrb[0].mxu0
        %v4775 = vpop.f32.mrb[0].mxu0
        %4776 = vdwg.mxu0
        %v4777 = vmul.f32 %v4772, 0.35355338
        %v4778 = vadd.f32 %v4777, %v427
        %v4779 = vsel %vm431, %v4778, -inf
        %4780 = vmax.xlane.f32.xlu0 %v4779
        %v4781 = vpop.xlane.xlu0 %4780
        %v4782 = vsub.f32 %v4778, %v4781
        %v4783 = vmul.f32 %v4782, 1.442695
        %v4784 = vpow.pop %v4783
        %v4785 = vsel %vm431, %v4784, 0.0
        %4786 = vadd.xlane.f32.xlu0 %v4785
        %v4787 = vpop.xlane.xlu0 %4786
        %v4788 = vrcp.pop %v4787
        %v4789 = vmul.f32 %v4784, %v4788
        %v4790 = vpack.c.bf16 %v4789, %v4789
        %4791 = vrot.lane.b32.xlu0 %v4398, 72
        %v4792 = vpop.permute.xlu0 %4791
        %v4795 = vsel %vm431, %v4790, 0
        %4797 = vmatprep.subr.bf16.mxu0 0
        %4798 = vmatpush1.bf16.msra.mxu0 %v4792
        %4799 = vmatprep.subr.bf16.mxu0 0
        %4800 = vmatpush1.bf16.msra.mxu0 0
        %4801 = vmatprep.subr.bf16.mxu0 0
        %4802 = vmatpush1.bf16.msra.mxu0 0
        %4803 = vmatprep.subr.bf16.mxu0 0
        %4804 = vmatpush1.bf16.msra.mxu0 0
        %4805 = vmatprep.subr.bf16.mxu0 0
        %4806 = vmatpush1.bf16.msra.mxu0 0
        %4807 = vmatprep.subr.bf16.mxu0 0
        %4808 = vmatpush1.bf16.msra.mxu0 0
        %4809 = vmatprep.subr.bf16.mxu0 0
        %4810 = vmatpush1.bf16.msra.mxu0 0
        %4811 = vmatprep.subr.bf16.mxu0 0
        %4812 = vmatpush1.bf16.msra.mxu0 0
        %4813 = vmatprep.subr.bf16.mxu0 0
        %4814 = vmatpush1.bf16.msra.mxu0 0
        %4815 = vmatprep.subr.bf16.mxu0 0
        %4816 = vmatpush1.bf16.msra.mxu0 0
        %4817 = vmatprep.subr.bf16.mxu0 0
        %4818 = vmatpush1.bf16.msra.mxu0 0
        %4819 = vmatprep.subr.bf16.mxu0 0
        %4820 = vmatpush1.bf16.msra.mxu0 0
        %4821 = vmatprep.subr.bf16.mxu0 0
        %4822 = vmatpush1.bf16.msra.mxu0 0
        %4823 = vmatprep.subr.bf16.mxu0 0
        %4824 = vmatpush1.bf16.msra.mxu0 0
        %4825 = vmatprep.subr.bf16.mxu0 0
        %4826 = vmatpush1.bf16.msra.mxu0 0
        %4827 = vmatprep.subr.bf16.mxu0 0
        %4828 = vmatpush1.bf16.msra.mxu0 0
        %4829 = vmatprep.mubr.bf16.mxu0 0
        %4830 = vmatmul.mubr.bf16.gmra.mrb[0].mxu0 %v4795
        %v4831 = vpop.f32.mrb[0].mxu0
        %v4832 = vadd.f32 0.0, %v4831
        %v4833 = vpop.f32.mrb[0].mxu0
        %v4834 = vpop.f32.mrb[0].mxu0
        %v4835 = vpop.f32.mrb[0].mxu0
        %4836 = vdwg.mxu0
        %4838 = vrot.lane.b32.xlu0 %v4612, 8
        %v4839 = vpop.permute.xlu0 %4838
        %4842 = vrot.lane.b32.xlu0 %v4722, 16
        %v4843 = vpop.permute.xlu0 %4842
        %4846 = vrot.lane.b32.xlu0 %v4832, 24
        %v4847 = vpop.permute.xlu0 %4846
        %v4849 = vsel %vm373, %v4501, %v4839
        %v4850 = vsel %vm431, %v4849, %v4843
        %v4851 = vsel %vm905, %v4850, %v4847
        %v4852 = vpack.c.bf16 %v4851, %v4851
        %v4853 = vld [vmem:[%s4 + $0x160] sm:$0xf]
        %v4854 = vld [vmem:[%s4 + $0x164] sm:$0xf]
        %v4855 = vld [vmem:[%s4 + $0x168] sm:$0xf]
        %v4856 = vld [vmem:[%s4 + $0x16c] sm:$0xf]
        %v4857 = vld [vmem:[%s5 + $0x128] sm:$0x1]
        %v4858 = vlaneseq
        %v4859 = vshrl.u32 %v4858, 7
        %v4860 = vsub.s32 0, %v4859
        %v4861 = vrot.slane %v4857, %v4860
        %v4866 = vunpack.c.l.b16 %v4853
        %v4867 = vunpack.c.l.b16 %v4854
        %v4868 = vunpack.c.l.b16 %v4855
        %v4869 = vunpack.c.l.b16 %v4856
        %v4870 = vpack.c.b16 %v4867, %v4866
        %v4871 = vpack.c.b16 %v4869, %v4868
        %v4875 = vsel %vm324, %v4852, 0
        %4877 = vmatprep.subr.bf16.mxu0 0
        %4878 = vmatpush1.bf16.msra.mxu0 %v4870
        %4879 = vmatprep.subr.bf16.mxu0 0
        %4880 = vmatpush1.bf16.msra.mxu0 %v4871
        %4881 = vmatprep.subr.bf16.mxu0 0
        %4882 = vmatpush1.bf16.msra.mxu0 0
        %4883 = vmatprep.subr.bf16.mxu0 0
        %4884 = vmatpush1.bf16.msra.mxu0 0
        %4885 = vmatprep.subr.bf16.mxu0 0
        %4886 = vmatpush1.bf16.msra.mxu0 0
        %4887 = vmatprep.subr.bf16.mxu0 0
        %4888 = vmatpush1.bf16.msra.mxu0 0
        %4889 = vmatprep.subr.bf16.mxu0 0
        %4890 = vmatpush1.bf16.msra.mxu0 0
        %4891 = vmatprep.subr.bf16.mxu0 0
        %4892 = vmatpush1.bf16.msra.mxu0 0
        %4893 = vmatprep.subr.bf16.mxu0 0
        %4894 = vmatpush1.bf16.msra.mxu0 0
        %4895 = vmatprep.subr.bf16.mxu0 0
        %4896 = vmatpush1.bf16.msra.mxu0 0
        %4897 = vmatprep.subr.bf16.mxu0 0
        %4898 = vmatpush1.bf16.msra.mxu0 0
        %4899 = vmatprep.subr.bf16.mxu0 0
        %4900 = vmatpush1.bf16.msra.mxu0 0
        %4901 = vmatprep.subr.bf16.mxu0 0
        %4902 = vmatpush1.bf16.msra.mxu0 0
        %4903 = vmatprep.subr.bf16.mxu0 0
        %4904 = vmatpush1.bf16.msra.mxu0 0
        %4905 = vmatprep.subr.bf16.mxu0 0
        %4906 = vmatpush1.bf16.msra.mxu0 0
        %4907 = vmatprep.subr.bf16.mxu0 0
        %4908 = vmatpush1.bf16.msra.mxu0 0
        %4909 = vmatprep.mubr.bf16.mxu0 0
        %4910 = vmatmul.mubr.bf16.gmra.mrb[0].mxu0 %v4875
        %v4911 = vpop.f32.mrb[0].mxu0
        %v4912 = vadd.f32 %v4861, %v4911
        %v4913 = vpop.f32.mrb[0].mxu0
        %v4914 = vpop.f32.mrb[0].mxu0
        %v4915 = vpop.f32.mrb[0].mxu0
        %4916 = vdwg.mxu0
        %v4917 = vadd.f32 %v4269, %v4912
        %v4918 = vld [vmem:[%s5 + $0x130] sm:$0x1]
        %v4919 = vld [vmem:[%s5 + $0x138] sm:$0x1]
        %v4920 = vsel %vm324, %v4917, 0.0
        %4921 = vadd.xlane.f32.xlu0 %v4920
        %v4922 = vpop.xlane.xlu0 %4921
        %v4923 = vmul.f32 %v4922, %v984
        %v4924 = vmul.f32 %v4917, %v4917
        %v4925 = vsel %vm324, %v4924, 0.0
        %4926 = vadd.xlane.f32.xlu0 %v4925
        %v4927 = vpop.xlane.xlu0 %4926
        %v4928 = vmul.f32 %v4927, %v984
        %v4929 = vmul.f32 %v4923, %v4923
        %v4930 = vsub.f32 %v4928, %v4929
        %v4931 = vsub.f32 %v4917, %v4923
        %v4932 = vadd.f32 %v4930, 1e-05
        %v4933 = vrsqrt.pop %v4932
        %v4934 = vmul.f32 %v4931, %v4933
        %v4935 = vlaneseq
        %v4936 = vshrl.u32 %v4935, 7
        %v4937 = vsub.s32 0, %v4936
        %v4938 = vrot.slane %v4918, %v4937
        %v4939 = vmul.f32 %v4934, %v4938
        %v4940 = vlaneseq
        %v4941 = vshrl.u32 %v4940, 7
        %v4942 = vsub.s32 0, %v4941
        %v4943 = vrot.slane %v4919, %v4942
        %v4944 = vadd.f32 %v4939, %v4943
        %v4945 = vpack.c.bf16 %v4944, %v4944
        %v4946 = vld [vmem:[%s4 + $0x170] sm:$0xf]
        %v4947 = vld [vmem:[%s4 + $0x174] sm:$0xf]
        %v4948 = vld [vmem:[%s4 + $0x178] sm:$0xf]
        %v4949 = vld [vmem:[%s4 + $0x17c] sm:$0xf]
        %v4950 = vld [vmem:[%s5 + $0x140] sm:$0x1]
        %v4951 = vlaneseq
        %v4952 = vshrl.u32 %v4951, 7
        %v4953 = vsub.s32 0, %v4952
        %v4954 = vrot.slane %v4950, %v4953
        %v4959 = vunpack.c.l.b16 %v4946
        %v4960 = vunpack.c.l.b16 %v4947
        %v4961 = vunpack.c.l.b16 %v4948
        %v4962 = vunpack.c.l.b16 %v4949
        %v4963 = vpack.c.b16 %v4960, %v4959
        %v4964 = vpack.c.b16 %v4962, %v4961
        %v4968 = vsel %vm324, %v4945, 0
        %4970 = vmatprep.subr.bf16.mxu0 0
        %4971 = vmatpush1.bf16.msra.mxu0 %v4963
        %4972 = vmatprep.subr.bf16.mxu0 0
        %4973 = vmatpush1.bf16.msra.mxu0 %v4964
        %4974 = vmatprep.subr.bf16.mxu0 0
        %4975 = vmatpush1.bf16.msra.mxu0 0
        %4976 = vmatprep.subr.bf16.mxu0 0
        %4977 = vmatpush1.bf16.msra.mxu0 0
        %4978 = vmatprep.subr.bf16.mxu0 0
        %4979 = vmatpush1.bf16.msra.mxu0 0
        %4980 = vmatprep.subr.bf16.mxu0 0
        %4981 = vmatpush1.bf16.msra.mxu0 0
        %4982 = vmatprep.subr.bf16.mxu0 0
        %4983 = vmatpush1.bf16.msra.mxu0 0
        %4984 = vmatprep.subr.bf16.mxu0 0
        %4985 = vmatpush1.bf16.msra.mxu0 0
        %4986 = vmatprep.subr.bf16.mxu0 0
        %4987 = vmatpush1.bf16.msra.mxu0 0
        %4988 = vmatprep.subr.bf16.mxu0 0
        %4989 = vmatpush1.bf16.msra.mxu0 0
        %4990 = vmatprep.subr.bf16.mxu0 0
        %4991 = vmatpush1.bf16.msra.mxu0 0
        %4992 = vmatprep.subr.bf16.mxu0 0
        %4993 = vmatpush1.bf16.msra.mxu0 0
        %4994 = vmatprep.subr.bf16.mxu0 0
        %4995 = vmatpush1.bf16.msra.mxu0 0
        %4996 = vmatprep.subr.bf16.mxu0 0
        %4997 = vmatpush1.bf16.msra.mxu0 0
        %4998 = vmatprep.subr.bf16.mxu0 0
        %4999 = vmatpush1.bf16.msra.mxu0 0
        %5000 = vmatprep.subr.bf16.mxu0 0
        %5001 = vmatpush1.bf16.msra.mxu0 0
        %5002 = vmatprep.mubr.bf16.mxu0 0
        %5003 = vmatmul.mubr.bf16.gmra.mrb[0].mxu0 %v4968
        %v5004 = vpop.f32.mrb[0].mxu0
        %v5005 = vadd.f32 %v4954, %v5004
        %v5006 = vpop.f32.mrb[0].mxu0
        %v5007 = vpop.f32.mrb[0].mxu0
        %v5008 = vpop.f32.mrb[0].mxu0
        %5009 = vdwg.mxu0
        %v5010 = vmax.f32 %v5005, 0.0
        %v5011 = vpack.c.bf16 %v5010, %v5010
        %v5012 = vld [vmem:[%s4 + $0x180] sm:$0xf]
        %v5013 = vld [vmem:[%s4 + $0x184] sm:$0xf]
        %v5014 = vld [vmem:[%s4 + $0x188] sm:$0xf]
        %v5015 = vld [vmem:[%s4 + $0x18c] sm:$0xf]
        %v5016 = vld [vmem:[%s4 + $0x190] sm:$0xf]
        %v5017 = vld [vmem:[%s4 + $0x194] sm:$0xf]
        %v5018 = vld [vmem:[%s4 + $0x198] sm:$0xf]
        %v5019 = vld [vmem:[%s4 + $0x19c] sm:$0xf]
        %v5020 = vld [vmem:[%s5 + $0x148] sm:$0x1]
        %v5021 = vlaneseq
        %v5022 = vshrl.u32 %v5021, 7
        %v5023 = vsub.s32 0, %v5022
        %v5024 = vrot.slane %v5020, %v5023
        %v5033 = vunpack.c.l.b16 %v5012
        %v5034 = vunpack.c.l.b16 %v5013
        %v5035 = vunpack.c.l.b16 %v5014
        %v5036 = vunpack.c.l.b16 %v5015
        %v5037 = vunpack.c.l.b16 %v5016
        %v5038 = vunpack.c.l.b16 %v5017
        %v5039 = vunpack.c.l.b16 %v5018
        %v5040 = vunpack.c.l.b16 %v5019
        %v5041 = vpack.c.b16 %v5034, %v5033
        %v5042 = vpack.c.b16 %v5036, %v5035
        %v5043 = vpack.c.b16 %v5038, %v5037
        %v5044 = vpack.c.b16 %v5040, %v5039
        %v5050 = vsel %vm1127, %v5011, 0
        %5052 = vmatprep.subr.bf16.mxu0 0
        %5053 = vmatpush1.bf16.msra.mxu0 %v5041
        %5054 = vmatprep.subr.bf16.mxu0 0
        %5055 = vmatpush1.bf16.msra.mxu0 %v5042
        %5056 = vmatprep.subr.bf16.mxu0 0
        %5057 = vmatpush1.bf16.msra.mxu0 %v5043
        %5058 = vmatprep.subr.bf16.mxu0 0
        %5059 = vmatpush1.bf16.msra.mxu0 %v5044
        %5060 = vmatprep.subr.bf16.mxu0 0
        %5061 = vmatpush1.bf16.msra.mxu0 0
        %5062 = vmatprep.subr.bf16.mxu0 0
        %5063 = vmatpush1.bf16.msra.mxu0 0
        %5064 = vmatprep.subr.bf16.mxu0 0
        %5065 = vmatpush1.bf16.msra.mxu0 0
        %5066 = vmatprep.subr.bf16.mxu0 0
        %5067 = vmatpush1.bf16.msra.mxu0 0
        %5068 = vmatprep.subr.bf16.mxu0 0
        %5069 = vmatpush1.bf16.msra.mxu0 0
        %5070 = vmatprep.subr.bf16.mxu0 0
        %5071 = vmatpush1.bf16.msra.mxu0 0
        %5072 = vmatprep.subr.bf16.mxu0 0
        %5073 = vmatpush1.bf16.msra.mxu0 0
        %5074 = vmatprep.subr.bf16.mxu0 0
        %5075 = vmatpush1.bf16.msra.mxu0 0
        %5076 = vmatprep.subr.bf16.mxu0 0
        %5077 = vmatpush1.bf16.msra.mxu0 0
        %5078 = vmatprep.subr.bf16.mxu0 0
        %5079 = vmatpush1.bf16.msra.mxu0 0
        %5080 = vmatprep.subr.bf16.mxu0 0
        %5081 = vmatpush1.bf16.msra.mxu0 0
        %5082 = vmatprep.subr.bf16.mxu0 0
        %5083 = vmatpush1.bf16.msra.mxu0 0
        %5084 = vmatprep.mubr.bf16.mxu0 0
        %5085 = vmatmul.mubr.bf16.gmra.mrb[0].mxu0 %v5050
        %v5086 = vpop.f32.mrb[0].mxu0
        %v5087 = vadd.f32 %v5024, %v5086
        %v5088 = vpop.f32.mrb[0].mxu0
        %v5089 = vpop.f32.mrb[0].mxu0
        %v5090 = vpop.f32.mrb[0].mxu0
        %5091 = vdwg.mxu0
        %v5092 = vadd.f32 %v4944, %v5087
        %v5093 = vld [vmem:[%s5 + $0x150] sm:$0x1]
        %v5094 = vld [vmem:[%s5 + $0x158] sm:$0x1]
        %v5095 = vsel %vm324, %v5092, 0.0
        %5096 = vadd.xlane.f32.xlu0 %v5095
        %v5097 = vpop.xlane.xlu0 %5096
        %v5098 = vmul.f32 %v5097, %v984
        %v5099 = vmul.f32 %v5092, %v5092
        %v5100 = vsel %vm324, %v5099, 0.0
        %5101 = vadd.xlane.f32.xlu0 %v5100
        %v5102 = vpop.xlane.xlu0 %5101
        %v5103 = vmul.f32 %v5102, %v984
        %v5104 = vmul.f32 %v5098, %v5098
        %v5105 = vsub.f32 %v5103, %v5104
        %v5106 = vsub.f32 %v5092, %v5098
        %v5107 = vadd.f32 %v5105, 1e-05
        %v5108 = vrsqrt.pop %v5107
        %v5109 = vmul.f32 %v5106, %v5108
        %v5110 = vlaneseq
        %v5111 = vshrl.u32 %v5110, 7
        %v5112 = vsub.s32 0, %v5111
        %v5113 = vrot.slane %v5093, %v5112
        %v5114 = vmul.f32 %v5109, %v5113
        %v5115 = vlaneseq
        %v5116 = vshrl.u32 %v5115, 7
        %v5117 = vsub.s32 0, %v5116
        %v5118 = vrot.slane %v5094, %v5117
        %v5119 = vadd.f32 %v5114, %v5118
        %v5120 = vld [vmem:[%s5 + $0x160] sm:$0x1]
        %v5121 = vld [vmem:[%s5 + $0x168] sm:$0x1]
        %v5122 = vsel %vm324, %v5119, 0.0
        %5123 = vadd.xlane.f32.xlu0 %v5122
        %v5124 = vpop.xlane.xlu0 %5123
        %v5125 = vmul.f32 %v5124, %v984
        %v5126 = vmul.f32 %v5119, %v5119
        %v5127 = vsel %vm324, %v5126, 0.0
        %5128 = vadd.xlane.f32.xlu0 %v5127
        %v5129 = vpop.xlane.xlu0 %5128
        %v5130 = vmul.f32 %v5129, %v984
        %v5131 = vmul.f32 %v5125, %v5125
        %v5132 = vsub.f32 %v5130, %v5131
        %v5133 = vsub.f32 %v5119, %v5125
        %v5134 = vadd.f32 %v5132, 1e-05
        %v5135 = vrsqrt.pop %v5134
        %v5136 = vmul.f32 %v5133, %v5135
        %v5137 = vlaneseq
        %v5138 = vshrl.u32 %v5137, 7
        %v5139 = vsub.s32 0, %v5138
        %v5140 = vrot.slane %v5120, %v5139
        %v5141 = vmul.f32 %v5136, %v5140
        %v5142 = vlaneseq
        %v5143 = vshrl.u32 %v5142, 7
        %v5144 = vsub.s32 0, %v5143
        %v5145 = vrot.slane %v5121, %v5144
        %v5146 = vadd.f32 %v5141, %v5145
        %v5147 = vpack.c.bf16 %v5146, %v5146
        %v5148 = vld [vmem:[%s4 + $0x1a0] sm:$0xf]
        %v5149 = vld [vmem:[%s4 + $0x1a4] sm:$0xf]
        %v5150 = vld [vmem:[%s4 + $0x1a8] sm:$0xf]
        %v5151 = vld [vmem:[%s4 + $0x1ac] sm:$0xf]
        %v5152 = vld [vmem:[%s5 + $0x170] sm:$0x1]
        %v5153 = vlaneseq
        %v5154 = vshrl.u32 %v5153, 7
        %v5155 = vsub.s32 0, %v5154
        %v5156 = vrot.slane %v5152, %v5155
        %v5161 = vunpack.c.l.b16 %v5148
        %v5162 = vunpack.c.l.b16 %v5149
        %v5163 = vunpack.c.l.b16 %v5150
        %v5164 = vunpack.c.l.b16 %v5151
        %v5165 = vpack.c.b16 %v5162, %v5161
        %v5166 = vpack.c.b16 %v5164, %v5163
        %v5170 = vsel %vm324, %v5147, 0
        %5172 = vmatprep.subr.bf16.mxu0 0
        %5173 = vmatpush1.bf16.msra.mxu0 %v5165
        %5174 = vmatprep.subr.bf16.mxu0 0
        %5175 = vmatpush1.bf16.msra.mxu0 %v5166
        %5176 = vmatprep.subr.bf16.mxu0 0
        %5177 = vmatpush1.bf16.msra.mxu0 0
        %5178 = vmatprep.subr.bf16.mxu0 0
        %5179 = vmatpush1.bf16.msra.mxu0 0
        %5180 = vmatprep.subr.bf16.mxu0 0
        %5181 = vmatpush1.bf16.msra.mxu0 0
        %5182 = vmatprep.subr.bf16.mxu0 0
        %5183 = vmatpush1.bf16.msra.mxu0 0
        %5184 = vmatprep.subr.bf16.mxu0 0
        %5185 = vmatpush1.bf16.msra.mxu0 0
        %5186 = vmatprep.subr.bf16.mxu0 0
        %5187 = vmatpush1.bf16.msra.mxu0 0
        %5188 = vmatprep.subr.bf16.mxu0 0
        %5189 = vmatpush1.bf16.msra.mxu0 0
        %5190 = vmatprep.subr.bf16.mxu0 0
        %5191 = vmatpush1.bf16.msra.mxu0 0
        %5192 = vmatprep.subr.bf16.mxu0 0
        %5193 = vmatpush1.bf16.msra.mxu0 0
        %5194 = vmatprep.subr.bf16.mxu0 0
        %5195 = vmatpush1.bf16.msra.mxu0 0
        %5196 = vmatprep.subr.bf16.mxu0 0
        %5197 = vmatpush1.bf16.msra.mxu0 0
        %5198 = vmatprep.subr.bf16.mxu0 0
        %5199 = vmatpush1.bf16.msra.mxu0 0
        %5200 = vmatprep.subr.bf16.mxu0 0
        %5201 = vmatpush1.bf16.msra.mxu0 0
        %5202 = vmatprep.subr.bf16.mxu0 0
        %5203 = vmatpush1.bf16.msra.mxu0 0
        %5204 = vmatprep.mubr.bf16.mxu0 0
        %5205 = vmatmul.mubr.bf16.gmra.mrb[0].mxu0 %v5170
        %v5206 = vpop.f32.mrb[0].mxu0
        %v5207 = vadd.f32 %v5156, %v5206
        %v5208 = vpop.f32.mrb[0].mxu0
        %v5209 = vpop.f32.mrb[0].mxu0
        %v5210 = vpop.f32.mrb[0].mxu0
        %5211 = vdwg.mxu0
        %5212 = vst [vmem:[%s280] sm:$0xff] %v5207
        %s5213 = sand.u32 %s174, 1
        %s5214 = scalar_lea.sflag [#allocation3], %s5213
        %s5215 = sand.u32 %s174, 1
        %s5216 = smul.addr %s5215, 8
        %s5217 = scalar_lea.vmem [#allocation2], %s5216
        // Predicated region
        $region45: #{p2w_forward.1} parent=43 // pred_check
          %p5218 = pneg %p184
        $region46: #{p2w_forward.1} parent=43 // pred_check_branch
          %5220 = sbr.rel (%p5218) target = $region48
        $region47: #{p2w_forward.1} parent=43 // pred_region
          %s5222 = ssub.s32 128, 128
          %5223 = vsyncadd %s5214, %s5222
          %s5224 = smul.addr %s20, 128
          %s5225 = scalar_lea.hbm %s6, %s5224
          %s5227 = sshll.u32 %s5217, 4
          %s5228 = int_to_ptr.vmem [resolvable:$true] %s5227
          %5230 = dma.vmem_to_hbm [thread:$0]  %s5228, 128, %s5225, %s5214
        $region48: #{p2w_forward.1} parent=43 // pred_fallthru
          _
      $region44: #{p2w_forward.1} parent=5 // pred_fallthru
        _
      %p5231 = scmp.le.s32.totalorder 2, %s15
      // Predicated region
      $region49: #{p2w_forward.1} parent=5 // pred_check
        %p5232 = pneg %p5231
      $region50: #{p2w_forward.1} parent=5 // pred_check_branch
        %5234 = sbr.rel (%p5232) target = $region52
      $region51: #{p2w_forward.1} parent=5 // pred_region
        %s5235 = ssub.s32 %s15, 2
        // Predicated region
        $region53: #{p2w_forward.1} parent=51 // pred_check
          %p5236 = pneg %p190
        $region54: #{p2w_forward.1} parent=51 // pred_check_branch
          %5238 = sbr.rel (%p5236) target = $region56
        $region55: #{p2w_forward.1} parent=51 // pred_region
          %s5239 = sand.u32 %s175, 1
          %s5240 = scalar_lea.sflag [#allocation3], %s5239
          %s5241 = sand.u32 %s175, 1
          %s5242 = smul.addr %s5241, 8
          %s5243 = scalar_lea.vmem [#allocation2], %s5242
          %5244 = dma.done %s5240, 128
        $region56: #{p2w_forward.1} parent=51 // pred_fallthru
          _
      $region52: #{p2w_forward.1} parent=5 // pred_fallthru
        _
    $region6: #{p2w_forward.1} parent=1 // loop_footer
      %s19 = sadd.s32 1, %s15
    $region7: #{p2w_forward.1} parent=1 // loop_footer_branch
      %14 = sbr.rel target = $region3
    $region8: #{p2w_forward.1} parent=1 // loop_exit
      _
    %5245 = vsyncpa [#allocation3], 1
    %s5246 = scalar_lea.sflag [#allocation3], 1
    %5247 = vsyncpa %s5246, 1

</llo_original>
